<compile_context>
chip_gen: v7x
topology: tpu7x:2x2x1
jax: 0.10.0
libtpu: 0.0.40
codegen_flags: <defaults>
</compile_context>

<pallas_src>
import functools

import jax
import jax.numpy as jnp
from jax.experimental import pallas as pl
from jax.experimental.pallas import tpu as pltpu


def _round_up(x, m):
    return ((x + m - 1) // m) * m


def _cond_gen_kernel(lab_ref, z_ref, mean_tbl_ref, dev_tbl_ref,
                     w1_ref, b1_ref, w2_ref, b2_ref, w3_ref, b3_ref,
                     out_ref, *, num_labels):
    """Fused label->(mean,dev) select + conditioning + 3-layer MLP for one batch tile."""
    tb = z_ref.shape[0]
    zdim = z_ref.shape[1]

    # ---- embedding lookup via exact unrolled select (num_labels is tiny) ----
    lab = lab_ref[...]                              # [TB, 1] int32
    mean_tbl = mean_tbl_ref[...]                    # [L_pad, Z] f32 (resident)
    dev_tbl = dev_tbl_ref[...]                      # [L_pad, Z] f32 (resident)
    mean = jnp.zeros((tb, zdim), jnp.float32)
    dev = jnp.zeros((tb, zdim), jnp.float32)
    for lbl in range(num_labels):                   # static unroll (VPU selects, exact)
        sel = (lab == lbl).astype(jnp.float32)      # [TB, 1]
        mean = mean + sel * mean_tbl[lbl:lbl + 1, :]
        dev = dev + sel * dev_tbl[lbl:lbl + 1, :]

    # ---- conditioning: z' = mean + z * dev  (f32, VPU) ----
    zc = mean + z_ref[...] * dev

    # ---- layer 1: relu(zc @ W1 + b1)   (bf16 operands, f32 MXU accumulation) ----
    h = jnp.dot(zc.astype(jnp.bfloat16), w1_ref[...],
                preferred_element_type=jnp.float32) + b1_ref[...]
    h = jnp.maximum(h, 0.0)

    # ---- layer 2: relu(h @ W2 + b2) ----
    h = jnp.dot(h.astype(jnp.bfloat16), w2_ref[...],
                preferred_element_type=jnp.float32) + b2_ref[...]
    h = jnp.maximum(h, 0.0)

    # ---- layer 3: softplus(h @ W3 + b3) ----
    x = jnp.dot(h.astype(jnp.bfloat16), w3_ref[...],
                preferred_element_type=jnp.float32) + b3_ref[...]
    # softplus(x) = log(1 + exp(x)) — stable form via logaddexp (EUP)
    out_ref[...] = jnp.logaddexp(x, 0.0).astype(out_ref.dtype)


@functools.partial(jax.jit, static_argnames=("tile_b",))
def conditional_generator_forward(z, labels, params, *, tile_b=256):
    """z: [B, z_dim] f32, labels: [B] int.  Returns [B, output_dim] f32 (eval-mode forward)."""
    B, Z = z.shape
    H2 = params["W1"].shape[1]          # hidden_dim * 2
    H = params["W2"].shape[1]           # hidden_dim
    O = params["W3"].shape[1]           # output_dim
    L = params["mean_embedding"].shape[0]

    # ---- batch tiling: large MXU-filling tiles, cdiv grid, pad the tail ----
    tile_b = min(tile_b, _round_up(B, 8))
    n_tiles = pl.cdiv(B, tile_b)
    b_pad = n_tiles * tile_b

    z_p = jnp.pad(z.astype(jnp.float32), ((0, b_pad - B), (0, 0)))
    lab_p = jnp.pad(labels.astype(jnp.int32), (0, b_pad - B)).reshape(b_pad, 1)

    # ---- parameters: bf16 weights (f32 accumulation in-kernel), f32 biases/tables ----
    w1 = params["W1"].astype(jnp.bfloat16)
    w2 = params["W2"].astype(jnp.bfloat16)
    w3 = params["W3"].astype(jnp.bfloat16)
    b1 = params["b1"].reshape(1, H2).astype(jnp.float32)
    b2 = params["b2"].reshape(1, H).astype(jnp.float32)
    b3 = params["b3"].reshape(1, O).astype(jnp.float32)

    l_pad = _round_up(L, 8)             # sublane-friendly embedding tables
    mean_tbl = jnp.pad(params["mean_embedding"].astype(jnp.float32),
                       ((0, l_pad - L), (0, 0)))
    dev_tbl = jnp.pad(params["dev_embedding"].astype(jnp.float32),
                      ((0, l_pad - L), (0, 0)))

    # ---- explicit VMEM budget (double-buffered operands + activation headroom) ----
    weight_bytes = 2 * (Z * H2 + H2 * H + H * O)          # bf16
    bias_bytes = 4 * (H2 + H + O)
    table_bytes = 4 * 2 * l_pad * Z
    io_tile_bytes = 4 * tile_b * (Z + 1 + O)
    act_bytes = 4 * tile_b * (2 * Z + H2 + H + O) + 2 * tile_b * (Z + H2 + H)
    vmem_needed = 2 * (weight_bytes + bias_bytes + table_bytes + io_tile_bytes) + act_bytes
    vmem_limit = int(min(max(2 * vmem_needed, 32 * 1024 * 1024), 64 * 1024 * 1024))

    cost = pl.CostEstimate(
        flops=int(2 * b_pad * (Z * H2 + H2 * H + H * O) + 4 * b_pad * L * Z + 2 * b_pad * Z),
        transcendentals=int(2 * b_pad * O),                # exp + log in softplus
        bytes_accessed=int(4 * b_pad * Z + 4 * b_pad + weight_bytes + bias_bytes
                           + table_bytes + 4 * b_pad * O),
    )

    kernel = functools.partial(_cond_gen_kernel, num_labels=L)

    out = pl.pallas_call(
        kernel,
        out_shape=jax.ShapeDtypeStruct((b_pad, O), jnp.float32),
        grid_spec=pltpu.PrefetchScalarGridSpec(
            num_scalar_prefetch=0,
            grid=(n_tiles,),
            in_specs=[
                pl.BlockSpec((tile_b, 1), lambda i: (i, 0)),    # labels (tiny stream)
                pl.BlockSpec((tile_b, Z), lambda i: (i, 0)),    # z
                pl.BlockSpec((l_pad, Z), lambda i: (0, 0)),     # mean table (resident)
                pl.BlockSpec((l_pad, Z), lambda i: (0, 0)),     # dev table  (resident)
                pl.BlockSpec((Z, H2), lambda i: (0, 0)),        # W1 (resident)
                pl.BlockSpec((1, H2), lambda i: (0, 0)),        # b1
                pl.BlockSpec((H2, H), lambda i: (0, 0)),        # W2
                pl.BlockSpec((1, H), lambda i: (0, 0)),         # b2
                pl.BlockSpec((H, O), lambda i: (0, 0)),         # W3
                pl.BlockSpec((1, O), lambda i: (0, 0)),         # b3
            ],
            out_specs=pl.BlockSpec((tile_b, O), lambda i: (i, 0)),
        ),
        compiler_params=pltpu.CompilerParams(
            dimension_semantics=("parallel",),      # batch tiles independent -> megacore on v7x
            vmem_limit_bytes=vmem_limit,
        ),
        cost_estimate=cost,
    )(lab_p, z_p, mean_tbl, dev_tbl, w1, b1, w2, b2, w3, b3)

    return out[:B]


def init_params(key, z_dim, hidden_dim, output_dim, num_labels):
    """Deterministic init mirroring the PyTorch __init__ (shapes + init style)."""
    keys = jax.random.split(key, 8)

    def xavier_uniform(k, fan_in, fan_out):
        limit = jnp.sqrt(6.0 / (fan_in + fan_out))
        return jax.random.uniform(k, (fan_in, fan_out), jnp.float32, -limit, limit)

    return {
        "mean_embedding": 0.02 * jax.random.normal(keys[0], (num_labels, z_dim), jnp.float32),
        "dev_embedding": 1.0 + 0.02 * jax.random.normal(keys[1], (num_labels, z_dim), jnp.float32),
        "W1": xavier_uniform(keys[2], z_dim, hidden_dim * 2),
        "b1": jax.random.normal(keys[3], (hidden_dim * 2,), jnp.float32),
        "W2": xavier_uniform(keys[4], hidden_dim * 2, hidden_dim),
        "b2": jax.random.normal(keys[5], (hidden_dim,), jnp.float32),
        "W3": xavier_uniform(keys[6], hidden_dim, output_dim),
        "b3": jax.random.normal(keys[7], (output_dim,), jnp.float32),
    }


def _reference_forward_f32(z, labels, params):
    """Pure-JAX f32 reference (PyTorch eval-mode semantics)."""
    hi = jax.lax.Precision.HIGHEST
    mean = params["mean_embedding"][labels]
    dev = params["dev_embedding"][labels]
    zc = mean + z * dev
    x = jnp.maximum(jnp.dot(zc, params["W1"], precision=hi) + params["b1"], 0.0)
    x = jnp.maximum(jnp.dot(x, params["W2"], precision=hi) + params["b2"], 0.0)
    x = jnp.dot(x, params["W3"], precision=hi) + params["b3"]
    return jnp.logaddexp(x, 0.0)


def _reference_forward_bf16(z, labels, params):
    """Reference mirroring the kernel's bf16-operand / f32-accumulation matmul numerics."""
    mean = params["mean_embedding"][labels]
    dev = params["dev_embedding"][labels]
    zc = mean + z * dev
    x = jnp.dot(zc.astype(jnp.bfloat16), params["W1"].astype(jnp.bfloat16),
                preferred_element_type=jnp.float32) + params["b1"]
    x = jnp.maximum(x, 0.0)
    x = jnp.dot(x.astype(jnp.bfloat16), params["W2"].astype(jnp.bfloat16),
                preferred_element_type=jnp.float32) + params["b2"]
    x = jnp.maximum(x, 0.0)
    x = jnp.dot(x.astype(jnp.bfloat16), params["W3"].astype(jnp.bfloat16),
                preferred_element_type=jnp.float32) + params["b3"]
    return jnp.logaddexp(x, 0.0)


if __name__ == "__main__":
    # Shapes consistent with the module (z_dim = hidden_dim = 256), kept small:
    # output_dim=512 stands in for len(df_cite.columns); BATCH=384 is deliberately
    # NOT a multiple of the 256-row tile so the cdiv/padding path and a 2-step grid
    # are both exercised.
    Z_DIM = 256
    HIDDEN = 256
    OUTPUT_DIM = 512
    NUM_LABELS = 4
    BATCH = 384

    key = jax.random.PRNGKey(0)
    k_params, k_z, k_lab = jax.random.split(key, 3)

    params = init_params(k_params, Z_DIM, HIDDEN, OUTPUT_DIM, NUM_LABELS)
    z = jax.random.normal(k_z, (BATCH, Z_DIM), jnp.float32)
    labels = jax.random.randint(k_lab, (BATCH,), 0, NUM_LABELS, jnp.int32)

    out = conditional_generator_forward(z, labels, params)
    out = jax.block_until_ready(out)

    assert out.shape == (BATCH, OUTPUT_DIM)

    ref_bf16 = _reference_forward_bf16(z, labels, params)   # matches kernel numerics
    ref_f32 = _reference_forward_f32(z, labels, params)     # module semantics, loose tol
    assert jnp.allclose(out, ref_bf16, atol=1e-2, rtol=1e-2), \
        float(jnp.max(jnp.abs(out - ref_bf16)))
    assert jnp.allclose(out, ref_f32, atol=1e-1, rtol=1e-1), \
        float(jnp.max(jnp.abs(out - ref_f32)))

    print("KERNEL_OK")
</pallas_src>

<mosaic_0001>
module attributes {stable_mosaic.version = 11 : i64} {
  func.func @_cond_gen_kernel(%arg0: i32, %arg1: memref<256x1xi32, #tpu.memory_space<vmem>>, %arg2: memref<256x256xf32, #tpu.memory_space<vmem>>, %arg3: memref<8x256xf32, #tpu.memory_space<vmem>>, %arg4: memref<8x256xf32, #tpu.memory_space<vmem>>, %arg5: memref<256x512xbf16, #tpu.memory_space<vmem>>, %arg6: memref<1x512xf32, #tpu.memory_space<vmem>>, %arg7: memref<512x256xbf16, #tpu.memory_space<vmem>>, %arg8: memref<1x256xf32, #tpu.memory_space<vmem>>, %arg9: memref<256x512xbf16, #tpu.memory_space<vmem>>, %arg10: memref<1x512xf32, #tpu.memory_space<vmem>>, %arg11: memref<256x512xf32, #tpu.memory_space<vmem>>) attributes {dimension_semantics = [#tpu.dimension_semantics<parallel>], iteration_bounds = array<i64: 2>, scalar_prefetch = 0 : i64, scratch_operands = 0 : i64, tpu.core_type = #tpu.core_type<tc>, window_params = [{transform_indices = @transform_0, window_bounds = array<i64: 256, 1>}, {transform_indices = @transform_1, window_bounds = array<i64: 256, 256>}, {pipeline_mode = #tpu.pipeline_mode<synchronous>, transform_indices = @transform_2, window_bounds = array<i64: 8, 256>}, {pipeline_mode = #tpu.pipeline_mode<synchronous>, transform_indices = @transform_3, window_bounds = array<i64: 8, 256>}, {pipeline_mode = #tpu.pipeline_mode<synchronous>, transform_indices = @transform_4, window_bounds = array<i64: 256, 512>}, {pipeline_mode = #tpu.pipeline_mode<synchronous>, transform_indices = @transform_5, window_bounds = array<i64: 1, 512>}, {pipeline_mode = #tpu.pipeline_mode<synchronous>, transform_indices = @transform_6, window_bounds = array<i64: 512, 256>}, {pipeline_mode = #tpu.pipeline_mode<synchronous>, transform_indices = @transform_7, window_bounds = array<i64: 1, 256>}, {pipeline_mode = #tpu.pipeline_mode<synchronous>, transform_indices = @transform_8, window_bounds = array<i64: 256, 512>}, {pipeline_mode = #tpu.pipeline_mode<synchronous>, transform_indices = @transform_9, window_bounds = array<i64: 1, 512>}, {transform_indices = @transform_10, window_bounds = array<i64: 256, 512>}]} {
    %c0 = arith.constant 0 : index
    %c0_0 = arith.constant 0 : index
    %0 = vector.load %arg1[%c0, %c0_0] : memref<256x1xi32, #tpu.memory_space<vmem>>, vector<256x1xi32>
    %c0_1 = arith.constant 0 : index
    %c0_2 = arith.constant 0 : index
    %1 = vector.load %arg3[%c0_1, %c0_2] : memref<8x256xf32, #tpu.memory_space<vmem>>, vector<8x256xf32>
    %c0_3 = arith.constant 0 : index
    %c0_4 = arith.constant 0 : index
    %2 = vector.load %arg4[%c0_3, %c0_4] : memref<8x256xf32, #tpu.memory_space<vmem>>, vector<8x256xf32>
    %cst = arith.constant 0.000000e+00 : f32
    %3 = vector.broadcast %cst : f32 to vector<256x256xf32>
    %cst_5 = arith.constant 0.000000e+00 : f32
    %4 = vector.broadcast %cst_5 : f32 to vector<256x256xf32>
    %c0_i32 = arith.constant 0 : i32
    %5 = vector.broadcast %c0_i32 : i32 to vector<256x1xi32>
    %6 = arith.cmpi eq, %0, %5 : vector<256x1xi32>
    %7 = arith.extui %6 : vector<256x1xi1> to vector<256x1xi32>
    %8 = arith.sitofp %7 : vector<256x1xi32> to vector<256x1xf32>
    %9 = vector.extract_strided_slice %1 {offsets = [0, 0], sizes = [1, 256], strides = [1, 1]} : vector<8x256xf32> to vector<1x256xf32>
    %10 = vector.broadcast %8 : vector<256x1xf32> to vector<256x256xf32>
    %11 = vector.broadcast %9 : vector<1x256xf32> to vector<256x256xf32>
    %12 = arith.mulf %10, %11 : vector<256x256xf32>
    %13 = arith.addf %3, %12 : vector<256x256xf32>
    %14 = vector.extract_strided_slice %2 {offsets = [0, 0], sizes = [1, 256], strides = [1, 1]} : vector<8x256xf32> to vector<1x256xf32>
    %15 = vector.broadcast %8 : vector<256x1xf32> to vector<256x256xf32>
    %16 = vector.broadcast %14 : vector<1x256xf32> to vector<256x256xf32>
    %17 = arith.mulf %15, %16 : vector<256x256xf32>
    %18 = arith.addf %4, %17 : vector<256x256xf32>
    %c1_i32 = arith.constant 1 : i32
    %19 = vector.broadcast %c1_i32 : i32 to vector<256x1xi32>
    %20 = arith.cmpi eq, %0, %19 : vector<256x1xi32>
    %21 = arith.extui %20 : vector<256x1xi1> to vector<256x1xi32>
    %22 = arith.sitofp %21 : vector<256x1xi32> to vector<256x1xf32>
    %23 = vector.extract_strided_slice %1 {offsets = [1, 0], sizes = [1, 256], strides = [1, 1]} : vector<8x256xf32> to vector<1x256xf32>
    %24 = vector.broadcast %22 : vector<256x1xf32> to vector<256x256xf32>
    %25 = vector.broadcast %23 : vector<1x256xf32> to vector<256x256xf32>
    %26 = arith.mulf %24, %25 : vector<256x256xf32>
    %27 = arith.addf %13, %26 : vector<256x256xf32>
    %28 = vector.extract_strided_slice %2 {offsets = [1, 0], sizes = [1, 256], strides = [1, 1]} : vector<8x256xf32> to vector<1x256xf32>
    %29 = vector.broadcast %22 : vector<256x1xf32> to vector<256x256xf32>
    %30 = vector.broadcast %28 : vector<1x256xf32> to vector<256x256xf32>
    %31 = arith.mulf %29, %30 : vector<256x256xf32>
    %32 = arith.addf %18, %31 : vector<256x256xf32>
    %c2_i32 = arith.constant 2 : i32
    %33 = vector.broadcast %c2_i32 : i32 to vector<256x1xi32>
    %34 = arith.cmpi eq, %0, %33 : vector<256x1xi32>
    %35 = arith.extui %34 : vector<256x1xi1> to vector<256x1xi32>
    %36 = arith.sitofp %35 : vector<256x1xi32> to vector<256x1xf32>
    %37 = vector.extract_strided_slice %1 {offsets = [2, 0], sizes = [1, 256], strides = [1, 1]} : vector<8x256xf32> to vector<1x256xf32>
    %38 = vector.broadcast %36 : vector<256x1xf32> to vector<256x256xf32>
    %39 = vector.broadcast %37 : vector<1x256xf32> to vector<256x256xf32>
    %40 = arith.mulf %38, %39 : vector<256x256xf32>
    %41 = arith.addf %27, %40 : vector<256x256xf32>
    %42 = vector.extract_strided_slice %2 {offsets = [2, 0], sizes = [1, 256], strides = [1, 1]} : vector<8x256xf32> to vector<1x256xf32>
    %43 = vector.broadcast %36 : vector<256x1xf32> to vector<256x256xf32>
    %44 = vector.broadcast %42 : vector<1x256xf32> to vector<256x256xf32>
    %45 = arith.mulf %43, %44 : vector<256x256xf32>
    %46 = arith.addf %32, %45 : vector<256x256xf32>
    %c3_i32 = arith.constant 3 : i32
    %47 = vector.broadcast %c3_i32 : i32 to vector<256x1xi32>
    %48 = arith.cmpi eq, %0, %47 : vector<256x1xi32>
    %49 = arith.extui %48 : vector<256x1xi1> to vector<256x1xi32>
    %50 = arith.sitofp %49 : vector<256x1xi32> to vector<256x1xf32>
    %51 = vector.extract_strided_slice %1 {offsets = [3, 0], sizes = [1, 256], strides = [1, 1]} : vector<8x256xf32> to vector<1x256xf32>
    %52 = vector.broadcast %50 : vector<256x1xf32> to vector<256x256xf32>
    %53 = vector.broadcast %51 : vector<1x256xf32> to vector<256x256xf32>
    %54 = arith.mulf %52, %53 : vector<256x256xf32>
    %55 = arith.addf %41, %54 : vector<256x256xf32>
    %56 = vector.extract_strided_slice %2 {offsets = [3, 0], sizes = [1, 256], strides = [1, 1]} : vector<8x256xf32> to vector<1x256xf32>
    %57 = vector.broadcast %50 : vector<256x1xf32> to vector<256x256xf32>
    %58 = vector.broadcast %56 : vector<1x256xf32> to vector<256x256xf32>
    %59 = arith.mulf %57, %58 : vector<256x256xf32>
    %60 = arith.addf %46, %59 : vector<256x256xf32>
    %c0_6 = arith.constant 0 : index
    %c0_7 = arith.constant 0 : index
    %61 = vector.load %arg2[%c0_6, %c0_7] : memref<256x256xf32, #tpu.memory_space<vmem>>, vector<256x256xf32>
    %62 = arith.mulf %61, %60 : vector<256x256xf32>
    %63 = arith.addf %55, %62 : vector<256x256xf32>
    %64 = arith.truncf %63 : vector<256x256xf32> to vector<256x256xbf16>
    %c0_8 = arith.constant 0 : index
    %c0_9 = arith.constant 0 : index
    %65 = vector.load %arg5[%c0_8, %c0_9] : memref<256x512xbf16, #tpu.memory_space<vmem>>, vector<256x512xbf16>
    %cst_10 = arith.constant dense<0.000000e+00> : vector<256x512xf32>
    %66 = tpu.matmul %64, %65, %cst_10 {dimension_numbers = #tpu.dot_dimension_numbers<[1], [0], [0], [1], [0, 0, 1, 1], [], []>} : vector<256x256xbf16>, vector<256x512xbf16>, vector<256x512xf32> -> vector<256x512xf32>
    %c0_11 = arith.constant 0 : index
    %c0_12 = arith.constant 0 : index
    %67 = vector.load %arg6[%c0_11, %c0_12] : memref<1x512xf32, #tpu.memory_space<vmem>>, vector<1x512xf32>
    %68 = vector.broadcast %67 : vector<1x512xf32> to vector<256x512xf32>
    %69 = arith.addf %66, %68 : vector<256x512xf32>
    %cst_13 = arith.constant 0.000000e+00 : f32
    %70 = vector.broadcast %cst_13 : f32 to vector<256x512xf32>
    %71 = arith.maximumf %69, %70 : vector<256x512xf32>
    %72 = arith.truncf %71 : vector<256x512xf32> to vector<256x512xbf16>
    %c0_14 = arith.constant 0 : index
    %c0_15 = arith.constant 0 : index
    %73 = vector.load %arg7[%c0_14, %c0_15] : memref<512x256xbf16, #tpu.memory_space<vmem>>, vector<512x256xbf16>
    %cst_16 = arith.constant dense<0.000000e+00> : vector<256x256xf32>
    %74 = tpu.matmul %72, %73, %cst_16 {dimension_numbers = #tpu.dot_dimension_numbers<[1], [0], [0], [1], [0, 0, 1, 1], [], []>} : vector<256x512xbf16>, vector<512x256xbf16>, vector<256x256xf32> -> vector<256x256xf32>
    %c0_17 = arith.constant 0 : index
    %c0_18 = arith.constant 0 : index
    %75 = vector.load %arg8[%c0_17, %c0_18] : memref<1x256xf32, #tpu.memory_space<vmem>>, vector<1x256xf32>
    %76 = vector.broadcast %75 : vector<1x256xf32> to vector<256x256xf32>
    %77 = arith.addf %74, %76 : vector<256x256xf32>
    %cst_19 = arith.constant 0.000000e+00 : f32
    %78 = vector.broadcast %cst_19 : f32 to vector<256x256xf32>
    %79 = arith.maximumf %77, %78 : vector<256x256xf32>
    %80 = arith.truncf %79 : vector<256x256xf32> to vector<256x256xbf16>
    %c0_20 = arith.constant 0 : index
    %c0_21 = arith.constant 0 : index
    %81 = vector.load %arg9[%c0_20, %c0_21] : memref<256x512xbf16, #tpu.memory_space<vmem>>, vector<256x512xbf16>
    %cst_22 = arith.constant dense<0.000000e+00> : vector<256x512xf32>
    %82 = tpu.matmul %80, %81, %cst_22 {dimension_numbers = #tpu.dot_dimension_numbers<[1], [0], [0], [1], [0, 0, 1, 1], [], []>} : vector<256x256xbf16>, vector<256x512xbf16>, vector<256x512xf32> -> vector<256x512xf32>
    %c0_23 = arith.constant 0 : index
    %c0_24 = arith.constant 0 : index
    %83 = vector.load %arg10[%c0_23, %c0_24] : memref<1x512xf32, #tpu.memory_space<vmem>>, vector<1x512xf32>
    %84 = vector.broadcast %83 : vector<1x512xf32> to vector<256x512xf32>
    %85 = arith.addf %82, %84 : vector<256x512xf32>
    %cst_25 = arith.constant 0.000000e+00 : f32
    %86 = vector.broadcast %cst_25 : f32 to vector<256x512xf32>
    %87 = arith.maximumf %85, %86 : vector<256x512xf32>
    %88 = vector.broadcast %cst_25 : f32 to vector<256x512xf32>
    %89 = arith.subf %85, %88 : vector<256x512xf32>
    %90 = arith.cmpf one, %89, %89 : vector<256x512xf32>
    %91 = vector.broadcast %cst_25 : f32 to vector<256x512xf32>
    %92 = arith.addf %85, %91 : vector<256x512xf32>
    %93 = math.absf %89 : vector<256x512xf32>
    %cst_26 = arith.constant 0.000000e+00 : f32
    %94 = vector.broadcast %cst_26 : f32 to vector<256x512xf32>
    %95 = arith.subf %94, %93 : vector<256x512xf32>
    %96 = math.exp %95 : vector<256x512xf32>
    %97 = math.log1p %96 : vector<256x512xf32>
    %98 = arith.addf %87, %97 : vector<256x512xf32>
    %99 = arith.select %90, %92, %98 : vector<256x512xi1>, vector<256x512xf32>
    %c0_27 = arith.constant 0 : index
    %c0_28 = arith.constant 0 : index
    %100 = vector.load %arg11[%c0_27, %c0_28] : memref<256x512xf32, #tpu.memory_space<vmem>>, vector<256x512xf32>
    tpu.vector_store %arg11[%c0_27, %c0_28], %99 {strides = array<i32>} : memref<256x512xf32, #tpu.memory_space<vmem>>, vector<256x512xf32>,
    return
  }
  func.func @transform_0(%arg0: i32) -> (i32, i32) {
    %c0_i32 = arith.constant 0 : i32
    %c0_i32_0 = arith.constant 0 : i32
    return %arg0, %c0_i32 : i32, i32
  }
  func.func @transform_1(%arg0: i32) -> (i32, i32) {
    %c0_i32 = arith.constant 0 : i32
    %c0_i32_0 = arith.constant 0 : i32
    return %arg0, %c0_i32 : i32, i32
  }
  func.func @transform_2(%arg0: i32) -> (i32, i32) {
    %c0_i32 = arith.constant 0 : i32
    %c0_i32_0 = arith.constant 0 : i32
    %c0_i32_1 = arith.constant 0 : i32
    return %c0_i32, %c0_i32_0 : i32, i32
  }
  func.func @transform_3(%arg0: i32) -> (i32, i32) {
    %c0_i32 = arith.constant 0 : i32
    %c0_i32_0 = arith.constant 0 : i32
    %c0_i32_1 = arith.constant 0 : i32
    return %c0_i32, %c0_i32_0 : i32, i32
  }
  func.func @transform_4(%arg0: i32) -> (i32, i32) {
    %c0_i32 = arith.constant 0 : i32
    %c0_i32_0 = arith.constant 0 : i32
    %c0_i32_1 = arith.constant 0 : i32
    return %c0_i32, %c0_i32_0 : i32, i32
  }
  func.func @transform_5(%arg0: i32) -> (i32, i32) {
    %c0_i32 = arith.constant 0 : i32
    %c0_i32_0 = arith.constant 0 : i32
    %c0_i32_1 = arith.constant 0 : i32
    return %c0_i32, %c0_i32_0 : i32, i32
  }
  func.func @transform_6(%arg0: i32) -> (i32, i32) {
    %c0_i32 = arith.constant 0 : i32
    %c0_i32_0 = arith.constant 0 : i32
    %c0_i32_1 = arith.constant 0 : i32
    return %c0_i32, %c0_i32_0 : i32, i32
  }
  func.func @transform_7(%arg0: i32) -> (i32, i32) {
    %c0_i32 = arith.constant 0 : i32
    %c0_i32_0 = arith.constant 0 : i32
    %c0_i32_1 = arith.constant 0 : i32
    return %c0_i32, %c0_i32_0 : i32, i32
  }
  func.func @transform_8(%arg0: i32) -> (i32, i32) {
    %c0_i32 = arith.constant 0 : i32
    %c0_i32_0 = arith.constant 0 : i32
    %c0_i32_1 = arith.constant 0 : i32
    return %c0_i32, %c0_i32_0 : i32, i32
  }
  func.func @transform_9(%arg0: i32) -> (i32, i32) {
    %c0_i32 = arith.constant 0 : i32
    %c0_i32_0 = arith.constant 0 : i32
    %c0_i32_1 = arith.constant 0 : i32
    return %c0_i32, %c0_i32_0 : i32, i32
  }
  func.func @transform_10(%arg0: i32) -> (i32, i32) {
    %c0_i32 = arith.constant 0 : i32
    %c0_i32_0 = arith.constant 0 : i32
    return %arg0, %c0_i32 : i32, i32
  }
}

</mosaic_0001>

<llo_original>
// kernel: conditional_generator_forward.1
$region0: #{conditional_generator_forward.1}
  #allocation0 [shape = 'u32[]', space=smem, size = 0x4, offset = 0x4, fixed_abs, tag = 'smem constant byte address 0x4 - core index']
  #allocation1 [shape = 'u32[144,128]{1,0:T(1,128)}', space=vmem, size = 0x12000, scoped, tag = 'internal scratch']
  %s0 = inlined_call_operand.vmem [shape: s32[512,1], index: 0, kind: input, shape index: {}]
  %s1 = inlined_call_operand.vmem [shape: f32[512,256], index: 1, kind: input, shape index: {}]
  %s2 = inlined_call_operand.vmem [shape: f32[8,256], index: 2, kind: input, shape index: {}]
  %s3 = inlined_call_operand.vmem [shape: f32[8,256], index: 3, kind: input, shape index: {}]
  %s4 = inlined_call_operand.vmem [shape: bf16[256,512], index: 4, kind: input, shape index: {}]
  %s5 = inlined_call_operand.vmem [shape: f32[1,512], index: 5, kind: input, shape index: {}]
  %s6 = inlined_call_operand.vmem [shape: bf16[512,256], index: 6, kind: input, shape index: {}]
  %s7 = inlined_call_operand.vmem [shape: f32[1,256], index: 7, kind: input, shape index: {}]
  %s8 = inlined_call_operand.vmem [shape: bf16[256,512], index: 8, kind: input, shape index: {}]
  %s9 = inlined_call_operand.vmem [shape: f32[1,512], index: 9, kind: input, shape index: {}]
  %s10 = inlined_call_operand.vmem [shape: f32[512,512], index: 10, kind: output, shape index: {}]
  %s11 = sld [smem:[#allocation0]]
  $region73: #{conditional_generator_forward.1} parent=0
    _
  %s13 = ssub.s32 1, %s11
  %s14 = scalar_select 0, %s13, %s11
  loop: start=0, step=1, limit=4
  $region2: #{conditional_generator_forward.1} parent=0 // loop_pre_header
    _
  $region3: #{conditional_generator_forward.1} parent=0 // loop_header
    %s16 = sphi 0, %s20
    %p17 = scmp.ge.s32.totalorder %s16, 4
    %s26 = sphi 0, %s28
    %s29 = sphi 0, %s26
    %s30 = sphi 0, %s29
    %s46 = sphi 0, %s30
    %s52 = sphi 0, %s54
    %s55 = sphi 0, %s52
    %s56 = sphi 0, %s55
    %s72 = sphi 0, %s56
    %s76 = sphi 0, %s76
    %s78 = sphi 0, %s76
    %s79 = sphi 0, %s78
    %s93 = sphi 0, %s79
    %s97 = sphi 0, %s97
    %s99 = sphi 0, %s97
    %s100 = sphi 0, %s99
    %s114 = sphi 0, %s100
    %s118 = sphi 0, %s118
    %s120 = sphi 0, %s118
    %s121 = sphi 0, %s120
    %s135 = sphi 0, %s121
    %s139 = sphi 0, %s139
    %s141 = sphi 0, %s139
    %s142 = sphi 0, %s141
    %s156 = sphi 0, %s142
    %s160 = sphi 0, %s160
    %s162 = sphi 0, %s160
    %s163 = sphi 0, %s162
    %s177 = sphi 0, %s163
    %s181 = sphi 0, %s181
    %s183 = sphi 0, %s181
    %s184 = sphi 0, %s183
    %s198 = sphi 0, %s184
    %s202 = sphi 0, %s202
    %s204 = sphi 0, %s202
    %s205 = sphi 0, %s204
    %s219 = sphi 0, %s205
    %s223 = sphi 0, %s223
    %s225 = sphi 0, %s223
    %s226 = sphi 0, %s225
    %s240 = sphi 0, %s226
    %s246 = sphi 0, %s248
    %s249 = sphi 0, %s246
    %s250 = sphi 0, %s249
    %s266 = sphi 0, %s250
  $region4: #{conditional_generator_forward.1} parent=0 // loop_header_branch
    %19 = sbr.rel (%p17) target = $region8
  $region5: #{conditional_generator_forward.1} parent=0 // loop_body
    %s21 = ssub.s32 %s16, 1
    %s22 = ssub.s32 %s16, 2
    %s23 = sadd.s32 %s16, 1
    %s24 = ssub.s32 %s16, %s23
    %p25 = scmp.eq.s32.totalorder %s24, 0
    %s27 = sadd.s32 %s26, 1
    %s28 = scalar_select %p25, %s26, %s27
    %p31 = pneg %p25
    %p32 = scmp.eq.s32.totalorder %s16, 1
    %p33 = por %p31, %p32
    %p34 = scmp.ne.s32.totalorder %s26, %s29
    %p35 = scmp.eq.s32.totalorder %s16, 0
    %p36 = por %p34, %p35
    %p37 = scmp.ne.s32.totalorder %s26, %s29
    %p38 = scmp.eq.s32.totalorder %s21, 1
    %p39 = por %p37, %p38
    %p40 = scmp.ne.s32.totalorder %s29, %s30
    %p41 = scmp.eq.s32.totalorder %s21, 0
    %p42 = por %p40, %p41
    %p43 = scmp.ne.s32.totalorder %s29, %s30
    %p44 = scmp.eq.s32.totalorder %s22, 1
    %p45 = por %p43, %p44
    %p47 = scmp.ne.s32.totalorder %s30, %s46
    %p48 = scmp.eq.s32.totalorder %s22, 0
    %p49 = por %p47, %p48
    %s50 = ssub.s32 %s16, %s23
    %p51 = scmp.eq.s32.totalorder %s50, 0
    %s53 = sadd.s32 %s52, 1
    %s54 = scalar_select %p51, %s52, %s53
    %p57 = pneg %p51
    %p58 = scmp.eq.s32.totalorder %s16, 1
    %p59 = por %p57, %p58
    %p60 = scmp.ne.s32.totalorder %s52, %s55
    %p61 = scmp.eq.s32.totalorder %s16, 0
    %p62 = por %p60, %p61
    %p63 = scmp.ne.s32.totalorder %s52, %s55
    %p64 = scmp.eq.s32.totalorder %s21, 1
    %p65 = por %p63, %p64
    %p66 = scmp.ne.s32.totalorder %s55, %s56
    %p67 = scmp.eq.s32.totalorder %s21, 0
    %p68 = por %p66, %p67
    %p69 = scmp.ne.s32.totalorder %s55, %s56
    %p70 = scmp.eq.s32.totalorder %s22, 1
    %p71 = por %p69, %p70
    %p73 = scmp.ne.s32.totalorder %s56, %s72
    %p74 = scmp.eq.s32.totalorder %s22, 0
    %p75 = por %p73, %p74
    %s77 = sadd.s32 %s76, 1
    %p80 = scmp.eq.s32.totalorder %s16, 1
    %p81 = scmp.ne.s32.totalorder %s76, %s78
    %p82 = scmp.eq.s32.totalorder %s16, 0
    %p83 = por %p81, %p82
    %p84 = scmp.ne.s32.totalorder %s76, %s78
    %p85 = scmp.eq.s32.totalorder %s21, 1
    %p86 = por %p84, %p85
    %p87 = scmp.ne.s32.totalorder %s78, %s79
    %p88 = scmp.eq.s32.totalorder %s21, 0
    %p89 = por %p87, %p88
    %p90 = scmp.ne.s32.totalorder %s78, %s79
    %p91 = scmp.eq.s32.totalorder %s22, 1
    %p92 = por %p90, %p91
    %p94 = scmp.ne.s32.totalorder %s79, %s93
    %p95 = scmp.eq.s32.totalorder %s22, 0
    %p96 = por %p94, %p95
    %s98 = sadd.s32 %s97, 1
    %p101 = scmp.eq.s32.totalorder %s16, 1
    %p102 = scmp.ne.s32.totalorder %s97, %s99
    %p103 = scmp.eq.s32.totalorder %s16, 0
    %p104 = por %p102, %p103
    %p105 = scmp.ne.s32.totalorder %s97, %s99
    %p106 = scmp.eq.s32.totalorder %s21, 1
    %p107 = por %p105, %p106
    %p108 = scmp.ne.s32.totalorder %s99, %s100
    %p109 = scmp.eq.s32.totalorder %s21, 0
    %p110 = por %p108, %p109
    %p111 = scmp.ne.s32.totalorder %s99, %s100
    %p112 = scmp.eq.s32.totalorder %s22, 1
    %p113 = por %p111, %p112
    %p115 = scmp.ne.s32.totalorder %s100, %s114
    %p116 = scmp.eq.s32.totalorder %s22, 0
    %p117 = por %p115, %p116
    %s119 = sadd.s32 %s118, 1
    %p122 = scmp.eq.s32.totalorder %s16, 1
    %p123 = scmp.ne.s32.totalorder %s118, %s120
    %p124 = scmp.eq.s32.totalorder %s16, 0
    %p125 = por %p123, %p124
    %p126 = scmp.ne.s32.totalorder %s118, %s120
    %p127 = scmp.eq.s32.totalorder %s21, 1
    %p128 = por %p126, %p127
    %p129 = scmp.ne.s32.totalorder %s120, %s121
    %p130 = scmp.eq.s32.totalorder %s21, 0
    %p131 = por %p129, %p130
    %p132 = scmp.ne.s32.totalorder %s120, %s121
    %p133 = scmp.eq.s32.totalorder %s22, 1
    %p134 = por %p132, %p133
    %p136 = scmp.ne.s32.totalorder %s121, %s135
    %p137 = scmp.eq.s32.totalorder %s22, 0
    %p138 = por %p136, %p137
    %s140 = sadd.s32 %s139, 1
    %p143 = scmp.eq.s32.totalorder %s16, 1
    %p144 = scmp.ne.s32.totalorder %s139, %s141
    %p145 = scmp.eq.s32.totalorder %s16, 0
    %p146 = por %p144, %p145
    %p147 = scmp.ne.s32.totalorder %s139, %s141
    %p148 = scmp.eq.s32.totalorder %s21, 1
    %p149 = por %p147, %p148
    %p150 = scmp.ne.s32.totalorder %s141, %s142
    %p151 = scmp.eq.s32.totalorder %s21, 0
    %p152 = por %p150, %p151
    %p153 = scmp.ne.s32.totalorder %s141, %s142
    %p154 = scmp.eq.s32.totalorder %s22, 1
    %p155 = por %p153, %p154
    %p157 = scmp.ne.s32.totalorder %s142, %s156
    %p158 = scmp.eq.s32.totalorder %s22, 0
    %p159 = por %p157, %p158
    %s161 = sadd.s32 %s160, 1
    %p164 = scmp.eq.s32.totalorder %s16, 1
    %p165 = scmp.ne.s32.totalorder %s160, %s162
    %p166 = scmp.eq.s32.totalorder %s16, 0
    %p167 = por %p165, %p166
    %p168 = scmp.ne.s32.totalorder %s160, %s162
    %p169 = scmp.eq.s32.totalorder %s21, 1
    %p170 = por %p168, %p169
    %p171 = scmp.ne.s32.totalorder %s162, %s163
    %p172 = scmp.eq.s32.totalorder %s21, 0
    %p173 = por %p171, %p172
    %p174 = scmp.ne.s32.totalorder %s162, %s163
    %p175 = scmp.eq.s32.totalorder %s22, 1
    %p176 = por %p174, %p175
    %p178 = scmp.ne.s32.totalorder %s163, %s177
    %p179 = scmp.eq.s32.totalorder %s22, 0
    %p180 = por %p178, %p179
    %s182 = sadd.s32 %s181, 1
    %p185 = scmp.eq.s32.totalorder %s16, 1
    %p186 = scmp.ne.s32.totalorder %s181, %s183
    %p187 = scmp.eq.s32.totalorder %s16, 0
    %p188 = por %p186, %p187
    %p189 = scmp.ne.s32.totalorder %s181, %s183
    %p190 = scmp.eq.s32.totalorder %s21, 1
    %p191 = por %p189, %p190
    %p192 = scmp.ne.s32.totalorder %s183, %s184
    %p193 = scmp.eq.s32.totalorder %s21, 0
    %p194 = por %p192, %p193
    %p195 = scmp.ne.s32.totalorder %s183, %s184
    %p196 = scmp.eq.s32.totalorder %s22, 1
    %p197 = por %p195, %p196
    %p199 = scmp.ne.s32.totalorder %s184, %s198
    %p200 = scmp.eq.s32.totalorder %s22, 0
    %p201 = por %p199, %p200
    %s203 = sadd.s32 %s202, 1
    %p206 = scmp.eq.s32.totalorder %s16, 1
    %p207 = scmp.ne.s32.totalorder %s202, %s204
    %p208 = scmp.eq.s32.totalorder %s16, 0
    %p209 = por %p207, %p208
    %p210 = scmp.ne.s32.totalorder %s202, %s204
    %p211 = scmp.eq.s32.totalorder %s21, 1
    %p212 = por %p210, %p211
    %p213 = scmp.ne.s32.totalorder %s204, %s205
    %p214 = scmp.eq.s32.totalorder %s21, 0
    %p215 = por %p213, %p214
    %p216 = scmp.ne.s32.totalorder %s204, %s205
    %p217 = scmp.eq.s32.totalorder %s22, 1
    %p218 = por %p216, %p217
    %p220 = scmp.ne.s32.totalorder %s205, %s219
    %p221 = scmp.eq.s32.totalorder %s22, 0
    %p222 = por %p220, %p221
    %s224 = sadd.s32 %s223, 1
    %p227 = scmp.eq.s32.totalorder %s16, 1
    %p228 = scmp.ne.s32.totalorder %s223, %s225
    %p229 = scmp.eq.s32.totalorder %s16, 0
    %p230 = por %p228, %p229
    %p231 = scmp.ne.s32.totalorder %s223, %s225
    %p232 = scmp.eq.s32.totalorder %s21, 1
    %p233 = por %p231, %p232
    %p234 = scmp.ne.s32.totalorder %s225, %s226
    %p235 = scmp.eq.s32.totalorder %s21, 0
    %p236 = por %p234, %p235
    %p237 = scmp.ne.s32.totalorder %s225, %s226
    %p238 = scmp.eq.s32.totalorder %s22, 1
    %p239 = por %p237, %p238
    %p241 = scmp.ne.s32.totalorder %s226, %s240
    %p242 = scmp.eq.s32.totalorder %s22, 0
    %p243 = por %p241, %p242
    %s244 = ssub.s32 %s16, %s23
    %p245 = scmp.eq.s32.totalorder %s244, 0
    %s247 = sadd.s32 %s246, 1
    %s248 = scalar_select %p245, %s246, %s247
    %p251 = pneg %p245
    %p252 = scmp.eq.s32.totalorder %s16, 1
    %p253 = por %p251, %p252
    %p254 = scmp.ne.s32.totalorder %s246, %s249
    %p255 = scmp.eq.s32.totalorder %s16, 0
    %p256 = por %p254, %p255
    %p257 = scmp.ne.s32.totalorder %s246, %s249
    %p258 = scmp.eq.s32.totalorder %s21, 1
    %p259 = por %p257, %p258
    %p260 = scmp.ne.s32.totalorder %s249, %s250
    %p261 = scmp.eq.s32.totalorder %s21, 0
    %p262 = por %p260, %p261
    %p263 = scmp.ne.s32.totalorder %s249, %s250
    %p264 = scmp.eq.s32.totalorder %s22, 1
    %p265 = por %p263, %p264
    %p267 = scmp.ne.s32.totalorder %s250, %s266
    %p268 = scmp.eq.s32.totalorder %s22, 0
    %p269 = por %p267, %p268
    %p270 = scmp.le.s32.totalorder 1, %s16
    %p271 = scmp.lt.s32.totalorder %s16, 3
    %p272 = pnand %p270, %p271
    %p273 = pneg %p272
    // Predicated region
    $region9: #{conditional_generator_forward.1} parent=5 // pred_check
      _
    $region10: #{conditional_generator_forward.1} parent=5 // pred_check_branch
      %275 = sbr.rel (%p272) target = $region12
    $region11: #{conditional_generator_forward.1} parent=5 // pred_region
      %s276 = ssub.s32 %s16, 1
      // Predicated region
      $region13: #{conditional_generator_forward.1} parent=11 // pred_check
        %p277 = pneg %p89
      $region14: #{conditional_generator_forward.1} parent=11 // pred_check_branch
        %279 = sbr.rel (%p277) target = $region16
      $region15: #{conditional_generator_forward.1} parent=11 // pred_region
        _
      $region16: #{conditional_generator_forward.1} parent=11 // pred_fallthru
        _
      // Predicated region
      $region17: #{conditional_generator_forward.1} parent=11 // pred_check
        %p280 = pneg %p110
      $region18: #{conditional_generator_forward.1} parent=11 // pred_check_branch
        %282 = sbr.rel (%p280) target = $region20
      $region19: #{conditional_generator_forward.1} parent=11 // pred_region
        _
      $region20: #{conditional_generator_forward.1} parent=11 // pred_fallthru
        _
      // Predicated region
      $region21: #{conditional_generator_forward.1} parent=11 // pred_check
        %p283 = pneg %p131
      $region22: #{conditional_generator_forward.1} parent=11 // pred_check_branch
        %285 = sbr.rel (%p283) target = $region24
      $region23: #{conditional_generator_forward.1} parent=11 // pred_region
        _
      $region24: #{conditional_generator_forward.1} parent=11 // pred_fallthru
        _
      // Predicated region
      $region25: #{conditional_generator_forward.1} parent=11 // pred_check
        %p286 = pneg %p152
      $region26: #{conditional_generator_forward.1} parent=11 // pred_check_branch
        %288 = sbr.rel (%p286) target = $region28
      $region27: #{conditional_generator_forward.1} parent=11 // pred_region
        _
      $region28: #{conditional_generator_forward.1} parent=11 // pred_fallthru
        _
      // Predicated region
      $region29: #{conditional_generator_forward.1} parent=11 // pred_check
        %p289 = pneg %p173
      $region30: #{conditional_generator_forward.1} parent=11 // pred_check_branch
        %291 = sbr.rel (%p289) target = $region32
      $region31: #{conditional_generator_forward.1} parent=11 // pred_region
        _
      $region32: #{conditional_generator_forward.1} parent=11 // pred_fallthru
        _
      // Predicated region
      $region33: #{conditional_generator_forward.1} parent=11 // pred_check
        %p292 = pneg %p194
      $region34: #{conditional_generator_forward.1} parent=11 // pred_check_branch
        %294 = sbr.rel (%p292) target = $region36
      $region35: #{conditional_generator_forward.1} parent=11 // pred_region
        _
      $region36: #{conditional_generator_forward.1} parent=11 // pred_fallthru
        _
      // Predicated region
      $region37: #{conditional_generator_forward.1} parent=11 // pred_check
        %p295 = pneg %p215
      $region38: #{conditional_generator_forward.1} parent=11 // pred_check_branch
        %297 = sbr.rel (%p295) target = $region40
      $region39: #{conditional_generator_forward.1} parent=11 // pred_region
        _
      $region40: #{conditional_generator_forward.1} parent=11 // pred_fallthru
        _
      // Predicated region
      $region41: #{conditional_generator_forward.1} parent=11 // pred_check
        %p298 = pneg %p236
      $region42: #{conditional_generator_forward.1} parent=11 // pred_check_branch
        %300 = sbr.rel (%p298) target = $region44
      $region43: #{conditional_generator_forward.1} parent=11 // pred_region
        _
      $region44: #{conditional_generator_forward.1} parent=11 // pred_fallthru
        _
    $region12: #{conditional_generator_forward.1} parent=5 // pred_fallthru
      _
    %p301 = scmp.lt.s32.totalorder %s16, 2
    // Predicated region
    $region45: #{conditional_generator_forward.1} parent=5 // pred_check
      %p302 = pneg %p301
    $region46: #{conditional_generator_forward.1} parent=5 // pred_check_branch
      %304 = sbr.rel (%p302) target = $region48
    $region47: #{conditional_generator_forward.1} parent=5 // pred_region
      // Predicated region
      $region49: #{conditional_generator_forward.1} parent=47 // pred_check
        %p305 = pneg %p36
      $region50: #{conditional_generator_forward.1} parent=47 // pred_check_branch
        %307 = sbr.rel (%p305) target = $region52
      $region51: #{conditional_generator_forward.1} parent=47 // pred_region
        %s308 = smul.u32 32, %s16
        %p309 = scmp.lt.s32.totalorder %s308, 63
        %s310 = scalar_select %p309, %s308, 63
        %s311 = smul.addr %s310, 8
        %s312 = scalar_lea.vmem %s0, %s311
        %s313 = smul.u32 32, %s16
      $region52: #{conditional_generator_forward.1} parent=47 // pred_fallthru
        _
      // Predicated region
      $region53: #{conditional_generator_forward.1} parent=47 // pred_check
        %p314 = pneg %p62
      $region54: #{conditional_generator_forward.1} parent=47 // pred_check_branch
        %316 = sbr.rel (%p314) target = $region56
      $region55: #{conditional_generator_forward.1} parent=47 // pred_region
        %s317 = smul.u32 32, %s16
        %p318 = scmp.lt.s32.totalorder %s317, 63
        %s319 = scalar_select %p318, %s317, 63
        %s320 = smul.addr %s319, 2
        %s321 = smul.addr %s320, 8
        %s322 = scalar_lea.vmem %s1, %s321
        %s323 = smul.u32 32, %s16
      $region56: #{conditional_generator_forward.1} parent=47 // pred_fallthru
        _
    $region48: #{conditional_generator_forward.1} parent=5 // pred_fallthru
      _
    %p324 = scmp.le.s32.totalorder 1, %s16
    %p325 = scmp.lt.s32.totalorder %s16, 3
    %p326 = pnand %p324, %p325
    %p327 = pneg %p326
    // Predicated region
    $region57: #{conditional_generator_forward.1} parent=5 // pred_check
      _
    $region58: #{conditional_generator_forward.1} parent=5 // pred_check_branch
      %329 = sbr.rel (%p326) target = $region60
    $region59: #{conditional_generator_forward.1} parent=5 // pred_region
      %s330 = ssub.s32 %s16, 1
      %s331 = smul.u32 32, %s21
      %p332 = scmp.lt.s32.totalorder %s331, 63
      %s333 = scalar_select %p332, %s331, 63
      %s334 = smul.addr %s333, 8
      %s335 = scalar_lea.vmem %s0, %s334
      %p336 = pneg %p42
      %p337 = pneg %p39
      %s338 = smul.u32 32, %s21
      %p339 = scmp.lt.s32.totalorder %s338, 63
      %s340 = scalar_select %p339, %s338, 63
      %s341 = smul.addr %s340, 2
      %s342 = smul.addr %s341, 8
      %s343 = scalar_lea.vmem %s1, %s342
      %p344 = pneg %p68
      %p345 = pneg %p65
      %p346 = pneg %p89
      %p347 = pneg %p86
      %p348 = pneg %p110
      %p349 = pneg %p107
      %p350 = pneg %p131
      %p351 = pneg %p128
      %p352 = pneg %p152
      %p353 = pneg %p149
      %p354 = pneg %p173
      %p355 = pneg %p170
      %p356 = pneg %p194
      %p357 = pneg %p191
      %p358 = pneg %p215
      %p359 = pneg %p212
      %p360 = pneg %p236
      %p361 = pneg %p233
      %p362 = pneg %p262
      %p363 = pneg %p259
      %s364 = smul.u32 32, %s21
      %p365 = scmp.lt.s32.totalorder %s364, 63
      %s366 = scalar_select %p365, %s364, 63
      %s367 = smul.addr %s366, 4
      %s368 = smul.addr %s367, 8
      %s369 = scalar_lea.vmem %s10, %s368
      %s370 = smul.u32 32, %s21
      %p371 = scmp.lt.s32.totalorder %s370, 63
      %s372 = scalar_select %p371, %s370, 63
      %s373 = smul.addr %s372, 8
      %s374 = scalar_lea.vmem %s0, %s373
      %s375 = smul.u32 32, %s21
      %s376 = smul.u32 32, %s21
      %p377 = scmp.lt.s32.totalorder %s376, 63
      %s378 = scalar_select %p377, %s376, 63
      %s379 = smul.addr %s378, 2
      %s380 = smul.addr %s379, 8
      %s381 = scalar_lea.vmem %s1, %s380
      %s382 = smul.u32 32, %s21
      %s383 = smul.u32 32, %s21
      %p384 = scmp.lt.s32.totalorder %s383, 63
      %s385 = scalar_select %p384, %s383, 63
      %s386 = smul.addr %s385, 4
      %s387 = smul.addr %s386, 8
      %s388 = scalar_lea.vmem %s10, %s387
      %s389 = smul.u32 32, %s21
      %v390 = vld [vmem:[%s374] sm:$0xff]
      %v391 = vld [vmem:[%s374 + $0x8] sm:$0xff]
      %v392 = vld [vmem:[%s374 + $0x10] sm:$0xff]
      %v393 = vld [vmem:[%s374 + $0x18] sm:$0xff]
      %v394 = vld [vmem:[%s374 + $0x20] sm:$0xff]
      %v395 = vld [vmem:[%s374 + $0x28] sm:$0xff]
      %v396 = vld [vmem:[%s374 + $0x30] sm:$0xff]
      %v397 = vld [vmem:[%s374 + $0x38] sm:$0xff]
      %v398 = vld [vmem:[%s374 + $0x40] sm:$0xff]
      %v399 = vld [vmem:[%s374 + $0x48] sm:$0xff]
      %v400 = vld [vmem:[%s374 + $0x50] sm:$0xff]
      %v401 = vld [vmem:[%s374 + $0x58] sm:$0xff]
      %v402 = vld [vmem:[%s374 + $0x60] sm:$0xff]
      %v403 = vld [vmem:[%s374 + $0x68] sm:$0xff]
      %v404 = vld [vmem:[%s374 + $0x70] sm:$0xff]
      %v405 = vld [vmem:[%s374 + $0x78] sm:$0xff]
      %v406 = vld [vmem:[%s374 + $0x80] sm:$0xff]
      %v407 = vld [vmem:[%s374 + $0x88] sm:$0xff]
      %v408 = vld [vmem:[%s374 + $0x90] sm:$0xff]
      %v409 = vld [vmem:[%s374 + $0x98] sm:$0xff]
      %v410 = vld [vmem:[%s374 + $0xa0] sm:$0xff]
      %v411 = vld [vmem:[%s374 + $0xa8] sm:$0xff]
      %v412 = vld [vmem:[%s374 + $0xb0] sm:$0xff]
      %v413 = vld [vmem:[%s374 + $0xb8] sm:$0xff]
      %v414 = vld [vmem:[%s374 + $0xc0] sm:$0xff]
      %v415 = vld [vmem:[%s374 + $0xc8] sm:$0xff]
      %v416 = vld [vmem:[%s374 + $0xd0] sm:$0xff]
      %v417 = vld [vmem:[%s374 + $0xd8] sm:$0xff]
      %v418 = vld [vmem:[%s374 + $0xe0] sm:$0xff]
      %v419 = vld [vmem:[%s374 + $0xe8] sm:$0xff]
      %v420 = vld [vmem:[%s374 + $0xf0] sm:$0xff]
      %v421 = vld [vmem:[%s374 + $0xf8] sm:$0xff]
      %v422 = vld [vmem:[%s2] sm:$0xff]
      %v423 = vld [vmem:[%s2 + $0x8] sm:$0xff]
      %v424 = vld [vmem:[%s3] sm:$0xff]
      %v425 = vld [vmem:[%s3 + $0x8] sm:$0xff]
      %vm426 = vcmp.eq.s32.totalorder %v390, 0
      %vm427 = vcmp.eq.s32.totalorder %v391, 0
      %vm428 = vcmp.eq.s32.totalorder %v392, 0
      %vm429 = vcmp.eq.s32.totalorder %v393, 0
      %vm430 = vcmp.eq.s32.totalorder %v394, 0
      %vm431 = vcmp.eq.s32.totalorder %v395, 0
      %vm432 = vcmp.eq.s32.totalorder %v396, 0
      %vm433 = vcmp.eq.s32.totalorder %v397, 0
      %vm434 = vcmp.eq.s32.totalorder %v398, 0
      %vm435 = vcmp.eq.s32.totalorder %v399, 0
      %vm436 = vcmp.eq.s32.totalorder %v400, 0
      %vm437 = vcmp.eq.s32.totalorder %v401, 0
      %vm438 = vcmp.eq.s32.totalorder %v402, 0
      %vm439 = vcmp.eq.s32.totalorder %v403, 0
      %vm440 = vcmp.eq.s32.totalorder %v404, 0
      %vm441 = vcmp.eq.s32.totalorder %v405, 0
      %vm442 = vcmp.eq.s32.totalorder %v406, 0
      %vm443 = vcmp.eq.s32.totalorder %v407, 0
      %vm444 = vcmp.eq.s32.totalorder %v408, 0
      %vm445 = vcmp.eq.s32.totalorder %v409, 0
      %vm446 = vcmp.eq.s32.totalorder %v410, 0
      %vm447 = vcmp.eq.s32.totalorder %v411, 0
      %vm448 = vcmp.eq.s32.totalorder %v412, 0
      %vm449 = vcmp.eq.s32.totalorder %v413, 0
      %vm450 = vcmp.eq.s32.totalorder %v414, 0
      %vm451 = vcmp.eq.s32.totalorder %v415, 0
      %vm452 = vcmp.eq.s32.totalorder %v416, 0
      %vm453 = vcmp.eq.s32.totalorder %v417, 0
      %vm454 = vcmp.eq.s32.totalorder %v418, 0
      %vm455 = vcmp.eq.s32.totalorder %v419, 0
      %vm456 = vcmp.eq.s32.totalorder %v420, 0
      %vm457 = vcmp.eq.s32.totalorder %v421, 0
      %v458 = vsel %vm426, 1, 0
      %v459 = vsel %vm427, 1, 0
      %v460 = vsel %vm428, 1, 0
      %v461 = vsel %vm429, 1, 0
      %v462 = vsel %vm430, 1, 0
      %v463 = vsel %vm431, 1, 0
      %v464 = vsel %vm432, 1, 0
      %v465 = vsel %vm433, 1, 0
      %v466 = vsel %vm434, 1, 0
      %v467 = vsel %vm435, 1, 0
      %v468 = vsel %vm436, 1, 0
      %v469 = vsel %vm437, 1, 0
      %v470 = vsel %vm438, 1, 0
      %v471 = vsel %vm439, 1, 0
      %v472 = vsel %vm440, 1, 0
      %v473 = vsel %vm441, 1, 0
      %v474 = vsel %vm442, 1, 0
      %v475 = vsel %vm443, 1, 0
      %v476 = vsel %vm444, 1, 0
      %v477 = vsel %vm445, 1, 0
      %v478 = vsel %vm446, 1, 0
      %v479 = vsel %vm447, 1, 0
      %v480 = vsel %vm448, 1, 0
      %v481 = vsel %vm449, 1, 0
      %v482 = vsel %vm450, 1, 0
      %v483 = vsel %vm451, 1, 0
      %v484 = vsel %vm452, 1, 0
      %v485 = vsel %vm453, 1, 0
      %v486 = vsel %vm454, 1, 0
      %v487 = vsel %vm455, 1, 0
      %v488 = vsel %vm456, 1, 0
      %v489 = vsel %vm457, 1, 0
      %v490 = vcvt.s32.f32 %v458
      %v491 = vcvt.s32.f32 %v459
      %v492 = vcvt.s32.f32 %v460
      %v493 = vcvt.s32.f32 %v461
      %v494 = vcvt.s32.f32 %v462
      %v495 = vcvt.s32.f32 %v463
      %v496 = vcvt.s32.f32 %v464
      %v497 = vcvt.s32.f32 %v465
      %v498 = vcvt.s32.f32 %v466
      %v499 = vcvt.s32.f32 %v467
      %v500 = vcvt.s32.f32 %v468
      %v501 = vcvt.s32.f32 %v469
      %v502 = vcvt.s32.f32 %v470
      %v503 = vcvt.s32.f32 %v471
      %v504 = vcvt.s32.f32 %v472
      %v505 = vcvt.s32.f32 %v473
      %v506 = vcvt.s32.f32 %v474
      %v507 = vcvt.s32.f32 %v475
      %v508 = vcvt.s32.f32 %v476
      %v509 = vcvt.s32.f32 %v477
      %v510 = vcvt.s32.f32 %v478
      %v511 = vcvt.s32.f32 %v479
      %v512 = vcvt.s32.f32 %v480
      %v513 = vcvt.s32.f32 %v481
      %v514 = vcvt.s32.f32 %v482
      %v515 = vcvt.s32.f32 %v483
      %v516 = vcvt.s32.f32 %v484
      %v517 = vcvt.s32.f32 %v485
      %v518 = vcvt.s32.f32 %v486
      %v519 = vcvt.s32.f32 %v487
      %v520 = vcvt.s32.f32 %v488
      %v521 = vcvt.s32.f32 %v489
      %523 = vset.pattern.permute.xlu0 0
      %524 = vperm.xlu0 %523, %v490
      %v525 = vpop.permute.xlu0 %524
      %528 = vset.pattern.permute.xlu0 0
      %529 = vperm.xlu0 %528, %v491
      %v530 = vpop.permute.xlu0 %529
      %533 = vset.pattern.permute.xlu0 0
      %534 = vperm.xlu0 %533, %v492
      %v535 = vpop.permute.xlu0 %534
      %538 = vset.pattern.permute.xlu0 0
      %539 = vperm.xlu0 %538, %v493
      %v540 = vpop.permute.xlu0 %539
      %543 = vset.pattern.permute.xlu0 0
      %544 = vperm.xlu0 %543, %v494
      %v545 = vpop.permute.xlu0 %544
      %548 = vset.pattern.permute.xlu0 0
      %549 = vperm.xlu0 %548, %v495
      %v550 = vpop.permute.xlu0 %549
      %553 = vset.pattern.permute.xlu0 0
      %554 = vperm.xlu0 %553, %v496
      %v555 = vpop.permute.xlu0 %554
      %558 = vset.pattern.permute.xlu0 0
      %559 = vperm.xlu0 %558, %v497
      %v560 = vpop.permute.xlu0 %559
      %563 = vset.pattern.permute.xlu0 0
      %564 = vperm.xlu0 %563, %v498
      %v565 = vpop.permute.xlu0 %564
      %568 = vset.pattern.permute.xlu0 0
      %569 = vperm.xlu0 %568, %v499
      %v570 = vpop.permute.xlu0 %569
      %573 = vset.pattern.permute.xlu0 0
      %574 = vperm.xlu0 %573, %v500
      %v575 = vpop.permute.xlu0 %574
      %578 = vset.pattern.permute.xlu0 0
      %579 = vperm.xlu0 %578, %v501
      %v580 = vpop.permute.xlu0 %579
      %583 = vset.pattern.permute.xlu0 0
      %584 = vperm.xlu0 %583, %v502
      %v585 = vpop.permute.xlu0 %584
      %588 = vset.pattern.permute.xlu0 0
      %589 = vperm.xlu0 %588, %v503
      %v590 = vpop.permute.xlu0 %589
      %593 = vset.pattern.permute.xlu0 0
      %594 = vperm.xlu0 %593, %v504
      %v595 = vpop.permute.xlu0 %594
      %598 = vset.pattern.permute.xlu0 0
      %599 = vperm.xlu0 %598, %v505
      %v600 = vpop.permute.xlu0 %599
      %603 = vset.pattern.permute.xlu0 0
      %604 = vperm.xlu0 %603, %v506
      %v605 = vpop.permute.xlu0 %604
      %608 = vset.pattern.permute.xlu0 0
      %609 = vperm.xlu0 %608, %v507
      %v610 = vpop.permute.xlu0 %609
      %613 = vset.pattern.permute.xlu0 0
      %614 = vperm.xlu0 %613, %v508
      %v615 = vpop.permute.xlu0 %614
      %618 = vset.pattern.permute.xlu0 0
      %619 = vperm.xlu0 %618, %v509
      %v620 = vpop.permute.xlu0 %619
      %623 = vset.pattern.permute.xlu0 0
      %624 = vperm.xlu0 %623, %v510
      %v625 = vpop.permute.xlu0 %624
      %628 = vset.pattern.permute.xlu0 0
      %629 = vperm.xlu0 %628, %v511
      %v630 = vpop.permute.xlu0 %629
      %633 = vset.pattern.permute.xlu0 0
      %634 = vperm.xlu0 %633, %v512
      %v635 = vpop.permute.xlu0 %634
      %638 = vset.pattern.permute.xlu0 0
      %639 = vperm.xlu0 %638, %v513
      %v640 = vpop.permute.xlu0 %639
      %643 = vset.pattern.permute.xlu0 0
      %644 = vperm.xlu0 %643, %v514
      %v645 = vpop.permute.xlu0 %644
      %648 = vset.pattern.permute.xlu0 0
      %649 = vperm.xlu0 %648, %v515
      %v650 = vpop.permute.xlu0 %649
      %653 = vset.pattern.permute.xlu0 0
      %654 = vperm.xlu0 %653, %v516
      %v655 = vpop.permute.xlu0 %654
      %658 = vset.pattern.permute.xlu0 0
      %659 = vperm.xlu0 %658, %v517
      %v660 = vpop.permute.xlu0 %659
      %663 = vset.pattern.permute.xlu0 0
      %664 = vperm.xlu0 %663, %v518
      %v665 = vpop.permute.xlu0 %664
      %668 = vset.pattern.permute.xlu0 0
      %669 = vperm.xlu0 %668, %v519
      %v670 = vpop.permute.xlu0 %669
      %673 = vset.pattern.permute.xlu0 0
      %674 = vperm.xlu0 %673, %v520
      %v675 = vpop.permute.xlu0 %674
      %678 = vset.pattern.permute.xlu0 0
      %679 = vperm.xlu0 %678, %v521
      %v680 = vpop.permute.xlu0 %679
      %v682 = vlaneseq
      %v683 = vshrl.u32 %v682, 7
      %v684 = vsub.s32 0, %v683
      %v685 = vrot.slane %v422, %v684
      %v686 = vlaneseq
      %v687 = vshrl.u32 %v686, 7
      %v688 = vsub.s32 0, %v687
      %v689 = vrot.slane %v423, %v688
      %v690 = vmul.f32 %v525, %v685
      %v691 = vmul.f32 %v525, %v689
      %v692 = vmul.f32 %v530, %v685
      %v693 = vmul.f32 %v530, %v689
      %v694 = vmul.f32 %v535, %v685
      %v695 = vmul.f32 %v535, %v689
      %v696 = vmul.f32 %v540, %v685
      %v697 = vmul.f32 %v540, %v689
      %v698 = vmul.f32 %v545, %v685
      %v699 = vmul.f32 %v545, %v689
      %v700 = vmul.f32 %v550, %v685
      %v701 = vmul.f32 %v550, %v689
      %v702 = vmul.f32 %v555, %v685
      %v703 = vmul.f32 %v555, %v689
      %v704 = vmul.f32 %v560, %v685
      %v705 = vmul.f32 %v560, %v689
      %v706 = vmul.f32 %v565, %v685
      %v707 = vmul.f32 %v565, %v689
      %v708 = vmul.f32 %v570, %v685
      %v709 = vmul.f32 %v570, %v689
      %v710 = vmul.f32 %v575, %v685
      %v711 = vmul.f32 %v575, %v689
      %v712 = vmul.f32 %v580, %v685
      %v713 = vmul.f32 %v580, %v689
      %v714 = vmul.f32 %v585, %v685
      %v715 = vmul.f32 %v585, %v689
      %v716 = vmul.f32 %v590, %v685
      %v717 = vmul.f32 %v590, %v689
      %v718 = vmul.f32 %v595, %v685
      %v719 = vmul.f32 %v595, %v689
      %v720 = vmul.f32 %v600, %v685
      %v721 = vmul.f32 %v600, %v689
      %v722 = vmul.f32 %v605, %v685
      %v723 = vmul.f32 %v605, %v689
      %v724 = vmul.f32 %v610, %v685
      %v725 = vmul.f32 %v610, %v689
      %v726 = vmul.f32 %v615, %v685
      %v727 = vmul.f32 %v615, %v689
      %v728 = vmul.f32 %v620, %v685
      %v729 = vmul.f32 %v620, %v689
      %v730 = vmul.f32 %v625, %v685
      %v731 = vmul.f32 %v625, %v689
      %v732 = vmul.f32 %v630, %v685
      %v733 = vmul.f32 %v630, %v689
      %v734 = vmul.f32 %v635, %v685
      %v735 = vmul.f32 %v635, %v689
      %v736 = vmul.f32 %v640, %v685
      %v737 = vmul.f32 %v640, %v689
      %v738 = vmul.f32 %v645, %v685
      %v739 = vmul.f32 %v645, %v689
      %v740 = vmul.f32 %v650, %v685
      %v741 = vmul.f32 %v650, %v689
      %v742 = vmul.f32 %v655, %v685
      %v743 = vmul.f32 %v655, %v689
      %v744 = vmul.f32 %v660, %v685
      %v745 = vmul.f32 %v660, %v689
      %v746 = vmul.f32 %v665, %v685
      %v747 = vmul.f32 %v665, %v689
      %v748 = vmul.f32 %v670, %v685
      %v749 = vmul.f32 %v670, %v689
      %v750 = vmul.f32 %v675, %v685
      %v751 = vmul.f32 %v675, %v689
      %v752 = vmul.f32 %v680, %v685
      %v753 = vmul.f32 %v680, %v689
      %v754 = vadd.f32 %v690, 0.0
      %v755 = vadd.f32 %v691, 0.0
      %v756 = vadd.f32 %v692, 0.0
      %v757 = vadd.f32 %v693, 0.0
      %v758 = vadd.f32 %v694, 0.0
      %v759 = vadd.f32 %v695, 0.0
      %v760 = vadd.f32 %v696, 0.0
      %v761 = vadd.f32 %v697, 0.0
      %v762 = vadd.f32 %v698, 0.0
      %v763 = vadd.f32 %v699, 0.0
      %v764 = vadd.f32 %v700, 0.0
      %v765 = vadd.f32 %v701, 0.0
      %v766 = vadd.f32 %v702, 0.0
      %v767 = vadd.f32 %v703, 0.0
      %v768 = vadd.f32 %v704, 0.0
      %v769 = vadd.f32 %v705, 0.0
      %v770 = vadd.f32 %v706, 0.0
      %v771 = vadd.f32 %v707, 0.0
      %v772 = vadd.f32 %v708, 0.0
      %v773 = vadd.f32 %v709, 0.0
      %v774 = vadd.f32 %v710, 0.0
      %v775 = vadd.f32 %v711, 0.0
      %v776 = vadd.f32 %v712, 0.0
      %v777 = vadd.f32 %v713, 0.0
      %v778 = vadd.f32 %v714, 0.0
      %v779 = vadd.f32 %v715, 0.0
      %v780 = vadd.f32 %v716, 0.0
      %v781 = vadd.f32 %v717, 0.0
      %v782 = vadd.f32 %v718, 0.0
      %v783 = vadd.f32 %v719, 0.0
      %v784 = vadd.f32 %v720, 0.0
      %v785 = vadd.f32 %v721, 0.0
      %v786 = vadd.f32 %v722, 0.0
      %v787 = vadd.f32 %v723, 0.0
      %v788 = vadd.f32 %v724, 0.0
      %v789 = vadd.f32 %v725, 0.0
      %v790 = vadd.f32 %v726, 0.0
      %v791 = vadd.f32 %v727, 0.0
      %v792 = vadd.f32 %v728, 0.0
      %v793 = vadd.f32 %v729, 0.0
      %v794 = vadd.f32 %v730, 0.0
      %v795 = vadd.f32 %v731, 0.0
      %v796 = vadd.f32 %v732, 0.0
      %v797 = vadd.f32 %v733, 0.0
      %v798 = vadd.f32 %v734, 0.0
      %v799 = vadd.f32 %v735, 0.0
      %v800 = vadd.f32 %v736, 0.0
      %v801 = vadd.f32 %v737, 0.0
      %v802 = vadd.f32 %v738, 0.0
      %v803 = vadd.f32 %v739, 0.0
      %v804 = vadd.f32 %v740, 0.0
      %v805 = vadd.f32 %v741, 0.0
      %v806 = vadd.f32 %v742, 0.0
      %v807 = vadd.f32 %v743, 0.0
      %v808 = vadd.f32 %v744, 0.0
      %v809 = vadd.f32 %v745, 0.0
      %v810 = vadd.f32 %v746, 0.0
      %v811 = vadd.f32 %v747, 0.0
      %v812 = vadd.f32 %v748, 0.0
      %v813 = vadd.f32 %v749, 0.0
      %v814 = vadd.f32 %v750, 0.0
      %v815 = vadd.f32 %v751, 0.0
      %v816 = vadd.f32 %v752, 0.0
      %v817 = vadd.f32 %v753, 0.0
      %v818 = vlaneseq
      %v819 = vshrl.u32 %v818, 7
      %v820 = vsub.s32 0, %v819
      %v821 = vrot.slane %v424, %v820
      %v822 = vlaneseq
      %v823 = vshrl.u32 %v822, 7
      %v824 = vsub.s32 0, %v823
      %v825 = vrot.slane %v425, %v824
      %v826 = vmul.f32 %v525, %v821
      %v827 = vmul.f32 %v525, %v825
      %v828 = vmul.f32 %v530, %v821
      %v829 = vmul.f32 %v530, %v825
      %v830 = vmul.f32 %v535, %v821
      %v831 = vmul.f32 %v535, %v825
      %v832 = vmul.f32 %v540, %v821
      %v833 = vmul.f32 %v540, %v825
      %v834 = vmul.f32 %v545, %v821
      %v835 = vmul.f32 %v545, %v825
      %v836 = vmul.f32 %v550, %v821
      %v837 = vmul.f32 %v550, %v825
      %v838 = vmul.f32 %v555, %v821
      %v839 = vmul.f32 %v555, %v825
      %v840 = vmul.f32 %v560, %v821
      %v841 = vmul.f32 %v560, %v825
      %v842 = vmul.f32 %v565, %v821
      %v843 = vmul.f32 %v565, %v825
      %v844 = vmul.f32 %v570, %v821
      %v845 = vmul.f32 %v570, %v825
      %v846 = vmul.f32 %v575, %v821
      %v847 = vmul.f32 %v575, %v825
      %v848 = vmul.f32 %v580, %v821
      %v849 = vmul.f32 %v580, %v825
      %v850 = vmul.f32 %v585, %v821
      %v851 = vmul.f32 %v585, %v825
      %v852 = vmul.f32 %v590, %v821
      %v853 = vmul.f32 %v590, %v825
      %v854 = vmul.f32 %v595, %v821
      %v855 = vmul.f32 %v595, %v825
      %v856 = vmul.f32 %v600, %v821
      %v857 = vmul.f32 %v600, %v825
      %v858 = vmul.f32 %v605, %v821
      %v859 = vmul.f32 %v605, %v825
      %v860 = vmul.f32 %v610, %v821
      %v861 = vmul.f32 %v610, %v825
      %v862 = vmul.f32 %v615, %v821
      %v863 = vmul.f32 %v615, %v825
      %v864 = vmul.f32 %v620, %v821
      %v865 = vmul.f32 %v620, %v825
      %v866 = vmul.f32 %v625, %v821
      %v867 = vmul.f32 %v625, %v825
      %v868 = vmul.f32 %v630, %v821
      %v869 = vmul.f32 %v630, %v825
      %v870 = vmul.f32 %v635, %v821
      %v871 = vmul.f32 %v635, %v825
      %v872 = vmul.f32 %v640, %v821
      %v873 = vmul.f32 %v640, %v825
      %v874 = vmul.f32 %v645, %v821
      %v875 = vmul.f32 %v645, %v825
      %v876 = vmul.f32 %v650, %v821
      %v877 = vmul.f32 %v650, %v825
      %v878 = vmul.f32 %v655, %v821
      %v879 = vmul.f32 %v655, %v825
      %v880 = vmul.f32 %v660, %v821
      %v881 = vmul.f32 %v660, %v825
      %v882 = vmul.f32 %v665, %v821
      %v883 = vmul.f32 %v665, %v825
      %v884 = vmul.f32 %v670, %v821
      %v885 = vmul.f32 %v670, %v825
      %v886 = vmul.f32 %v675, %v821
      %v887 = vmul.f32 %v675, %v825
      %v888 = vmul.f32 %v680, %v821
      %v889 = vmul.f32 %v680, %v825
      %v890 = vadd.f32 %v826, 0.0
      %v891 = vadd.f32 %v827, 0.0
      %v892 = vadd.f32 %v828, 0.0
      %v893 = vadd.f32 %v829, 0.0
      %v894 = vadd.f32 %v830, 0.0
      %v895 = vadd.f32 %v831, 0.0
      %v896 = vadd.f32 %v832, 0.0
      %v897 = vadd.f32 %v833, 0.0
      %v898 = vadd.f32 %v834, 0.0
      %v899 = vadd.f32 %v835, 0.0
      %v900 = vadd.f32 %v836, 0.0
      %v901 = vadd.f32 %v837, 0.0
      %v902 = vadd.f32 %v838, 0.0
      %v903 = vadd.f32 %v839, 0.0
      %v904 = vadd.f32 %v840, 0.0
      %v905 = vadd.f32 %v841, 0.0
      %v906 = vadd.f32 %v842, 0.0
      %v907 = vadd.f32 %v843, 0.0
      %v908 = vadd.f32 %v844, 0.0
      %v909 = vadd.f32 %v845, 0.0
      %v910 = vadd.f32 %v846, 0.0
      %v911 = vadd.f32 %v847, 0.0
      %v912 = vadd.f32 %v848, 0.0
      %v913 = vadd.f32 %v849, 0.0
      %v914 = vadd.f32 %v850, 0.0
      %v915 = vadd.f32 %v851, 0.0
      %v916 = vadd.f32 %v852, 0.0
      %v917 = vadd.f32 %v853, 0.0
      %v918 = vadd.f32 %v854, 0.0
      %v919 = vadd.f32 %v855, 0.0
      %v920 = vadd.f32 %v856, 0.0
      %v921 = vadd.f32 %v857, 0.0
      %v922 = vadd.f32 %v858, 0.0
      %v923 = vadd.f32 %v859, 0.0
      %v924 = vadd.f32 %v860, 0.0
      %v925 = vadd.f32 %v861, 0.0
      %v926 = vadd.f32 %v862, 0.0
      %v927 = vadd.f32 %v863, 0.0
      %v928 = vadd.f32 %v864, 0.0
      %v929 = vadd.f32 %v865, 0.0
      %v930 = vadd.f32 %v866, 0.0
      %v931 = vadd.f32 %v867, 0.0
      %v932 = vadd.f32 %v868, 0.0
      %v933 = vadd.f32 %v869, 0.0
      %v934 = vadd.f32 %v870, 0.0
      %v935 = vadd.f32 %v871, 0.0
      %v936 = vadd.f32 %v872, 0.0
      %v937 = vadd.f32 %v873, 0.0
      %v938 = vadd.f32 %v874, 0.0
      %v939 = vadd.f32 %v875, 0.0
      %v940 = vadd.f32 %v876, 0.0
      %v941 = vadd.f32 %v877, 0.0
      %v942 = vadd.f32 %v878, 0.0
      %v943 = vadd.f32 %v879, 0.0
      %v944 = vadd.f32 %v880, 0.0
      %v945 = vadd.f32 %v881, 0.0
      %v946 = vadd.f32 %v882, 0.0
      %v947 = vadd.f32 %v883, 0.0
      %v948 = vadd.f32 %v884, 0.0
      %v949 = vadd.f32 %v885, 0.0
      %v950 = vadd.f32 %v886, 0.0
      %v951 = vadd.f32 %v887, 0.0
      %v952 = vadd.f32 %v888, 0.0
      %v953 = vadd.f32 %v889, 0.0
      %vm954 = vcmp.eq.s32.totalorder %v390, 1
      %vm955 = vcmp.eq.s32.totalorder %v391, 1
      %vm956 = vcmp.eq.s32.totalorder %v392, 1
      %vm957 = vcmp.eq.s32.totalorder %v393, 1
      %vm958 = vcmp.eq.s32.totalorder %v394, 1
      %vm959 = vcmp.eq.s32.totalorder %v395, 1
      %vm960 = vcmp.eq.s32.totalorder %v396, 1
      %vm961 = vcmp.eq.s32.totalorder %v397, 1
      %vm962 = vcmp.eq.s32.totalorder %v398, 1
      %vm963 = vcmp.eq.s32.totalorder %v399, 1
      %vm964 = vcmp.eq.s32.totalorder %v400, 1
      %vm965 = vcmp.eq.s32.totalorder %v401, 1
      %vm966 = vcmp.eq.s32.totalorder %v402, 1
      %vm967 = vcmp.eq.s32.totalorder %v403, 1
      %vm968 = vcmp.eq.s32.totalorder %v404, 1
      %vm969 = vcmp.eq.s32.totalorder %v405, 1
      %vm970 = vcmp.eq.s32.totalorder %v406, 1
      %vm971 = vcmp.eq.s32.totalorder %v407, 1
      %vm972 = vcmp.eq.s32.totalorder %v408, 1
      %vm973 = vcmp.eq.s32.totalorder %v409, 1
      %vm974 = vcmp.eq.s32.totalorder %v410, 1
      %vm975 = vcmp.eq.s32.totalorder %v411, 1
      %vm976 = vcmp.eq.s32.totalorder %v412, 1
      %vm977 = vcmp.eq.s32.totalorder %v413, 1
      %vm978 = vcmp.eq.s32.totalorder %v414, 1
      %vm979 = vcmp.eq.s32.totalorder %v415, 1
      %vm980 = vcmp.eq.s32.totalorder %v416, 1
      %vm981 = vcmp.eq.s32.totalorder %v417, 1
      %vm982 = vcmp.eq.s32.totalorder %v418, 1
      %vm983 = vcmp.eq.s32.totalorder %v419, 1
      %vm984 = vcmp.eq.s32.totalorder %v420, 1
      %vm985 = vcmp.eq.s32.totalorder %v421, 1
      %v986 = vsel %vm954, 1, 0
      %v987 = vsel %vm955, 1, 0
      %v988 = vsel %vm956, 1, 0
      %v989 = vsel %vm957, 1, 0
      %v990 = vsel %vm958, 1, 0
      %v991 = vsel %vm959, 1, 0
      %v992 = vsel %vm960, 1, 0
      %v993 = vsel %vm961, 1, 0
      %v994 = vsel %vm962, 1, 0
      %v995 = vsel %vm963, 1, 0
      %v996 = vsel %vm964, 1, 0
      %v997 = vsel %vm965, 1, 0
      %v998 = vsel %vm966, 1, 0
      %v999 = vsel %vm967, 1, 0
      %v1000 = vsel %vm968, 1, 0
      %v1001 = vsel %vm969, 1, 0
      %v1002 = vsel %vm970, 1, 0
      %v1003 = vsel %vm971, 1, 0
      %v1004 = vsel %vm972, 1, 0
      %v1005 = vsel %vm973, 1, 0
      %v1006 = vsel %vm974, 1, 0
      %v1007 = vsel %vm975, 1, 0
      %v1008 = vsel %vm976, 1, 0
      %v1009 = vsel %vm977, 1, 0
      %v1010 = vsel %vm978, 1, 0
      %v1011 = vsel %vm979, 1, 0
      %v1012 = vsel %vm980, 1, 0
      %v1013 = vsel %vm981, 1, 0
      %v1014 = vsel %vm982, 1, 0
      %v1015 = vsel %vm983, 1, 0
      %v1016 = vsel %vm984, 1, 0
      %v1017 = vsel %vm985, 1, 0
      %v1018 = vcvt.s32.f32 %v986
      %v1019 = vcvt.s32.f32 %v987
      %v1020 = vcvt.s32.f32 %v988
      %v1021 = vcvt.s32.f32 %v989
      %v1022 = vcvt.s32.f32 %v990
      %v1023 = vcvt.s32.f32 %v991
      %v1024 = vcvt.s32.f32 %v992
      %v1025 = vcvt.s32.f32 %v993
      %v1026 = vcvt.s32.f32 %v994
      %v1027 = vcvt.s32.f32 %v995
      %v1028 = vcvt.s32.f32 %v996
      %v1029 = vcvt.s32.f32 %v997
      %v1030 = vcvt.s32.f32 %v998
      %v1031 = vcvt.s32.f32 %v999
      %v1032 = vcvt.s32.f32 %v1000
      %v1033 = vcvt.s32.f32 %v1001
      %v1034 = vcvt.s32.f32 %v1002
      %v1035 = vcvt.s32.f32 %v1003
      %v1036 = vcvt.s32.f32 %v1004
      %v1037 = vcvt.s32.f32 %v1005
      %v1038 = vcvt.s32.f32 %v1006
      %v1039 = vcvt.s32.f32 %v1007
      %v1040 = vcvt.s32.f32 %v1008
      %v1041 = vcvt.s32.f32 %v1009
      %v1042 = vcvt.s32.f32 %v1010
      %v1043 = vcvt.s32.f32 %v1011
      %v1044 = vcvt.s32.f32 %v1012
      %v1045 = vcvt.s32.f32 %v1013
      %v1046 = vcvt.s32.f32 %v1014
      %v1047 = vcvt.s32.f32 %v1015
      %v1048 = vcvt.s32.f32 %v1016
      %v1049 = vcvt.s32.f32 %v1017
      %1051 = vset.pattern.permute.xlu0 0
      %1052 = vperm.xlu0 %1051, %v1018
      %v1053 = vpop.permute.xlu0 %1052
      %1056 = vset.pattern.permute.xlu0 0
      %1057 = vperm.xlu0 %1056, %v1019
      %v1058 = vpop.permute.xlu0 %1057
      %1061 = vset.pattern.permute.xlu0 0
      %1062 = vperm.xlu0 %1061, %v1020
      %v1063 = vpop.permute.xlu0 %1062
      %1066 = vset.pattern.permute.xlu0 0
      %1067 = vperm.xlu0 %1066, %v1021
      %v1068 = vpop.permute.xlu0 %1067
      %1071 = vset.pattern.permute.xlu0 0
      %1072 = vperm.xlu0 %1071, %v1022
      %v1073 = vpop.permute.xlu0 %1072
      %1076 = vset.pattern.permute.xlu0 0
      %1077 = vperm.xlu0 %1076, %v1023
      %v1078 = vpop.permute.xlu0 %1077
      %1081 = vset.pattern.permute.xlu0 0
      %1082 = vperm.xlu0 %1081, %v1024
      %v1083 = vpop.permute.xlu0 %1082
      %1086 = vset.pattern.permute.xlu0 0
      %1087 = vperm.xlu0 %1086, %v1025
      %v1088 = vpop.permute.xlu0 %1087
      %1091 = vset.pattern.permute.xlu0 0
      %1092 = vperm.xlu0 %1091, %v1026
      %v1093 = vpop.permute.xlu0 %1092
      %1096 = vset.pattern.permute.xlu0 0
      %1097 = vperm.xlu0 %1096, %v1027
      %v1098 = vpop.permute.xlu0 %1097
      %1101 = vset.pattern.permute.xlu0 0
      %1102 = vperm.xlu0 %1101, %v1028
      %v1103 = vpop.permute.xlu0 %1102
      %1106 = vset.pattern.permute.xlu0 0
      %1107 = vperm.xlu0 %1106, %v1029
      %v1108 = vpop.permute.xlu0 %1107
      %1111 = vset.pattern.permute.xlu0 0
      %1112 = vperm.xlu0 %1111, %v1030
      %v1113 = vpop.permute.xlu0 %1112
      %1116 = vset.pattern.permute.xlu0 0
      %1117 = vperm.xlu0 %1116, %v1031
      %v1118 = vpop.permute.xlu0 %1117
      %1121 = vset.pattern.permute.xlu0 0
      %1122 = vperm.xlu0 %1121, %v1032
      %v1123 = vpop.permute.xlu0 %1122
      %1126 = vset.pattern.permute.xlu0 0
      %1127 = vperm.xlu0 %1126, %v1033
      %v1128 = vpop.permute.xlu0 %1127
      %1131 = vset.pattern.permute.xlu0 0
      %1132 = vperm.xlu0 %1131, %v1034
      %v1133 = vpop.permute.xlu0 %1132
      %1136 = vset.pattern.permute.xlu0 0
      %1137 = vperm.xlu0 %1136, %v1035
      %v1138 = vpop.permute.xlu0 %1137
      %1141 = vset.pattern.permute.xlu0 0
      %1142 = vperm.xlu0 %1141, %v1036
      %v1143 = vpop.permute.xlu0 %1142
      %1146 = vset.pattern.permute.xlu0 0
      %1147 = vperm.xlu0 %1146, %v1037
      %v1148 = vpop.permute.xlu0 %1147
      %1151 = vset.pattern.permute.xlu0 0
      %1152 = vperm.xlu0 %1151, %v1038
      %v1153 = vpop.permute.xlu0 %1152
      %1156 = vset.pattern.permute.xlu0 0
      %1157 = vperm.xlu0 %1156, %v1039
      %v1158 = vpop.permute.xlu0 %1157
      %1161 = vset.pattern.permute.xlu0 0
      %1162 = vperm.xlu0 %1161, %v1040
      %v1163 = vpop.permute.xlu0 %1162
      %1166 = vset.pattern.permute.xlu0 0
      %1167 = vperm.xlu0 %1166, %v1041
      %v1168 = vpop.permute.xlu0 %1167
      %1171 = vset.pattern.permute.xlu0 0
      %1172 = vperm.xlu0 %1171, %v1042
      %v1173 = vpop.permute.xlu0 %1172
      %1176 = vset.pattern.permute.xlu0 0
      %1177 = vperm.xlu0 %1176, %v1043
      %v1178 = vpop.permute.xlu0 %1177
      %1181 = vset.pattern.permute.xlu0 0
      %1182 = vperm.xlu0 %1181, %v1044
      %v1183 = vpop.permute.xlu0 %1182
      %1186 = vset.pattern.permute.xlu0 0
      %1187 = vperm.xlu0 %1186, %v1045
      %v1188 = vpop.permute.xlu0 %1187
      %1191 = vset.pattern.permute.xlu0 0
      %1192 = vperm.xlu0 %1191, %v1046
      %v1193 = vpop.permute.xlu0 %1192
      %1196 = vset.pattern.permute.xlu0 0
      %1197 = vperm.xlu0 %1196, %v1047
      %v1198 = vpop.permute.xlu0 %1197
      %1201 = vset.pattern.permute.xlu0 0
      %1202 = vperm.xlu0 %1201, %v1048
      %v1203 = vpop.permute.xlu0 %1202
      %1206 = vset.pattern.permute.xlu0 0
      %1207 = vperm.xlu0 %1206, %v1049
      %v1208 = vpop.permute.xlu0 %1207
      %v1210 = vlaneseq
      %v1211 = vshrl.u32 %v1210, 7
      %v1212 = vsub.s32 1, %v1211
      %v1213 = vrot.slane %v422, %v1212
      %v1214 = vlaneseq
      %v1215 = vshrl.u32 %v1214, 7
      %v1216 = vsub.s32 1, %v1215
      %v1217 = vrot.slane %v423, %v1216
      %v1218 = vmul.f32 %v1053, %v1213
      %v1219 = vmul.f32 %v1053, %v1217
      %v1220 = vmul.f32 %v1058, %v1213
      %v1221 = vmul.f32 %v1058, %v1217
      %v1222 = vmul.f32 %v1063, %v1213
      %v1223 = vmul.f32 %v1063, %v1217
      %v1224 = vmul.f32 %v1068, %v1213
      %v1225 = vmul.f32 %v1068, %v1217
      %v1226 = vmul.f32 %v1073, %v1213
      %v1227 = vmul.f32 %v1073, %v1217
      %v1228 = vmul.f32 %v1078, %v1213
      %v1229 = vmul.f32 %v1078, %v1217
      %v1230 = vmul.f32 %v1083, %v1213
      %v1231 = vmul.f32 %v1083, %v1217
      %v1232 = vmul.f32 %v1088, %v1213
      %v1233 = vmul.f32 %v1088, %v1217
      %v1234 = vmul.f32 %v1093, %v1213
      %v1235 = vmul.f32 %v1093, %v1217
      %v1236 = vmul.f32 %v1098, %v1213
      %v1237 = vmul.f32 %v1098, %v1217
      %v1238 = vmul.f32 %v1103, %v1213
      %v1239 = vmul.f32 %v1103, %v1217
      %v1240 = vmul.f32 %v1108, %v1213
      %v1241 = vmul.f32 %v1108, %v1217
      %v1242 = vmul.f32 %v1113, %v1213
      %v1243 = vmul.f32 %v1113, %v1217
      %v1244 = vmul.f32 %v1118, %v1213
      %v1245 = vmul.f32 %v1118, %v1217
      %v1246 = vmul.f32 %v1123, %v1213
      %v1247 = vmul.f32 %v1123, %v1217
      %v1248 = vmul.f32 %v1128, %v1213
      %v1249 = vmul.f32 %v1128, %v1217
      %v1250 = vmul.f32 %v1133, %v1213
      %v1251 = vmul.f32 %v1133, %v1217
      %v1252 = vmul.f32 %v1138, %v1213
      %v1253 = vmul.f32 %v1138, %v1217
      %v1254 = vmul.f32 %v1143, %v1213
      %v1255 = vmul.f32 %v1143, %v1217
      %v1256 = vmul.f32 %v1148, %v1213
      %v1257 = vmul.f32 %v1148, %v1217
      %v1258 = vmul.f32 %v1153, %v1213
      %v1259 = vmul.f32 %v1153, %v1217
      %v1260 = vmul.f32 %v1158, %v1213
      %v1261 = vmul.f32 %v1158, %v1217
      %v1262 = vmul.f32 %v1163, %v1213
      %v1263 = vmul.f32 %v1163, %v1217
      %v1264 = vmul.f32 %v1168, %v1213
      %v1265 = vmul.f32 %v1168, %v1217
      %v1266 = vmul.f32 %v1173, %v1213
      %v1267 = vmul.f32 %v1173, %v1217
      %v1268 = vmul.f32 %v1178, %v1213
      %v1269 = vmul.f32 %v1178, %v1217
      %v1270 = vmul.f32 %v1183, %v1213
      %v1271 = vmul.f32 %v1183, %v1217
      %v1272 = vmul.f32 %v1188, %v1213
      %v1273 = vmul.f32 %v1188, %v1217
      %v1274 = vmul.f32 %v1193, %v1213
      %v1275 = vmul.f32 %v1193, %v1217
      %v1276 = vmul.f32 %v1198, %v1213
      %v1277 = vmul.f32 %v1198, %v1217
      %v1278 = vmul.f32 %v1203, %v1213
      %v1279 = vmul.f32 %v1203, %v1217
      %v1280 = vmul.f32 %v1208, %v1213
      %v1281 = vmul.f32 %v1208, %v1217
      %v1282 = vadd.f32 %v754, %v1218
      %v1283 = vadd.f32 %v755, %v1219
      %v1284 = vadd.f32 %v756, %v1220
      %v1285 = vadd.f32 %v757, %v1221
      %v1286 = vadd.f32 %v758, %v1222
      %v1287 = vadd.f32 %v759, %v1223
      %v1288 = vadd.f32 %v760, %v1224
      %v1289 = vadd.f32 %v761, %v1225
      %v1290 = vadd.f32 %v762, %v1226
      %v1291 = vadd.f32 %v763, %v1227
      %v1292 = vadd.f32 %v764, %v1228
      %v1293 = vadd.f32 %v765, %v1229
      %v1294 = vadd.f32 %v766, %v1230
      %v1295 = vadd.f32 %v767, %v1231
      %v1296 = vadd.f32 %v768, %v1232
      %v1297 = vadd.f32 %v769, %v1233
      %v1298 = vadd.f32 %v770, %v1234
      %v1299 = vadd.f32 %v771, %v1235
      %v1300 = vadd.f32 %v772, %v1236
      %v1301 = vadd.f32 %v773, %v1237
      %v1302 = vadd.f32 %v774, %v1238
      %v1303 = vadd.f32 %v775, %v1239
      %v1304 = vadd.f32 %v776, %v1240
      %v1305 = vadd.f32 %v777, %v1241
      %v1306 = vadd.f32 %v778, %v1242
      %v1307 = vadd.f32 %v779, %v1243
      %v1308 = vadd.f32 %v780, %v1244
      %v1309 = vadd.f32 %v781, %v1245
      %v1310 = vadd.f32 %v782, %v1246
      %v1311 = vadd.f32 %v783, %v1247
      %v1312 = vadd.f32 %v784, %v1248
      %v1313 = vadd.f32 %v785, %v1249
      %v1314 = vadd.f32 %v786, %v1250
      %v1315 = vadd.f32 %v787, %v1251
      %v1316 = vadd.f32 %v788, %v1252
      %v1317 = vadd.f32 %v789, %v1253
      %v1318 = vadd.f32 %v790, %v1254
      %v1319 = vadd.f32 %v791, %v1255
      %v1320 = vadd.f32 %v792, %v1256
      %v1321 = vadd.f32 %v793, %v1257
      %v1322 = vadd.f32 %v794, %v1258
      %v1323 = vadd.f32 %v795, %v1259
      %v1324 = vadd.f32 %v796, %v1260
      %v1325 = vadd.f32 %v797, %v1261
      %v1326 = vadd.f32 %v798, %v1262
      %v1327 = vadd.f32 %v799, %v1263
      %v1328 = vadd.f32 %v800, %v1264
      %v1329 = vadd.f32 %v801, %v1265
      %v1330 = vadd.f32 %v802, %v1266
      %v1331 = vadd.f32 %v803, %v1267
      %v1332 = vadd.f32 %v804, %v1268
      %v1333 = vadd.f32 %v805, %v1269
      %v1334 = vadd.f32 %v806, %v1270
      %v1335 = vadd.f32 %v807, %v1271
      %v1336 = vadd.f32 %v808, %v1272
      %v1337 = vadd.f32 %v809, %v1273
      %v1338 = vadd.f32 %v810, %v1274
      %v1339 = vadd.f32 %v811, %v1275
      %v1340 = vadd.f32 %v812, %v1276
      %v1341 = vadd.f32 %v813, %v1277
      %v1342 = vadd.f32 %v814, %v1278
      %v1343 = vadd.f32 %v815, %v1279
      %v1344 = vadd.f32 %v816, %v1280
      %v1345 = vadd.f32 %v817, %v1281
      %v1346 = vlaneseq
      %v1347 = vshrl.u32 %v1346, 7
      %v1348 = vsub.s32 1, %v1347
      %v1349 = vrot.slane %v424, %v1348
      %v1350 = vlaneseq
      %v1351 = vshrl.u32 %v1350, 7
      %v1352 = vsub.s32 1, %v1351
      %v1353 = vrot.slane %v425, %v1352
      %v1354 = vmul.f32 %v1053, %v1349
      %v1355 = vmul.f32 %v1053, %v1353
      %v1356 = vmul.f32 %v1058, %v1349
      %v1357 = vmul.f32 %v1058, %v1353
      %v1358 = vmul.f32 %v1063, %v1349
      %v1359 = vmul.f32 %v1063, %v1353
      %v1360 = vmul.f32 %v1068, %v1349
      %v1361 = vmul.f32 %v1068, %v1353
      %v1362 = vmul.f32 %v1073, %v1349
      %v1363 = vmul.f32 %v1073, %v1353
      %v1364 = vmul.f32 %v1078, %v1349
      %v1365 = vmul.f32 %v1078, %v1353
      %v1366 = vmul.f32 %v1083, %v1349
      %v1367 = vmul.f32 %v1083, %v1353
      %v1368 = vmul.f32 %v1088, %v1349
      %v1369 = vmul.f32 %v1088, %v1353
      %v1370 = vmul.f32 %v1093, %v1349
      %v1371 = vmul.f32 %v1093, %v1353
      %v1372 = vmul.f32 %v1098, %v1349
      %v1373 = vmul.f32 %v1098, %v1353
      %v1374 = vmul.f32 %v1103, %v1349
      %v1375 = vmul.f32 %v1103, %v1353
      %v1376 = vmul.f32 %v1108, %v1349
      %v1377 = vmul.f32 %v1108, %v1353
      %v1378 = vmul.f32 %v1113, %v1349
      %v1379 = vmul.f32 %v1113, %v1353
      %v1380 = vmul.f32 %v1118, %v1349
      %v1381 = vmul.f32 %v1118, %v1353
      %v1382 = vmul.f32 %v1123, %v1349
      %v1383 = vmul.f32 %v1123, %v1353
      %v1384 = vmul.f32 %v1128, %v1349
      %v1385 = vmul.f32 %v1128, %v1353
      %v1386 = vmul.f32 %v1133, %v1349
      %v1387 = vmul.f32 %v1133, %v1353
      %v1388 = vmul.f32 %v1138, %v1349
      %v1389 = vmul.f32 %v1138, %v1353
      %v1390 = vmul.f32 %v1143, %v1349
      %v1391 = vmul.f32 %v1143, %v1353
      %v1392 = vmul.f32 %v1148, %v1349
      %v1393 = vmul.f32 %v1148, %v1353
      %v1394 = vmul.f32 %v1153, %v1349
      %v1395 = vmul.f32 %v1153, %v1353
      %v1396 = vmul.f32 %v1158, %v1349
      %v1397 = vmul.f32 %v1158, %v1353
      %v1398 = vmul.f32 %v1163, %v1349
      %v1399 = vmul.f32 %v1163, %v1353
      %v1400 = vmul.f32 %v1168, %v1349
      %v1401 = vmul.f32 %v1168, %v1353
      %v1402 = vmul.f32 %v1173, %v1349
      %v1403 = vmul.f32 %v1173, %v1353
      %v1404 = vmul.f32 %v1178, %v1349
      %v1405 = vmul.f32 %v1178, %v1353
      %v1406 = vmul.f32 %v1183, %v1349
      %v1407 = vmul.f32 %v1183, %v1353
      %v1408 = vmul.f32 %v1188, %v1349
      %v1409 = vmul.f32 %v1188, %v1353
      %v1410 = vmul.f32 %v1193, %v1349
      %v1411 = vmul.f32 %v1193, %v1353
      %v1412 = vmul.f32 %v1198, %v1349
      %v1413 = vmul.f32 %v1198, %v1353
      %v1414 = vmul.f32 %v1203, %v1349
      %v1415 = vmul.f32 %v1203, %v1353
      %v1416 = vmul.f32 %v1208, %v1349
      %v1417 = vmul.f32 %v1208, %v1353
      %v1418 = vadd.f32 %v890, %v1354
      %v1419 = vadd.f32 %v891, %v1355
      %v1420 = vadd.f32 %v892, %v1356
      %v1421 = vadd.f32 %v893, %v1357
      %v1422 = vadd.f32 %v894, %v1358
      %v1423 = vadd.f32 %v895, %v1359
      %v1424 = vadd.f32 %v896, %v1360
      %v1425 = vadd.f32 %v897, %v1361
      %v1426 = vadd.f32 %v898, %v1362
      %v1427 = vadd.f32 %v899, %v1363
      %v1428 = vadd.f32 %v900, %v1364
      %v1429 = vadd.f32 %v901, %v1365
      %v1430 = vadd.f32 %v902, %v1366
      %v1431 = vadd.f32 %v903, %v1367
      %v1432 = vadd.f32 %v904, %v1368
      %v1433 = vadd.f32 %v905, %v1369
      %v1434 = vadd.f32 %v906, %v1370
      %v1435 = vadd.f32 %v907, %v1371
      %v1436 = vadd.f32 %v908, %v1372
      %v1437 = vadd.f32 %v909, %v1373
      %v1438 = vadd.f32 %v910, %v1374
      %v1439 = vadd.f32 %v911, %v1375
      %v1440 = vadd.f32 %v912, %v1376
      %v1441 = vadd.f32 %v913, %v1377
      %v1442 = vadd.f32 %v914, %v1378
      %v1443 = vadd.f32 %v915, %v1379
      %v1444 = vadd.f32 %v916, %v1380
      %v1445 = vadd.f32 %v917, %v1381
      %v1446 = vadd.f32 %v918, %v1382
      %v1447 = vadd.f32 %v919, %v1383
      %v1448 = vadd.f32 %v920, %v1384
      %v1449 = vadd.f32 %v921, %v1385
      %v1450 = vadd.f32 %v922, %v1386
      %v1451 = vadd.f32 %v923, %v1387
      %v1452 = vadd.f32 %v924, %v1388
      %v1453 = vadd.f32 %v925, %v1389
      %v1454 = vadd.f32 %v926, %v1390
      %v1455 = vadd.f32 %v927, %v1391
      %v1456 = vadd.f32 %v928, %v1392
      %v1457 = vadd.f32 %v929, %v1393
      %v1458 = vadd.f32 %v930, %v1394
      %v1459 = vadd.f32 %v931, %v1395
      %v1460 = vadd.f32 %v932, %v1396
      %v1461 = vadd.f32 %v933, %v1397
      %v1462 = vadd.f32 %v934, %v1398
      %v1463 = vadd.f32 %v935, %v1399
      %v1464 = vadd.f32 %v936, %v1400
      %v1465 = vadd.f32 %v937, %v1401
      %v1466 = vadd.f32 %v938, %v1402
      %v1467 = vadd.f32 %v939, %v1403
      %v1468 = vadd.f32 %v940, %v1404
      %v1469 = vadd.f32 %v941, %v1405
      %v1470 = vadd.f32 %v942, %v1406
      %v1471 = vadd.f32 %v943, %v1407
      %v1472 = vadd.f32 %v944, %v1408
      %v1473 = vadd.f32 %v945, %v1409
      %v1474 = vadd.f32 %v946, %v1410
      %v1475 = vadd.f32 %v947, %v1411
      %v1476 = vadd.f32 %v948, %v1412
      %v1477 = vadd.f32 %v949, %v1413
      %v1478 = vadd.f32 %v950, %v1414
      %v1479 = vadd.f32 %v951, %v1415
      %v1480 = vadd.f32 %v952, %v1416
      %v1481 = vadd.f32 %v953, %v1417
      %vm1482 = vcmp.eq.s32.totalorder %v390, 2
      %vm1483 = vcmp.eq.s32.totalorder %v391, 2
      %vm1484 = vcmp.eq.s32.totalorder %v392, 2
      %vm1485 = vcmp.eq.s32.totalorder %v393, 2
      %vm1486 = vcmp.eq.s32.totalorder %v394, 2
      %vm1487 = vcmp.eq.s32.totalorder %v395, 2
      %vm1488 = vcmp.eq.s32.totalorder %v396, 2
      %vm1489 = vcmp.eq.s32.totalorder %v397, 2
      %vm1490 = vcmp.eq.s32.totalorder %v398, 2
      %vm1491 = vcmp.eq.s32.totalorder %v399, 2
      %vm1492 = vcmp.eq.s32.totalorder %v400, 2
      %vm1493 = vcmp.eq.s32.totalorder %v401, 2
      %vm1494 = vcmp.eq.s32.totalorder %v402, 2
      %vm1495 = vcmp.eq.s32.totalorder %v403, 2
      %vm1496 = vcmp.eq.s32.totalorder %v404, 2
      %vm1497 = vcmp.eq.s32.totalorder %v405, 2
      %vm1498 = vcmp.eq.s32.totalorder %v406, 2
      %vm1499 = vcmp.eq.s32.totalorder %v407, 2
      %vm1500 = vcmp.eq.s32.totalorder %v408, 2
      %vm1501 = vcmp.eq.s32.totalorder %v409, 2
      %vm1502 = vcmp.eq.s32.totalorder %v410, 2
      %vm1503 = vcmp.eq.s32.totalorder %v411, 2
      %vm1504 = vcmp.eq.s32.totalorder %v412, 2
      %vm1505 = vcmp.eq.s32.totalorder %v413, 2
      %vm1506 = vcmp.eq.s32.totalorder %v414, 2
      %vm1507 = vcmp.eq.s32.totalorder %v415, 2
      %vm1508 = vcmp.eq.s32.totalorder %v416, 2
      %vm1509 = vcmp.eq.s32.totalorder %v417, 2
      %vm1510 = vcmp.eq.s32.totalorder %v418, 2
      %vm1511 = vcmp.eq.s32.totalorder %v419, 2
      %vm1512 = vcmp.eq.s32.totalorder %v420, 2
      %vm1513 = vcmp.eq.s32.totalorder %v421, 2
      %v1514 = vsel %vm1482, 1, 0
      %v1515 = vsel %vm1483, 1, 0
      %v1516 = vsel %vm1484, 1, 0
      %v1517 = vsel %vm1485, 1, 0
      %v1518 = vsel %vm1486, 1, 0
      %v1519 = vsel %vm1487, 1, 0
      %v1520 = vsel %vm1488, 1, 0
      %v1521 = vsel %vm1489, 1, 0
      %v1522 = vsel %vm1490, 1, 0
      %v1523 = vsel %vm1491, 1, 0
      %v1524 = vsel %vm1492, 1, 0
      %v1525 = vsel %vm1493, 1, 0
      %v1526 = vsel %vm1494, 1, 0
      %v1527 = vsel %vm1495, 1, 0
      %v1528 = vsel %vm1496, 1, 0
      %v1529 = vsel %vm1497, 1, 0
      %v1530 = vsel %vm1498, 1, 0
      %v1531 = vsel %vm1499, 1, 0
      %v1532 = vsel %vm1500, 1, 0
      %v1533 = vsel %vm1501, 1, 0
      %v1534 = vsel %vm1502, 1, 0
      %v1535 = vsel %vm1503, 1, 0
      %v1536 = vsel %vm1504, 1, 0
      %v1537 = vsel %vm1505, 1, 0
      %v1538 = vsel %vm1506, 1, 0
      %v1539 = vsel %vm1507, 1, 0
      %v1540 = vsel %vm1508, 1, 0
      %v1541 = vsel %vm1509, 1, 0
      %v1542 = vsel %vm1510, 1, 0
      %v1543 = vsel %vm1511, 1, 0
      %v1544 = vsel %vm1512, 1, 0
      %v1545 = vsel %vm1513, 1, 0
      %v1546 = vcvt.s32.f32 %v1514
      %v1547 = vcvt.s32.f32 %v1515
      %v1548 = vcvt.s32.f32 %v1516
      %v1549 = vcvt.s32.f32 %v1517
      %v1550 = vcvt.s32.f32 %v1518
      %v1551 = vcvt.s32.f32 %v1519
      %v1552 = vcvt.s32.f32 %v1520
      %v1553 = vcvt.s32.f32 %v1521
      %v1554 = vcvt.s32.f32 %v1522
      %v1555 = vcvt.s32.f32 %v1523
      %v1556 = vcvt.s32.f32 %v1524
      %v1557 = vcvt.s32.f32 %v1525
      %v1558 = vcvt.s32.f32 %v1526
      %v1559 = vcvt.s32.f32 %v1527
      %v1560 = vcvt.s32.f32 %v1528
      %v1561 = vcvt.s32.f32 %v1529
      %v1562 = vcvt.s32.f32 %v1530
      %v1563 = vcvt.s32.f32 %v1531
      %v1564 = vcvt.s32.f32 %v1532
      %v1565 = vcvt.s32.f32 %v1533
      %v1566 = vcvt.s32.f32 %v1534
      %v1567 = vcvt.s32.f32 %v1535
      %v1568 = vcvt.s32.f32 %v1536
      %v1569 = vcvt.s32.f32 %v1537
      %v1570 = vcvt.s32.f32 %v1538
      %v1571 = vcvt.s32.f32 %v1539
      %v1572 = vcvt.s32.f32 %v1540
      %v1573 = vcvt.s32.f32 %v1541
      %v1574 = vcvt.s32.f32 %v1542
      %v1575 = vcvt.s32.f32 %v1543
      %v1576 = vcvt.s32.f32 %v1544
      %v1577 = vcvt.s32.f32 %v1545
      %1579 = vset.pattern.permute.xlu0 0
      %1580 = vperm.xlu0 %1579, %v1546
      %v1581 = vpop.permute.xlu0 %1580
      %1584 = vset.pattern.permute.xlu0 0
      %1585 = vperm.xlu0 %1584, %v1547
      %v1586 = vpop.permute.xlu0 %1585
      %1589 = vset.pattern.permute.xlu0 0
      %1590 = vperm.xlu0 %1589, %v1548
      %v1591 = vpop.permute.xlu0 %1590
      %1594 = vset.pattern.permute.xlu0 0
      %1595 = vperm.xlu0 %1594, %v1549
      %v1596 = vpop.permute.xlu0 %1595
      %1599 = vset.pattern.permute.xlu0 0
      %1600 = vperm.xlu0 %1599, %v1550
      %v1601 = vpop.permute.xlu0 %1600
      %1604 = vset.pattern.permute.xlu0 0
      %1605 = vperm.xlu0 %1604, %v1551
      %v1606 = vpop.permute.xlu0 %1605
      %1609 = vset.pattern.permute.xlu0 0
      %1610 = vperm.xlu0 %1609, %v1552
      %v1611 = vpop.permute.xlu0 %1610
      %1614 = vset.pattern.permute.xlu0 0
      %1615 = vperm.xlu0 %1614, %v1553
      %v1616 = vpop.permute.xlu0 %1615
      %1619 = vset.pattern.permute.xlu0 0
      %1620 = vperm.xlu0 %1619, %v1554
      %v1621 = vpop.permute.xlu0 %1620
      %1624 = vset.pattern.permute.xlu0 0
      %1625 = vperm.xlu0 %1624, %v1555
      %v1626 = vpop.permute.xlu0 %1625
      %1629 = vset.pattern.permute.xlu0 0
      %1630 = vperm.xlu0 %1629, %v1556
      %v1631 = vpop.permute.xlu0 %1630
      %1634 = vset.pattern.permute.xlu0 0
      %1635 = vperm.xlu0 %1634, %v1557
      %v1636 = vpop.permute.xlu0 %1635
      %1639 = vset.pattern.permute.xlu0 0
      %1640 = vperm.xlu0 %1639, %v1558
      %v1641 = vpop.permute.xlu0 %1640
      %1644 = vset.pattern.permute.xlu0 0
      %1645 = vperm.xlu0 %1644, %v1559
      %v1646 = vpop.permute.xlu0 %1645
      %1649 = vset.pattern.permute.xlu0 0
      %1650 = vperm.xlu0 %1649, %v1560
      %v1651 = vpop.permute.xlu0 %1650
      %1654 = vset.pattern.permute.xlu0 0
      %1655 = vperm.xlu0 %1654, %v1561
      %v1656 = vpop.permute.xlu0 %1655
      %1659 = vset.pattern.permute.xlu0 0
      %1660 = vperm.xlu0 %1659, %v1562
      %v1661 = vpop.permute.xlu0 %1660
      %1664 = vset.pattern.permute.xlu0 0
      %1665 = vperm.xlu0 %1664, %v1563
      %v1666 = vpop.permute.xlu0 %1665
      %1669 = vset.pattern.permute.xlu0 0
      %1670 = vperm.xlu0 %1669, %v1564
      %v1671 = vpop.permute.xlu0 %1670
      %1674 = vset.pattern.permute.xlu0 0
      %1675 = vperm.xlu0 %1674, %v1565
      %v1676 = vpop.permute.xlu0 %1675
      %1679 = vset.pattern.permute.xlu0 0
      %1680 = vperm.xlu0 %1679, %v1566
      %v1681 = vpop.permute.xlu0 %1680
      %1684 = vset.pattern.permute.xlu0 0
      %1685 = vperm.xlu0 %1684, %v1567
      %v1686 = vpop.permute.xlu0 %1685
      %1689 = vset.pattern.permute.xlu0 0
      %1690 = vperm.xlu0 %1689, %v1568
      %v1691 = vpop.permute.xlu0 %1690
      %1694 = vset.pattern.permute.xlu0 0
      %1695 = vperm.xlu0 %1694, %v1569
      %v1696 = vpop.permute.xlu0 %1695
      %1699 = vset.pattern.permute.xlu0 0
      %1700 = vperm.xlu0 %1699, %v1570
      %v1701 = vpop.permute.xlu0 %1700
      %1704 = vset.pattern.permute.xlu0 0
      %1705 = vperm.xlu0 %1704, %v1571
      %v1706 = vpop.permute.xlu0 %1705
      %1709 = vset.pattern.permute.xlu0 0
      %1710 = vperm.xlu0 %1709, %v1572
      %v1711 = vpop.permute.xlu0 %1710
      %1714 = vset.pattern.permute.xlu0 0
      %1715 = vperm.xlu0 %1714, %v1573
      %v1716 = vpop.permute.xlu0 %1715
      %1719 = vset.pattern.permute.xlu0 0
      %1720 = vperm.xlu0 %1719, %v1574
      %v1721 = vpop.permute.xlu0 %1720
      %1724 = vset.pattern.permute.xlu0 0
      %1725 = vperm.xlu0 %1724, %v1575
      %v1726 = vpop.permute.xlu0 %1725
      %1729 = vset.pattern.permute.xlu0 0
      %1730 = vperm.xlu0 %1729, %v1576
      %v1731 = vpop.permute.xlu0 %1730
      %1734 = vset.pattern.permute.xlu0 0
      %1735 = vperm.xlu0 %1734, %v1577
      %v1736 = vpop.permute.xlu0 %1735
      %v1738 = vlaneseq
      %v1739 = vshrl.u32 %v1738, 7
      %v1740 = vsub.s32 2, %v1739
      %v1741 = vrot.slane %v422, %v1740
      %v1742 = vlaneseq
      %v1743 = vshrl.u32 %v1742, 7
      %v1744 = vsub.s32 2, %v1743
      %v1745 = vrot.slane %v423, %v1744
      %v1746 = vmul.f32 %v1581, %v1741
      %v1747 = vmul.f32 %v1581, %v1745
      %v1748 = vmul.f32 %v1586, %v1741
      %v1749 = vmul.f32 %v1586, %v1745
      %v1750 = vmul.f32 %v1591, %v1741
      %v1751 = vmul.f32 %v1591, %v1745
      %v1752 = vmul.f32 %v1596, %v1741
      %v1753 = vmul.f32 %v1596, %v1745
      %v1754 = vmul.f32 %v1601, %v1741
      %v1755 = vmul.f32 %v1601, %v1745
      %v1756 = vmul.f32 %v1606, %v1741
      %v1757 = vmul.f32 %v1606, %v1745
      %v1758 = vmul.f32 %v1611, %v1741
      %v1759 = vmul.f32 %v1611, %v1745
      %v1760 = vmul.f32 %v1616, %v1741
      %v1761 = vmul.f32 %v1616, %v1745
      %v1762 = vmul.f32 %v1621, %v1741
      %v1763 = vmul.f32 %v1621, %v1745
      %v1764 = vmul.f32 %v1626, %v1741
      %v1765 = vmul.f32 %v1626, %v1745
      %v1766 = vmul.f32 %v1631, %v1741
      %v1767 = vmul.f32 %v1631, %v1745
      %v1768 = vmul.f32 %v1636, %v1741
      %v1769 = vmul.f32 %v1636, %v1745
      %v1770 = vmul.f32 %v1641, %v1741
      %v1771 = vmul.f32 %v1641, %v1745
      %v1772 = vmul.f32 %v1646, %v1741
      %v1773 = vmul.f32 %v1646, %v1745
      %v1774 = vmul.f32 %v1651, %v1741
      %v1775 = vmul.f32 %v1651, %v1745
      %v1776 = vmul.f32 %v1656, %v1741
      %v1777 = vmul.f32 %v1656, %v1745
      %v1778 = vmul.f32 %v1661, %v1741
      %v1779 = vmul.f32 %v1661, %v1745
      %v1780 = vmul.f32 %v1666, %v1741
      %v1781 = vmul.f32 %v1666, %v1745
      %v1782 = vmul.f32 %v1671, %v1741
      %v1783 = vmul.f32 %v1671, %v1745
      %v1784 = vmul.f32 %v1676, %v1741
      %v1785 = vmul.f32 %v1676, %v1745
      %v1786 = vmul.f32 %v1681, %v1741
      %v1787 = vmul.f32 %v1681, %v1745
      %v1788 = vmul.f32 %v1686, %v1741
      %v1789 = vmul.f32 %v1686, %v1745
      %v1790 = vmul.f32 %v1691, %v1741
      %v1791 = vmul.f32 %v1691, %v1745
      %v1792 = vmul.f32 %v1696, %v1741
      %v1793 = vmul.f32 %v1696, %v1745
      %v1794 = vmul.f32 %v1701, %v1741
      %v1795 = vmul.f32 %v1701, %v1745
      %v1796 = vmul.f32 %v1706, %v1741
      %v1797 = vmul.f32 %v1706, %v1745
      %v1798 = vmul.f32 %v1711, %v1741
      %v1799 = vmul.f32 %v1711, %v1745
      %v1800 = vmul.f32 %v1716, %v1741
      %v1801 = vmul.f32 %v1716, %v1745
      %v1802 = vmul.f32 %v1721, %v1741
      %v1803 = vmul.f32 %v1721, %v1745
      %v1804 = vmul.f32 %v1726, %v1741
      %v1805 = vmul.f32 %v1726, %v1745
      %v1806 = vmul.f32 %v1731, %v1741
      %v1807 = vmul.f32 %v1731, %v1745
      %v1808 = vmul.f32 %v1736, %v1741
      %v1809 = vmul.f32 %v1736, %v1745
      %v1810 = vadd.f32 %v1282, %v1746
      %v1811 = vadd.f32 %v1283, %v1747
      %v1812 = vadd.f32 %v1284, %v1748
      %v1813 = vadd.f32 %v1285, %v1749
      %v1814 = vadd.f32 %v1286, %v1750
      %v1815 = vadd.f32 %v1287, %v1751
      %v1816 = vadd.f32 %v1288, %v1752
      %v1817 = vadd.f32 %v1289, %v1753
      %v1818 = vadd.f32 %v1290, %v1754
      %v1819 = vadd.f32 %v1291, %v1755
      %v1820 = vadd.f32 %v1292, %v1756
      %v1821 = vadd.f32 %v1293, %v1757
      %v1822 = vadd.f32 %v1294, %v1758
      %v1823 = vadd.f32 %v1295, %v1759
      %v1824 = vadd.f32 %v1296, %v1760
      %v1825 = vadd.f32 %v1297, %v1761
      %v1826 = vadd.f32 %v1298, %v1762
      %v1827 = vadd.f32 %v1299, %v1763
      %v1828 = vadd.f32 %v1300, %v1764
      %v1829 = vadd.f32 %v1301, %v1765
      %v1830 = vadd.f32 %v1302, %v1766
      %v1831 = vadd.f32 %v1303, %v1767
      %v1832 = vadd.f32 %v1304, %v1768
      %v1833 = vadd.f32 %v1305, %v1769
      %v1834 = vadd.f32 %v1306, %v1770
      %v1835 = vadd.f32 %v1307, %v1771
      %v1836 = vadd.f32 %v1308, %v1772
      %v1837 = vadd.f32 %v1309, %v1773
      %v1838 = vadd.f32 %v1310, %v1774
      %v1839 = vadd.f32 %v1311, %v1775
      %v1840 = vadd.f32 %v1312, %v1776
      %v1841 = vadd.f32 %v1313, %v1777
      %v1842 = vadd.f32 %v1314, %v1778
      %v1843 = vadd.f32 %v1315, %v1779
      %v1844 = vadd.f32 %v1316, %v1780
      %v1845 = vadd.f32 %v1317, %v1781
      %v1846 = vadd.f32 %v1318, %v1782
      %v1847 = vadd.f32 %v1319, %v1783
      %v1848 = vadd.f32 %v1320, %v1784
      %v1849 = vadd.f32 %v1321, %v1785
      %v1850 = vadd.f32 %v1322, %v1786
      %v1851 = vadd.f32 %v1323, %v1787
      %v1852 = vadd.f32 %v1324, %v1788
      %v1853 = vadd.f32 %v1325, %v1789
      %v1854 = vadd.f32 %v1326, %v1790
      %v1855 = vadd.f32 %v1327, %v1791
      %v1856 = vadd.f32 %v1328, %v1792
      %v1857 = vadd.f32 %v1329, %v1793
      %v1858 = vadd.f32 %v1330, %v1794
      %v1859 = vadd.f32 %v1331, %v1795
      %v1860 = vadd.f32 %v1332, %v1796
      %v1861 = vadd.f32 %v1333, %v1797
      %v1862 = vadd.f32 %v1334, %v1798
      %v1863 = vadd.f32 %v1335, %v1799
      %v1864 = vadd.f32 %v1336, %v1800
      %v1865 = vadd.f32 %v1337, %v1801
      %v1866 = vadd.f32 %v1338, %v1802
      %v1867 = vadd.f32 %v1339, %v1803
      %v1868 = vadd.f32 %v1340, %v1804
      %v1869 = vadd.f32 %v1341, %v1805
      %v1870 = vadd.f32 %v1342, %v1806
      %v1871 = vadd.f32 %v1343, %v1807
      %v1872 = vadd.f32 %v1344, %v1808
      %v1873 = vadd.f32 %v1345, %v1809
      %v1874 = vlaneseq
      %v1875 = vshrl.u32 %v1874, 7
      %v1876 = vsub.s32 2, %v1875
      %v1877 = vrot.slane %v424, %v1876
      %v1878 = vlaneseq
      %v1879 = vshrl.u32 %v1878, 7
      %v1880 = vsub.s32 2, %v1879
      %v1881 = vrot.slane %v425, %v1880
      %v1882 = vmul.f32 %v1581, %v1877
      %v1883 = vmul.f32 %v1581, %v1881
      %v1884 = vmul.f32 %v1586, %v1877
      %v1885 = vmul.f32 %v1586, %v1881
      %v1886 = vmul.f32 %v1591, %v1877
      %v1887 = vmul.f32 %v1591, %v1881
      %v1888 = vmul.f32 %v1596, %v1877
      %v1889 = vmul.f32 %v1596, %v1881
      %v1890 = vmul.f32 %v1601, %v1877
      %v1891 = vmul.f32 %v1601, %v1881
      %v1892 = vmul.f32 %v1606, %v1877
      %v1893 = vmul.f32 %v1606, %v1881
      %v1894 = vmul.f32 %v1611, %v1877
      %v1895 = vmul.f32 %v1611, %v1881
      %v1896 = vmul.f32 %v1616, %v1877
      %v1897 = vmul.f32 %v1616, %v1881
      %v1898 = vmul.f32 %v1621, %v1877
      %v1899 = vmul.f32 %v1621, %v1881
      %v1900 = vmul.f32 %v1626, %v1877
      %v1901 = vmul.f32 %v1626, %v1881
      %v1902 = vmul.f32 %v1631, %v1877
      %v1903 = vmul.f32 %v1631, %v1881
      %v1904 = vmul.f32 %v1636, %v1877
      %v1905 = vmul.f32 %v1636, %v1881
      %v1906 = vmul.f32 %v1641, %v1877
      %v1907 = vmul.f32 %v1641, %v1881
      %v1908 = vmul.f32 %v1646, %v1877
      %v1909 = vmul.f32 %v1646, %v1881
      %v1910 = vmul.f32 %v1651, %v1877
      %v1911 = vmul.f32 %v1651, %v1881
      %v1912 = vmul.f32 %v1656, %v1877
      %v1913 = vmul.f32 %v1656, %v1881
      %v1914 = vmul.f32 %v1661, %v1877
      %v1915 = vmul.f32 %v1661, %v1881
      %v1916 = vmul.f32 %v1666, %v1877
      %v1917 = vmul.f32 %v1666, %v1881
      %v1918 = vmul.f32 %v1671, %v1877
      %v1919 = vmul.f32 %v1671, %v1881
      %v1920 = vmul.f32 %v1676, %v1877
      %v1921 = vmul.f32 %v1676, %v1881
      %v1922 = vmul.f32 %v1681, %v1877
      %v1923 = vmul.f32 %v1681, %v1881
      %v1924 = vmul.f32 %v1686, %v1877
      %v1925 = vmul.f32 %v1686, %v1881
      %v1926 = vmul.f32 %v1691, %v1877
      %v1927 = vmul.f32 %v1691, %v1881
      %v1928 = vmul.f32 %v1696, %v1877
      %v1929 = vmul.f32 %v1696, %v1881
      %v1930 = vmul.f32 %v1701, %v1877
      %v1931 = vmul.f32 %v1701, %v1881
      %v1932 = vmul.f32 %v1706, %v1877
      %v1933 = vmul.f32 %v1706, %v1881
      %v1934 = vmul.f32 %v1711, %v1877
      %v1935 = vmul.f32 %v1711, %v1881
      %v1936 = vmul.f32 %v1716, %v1877
      %v1937 = vmul.f32 %v1716, %v1881
      %v1938 = vmul.f32 %v1721, %v1877
      %v1939 = vmul.f32 %v1721, %v1881
      %v1940 = vmul.f32 %v1726, %v1877
      %v1941 = vmul.f32 %v1726, %v1881
      %v1942 = vmul.f32 %v1731, %v1877
      %v1943 = vmul.f32 %v1731, %v1881
      %v1944 = vmul.f32 %v1736, %v1877
      %v1945 = vmul.f32 %v1736, %v1881
      %v1946 = vadd.f32 %v1418, %v1882
      %v1947 = vadd.f32 %v1419, %v1883
      %v1948 = vadd.f32 %v1420, %v1884
      %v1949 = vadd.f32 %v1421, %v1885
      %v1950 = vadd.f32 %v1422, %v1886
      %v1951 = vadd.f32 %v1423, %v1887
      %v1952 = vadd.f32 %v1424, %v1888
      %v1953 = vadd.f32 %v1425, %v1889
      %v1954 = vadd.f32 %v1426, %v1890
      %v1955 = vadd.f32 %v1427, %v1891
      %v1956 = vadd.f32 %v1428, %v1892
      %v1957 = vadd.f32 %v1429, %v1893
      %v1958 = vadd.f32 %v1430, %v1894
      %v1959 = vadd.f32 %v1431, %v1895
      %v1960 = vadd.f32 %v1432, %v1896
      %v1961 = vadd.f32 %v1433, %v1897
      %v1962 = vadd.f32 %v1434, %v1898
      %v1963 = vadd.f32 %v1435, %v1899
      %v1964 = vadd.f32 %v1436, %v1900
      %v1965 = vadd.f32 %v1437, %v1901
      %v1966 = vadd.f32 %v1438, %v1902
      %v1967 = vadd.f32 %v1439, %v1903
      %v1968 = vadd.f32 %v1440, %v1904
      %v1969 = vadd.f32 %v1441, %v1905
      %v1970 = vadd.f32 %v1442, %v1906
      %v1971 = vadd.f32 %v1443, %v1907
      %v1972 = vadd.f32 %v1444, %v1908
      %v1973 = vadd.f32 %v1445, %v1909
      %v1974 = vadd.f32 %v1446, %v1910
      %v1975 = vadd.f32 %v1447, %v1911
      %v1976 = vadd.f32 %v1448, %v1912
      %v1977 = vadd.f32 %v1449, %v1913
      %v1978 = vadd.f32 %v1450, %v1914
      %v1979 = vadd.f32 %v1451, %v1915
      %v1980 = vadd.f32 %v1452, %v1916
      %v1981 = vadd.f32 %v1453, %v1917
      %v1982 = vadd.f32 %v1454, %v1918
      %v1983 = vadd.f32 %v1455, %v1919
      %v1984 = vadd.f32 %v1456, %v1920
      %v1985 = vadd.f32 %v1457, %v1921
      %v1986 = vadd.f32 %v1458, %v1922
      %v1987 = vadd.f32 %v1459, %v1923
      %v1988 = vadd.f32 %v1460, %v1924
      %v1989 = vadd.f32 %v1461, %v1925
      %v1990 = vadd.f32 %v1462, %v1926
      %v1991 = vadd.f32 %v1463, %v1927
      %v1992 = vadd.f32 %v1464, %v1928
      %v1993 = vadd.f32 %v1465, %v1929
      %v1994 = vadd.f32 %v1466, %v1930
      %v1995 = vadd.f32 %v1467, %v1931
      %v1996 = vadd.f32 %v1468, %v1932
      %v1997 = vadd.f32 %v1469, %v1933
      %v1998 = vadd.f32 %v1470, %v1934
      %v1999 = vadd.f32 %v1471, %v1935
      %v2000 = vadd.f32 %v1472, %v1936
      %v2001 = vadd.f32 %v1473, %v1937
      %v2002 = vadd.f32 %v1474, %v1938
      %v2003 = vadd.f32 %v1475, %v1939
      %v2004 = vadd.f32 %v1476, %v1940
      %v2005 = vadd.f32 %v1477, %v1941
      %v2006 = vadd.f32 %v1478, %v1942
      %v2007 = vadd.f32 %v1479, %v1943
      %v2008 = vadd.f32 %v1480, %v1944
      %v2009 = vadd.f32 %v1481, %v1945
      %vm2010 = vcmp.eq.s32.totalorder %v390, 3
      %vm2011 = vcmp.eq.s32.totalorder %v391, 3
      %vm2012 = vcmp.eq.s32.totalorder %v392, 3
      %vm2013 = vcmp.eq.s32.totalorder %v393, 3
      %vm2014 = vcmp.eq.s32.totalorder %v394, 3
      %vm2015 = vcmp.eq.s32.totalorder %v395, 3
      %vm2016 = vcmp.eq.s32.totalorder %v396, 3
      %vm2017 = vcmp.eq.s32.totalorder %v397, 3
      %vm2018 = vcmp.eq.s32.totalorder %v398, 3
      %vm2019 = vcmp.eq.s32.totalorder %v399, 3
      %vm2020 = vcmp.eq.s32.totalorder %v400, 3
      %vm2021 = vcmp.eq.s32.totalorder %v401, 3
      %vm2022 = vcmp.eq.s32.totalorder %v402, 3
      %vm2023 = vcmp.eq.s32.totalorder %v403, 3
      %vm2024 = vcmp.eq.s32.totalorder %v404, 3
      %vm2025 = vcmp.eq.s32.totalorder %v405, 3
      %vm2026 = vcmp.eq.s32.totalorder %v406, 3
      %vm2027 = vcmp.eq.s32.totalorder %v407, 3
      %vm2028 = vcmp.eq.s32.totalorder %v408, 3
      %vm2029 = vcmp.eq.s32.totalorder %v409, 3
      %vm2030 = vcmp.eq.s32.totalorder %v410, 3
      %vm2031 = vcmp.eq.s32.totalorder %v411, 3
      %vm2032 = vcmp.eq.s32.totalorder %v412, 3
      %vm2033 = vcmp.eq.s32.totalorder %v413, 3
      %vm2034 = vcmp.eq.s32.totalorder %v414, 3
      %vm2035 = vcmp.eq.s32.totalorder %v415, 3
      %vm2036 = vcmp.eq.s32.totalorder %v416, 3
      %vm2037 = vcmp.eq.s32.totalorder %v417, 3
      %vm2038 = vcmp.eq.s32.totalorder %v418, 3
      %vm2039 = vcmp.eq.s32.totalorder %v419, 3
      %vm2040 = vcmp.eq.s32.totalorder %v420, 3
      %vm2041 = vcmp.eq.s32.totalorder %v421, 3
      %v2042 = vsel %vm2010, 1, 0
      %v2043 = vsel %vm2011, 1, 0
      %v2044 = vsel %vm2012, 1, 0
      %v2045 = vsel %vm2013, 1, 0
      %v2046 = vsel %vm2014, 1, 0
      %v2047 = vsel %vm2015, 1, 0
      %v2048 = vsel %vm2016, 1, 0
      %v2049 = vsel %vm2017, 1, 0
      %v2050 = vsel %vm2018, 1, 0
      %v2051 = vsel %vm2019, 1, 0
      %v2052 = vsel %vm2020, 1, 0
      %v2053 = vsel %vm2021, 1, 0
      %v2054 = vsel %vm2022, 1, 0
      %v2055 = vsel %vm2023, 1, 0
      %v2056 = vsel %vm2024, 1, 0
      %v2057 = vsel %vm2025, 1, 0
      %v2058 = vsel %vm2026, 1, 0
      %v2059 = vsel %vm2027, 1, 0
      %v2060 = vsel %vm2028, 1, 0
      %v2061 = vsel %vm2029, 1, 0
      %v2062 = vsel %vm2030, 1, 0
      %v2063 = vsel %vm2031, 1, 0
      %v2064 = vsel %vm2032, 1, 0
      %v2065 = vsel %vm2033, 1, 0
      %v2066 = vsel %vm2034, 1, 0
      %v2067 = vsel %vm2035, 1, 0
      %v2068 = vsel %vm2036, 1, 0
      %v2069 = vsel %vm2037, 1, 0
      %v2070 = vsel %vm2038, 1, 0
      %v2071 = vsel %vm2039, 1, 0
      %v2072 = vsel %vm2040, 1, 0
      %v2073 = vsel %vm2041, 1, 0
      %v2074 = vcvt.s32.f32 %v2042
      %v2075 = vcvt.s32.f32 %v2043
      %v2076 = vcvt.s32.f32 %v2044
      %v2077 = vcvt.s32.f32 %v2045
      %v2078 = vcvt.s32.f32 %v2046
      %v2079 = vcvt.s32.f32 %v2047
      %v2080 = vcvt.s32.f32 %v2048
      %v2081 = vcvt.s32.f32 %v2049
      %v2082 = vcvt.s32.f32 %v2050
      %v2083 = vcvt.s32.f32 %v2051
      %v2084 = vcvt.s32.f32 %v2052
      %v2085 = vcvt.s32.f32 %v2053
      %v2086 = vcvt.s32.f32 %v2054
      %v2087 = vcvt.s32.f32 %v2055
      %v2088 = vcvt.s32.f32 %v2056
      %v2089 = vcvt.s32.f32 %v2057
      %v2090 = vcvt.s32.f32 %v2058
      %v2091 = vcvt.s32.f32 %v2059
      %v2092 = vcvt.s32.f32 %v2060
      %v2093 = vcvt.s32.f32 %v2061
      %v2094 = vcvt.s32.f32 %v2062
      %v2095 = vcvt.s32.f32 %v2063
      %v2096 = vcvt.s32.f32 %v2064
      %v2097 = vcvt.s32.f32 %v2065
      %v2098 = vcvt.s32.f32 %v2066
      %v2099 = vcvt.s32.f32 %v2067
      %v2100 = vcvt.s32.f32 %v2068
      %v2101 = vcvt.s32.f32 %v2069
      %v2102 = vcvt.s32.f32 %v2070
      %v2103 = vcvt.s32.f32 %v2071
      %v2104 = vcvt.s32.f32 %v2072
      %v2105 = vcvt.s32.f32 %v2073
      %2107 = vset.pattern.permute.xlu0 0
      %2108 = vperm.xlu0 %2107, %v2074
      %v2109 = vpop.permute.xlu0 %2108
      %2112 = vset.pattern.permute.xlu0 0
      %2113 = vperm.xlu0 %2112, %v2075
      %v2114 = vpop.permute.xlu0 %2113
      %2117 = vset.pattern.permute.xlu0 0
      %2118 = vperm.xlu0 %2117, %v2076
      %v2119 = vpop.permute.xlu0 %2118
      %2122 = vset.pattern.permute.xlu0 0
      %2123 = vperm.xlu0 %2122, %v2077
      %v2124 = vpop.permute.xlu0 %2123
      %2127 = vset.pattern.permute.xlu0 0
      %2128 = vperm.xlu0 %2127, %v2078
      %v2129 = vpop.permute.xlu0 %2128
      %2132 = vset.pattern.permute.xlu0 0
      %2133 = vperm.xlu0 %2132, %v2079
      %v2134 = vpop.permute.xlu0 %2133
      %2137 = vset.pattern.permute.xlu0 0
      %2138 = vperm.xlu0 %2137, %v2080
      %v2139 = vpop.permute.xlu0 %2138
      %2142 = vset.pattern.permute.xlu0 0
      %2143 = vperm.xlu0 %2142, %v2081
      %v2144 = vpop.permute.xlu0 %2143
      %2147 = vset.pattern.permute.xlu0 0
      %2148 = vperm.xlu0 %2147, %v2082
      %v2149 = vpop.permute.xlu0 %2148
      %2152 = vset.pattern.permute.xlu0 0
      %2153 = vperm.xlu0 %2152, %v2083
      %v2154 = vpop.permute.xlu0 %2153
      %2157 = vset.pattern.permute.xlu0 0
      %2158 = vperm.xlu0 %2157, %v2084
      %v2159 = vpop.permute.xlu0 %2158
      %2162 = vset.pattern.permute.xlu0 0
      %2163 = vperm.xlu0 %2162, %v2085
      %v2164 = vpop.permute.xlu0 %2163
      %2167 = vset.pattern.permute.xlu0 0
      %2168 = vperm.xlu0 %2167, %v2086
      %v2169 = vpop.permute.xlu0 %2168
      %2172 = vset.pattern.permute.xlu0 0
      %2173 = vperm.xlu0 %2172, %v2087
      %v2174 = vpop.permute.xlu0 %2173
      %2177 = vset.pattern.permute.xlu0 0
      %2178 = vperm.xlu0 %2177, %v2088
      %v2179 = vpop.permute.xlu0 %2178
      %2182 = vset.pattern.permute.xlu0 0
      %2183 = vperm.xlu0 %2182, %v2089
      %v2184 = vpop.permute.xlu0 %2183
      %2187 = vset.pattern.permute.xlu0 0
      %2188 = vperm.xlu0 %2187, %v2090
      %v2189 = vpop.permute.xlu0 %2188
      %2192 = vset.pattern.permute.xlu0 0
      %2193 = vperm.xlu0 %2192, %v2091
      %v2194 = vpop.permute.xlu0 %2193
      %2197 = vset.pattern.permute.xlu0 0
      %2198 = vperm.xlu0 %2197, %v2092
      %v2199 = vpop.permute.xlu0 %2198
      %2202 = vset.pattern.permute.xlu0 0
      %2203 = vperm.xlu0 %2202, %v2093
      %v2204 = vpop.permute.xlu0 %2203
      %2207 = vset.pattern.permute.xlu0 0
      %2208 = vperm.xlu0 %2207, %v2094
      %v2209 = vpop.permute.xlu0 %2208
      %2212 = vset.pattern.permute.xlu0 0
      %2213 = vperm.xlu0 %2212, %v2095
      %v2214 = vpop.permute.xlu0 %2213
      %2217 = vset.pattern.permute.xlu0 0
      %2218 = vperm.xlu0 %2217, %v2096
      %v2219 = vpop.permute.xlu0 %2218
      %2222 = vset.pattern.permute.xlu0 0
      %2223 = vperm.xlu0 %2222, %v2097
      %v2224 = vpop.permute.xlu0 %2223
      %2227 = vset.pattern.permute.xlu0 0
      %2228 = vperm.xlu0 %2227, %v2098
      %v2229 = vpop.permute.xlu0 %2228
      %2232 = vset.pattern.permute.xlu0 0
      %2233 = vperm.xlu0 %2232, %v2099
      %v2234 = vpop.permute.xlu0 %2233
      %2237 = vset.pattern.permute.xlu0 0
      %2238 = vperm.xlu0 %2237, %v2100
      %v2239 = vpop.permute.xlu0 %2238
      %2242 = vset.pattern.permute.xlu0 0
      %2243 = vperm.xlu0 %2242, %v2101
      %v2244 = vpop.permute.xlu0 %2243
      %2247 = vset.pattern.permute.xlu0 0
      %2248 = vperm.xlu0 %2247, %v2102
      %v2249 = vpop.permute.xlu0 %2248
      %2252 = vset.pattern.permute.xlu0 0
      %2253 = vperm.xlu0 %2252, %v2103
      %v2254 = vpop.permute.xlu0 %2253
      %2257 = vset.pattern.permute.xlu0 0
      %2258 = vperm.xlu0 %2257, %v2104
      %v2259 = vpop.permute.xlu0 %2258
      %2262 = vset.pattern.permute.xlu0 0
      %2263 = vperm.xlu0 %2262, %v2105
      %v2264 = vpop.permute.xlu0 %2263
      %v2266 = vlaneseq
      %v2267 = vshrl.u32 %v2266, 7
      %v2268 = vsub.s32 3, %v2267
      %v2269 = vrot.slane %v422, %v2268
      %v2270 = vlaneseq
      %v2271 = vshrl.u32 %v2270, 7
      %v2272 = vsub.s32 3, %v2271
      %v2273 = vrot.slane %v423, %v2272
      %v2274 = vmul.f32 %v2109, %v2269
      %v2275 = vmul.f32 %v2109, %v2273
      %v2276 = vmul.f32 %v2114, %v2269
      %v2277 = vmul.f32 %v2114, %v2273
      %v2278 = vmul.f32 %v2119, %v2269
      %v2279 = vmul.f32 %v2119, %v2273
      %v2280 = vmul.f32 %v2124, %v2269
      %v2281 = vmul.f32 %v2124, %v2273
      %v2282 = vmul.f32 %v2129, %v2269
      %v2283 = vmul.f32 %v2129, %v2273
      %v2284 = vmul.f32 %v2134, %v2269
      %v2285 = vmul.f32 %v2134, %v2273
      %v2286 = vmul.f32 %v2139, %v2269
      %v2287 = vmul.f32 %v2139, %v2273
      %v2288 = vmul.f32 %v2144, %v2269
      %v2289 = vmul.f32 %v2144, %v2273
      %v2290 = vmul.f32 %v2149, %v2269
      %v2291 = vmul.f32 %v2149, %v2273
      %v2292 = vmul.f32 %v2154, %v2269
      %v2293 = vmul.f32 %v2154, %v2273
      %v2294 = vmul.f32 %v2159, %v2269
      %v2295 = vmul.f32 %v2159, %v2273
      %v2296 = vmul.f32 %v2164, %v2269
      %v2297 = vmul.f32 %v2164, %v2273
      %v2298 = vmul.f32 %v2169, %v2269
      %v2299 = vmul.f32 %v2169, %v2273
      %v2300 = vmul.f32 %v2174, %v2269
      %v2301 = vmul.f32 %v2174, %v2273
      %v2302 = vmul.f32 %v2179, %v2269
      %v2303 = vmul.f32 %v2179, %v2273
      %v2304 = vmul.f32 %v2184, %v2269
      %v2305 = vmul.f32 %v2184, %v2273
      %v2306 = vmul.f32 %v2189, %v2269
      %v2307 = vmul.f32 %v2189, %v2273
      %v2308 = vmul.f32 %v2194, %v2269
      %v2309 = vmul.f32 %v2194, %v2273
      %v2310 = vmul.f32 %v2199, %v2269
      %v2311 = vmul.f32 %v2199, %v2273
      %v2312 = vmul.f32 %v2204, %v2269
      %v2313 = vmul.f32 %v2204, %v2273
      %v2314 = vmul.f32 %v2209, %v2269
      %v2315 = vmul.f32 %v2209, %v2273
      %v2316 = vmul.f32 %v2214, %v2269
      %v2317 = vmul.f32 %v2214, %v2273
      %v2318 = vmul.f32 %v2219, %v2269
      %v2319 = vmul.f32 %v2219, %v2273
      %v2320 = vmul.f32 %v2224, %v2269
      %v2321 = vmul.f32 %v2224, %v2273
      %v2322 = vmul.f32 %v2229, %v2269
      %v2323 = vmul.f32 %v2229, %v2273
      %v2324 = vmul.f32 %v2234, %v2269
      %v2325 = vmul.f32 %v2234, %v2273
      %v2326 = vmul.f32 %v2239, %v2269
      %v2327 = vmul.f32 %v2239, %v2273
      %v2328 = vmul.f32 %v2244, %v2269
      %v2329 = vmul.f32 %v2244, %v2273
      %v2330 = vmul.f32 %v2249, %v2269
      %v2331 = vmul.f32 %v2249, %v2273
      %v2332 = vmul.f32 %v2254, %v2269
      %v2333 = vmul.f32 %v2254, %v2273
      %v2334 = vmul.f32 %v2259, %v2269
      %v2335 = vmul.f32 %v2259, %v2273
      %v2336 = vmul.f32 %v2264, %v2269
      %v2337 = vmul.f32 %v2264, %v2273
      %v2338 = vadd.f32 %v1810, %v2274
      %v2339 = vadd.f32 %v1811, %v2275
      %v2340 = vadd.f32 %v1812, %v2276
      %v2341 = vadd.f32 %v1813, %v2277
      %v2342 = vadd.f32 %v1814, %v2278
      %v2343 = vadd.f32 %v1815, %v2279
      %v2344 = vadd.f32 %v1816, %v2280
      %v2345 = vadd.f32 %v1817, %v2281
      %v2346 = vadd.f32 %v1818, %v2282
      %v2347 = vadd.f32 %v1819, %v2283
      %v2348 = vadd.f32 %v1820, %v2284
      %v2349 = vadd.f32 %v1821, %v2285
      %v2350 = vadd.f32 %v1822, %v2286
      %v2351 = vadd.f32 %v1823, %v2287
      %v2352 = vadd.f32 %v1824, %v2288
      %v2353 = vadd.f32 %v1825, %v2289
      %v2354 = vadd.f32 %v1826, %v2290
      %v2355 = vadd.f32 %v1827, %v2291
      %v2356 = vadd.f32 %v1828, %v2292
      %v2357 = vadd.f32 %v1829, %v2293
      %v2358 = vadd.f32 %v1830, %v2294
      %v2359 = vadd.f32 %v1831, %v2295
      %v2360 = vadd.f32 %v1832, %v2296
      %v2361 = vadd.f32 %v1833, %v2297
      %v2362 = vadd.f32 %v1834, %v2298
      %v2363 = vadd.f32 %v1835, %v2299
      %v2364 = vadd.f32 %v1836, %v2300
      %v2365 = vadd.f32 %v1837, %v2301
      %v2366 = vadd.f32 %v1838, %v2302
      %v2367 = vadd.f32 %v1839, %v2303
      %v2368 = vadd.f32 %v1840, %v2304
      %v2369 = vadd.f32 %v1841, %v2305
      %v2370 = vadd.f32 %v1842, %v2306
      %v2371 = vadd.f32 %v1843, %v2307
      %v2372 = vadd.f32 %v1844, %v2308
      %v2373 = vadd.f32 %v1845, %v2309
      %v2374 = vadd.f32 %v1846, %v2310
      %v2375 = vadd.f32 %v1847, %v2311
      %v2376 = vadd.f32 %v1848, %v2312
      %v2377 = vadd.f32 %v1849, %v2313
      %v2378 = vadd.f32 %v1850, %v2314
      %v2379 = vadd.f32 %v1851, %v2315
      %v2380 = vadd.f32 %v1852, %v2316
      %v2381 = vadd.f32 %v1853, %v2317
      %v2382 = vadd.f32 %v1854, %v2318
      %v2383 = vadd.f32 %v1855, %v2319
      %v2384 = vadd.f32 %v1856, %v2320
      %v2385 = vadd.f32 %v1857, %v2321
      %v2386 = vadd.f32 %v1858, %v2322
      %v2387 = vadd.f32 %v1859, %v2323
      %v2388 = vadd.f32 %v1860, %v2324
      %v2389 = vadd.f32 %v1861, %v2325
      %v2390 = vadd.f32 %v1862, %v2326
      %v2391 = vadd.f32 %v1863, %v2327
      %v2392 = vadd.f32 %v1864, %v2328
      %v2393 = vadd.f32 %v1865, %v2329
      %v2394 = vadd.f32 %v1866, %v2330
      %v2395 = vadd.f32 %v1867, %v2331
      %v2396 = vadd.f32 %v1868, %v2332
      %v2397 = vadd.f32 %v1869, %v2333
      %v2398 = vadd.f32 %v1870, %v2334
      %v2399 = vadd.f32 %v1871, %v2335
      %v2400 = vadd.f32 %v1872, %v2336
      %v2401 = vadd.f32 %v1873, %v2337
      %v2402 = vlaneseq
      %v2403 = vshrl.u32 %v2402, 7
      %v2404 = vsub.s32 3, %v2403
      %v2405 = vrot.slane %v424, %v2404
      %v2406 = vlaneseq
      %v2407 = vshrl.u32 %v2406, 7
      %v2408 = vsub.s32 3, %v2407
      %v2409 = vrot.slane %v425, %v2408
      %v2410 = vmul.f32 %v2109, %v2405
      %v2411 = vmul.f32 %v2109, %v2409
      %v2412 = vmul.f32 %v2114, %v2405
      %v2413 = vmul.f32 %v2114, %v2409
      %v2414 = vmul.f32 %v2119, %v2405
      %v2415 = vmul.f32 %v2119, %v2409
      %v2416 = vmul.f32 %v2124, %v2405
      %v2417 = vmul.f32 %v2124, %v2409
      %v2418 = vmul.f32 %v2129, %v2405
      %v2419 = vmul.f32 %v2129, %v2409
      %v2420 = vmul.f32 %v2134, %v2405
      %v2421 = vmul.f32 %v2134, %v2409
      %v2422 = vmul.f32 %v2139, %v2405
      %v2423 = vmul.f32 %v2139, %v2409
      %v2424 = vmul.f32 %v2144, %v2405
      %v2425 = vmul.f32 %v2144, %v2409
      %v2426 = vmul.f32 %v2149, %v2405
      %v2427 = vmul.f32 %v2149, %v2409
      %v2428 = vmul.f32 %v2154, %v2405
      %v2429 = vmul.f32 %v2154, %v2409
      %v2430 = vmul.f32 %v2159, %v2405
      %v2431 = vmul.f32 %v2159, %v2409
      %v2432 = vmul.f32 %v2164, %v2405
      %v2433 = vmul.f32 %v2164, %v2409
      %v2434 = vmul.f32 %v2169, %v2405
      %v2435 = vmul.f32 %v2169, %v2409
      %v2436 = vmul.f32 %v2174, %v2405
      %v2437 = vmul.f32 %v2174, %v2409
      %v2438 = vmul.f32 %v2179, %v2405
      %v2439 = vmul.f32 %v2179, %v2409
      %v2440 = vmul.f32 %v2184, %v2405
      %v2441 = vmul.f32 %v2184, %v2409
      %v2442 = vmul.f32 %v2189, %v2405
      %v2443 = vmul.f32 %v2189, %v2409
      %v2444 = vmul.f32 %v2194, %v2405
      %v2445 = vmul.f32 %v2194, %v2409
      %v2446 = vmul.f32 %v2199, %v2405
      %v2447 = vmul.f32 %v2199, %v2409
      %v2448 = vmul.f32 %v2204, %v2405
      %v2449 = vmul.f32 %v2204, %v2409
      %v2450 = vmul.f32 %v2209, %v2405
      %v2451 = vmul.f32 %v2209, %v2409
      %v2452 = vmul.f32 %v2214, %v2405
      %v2453 = vmul.f32 %v2214, %v2409
      %v2454 = vmul.f32 %v2219, %v2405
      %v2455 = vmul.f32 %v2219, %v2409
      %v2456 = vmul.f32 %v2224, %v2405
      %v2457 = vmul.f32 %v2224, %v2409
      %v2458 = vmul.f32 %v2229, %v2405
      %v2459 = vmul.f32 %v2229, %v2409
      %v2460 = vmul.f32 %v2234, %v2405
      %v2461 = vmul.f32 %v2234, %v2409
      %v2462 = vmul.f32 %v2239, %v2405
      %v2463 = vmul.f32 %v2239, %v2409
      %v2464 = vmul.f32 %v2244, %v2405
      %v2465 = vmul.f32 %v2244, %v2409
      %v2466 = vmul.f32 %v2249, %v2405
      %v2467 = vmul.f32 %v2249, %v2409
      %v2468 = vmul.f32 %v2254, %v2405
      %v2469 = vmul.f32 %v2254, %v2409
      %v2470 = vmul.f32 %v2259, %v2405
      %v2471 = vmul.f32 %v2259, %v2409
      %v2472 = vmul.f32 %v2264, %v2405
      %v2473 = vmul.f32 %v2264, %v2409
      %v2474 = vadd.f32 %v1946, %v2410
      %v2475 = vadd.f32 %v1947, %v2411
      %v2476 = vadd.f32 %v1948, %v2412
      %v2477 = vadd.f32 %v1949, %v2413
      %v2478 = vadd.f32 %v1950, %v2414
      %v2479 = vadd.f32 %v1951, %v2415
      %v2480 = vadd.f32 %v1952, %v2416
      %v2481 = vadd.f32 %v1953, %v2417
      %v2482 = vadd.f32 %v1954, %v2418
      %v2483 = vadd.f32 %v1955, %v2419
      %v2484 = vadd.f32 %v1956, %v2420
      %v2485 = vadd.f32 %v1957, %v2421
      %v2486 = vadd.f32 %v1958, %v2422
      %v2487 = vadd.f32 %v1959, %v2423
      %v2488 = vadd.f32 %v1960, %v2424
      %v2489 = vadd.f32 %v1961, %v2425
      %v2490 = vadd.f32 %v1962, %v2426
      %v2491 = vadd.f32 %v1963, %v2427
      %v2492 = vadd.f32 %v1964, %v2428
      %v2493 = vadd.f32 %v1965, %v2429
      %v2494 = vadd.f32 %v1966, %v2430
      %v2495 = vadd.f32 %v1967, %v2431
      %v2496 = vadd.f32 %v1968, %v2432
      %v2497 = vadd.f32 %v1969, %v2433
      %v2498 = vadd.f32 %v1970, %v2434
      %v2499 = vadd.f32 %v1971, %v2435
      %v2500 = vadd.f32 %v1972, %v2436
      %v2501 = vadd.f32 %v1973, %v2437
      %v2502 = vadd.f32 %v1974, %v2438
      %v2503 = vadd.f32 %v1975, %v2439
      %v2504 = vadd.f32 %v1976, %v2440
      %v2505 = vadd.f32 %v1977, %v2441
      %v2506 = vadd.f32 %v1978, %v2442
      %v2507 = vadd.f32 %v1979, %v2443
      %v2508 = vadd.f32 %v1980, %v2444
      %v2509 = vadd.f32 %v1981, %v2445
      %v2510 = vadd.f32 %v1982, %v2446
      %v2511 = vadd.f32 %v1983, %v2447
      %v2512 = vadd.f32 %v1984, %v2448
      %v2513 = vadd.f32 %v1985, %v2449
      %v2514 = vadd.f32 %v1986, %v2450
      %v2515 = vadd.f32 %v1987, %v2451
      %v2516 = vadd.f32 %v1988, %v2452
      %v2517 = vadd.f32 %v1989, %v2453
      %v2518 = vadd.f32 %v1990, %v2454
      %v2519 = vadd.f32 %v1991, %v2455
      %v2520 = vadd.f32 %v1992, %v2456
      %v2521 = vadd.f32 %v1993, %v2457
      %v2522 = vadd.f32 %v1994, %v2458
      %v2523 = vadd.f32 %v1995, %v2459
      %v2524 = vadd.f32 %v1996, %v2460
      %v2525 = vadd.f32 %v1997, %v2461
      %v2526 = vadd.f32 %v1998, %v2462
      %v2527 = vadd.f32 %v1999, %v2463
      %v2528 = vadd.f32 %v2000, %v2464
      %v2529 = vadd.f32 %v2001, %v2465
      %v2530 = vadd.f32 %v2002, %v2466
      %v2531 = vadd.f32 %v2003, %v2467
      %v2532 = vadd.f32 %v2004, %v2468
      %v2533 = vadd.f32 %v2005, %v2469
      %v2534 = vadd.f32 %v2006, %v2470
      %v2535 = vadd.f32 %v2007, %v2471
      %v2536 = vadd.f32 %v2008, %v2472
      %v2537 = vadd.f32 %v2009, %v2473
      %v2538 = vld [vmem:[%s381] sm:$0xff]
      %v2539 = vld [vmem:[%s381 + $0x8] sm:$0xff]
      %v2540 = vld [vmem:[%s381 + $0x10] sm:$0xff]
      %v2541 = vld [vmem:[%s381 + $0x18] sm:$0xff]
      %v2542 = vld [vmem:[%s381 + $0x20] sm:$0xff]
      %v2543 = vld [vmem:[%s381 + $0x28] sm:$0xff]
      %v2544 = vld [vmem:[%s381 + $0x30] sm:$0xff]
      %v2545 = vld [vmem:[%s381 + $0x38] sm:$0xff]
      %v2546 = vld [vmem:[%s381 + $0x40] sm:$0xff]
      %v2547 = vld [vmem:[%s381 + $0x48] sm:$0xff]
      %v2548 = vld [vmem:[%s381 + $0x50] sm:$0xff]
      %v2549 = vld [vmem:[%s381 + $0x58] sm:$0xff]
      %v2550 = vld [vmem:[%s381 + $0x60] sm:$0xff]
      %v2551 = vld [vmem:[%s381 + $0x68] sm:$0xff]
      %v2552 = vld [vmem:[%s381 + $0x70] sm:$0xff]
      %v2553 = vld [vmem:[%s381 + $0x78] sm:$0xff]
      %v2554 = vld [vmem:[%s381 + $0x80] sm:$0xff]
      %v2555 = vld [vmem:[%s381 + $0x88] sm:$0xff]
      %v2556 = vld [vmem:[%s381 + $0x90] sm:$0xff]
      %v2557 = vld [vmem:[%s381 + $0x98] sm:$0xff]
      %v2558 = vld [vmem:[%s381 + $0xa0] sm:$0xff]
      %v2559 = vld [vmem:[%s381 + $0xa8] sm:$0xff]
      %v2560 = vld [vmem:[%s381 + $0xb0] sm:$0xff]
      %v2561 = vld [vmem:[%s381 + $0xb8] sm:$0xff]
      %v2562 = vld [vmem:[%s381 + $0xc0] sm:$0xff]
      %v2563 = vld [vmem:[%s381 + $0xc8] sm:$0xff]
      %v2564 = vld [vmem:[%s381 + $0xd0] sm:$0xff]
      %v2565 = vld [vmem:[%s381 + $0xd8] sm:$0xff]
      %v2566 = vld [vmem:[%s381 + $0xe0] sm:$0xff]
      %v2567 = vld [vmem:[%s381 + $0xe8] sm:$0xff]
      %v2568 = vld [vmem:[%s381 + $0xf0] sm:$0xff]
      %v2569 = vld [vmem:[%s381 + $0xf8] sm:$0xff]
      %v2570 = vld [vmem:[%s381 + $0x100] sm:$0xff]
      %v2571 = vld [vmem:[%s381 + $0x108] sm:$0xff]
      %v2572 = vld [vmem:[%s381 + $0x110] sm:$0xff]
      %v2573 = vld [vmem:[%s381 + $0x118] sm:$0xff]
      %v2574 = vld [vmem:[%s381 + $0x120] sm:$0xff]
      %v2575 = vld [vmem:[%s381 + $0x128] sm:$0xff]
      %v2576 = vld [vmem:[%s381 + $0x130] sm:$0xff]
      %v2577 = vld [vmem:[%s381 + $0x138] sm:$0xff]
      %v2578 = vld [vmem:[%s381 + $0x140] sm:$0xff]
      %v2579 = vld [vmem:[%s381 + $0x148] sm:$0xff]
      %v2580 = vld [vmem:[%s381 + $0x150] sm:$0xff]
      %v2581 = vld [vmem:[%s381 + $0x158] sm:$0xff]
      %v2582 = vld [vmem:[%s381 + $0x160] sm:$0xff]
      %v2583 = vld [vmem:[%s381 + $0x168] sm:$0xff]
      %v2584 = vld [vmem:[%s381 + $0x170] sm:$0xff]
      %v2585 = vld [vmem:[%s381 + $0x178] sm:$0xff]
      %v2586 = vld [vmem:[%s381 + $0x180] sm:$0xff]
      %v2587 = vld [vmem:[%s381 + $0x188] sm:$0xff]
      %v2588 = vld [vmem:[%s381 + $0x190] sm:$0xff]
      %v2589 = vld [vmem:[%s381 + $0x198] sm:$0xff]
      %v2590 = vld [vmem:[%s381 + $0x1a0] sm:$0xff]
      %v2591 = vld [vmem:[%s381 + $0x1a8] sm:$0xff]
      %v2592 = vld [vmem:[%s381 + $0x1b0] sm:$0xff]
      %v2593 = vld [vmem:[%s381 + $0x1b8] sm:$0xff]
      %v2594 = vld [vmem:[%s381 + $0x1c0] sm:$0xff]
      %v2595 = vld [vmem:[%s381 + $0x1c8] sm:$0xff]
      %v2596 = vld [vmem:[%s381 + $0x1d0] sm:$0xff]
      %v2597 = vld [vmem:[%s381 + $0x1d8] sm:$0xff]
      %v2598 = vld [vmem:[%s381 + $0x1e0] sm:$0xff]
      %v2599 = vld [vmem:[%s381 + $0x1e8] sm:$0xff]
      %v2600 = vld [vmem:[%s381 + $0x1f0] sm:$0xff]
      %v2601 = vld [vmem:[%s381 + $0x1f8] sm:$0xff]
      %v2602 = vmul.f32 %v2538, %v2474
      %v2603 = vmul.f32 %v2539, %v2475
      %v2604 = vmul.f32 %v2540, %v2476
      %v2605 = vmul.f32 %v2541, %v2477
      %v2606 = vmul.f32 %v2542, %v2478
      %v2607 = vmul.f32 %v2543, %v2479
      %v2608 = vmul.f32 %v2544, %v2480
      %v2609 = vmul.f32 %v2545, %v2481
      %v2610 = vmul.f32 %v2546, %v2482
      %v2611 = vmul.f32 %v2547, %v2483
      %v2612 = vmul.f32 %v2548, %v2484
      %v2613 = vmul.f32 %v2549, %v2485
      %v2614 = vmul.f32 %v2550, %v2486
      %v2615 = vmul.f32 %v2551, %v2487
      %v2616 = vmul.f32 %v2552, %v2488
      %v2617 = vmul.f32 %v2553, %v2489
      %v2618 = vmul.f32 %v2554, %v2490
      %v2619 = vmul.f32 %v2555, %v2491
      %v2620 = vmul.f32 %v2556, %v2492
      %v2621 = vmul.f32 %v2557, %v2493
      %v2622 = vmul.f32 %v2558, %v2494
      %v2623 = vmul.f32 %v2559, %v2495
      %v2624 = vmul.f32 %v2560, %v2496
      %v2625 = vmul.f32 %v2561, %v2497
      %v2626 = vmul.f32 %v2562, %v2498
      %v2627 = vmul.f32 %v2563, %v2499
      %v2628 = vmul.f32 %v2564, %v2500
      %v2629 = vmul.f32 %v2565, %v2501
      %v2630 = vmul.f32 %v2566, %v2502
      %v2631 = vmul.f32 %v2567, %v2503
      %v2632 = vmul.f32 %v2568, %v2504
      %v2633 = vmul.f32 %v2569, %v2505
      %v2634 = vmul.f32 %v2570, %v2506
      %v2635 = vmul.f32 %v2571, %v2507
      %v2636 = vmul.f32 %v2572, %v2508
      %v2637 = vmul.f32 %v2573, %v2509
      %v2638 = vmul.f32 %v2574, %v2510
      %v2639 = vmul.f32 %v2575, %v2511
      %v2640 = vmul.f32 %v2576, %v2512
      %v2641 = vmul.f32 %v2577, %v2513
      %v2642 = vmul.f32 %v2578, %v2514
      %v2643 = vmul.f32 %v2579, %v2515
      %v2644 = vmul.f32 %v2580, %v2516
      %v2645 = vmul.f32 %v2581, %v2517
      %v2646 = vmul.f32 %v2582, %v2518
      %v2647 = vmul.f32 %v2583, %v2519
      %v2648 = vmul.f32 %v2584, %v2520
      %v2649 = vmul.f32 %v2585, %v2521
      %v2650 = vmul.f32 %v2586, %v2522
      %v2651 = vmul.f32 %v2587, %v2523
      %v2652 = vmul.f32 %v2588, %v2524
      %v2653 = vmul.f32 %v2589, %v2525
      %v2654 = vmul.f32 %v2590, %v2526
      %v2655 = vmul.f32 %v2591, %v2527
      %v2656 = vmul.f32 %v2592, %v2528
      %v2657 = vmul.f32 %v2593, %v2529
      %v2658 = vmul.f32 %v2594, %v2530
      %v2659 = vmul.f32 %v2595, %v2531
      %v2660 = vmul.f32 %v2596, %v2532
      %v2661 = vmul.f32 %v2597, %v2533
      %v2662 = vmul.f32 %v2598, %v2534
      %v2663 = vmul.f32 %v2599, %v2535
      %v2664 = vmul.f32 %v2600, %v2536
      %v2665 = vmul.f32 %v2601, %v2537
      %v2666 = vadd.f32 %v2338, %v2602
      %v2667 = vadd.f32 %v2339, %v2603
      %v2668 = vadd.f32 %v2340, %v2604
      %v2669 = vadd.f32 %v2341, %v2605
      %v2670 = vadd.f32 %v2342, %v2606
      %v2671 = vadd.f32 %v2343, %v2607
      %v2672 = vadd.f32 %v2344, %v2608
      %v2673 = vadd.f32 %v2345, %v2609
      %v2674 = vadd.f32 %v2346, %v2610
      %v2675 = vadd.f32 %v2347, %v2611
      %v2676 = vadd.f32 %v2348, %v2612
      %v2677 = vadd.f32 %v2349, %v2613
      %v2678 = vadd.f32 %v2350, %v2614
      %v2679 = vadd.f32 %v2351, %v2615
      %v2680 = vadd.f32 %v2352, %v2616
      %v2681 = vadd.f32 %v2353, %v2617
      %v2682 = vadd.f32 %v2354, %v2618
      %v2683 = vadd.f32 %v2355, %v2619
      %v2684 = vadd.f32 %v2356, %v2620
      %v2685 = vadd.f32 %v2357, %v2621
      %v2686 = vadd.f32 %v2358, %v2622
      %v2687 = vadd.f32 %v2359, %v2623
      %v2688 = vadd.f32 %v2360, %v2624
      %v2689 = vadd.f32 %v2361, %v2625
      %v2690 = vadd.f32 %v2362, %v2626
      %v2691 = vadd.f32 %v2363, %v2627
      %v2692 = vadd.f32 %v2364, %v2628
      %v2693 = vadd.f32 %v2365, %v2629
      %v2694 = vadd.f32 %v2366, %v2630
      %v2695 = vadd.f32 %v2367, %v2631
      %v2696 = vadd.f32 %v2368, %v2632
      %v2697 = vadd.f32 %v2369, %v2633
      %v2698 = vadd.f32 %v2370, %v2634
      %v2699 = vadd.f32 %v2371, %v2635
      %v2700 = vadd.f32 %v2372, %v2636
      %v2701 = vadd.f32 %v2373, %v2637
      %v2702 = vadd.f32 %v2374, %v2638
      %v2703 = vadd.f32 %v2375, %v2639
      %v2704 = vadd.f32 %v2376, %v2640
      %v2705 = vadd.f32 %v2377, %v2641
      %v2706 = vadd.f32 %v2378, %v2642
      %v2707 = vadd.f32 %v2379, %v2643
      %v2708 = vadd.f32 %v2380, %v2644
      %v2709 = vadd.f32 %v2381, %v2645
      %v2710 = vadd.f32 %v2382, %v2646
      %v2711 = vadd.f32 %v2383, %v2647
      %v2712 = vadd.f32 %v2384, %v2648
      %v2713 = vadd.f32 %v2385, %v2649
      %v2714 = vadd.f32 %v2386, %v2650
      %v2715 = vadd.f32 %v2387, %v2651
      %v2716 = vadd.f32 %v2388, %v2652
      %v2717 = vadd.f32 %v2389, %v2653
      %v2718 = vadd.f32 %v2390, %v2654
      %v2719 = vadd.f32 %v2391, %v2655
      %v2720 = vadd.f32 %v2392, %v2656
      %v2721 = vadd.f32 %v2393, %v2657
      %v2722 = vadd.f32 %v2394, %v2658
      %v2723 = vadd.f32 %v2395, %v2659
      %v2724 = vadd.f32 %v2396, %v2660
      %v2725 = vadd.f32 %v2397, %v2661
      %v2726 = vadd.f32 %v2398, %v2662
      %v2727 = vadd.f32 %v2399, %v2663
      %v2728 = vadd.f32 %v2400, %v2664
      %v2729 = vadd.f32 %v2401, %v2665
      %v2730 = vpack.c.bf16 %v2668, %v2666
      %v2731 = vpack.c.bf16 %v2669, %v2667
      %v2732 = vpack.c.bf16 %v2672, %v2670
      %v2733 = vpack.c.bf16 %v2673, %v2671
      %v2734 = vpack.c.bf16 %v2676, %v2674
      %v2735 = vpack.c.bf16 %v2677, %v2675
      %v2736 = vpack.c.bf16 %v2680, %v2678
      %v2737 = vpack.c.bf16 %v2681, %v2679
      %v2738 = vpack.c.bf16 %v2684, %v2682
      %v2739 = vpack.c.bf16 %v2685, %v2683
      %v2740 = vpack.c.bf16 %v2688, %v2686
      %v2741 = vpack.c.bf16 %v2689, %v2687
      %v2742 = vpack.c.bf16 %v2692, %v2690
      %v2743 = vpack.c.bf16 %v2693, %v2691
      %v2744 = vpack.c.bf16 %v2696, %v2694
      %v2745 = vpack.c.bf16 %v2697, %v2695
      %v2746 = vpack.c.bf16 %v2700, %v2698
      %v2747 = vpack.c.bf16 %v2701, %v2699
      %v2748 = vpack.c.bf16 %v2704, %v2702
      %v2749 = vpack.c.bf16 %v2705, %v2703
      %v2750 = vpack.c.bf16 %v2708, %v2706
      %v2751 = vpack.c.bf16 %v2709, %v2707
      %v2752 = vpack.c.bf16 %v2712, %v2710
      %v2753 = vpack.c.bf16 %v2713, %v2711
      %v2754 = vpack.c.bf16 %v2716, %v2714
      %v2755 = vpack.c.bf16 %v2717, %v2715
      %v2756 = vpack.c.bf16 %v2720, %v2718
      %v2757 = vpack.c.bf16 %v2721, %v2719
      %v2758 = vpack.c.bf16 %v2724, %v2722
      %v2759 = vpack.c.bf16 %v2725, %v2723
      %v2760 = vpack.c.bf16 %v2728, %v2726
      %v2761 = vpack.c.bf16 %v2729, %v2727
      %v2762 = vld [vmem:[%s4] sm:$0xff]
      %v2763 = vld [vmem:[%s4 + $0x8] sm:$0xff]
      %v2764 = vld [vmem:[%s4 + $0x10] sm:$0xff]
      %v2765 = vld [vmem:[%s4 + $0x18] sm:$0xff]
      %v2766 = vld [vmem:[%s4 + $0x20] sm:$0xff]
      %v2767 = vld [vmem:[%s4 + $0x28] sm:$0xff]
      %v2768 = vld [vmem:[%s4 + $0x30] sm:$0xff]
      %v2769 = vld [vmem:[%s4 + $0x38] sm:$0xff]
      %v2770 = vld [vmem:[%s4 + $0x40] sm:$0xff]
      %v2771 = vld [vmem:[%s4 + $0x48] sm:$0xff]
      %v2772 = vld [vmem:[%s4 + $0x50] sm:$0xff]
      %v2773 = vld [vmem:[%s4 + $0x58] sm:$0xff]
      %v2774 = vld [vmem:[%s4 + $0x60] sm:$0xff]
      %v2775 = vld [vmem:[%s4 + $0x68] sm:$0xff]
      %v2776 = vld [vmem:[%s4 + $0x70] sm:$0xff]
      %v2777 = vld [vmem:[%s4 + $0x78] sm:$0xff]
      %v2778 = vld [vmem:[%s4 + $0x80] sm:$0xff]
      %v2779 = vld [vmem:[%s4 + $0x88] sm:$0xff]
      %v2780 = vld [vmem:[%s4 + $0x90] sm:$0xff]
      %v2781 = vld [vmem:[%s4 + $0x98] sm:$0xff]
      %v2782 = vld [vmem:[%s4 + $0xa0] sm:$0xff]
      %v2783 = vld [vmem:[%s4 + $0xa8] sm:$0xff]
      %v2784 = vld [vmem:[%s4 + $0xb0] sm:$0xff]
      %v2785 = vld [vmem:[%s4 + $0xb8] sm:$0xff]
      %v2786 = vld [vmem:[%s4 + $0xc0] sm:$0xff]
      %v2787 = vld [vmem:[%s4 + $0xc8] sm:$0xff]
      %v2788 = vld [vmem:[%s4 + $0xd0] sm:$0xff]
      %v2789 = vld [vmem:[%s4 + $0xd8] sm:$0xff]
      %v2790 = vld [vmem:[%s4 + $0xe0] sm:$0xff]
      %v2791 = vld [vmem:[%s4 + $0xe8] sm:$0xff]
      %v2792 = vld [vmem:[%s4 + $0xf0] sm:$0xff]
      %v2793 = vld [vmem:[%s4 + $0xf8] sm:$0xff]
      %v2794 = vld [vmem:[%s4 + $0x100] sm:$0xff]
      %v2795 = vld [vmem:[%s4 + $0x108] sm:$0xff]
      %v2796 = vld [vmem:[%s4 + $0x110] sm:$0xff]
      %v2797 = vld [vmem:[%s4 + $0x118] sm:$0xff]
      %v2798 = vld [vmem:[%s4 + $0x120] sm:$0xff]
      %v2799 = vld [vmem:[%s4 + $0x128] sm:$0xff]
      %v2800 = vld [vmem:[%s4 + $0x130] sm:$0xff]
      %v2801 = vld [vmem:[%s4 + $0x138] sm:$0xff]
      %v2802 = vld [vmem:[%s4 + $0x140] sm:$0xff]
      %v2803 = vld [vmem:[%s4 + $0x148] sm:$0xff]
      %v2804 = vld [vmem:[%s4 + $0x150] sm:$0xff]
      %v2805 = vld [vmem:[%s4 + $0x158] sm:$0xff]
      %v2806 = vld [vmem:[%s4 + $0x160] sm:$0xff]
      %v2807 = vld [vmem:[%s4 + $0x168] sm:$0xff]
      %v2808 = vld [vmem:[%s4 + $0x170] sm:$0xff]
      %v2809 = vld [vmem:[%s4 + $0x178] sm:$0xff]
      %v2810 = vld [vmem:[%s4 + $0x180] sm:$0xff]
      %v2811 = vld [vmem:[%s4 + $0x188] sm:$0xff]
      %v2812 = vld [vmem:[%s4 + $0x190] sm:$0xff]
      %v2813 = vld [vmem:[%s4 + $0x198] sm:$0xff]
      %v2814 = vld [vmem:[%s4 + $0x1a0] sm:$0xff]
      %v2815 = vld [vmem:[%s4 + $0x1a8] sm:$0xff]
      %v2816 = vld [vmem:[%s4 + $0x1b0] sm:$0xff]
      %v2817 = vld [vmem:[%s4 + $0x1b8] sm:$0xff]
      %v2818 = vld [vmem:[%s4 + $0x1c0] sm:$0xff]
      %v2819 = vld [vmem:[%s4 + $0x1c8] sm:$0xff]
      %v2820 = vld [vmem:[%s4 + $0x1d0] sm:$0xff]
      %v2821 = vld [vmem:[%s4 + $0x1d8] sm:$0xff]
      %v2822 = vld [vmem:[%s4 + $0x1e0] sm:$0xff]
      %v2823 = vld [vmem:[%s4 + $0x1e8] sm:$0xff]
      %v2824 = vld [vmem:[%s4 + $0x1f0] sm:$0xff]
      %v2825 = vld [vmem:[%s4 + $0x1f8] sm:$0xff]
      %v2826 = vld [vmem:[%s5] sm:$0xf]
      %v2828 = vlaneseq
      %v2829 = vshrl.u32 %v2828, 7
      %v2830 = vsub.s32 0, %v2829
      %v2831 = vrot.slane %v2826, %v2830
      %v2832 = vlaneseq
      %v2833 = vshrl.u32 %v2832, 7
      %v2834 = vsub.s32 1, %v2833
      %v2835 = vrot.slane %v2826, %v2834
      %v2836 = vlaneseq
      %v2837 = vshrl.u32 %v2836, 7
      %v2838 = vsub.s32 2, %v2837
      %v2839 = vrot.slane %v2826, %v2838
      %v2840 = vlaneseq
      %v2841 = vshrl.u32 %v2840, 7
      %v2842 = vsub.s32 3, %v2841
      %v2843 = vrot.slane %v2826, %v2842
      %v2912 = vunpack.c.l.b16 %v2762
      %v2913 = vunpack.c.h.b16 %v2762
      %v2914 = vunpack.c.l.b16 %v2763
      %v2915 = vunpack.c.h.b16 %v2763
      %v2916 = vunpack.c.l.b16 %v2764
      %v2917 = vunpack.c.h.b16 %v2764
      %v2918 = vunpack.c.l.b16 %v2765
      %v2919 = vunpack.c.h.b16 %v2765
      %v2920 = vunpack.c.l.b16 %v2766
      %v2921 = vunpack.c.h.b16 %v2766
      %v2922 = vunpack.c.l.b16 %v2767
      %v2923 = vunpack.c.h.b16 %v2767
      %v2924 = vunpack.c.l.b16 %v2768
      %v2925 = vunpack.c.h.b16 %v2768
      %v2926 = vunpack.c.l.b16 %v2769
      %v2927 = vunpack.c.h.b16 %v2769
      %v2928 = vunpack.c.l.b16 %v2770
      %v2929 = vunpack.c.h.b16 %v2770
      %v2930 = vunpack.c.l.b16 %v2771
      %v2931 = vunpack.c.h.b16 %v2771
      %v2932 = vunpack.c.l.b16 %v2772
      %v2933 = vunpack.c.h.b16 %v2772
      %v2934 = vunpack.c.l.b16 %v2773
      %v2935 = vunpack.c.h.b16 %v2773
      %v2936 = vunpack.c.l.b16 %v2774
      %v2937 = vunpack.c.h.b16 %v2774
      %v2938 = vunpack.c.l.b16 %v2775
      %v2939 = vunpack.c.h.b16 %v2775
      %v2940 = vunpack.c.l.b16 %v2776
      %v2941 = vunpack.c.h.b16 %v2776
      %v2942 = vunpack.c.l.b16 %v2777
      %v2943 = vunpack.c.h.b16 %v2777
      %v2944 = vunpack.c.l.b16 %v2778
      %v2945 = vunpack.c.h.b16 %v2778
      %v2946 = vunpack.c.l.b16 %v2779
      %v2947 = vunpack.c.h.b16 %v2779
      %v2948 = vunpack.c.l.b16 %v2780
      %v2949 = vunpack.c.h.b16 %v2780
      %v2950 = vunpack.c.l.b16 %v2781
      %v2951 = vunpack.c.h.b16 %v2781
      %v2952 = vunpack.c.l.b16 %v2782
      %v2953 = vunpack.c.h.b16 %v2782
      %v2954 = vunpack.c.l.b16 %v2783
      %v2955 = vunpack.c.h.b16 %v2783
      %v2956 = vunpack.c.l.b16 %v2784
      %v2957 = vunpack.c.h.b16 %v2784
      %v2958 = vunpack.c.l.b16 %v2785
      %v2959 = vunpack.c.h.b16 %v2785
      %v2960 = vunpack.c.l.b16 %v2786
      %v2961 = vunpack.c.h.b16 %v2786
      %v2962 = vunpack.c.l.b16 %v2787
      %v2963 = vunpack.c.h.b16 %v2787
      %v2964 = vunpack.c.l.b16 %v2788
      %v2965 = vunpack.c.h.b16 %v2788
      %v2966 = vunpack.c.l.b16 %v2789
      %v2967 = vunpack.c.h.b16 %v2789
      %v2968 = vunpack.c.l.b16 %v2790
      %v2969 = vunpack.c.h.b16 %v2790
      %v2970 = vunpack.c.l.b16 %v2791
      %v2971 = vunpack.c.h.b16 %v2791
      %v2972 = vunpack.c.l.b16 %v2792
      %v2973 = vunpack.c.h.b16 %v2792
      %v2974 = vunpack.c.l.b16 %v2793
      %v2975 = vunpack.c.h.b16 %v2793
      %v2976 = vunpack.c.l.b16 %v2794
      %v2977 = vunpack.c.h.b16 %v2794
      %v2978 = vunpack.c.l.b16 %v2795
      %v2979 = vunpack.c.h.b16 %v2795
      %v2980 = vunpack.c.l.b16 %v2796
      %v2981 = vunpack.c.h.b16 %v2796
      %v2982 = vunpack.c.l.b16 %v2797
      %v2983 = vunpack.c.h.b16 %v2797
      %v2984 = vunpack.c.l.b16 %v2798
      %v2985 = vunpack.c.h.b16 %v2798
      %v2986 = vunpack.c.l.b16 %v2799
      %v2987 = vunpack.c.h.b16 %v2799
      %v2988 = vunpack.c.l.b16 %v2800
      %v2989 = vunpack.c.h.b16 %v2800
      %v2990 = vunpack.c.l.b16 %v2801
      %v2991 = vunpack.c.h.b16 %v2801
      %v2992 = vunpack.c.l.b16 %v2802
      %v2993 = vunpack.c.h.b16 %v2802
      %v2994 = vunpack.c.l.b16 %v2803
      %v2995 = vunpack.c.h.b16 %v2803
      %v2996 = vunpack.c.l.b16 %v2804
      %v2997 = vunpack.c.h.b16 %v2804
      %v2998 = vunpack.c.l.b16 %v2805
      %v2999 = vunpack.c.h.b16 %v2805
      %v3000 = vunpack.c.l.b16 %v2806
      %v3001 = vunpack.c.h.b16 %v2806
      %v3002 = vunpack.c.l.b16 %v2807
      %v3003 = vunpack.c.h.b16 %v2807
      %v3004 = vunpack.c.l.b16 %v2808
      %v3005 = vunpack.c.h.b16 %v2808
      %v3006 = vunpack.c.l.b16 %v2809
      %v3007 = vunpack.c.h.b16 %v2809
      %v3008 = vunpack.c.l.b16 %v2810
      %v3009 = vunpack.c.h.b16 %v2810
      %v3010 = vunpack.c.l.b16 %v2811
      %v3011 = vunpack.c.h.b16 %v2811
      %v3012 = vunpack.c.l.b16 %v2812
      %v3013 = vunpack.c.h.b16 %v2812
      %v3014 = vunpack.c.l.b16 %v2813
      %v3015 = vunpack.c.h.b16 %v2813
      %v3016 = vunpack.c.l.b16 %v2814
      %v3017 = vunpack.c.h.b16 %v2814
      %v3018 = vunpack.c.l.b16 %v2815
      %v3019 = vunpack.c.h.b16 %v2815
      %v3020 = vunpack.c.l.b16 %v2816
      %v3021 = vunpack.c.h.b16 %v2816
      %v3022 = vunpack.c.l.b16 %v2817
      %v3023 = vunpack.c.h.b16 %v2817
      %v3024 = vunpack.c.l.b16 %v2818
      %v3025 = vunpack.c.h.b16 %v2818
      %v3026 = vunpack.c.l.b16 %v2819
      %v3027 = vunpack.c.h.b16 %v2819
      %v3028 = vunpack.c.l.b16 %v2820
      %v3029 = vunpack.c.h.b16 %v2820
      %v3030 = vunpack.c.l.b16 %v2821
      %v3031 = vunpack.c.h.b16 %v2821
      %v3032 = vunpack.c.l.b16 %v2822
      %v3033 = vunpack.c.h.b16 %v2822
      %v3034 = vunpack.c.l.b16 %v2823
      %v3035 = vunpack.c.h.b16 %v2823
      %v3036 = vunpack.c.l.b16 %v2824
      %v3037 = vunpack.c.h.b16 %v2824
      %v3038 = vunpack.c.l.b16 %v2825
      %v3039 = vunpack.c.h.b16 %v2825
      %v3040 = vpack.c.b16 %v2916, %v2912
      %v3041 = vpack.c.b16 %v2917, %v2913
      %v3042 = vpack.c.b16 %v2918, %v2914
      %v3043 = vpack.c.b16 %v2919, %v2915
      %v3044 = vpack.c.b16 %v2924, %v2920
      %v3045 = vpack.c.b16 %v2925, %v2921
      %v3046 = vpack.c.b16 %v2926, %v2922
      %v3047 = vpack.c.b16 %v2927, %v2923
      %v3048 = vpack.c.b16 %v2932, %v2928
      %v3049 = vpack.c.b16 %v2933, %v2929
      %v3050 = vpack.c.b16 %v2934, %v2930
      %v3051 = vpack.c.b16 %v2935, %v2931
      %v3052 = vpack.c.b16 %v2940, %v2936
      %v3053 = vpack.c.b16 %v2941, %v2937
      %v3054 = vpack.c.b16 %v2942, %v2938
      %v3055 = vpack.c.b16 %v2943, %v2939
      %v3056 = vpack.c.b16 %v2948, %v2944
      %v3057 = vpack.c.b16 %v2949, %v2945
      %v3058 = vpack.c.b16 %v2950, %v2946
      %v3059 = vpack.c.b16 %v2951, %v2947
      %v3060 = vpack.c.b16 %v2956, %v2952
      %v3061 = vpack.c.b16 %v2957, %v2953
      %v3062 = vpack.c.b16 %v2958, %v2954
      %v3063 = vpack.c.b16 %v2959, %v2955
      %v3064 = vpack.c.b16 %v2964, %v2960
      %v3065 = vpack.c.b16 %v2965, %v2961
      %v3066 = vpack.c.b16 %v2966, %v2962
      %v3067 = vpack.c.b16 %v2967, %v2963
      %v3068 = vpack.c.b16 %v2972, %v2968
      %v3069 = vpack.c.b16 %v2973, %v2969
      %v3070 = vpack.c.b16 %v2974, %v2970
      %v3071 = vpack.c.b16 %v2975, %v2971
      %v3072 = vpack.c.b16 %v2980, %v2976
      %v3073 = vpack.c.b16 %v2981, %v2977
      %v3074 = vpack.c.b16 %v2982, %v2978
      %v3075 = vpack.c.b16 %v2983, %v2979
      %v3076 = vpack.c.b16 %v2988, %v2984
      %v3077 = vpack.c.b16 %v2989, %v2985
      %v3078 = vpack.c.b16 %v2990, %v2986
      %v3079 = vpack.c.b16 %v2991, %v2987
      %v3080 = vpack.c.b16 %v2996, %v2992
      %v3081 = vpack.c.b16 %v2997, %v2993
      %v3082 = vpack.c.b16 %v2998, %v2994
      %v3083 = vpack.c.b16 %v2999, %v2995
      %v3084 = vpack.c.b16 %v3004, %v3000
      %v3085 = vpack.c.b16 %v3005, %v3001
      %v3086 = vpack.c.b16 %v3006, %v3002
      %v3087 = vpack.c.b16 %v3007, %v3003
      %v3088 = vpack.c.b16 %v3012, %v3008
      %v3089 = vpack.c.b16 %v3013, %v3009
      %v3090 = vpack.c.b16 %v3014, %v3010
      %v3091 = vpack.c.b16 %v3015, %v3011
      %v3092 = vpack.c.b16 %v3020, %v3016
      %v3093 = vpack.c.b16 %v3021, %v3017
      %v3094 = vpack.c.b16 %v3022, %v3018
      %v3095 = vpack.c.b16 %v3023, %v3019
      %v3096 = vpack.c.b16 %v3028, %v3024
      %v3097 = vpack.c.b16 %v3029, %v3025
      %v3098 = vpack.c.b16 %v3030, %v3026
      %v3099 = vpack.c.b16 %v3031, %v3027
      %v3100 = vpack.c.b16 %v3036, %v3032
      %v3101 = vpack.c.b16 %v3037, %v3033
      %v3102 = vpack.c.b16 %v3038, %v3034
      %v3103 = vpack.c.b16 %v3039, %v3035
      %3168 = vmatprep.subr.bf16.mxu0 %v3041
      %3169 = vmatpush1.bf16.msra.mxu0 %v3040
      %3170 = vmatprep.subr.bf16.mxu0 %v3045
      %3171 = vmatpush1.bf16.msra.mxu0 %v3044
      %3172 = vmatprep.subr.bf16.mxu0 %v3049
      %3173 = vmatpush1.bf16.msra.mxu0 %v3048
      %3174 = vmatprep.subr.bf16.mxu0 %v3053
      %3175 = vmatpush1.bf16.msra.mxu0 %v3052
      %3176 = vmatprep.subr.bf16.mxu0 %v3057
      %3177 = vmatpush1.bf16.msra.mxu0 %v3056
      %3178 = vmatprep.subr.bf16.mxu0 %v3061
      %3179 = vmatpush1.bf16.msra.mxu0 %v3060
      %3180 = vmatprep.subr.bf16.mxu0 %v3065
      %3181 = vmatpush1.bf16.msra.mxu0 %v3064
      %3182 = vmatprep.subr.bf16.mxu0 %v3069
      %3183 = vmatpush1.bf16.msra.mxu0 %v3068
      %3184 = vmatprep.subr.bf16.mxu0 %v3073
      %3185 = vmatpush1.bf16.msra.mxu0 %v3072
      %3186 = vmatprep.subr.bf16.mxu0 %v3077
      %3187 = vmatpush1.bf16.msra.mxu0 %v3076
      %3188 = vmatprep.subr.bf16.mxu0 %v3081
      %3189 = vmatpush1.bf16.msra.mxu0 %v3080
      %3190 = vmatprep.subr.bf16.mxu0 %v3085
      %3191 = vmatpush1.bf16.msra.mxu0 %v3084
      %3192 = vmatprep.subr.bf16.mxu0 %v3089
      %3193 = vmatpush1.bf16.msra.mxu0 %v3088
      %3194 = vmatprep.subr.bf16.mxu0 %v3093
      %3195 = vmatpush1.bf16.msra.mxu0 %v3092
      %3196 = vmatprep.subr.bf16.mxu0 %v3097
      %3197 = vmatpush1.bf16.msra.mxu0 %v3096
      %3198 = vmatprep.subr.bf16.mxu0 %v3101
      %3199 = vmatpush1.bf16.msra.mxu0 %v3100
      %3200 = vmatprep.mubr.bf16.mxu0 %v2731
      %3201 = vmatmul.mubr.bf16.gmra.mrb[0].mxu0 %v2730
      %v3202 = vpop.f32.mrb[0].mxu0
      %v3203 = vadd.f32 %v2831, %v3202
      %v3204 = vpop.f32.mrb[0].mxu0
      %v3205 = vadd.f32 %v2835, %v3204
      %v3206 = vpop.f32.mrb[0].mxu0
      %v3207 = vadd.f32 %v2831, %v3206
      %v3208 = vpop.f32.mrb[0].mxu0
      %v3209 = vadd.f32 %v2835, %v3208
      %3210 = vmatprep.mubr.bf16.mxu0 %v2733
      %3211 = vmatmul.mubr.bf16.gmra.mrb[0].mxu0 %v2732
      %v3212 = vpop.f32.mrb[0].mxu0
      %v3213 = vadd.f32 %v2831, %v3212
      %v3214 = vpop.f32.mrb[0].mxu0
      %v3215 = vadd.f32 %v2835, %v3214
      %v3216 = vpop.f32.mrb[0].mxu0
      %v3217 = vadd.f32 %v2831, %v3216
      %v3218 = vpop.f32.mrb[0].mxu0
      %v3219 = vadd.f32 %v2835, %v3218
      %3220 = vmatprep.mubr.bf16.mxu0 %v2735
      %3221 = vmatmul.mubr.bf16.gmra.mrb[0].mxu0 %v2734
      %v3222 = vpop.f32.mrb[0].mxu0
      %v3223 = vadd.f32 %v2831, %v3222
      %v3224 = vpop.f32.mrb[0].mxu0
      %v3225 = vadd.f32 %v2835, %v3224
      %v3226 = vpop.f32.mrb[0].mxu0
      %v3227 = vadd.f32 %v2831, %v3226
      %v3228 = vpop.f32.mrb[0].mxu0
      %v3229 = vadd.f32 %v2835, %v3228
      %3230 = vmatprep.mubr.bf16.mxu0 %v2737
      %3231 = vmatmul.mubr.bf16.gmra.mrb[0].mxu0 %v2736
      %v3232 = vpop.f32.mrb[0].mxu0
      %v3233 = vadd.f32 %v2831, %v3232
      %v3234 = vpop.f32.mrb[0].mxu0
      %v3235 = vadd.f32 %v2835, %v3234
      %v3236 = vpop.f32.mrb[0].mxu0
      %v3237 = vadd.f32 %v2831, %v3236
      %v3238 = vpop.f32.mrb[0].mxu0
      %v3239 = vadd.f32 %v2835, %v3238
      %3240 = vmatprep.mubr.bf16.mxu0 %v2739
      %3241 = vmatmul.mubr.bf16.gmra.mrb[0].mxu0 %v2738
      %v3242 = vpop.f32.mrb[0].mxu0
      %v3243 = vadd.f32 %v2831, %v3242
      %v3244 = vpop.f32.mrb[0].mxu0
      %v3245 = vadd.f32 %v2835, %v3244
      %v3246 = vpop.f32.mrb[0].mxu0
      %v3247 = vadd.f32 %v2831, %v3246
      %v3248 = vpop.f32.mrb[0].mxu0
      %v3249 = vadd.f32 %v2835, %v3248
      %3250 = vmatprep.mubr.bf16.mxu0 %v2741
      %3251 = vmatmul.mubr.bf16.gmra.mrb[0].mxu0 %v2740
      %v3252 = vpop.f32.mrb[0].mxu0
      %v3253 = vadd.f32 %v2831, %v3252
      %v3254 = vpop.f32.mrb[0].mxu0
      %v3255 = vadd.f32 %v2835, %v3254
      %v3256 = vpop.f32.mrb[0].mxu0
      %v3257 = vadd.f32 %v2831, %v3256
      %v3258 = vpop.f32.mrb[0].mxu0
      %v3259 = vadd.f32 %v2835, %v3258
      %3260 = vmatprep.mubr.bf16.mxu0 %v2743
      %3261 = vmatmul.mubr.bf16.gmra.mrb[0].mxu0 %v2742
      %v3262 = vpop.f32.mrb[0].mxu0
      %v3263 = vadd.f32 %v2831, %v3262
      %v3264 = vpop.f32.mrb[0].mxu0
      %v3265 = vadd.f32 %v2835, %v3264
      %v3266 = vpop.f32.mrb[0].mxu0
      %v3267 = vadd.f32 %v2831, %v3266
      %v3268 = vpop.f32.mrb[0].mxu0
      %v3269 = vadd.f32 %v2835, %v3268
      %3270 = vmatprep.mubr.bf16.mxu0 %v2745
      %3271 = vmatmul.mubr.bf16.gmra.mrb[0].mxu0 %v2744
      %v3272 = vpop.f32.mrb[0].mxu0
      %v3273 = vadd.f32 %v2831, %v3272
      %v3274 = vpop.f32.mrb[0].mxu0
      %v3275 = vadd.f32 %v2835, %v3274
      %v3276 = vpop.f32.mrb[0].mxu0
      %v3277 = vadd.f32 %v2831, %v3276
      %v3278 = vpop.f32.mrb[0].mxu0
      %v3279 = vadd.f32 %v2835, %v3278
      %3280 = vmatprep.mubr.bf16.mxu0 %v2747
      %3281 = vmatmul.mubr.bf16.gmra.mrb[0].mxu0 %v2746
      %v3282 = vpop.f32.mrb[0].mxu0
      %v3283 = vadd.f32 %v2831, %v3282
      %v3284 = vpop.f32.mrb[0].mxu0
      %v3285 = vadd.f32 %v2835, %v3284
      %v3286 = vpop.f32.mrb[0].mxu0
      %v3287 = vadd.f32 %v2831, %v3286
      %v3288 = vpop.f32.mrb[0].mxu0
      %v3289 = vadd.f32 %v2835, %v3288
      %3290 = vmatprep.mubr.bf16.mxu0 %v2749
      %3291 = vmatmul.mubr.bf16.gmra.mrb[0].mxu0 %v2748
      %v3292 = vpop.f32.mrb[0].mxu0
      %v3293 = vadd.f32 %v2831, %v3292
      %v3294 = vpop.f32.mrb[0].mxu0
      %v3295 = vadd.f32 %v2835, %v3294
      %v3296 = vpop.f32.mrb[0].mxu0
      %v3297 = vadd.f32 %v2831, %v3296
      %v3298 = vpop.f32.mrb[0].mxu0
      %v3299 = vadd.f32 %v2835, %v3298
      %3300 = vmatprep.mubr.bf16.mxu0 %v2751
      %3301 = vmatmul.mubr.bf16.gmra.mrb[0].mxu0 %v2750
      %v3302 = vpop.f32.mrb[0].mxu0
      %v3303 = vadd.f32 %v2831, %v3302
      %v3304 = vpop.f32.mrb[0].mxu0
      %v3305 = vadd.f32 %v2835, %v3304
      %v3306 = vpop.f32.mrb[0].mxu0
      %v3307 = vadd.f32 %v2831, %v3306
      %v3308 = vpop.f32.mrb[0].mxu0
      %v3309 = vadd.f32 %v2835, %v3308
      %3310 = vmatprep.mubr.bf16.mxu0 %v2753
      %3311 = vmatmul.mubr.bf16.gmra.mrb[0].mxu0 %v2752
      %v3312 = vpop.f32.mrb[0].mxu0
      %v3313 = vadd.f32 %v2831, %v3312
      %v3314 = vpop.f32.mrb[0].mxu0
      %v3315 = vadd.f32 %v2835, %v3314
      %v3316 = vpop.f32.mrb[0].mxu0
      %v3317 = vadd.f32 %v2831, %v3316
      %v3318 = vpop.f32.mrb[0].mxu0
      %v3319 = vadd.f32 %v2835, %v3318
      %3320 = vmatprep.mubr.bf16.mxu0 %v2755
      %3321 = vmatmul.mubr.bf16.gmra.mrb[0].mxu0 %v2754
      %v3322 = vpop.f32.mrb[0].mxu0
      %v3323 = vadd.f32 %v2831, %v3322
      %v3324 = vpop.f32.mrb[0].mxu0
      %v3325 = vadd.f32 %v2835, %v3324
      %v3326 = vpop.f32.mrb[0].mxu0
      %v3327 = vadd.f32 %v2831, %v3326
      %v3328 = vpop.f32.mrb[0].mxu0
      %v3329 = vadd.f32 %v2835, %v3328
      %3330 = vmatprep.mubr.bf16.mxu0 %v2757
      %3331 = vmatmul.mubr.bf16.gmra.mrb[0].mxu0 %v2756
      %v3332 = vpop.f32.mrb[0].mxu0
      %v3333 = vadd.f32 %v2831, %v3332
      %v3334 = vpop.f32.mrb[0].mxu0
      %v3335 = vadd.f32 %v2835, %v3334
      %v3336 = vpop.f32.mrb[0].mxu0
      %v3337 = vadd.f32 %v2831, %v3336
      %v3338 = vpop.f32.mrb[0].mxu0
      %v3339 = vadd.f32 %v2835, %v3338
      %3340 = vmatprep.mubr.bf16.mxu0 %v2759
      %3341 = vmatmul.mubr.bf16.gmra.mrb[0].mxu0 %v2758
      %v3342 = vpop.f32.mrb[0].mxu0
      %v3343 = vadd.f32 %v2831, %v3342
      %v3344 = vpop.f32.mrb[0].mxu0
      %v3345 = vadd.f32 %v2835, %v3344
      %v3346 = vpop.f32.mrb[0].mxu0
      %v3347 = vadd.f32 %v2831, %v3346
      %v3348 = vpop.f32.mrb[0].mxu0
      %v3349 = vadd.f32 %v2835, %v3348
      %3350 = vmatprep.mubr.bf16.mxu0 %v2761
      %3351 = vmatmul.mubr.bf16.gmra.mrb[0].mxu0 %v2760
      %v3352 = vpop.f32.mrb[0].mxu0
      %v3353 = vadd.f32 %v2831, %v3352
      %v3354 = vpop.f32.mrb[0].mxu0
      %v3355 = vadd.f32 %v2835, %v3354
      %v3356 = vpop.f32.mrb[0].mxu0
      %v3357 = vadd.f32 %v2831, %v3356
      %v3358 = vpop.f32.mrb[0].mxu0
      %v3359 = vadd.f32 %v2835, %v3358
      %3360 = vdwg.mxu0
      %3361 = vmatprep.subr.bf16.mxu0 %v3043
      %3362 = vmatpush1.bf16.msra.mxu0 %v3042
      %3363 = vmatprep.subr.bf16.mxu0 %v3047
      %3364 = vmatpush1.bf16.msra.mxu0 %v3046
      %3365 = vmatprep.subr.bf16.mxu0 %v3051
      %3366 = vmatpush1.bf16.msra.mxu0 %v3050
      %3367 = vmatprep.subr.bf16.mxu0 %v3055
      %3368 = vmatpush1.bf16.msra.mxu0 %v3054
      %3369 = vmatprep.subr.bf16.mxu0 %v3059
      %3370 = vmatpush1.bf16.msra.mxu0 %v3058
      %3371 = vmatprep.subr.bf16.mxu0 %v3063
      %3372 = vmatpush1.bf16.msra.mxu0 %v3062
      %3373 = vmatprep.subr.bf16.mxu0 %v3067
      %3374 = vmatpush1.bf16.msra.mxu0 %v3066
      %3375 = vmatprep.subr.bf16.mxu0 %v3071
      %3376 = vmatpush1.bf16.msra.mxu0 %v3070
      %3377 = vmatprep.subr.bf16.mxu0 %v3075
      %3378 = vmatpush1.bf16.msra.mxu0 %v3074
      %3379 = vmatprep.subr.bf16.mxu0 %v3079
      %3380 = vmatpush1.bf16.msra.mxu0 %v3078
      %3381 = vmatprep.subr.bf16.mxu0 %v3083
      %3382 = vmatpush1.bf16.msra.mxu0 %v3082
      %3383 = vmatprep.subr.bf16.mxu0 %v3087
      %3384 = vmatpush1.bf16.msra.mxu0 %v3086
      %3385 = vmatprep.subr.bf16.mxu0 %v3091
      %3386 = vmatpush1.bf16.msra.mxu0 %v3090
      %3387 = vmatprep.subr.bf16.mxu0 %v3095
      %3388 = vmatpush1.bf16.msra.mxu0 %v3094
      %3389 = vmatprep.subr.bf16.mxu0 %v3099
      %3390 = vmatpush1.bf16.msra.mxu0 %v3098
      %3391 = vmatprep.subr.bf16.mxu0 %v3103
      %3392 = vmatpush1.bf16.msra.mxu0 %v3102
      %3393 = vmatprep.mubr.bf16.mxu0 %v2731
      %3394 = vmatmul.mubr.bf16.gmra.mrb[0].mxu0 %v2730
      %v3395 = vpop.f32.mrb[0].mxu0
      %v3396 = vadd.f32 %v2839, %v3395
      %v3397 = vpop.f32.mrb[0].mxu0
      %v3398 = vadd.f32 %v2843, %v3397
      %v3399 = vpop.f32.mrb[0].mxu0
      %v3400 = vadd.f32 %v2839, %v3399
      %v3401 = vpop.f32.mrb[0].mxu0
      %v3402 = vadd.f32 %v2843, %v3401
      %3403 = vmatprep.mubr.bf16.mxu0 %v2733
      %3404 = vmatmul.mubr.bf16.gmra.mrb[0].mxu0 %v2732
      %v3405 = vpop.f32.mrb[0].mxu0
      %v3406 = vadd.f32 %v2839, %v3405
      %v3407 = vpop.f32.mrb[0].mxu0
      %v3408 = vadd.f32 %v2843, %v3407
      %v3409 = vpop.f32.mrb[0].mxu0
      %v3410 = vadd.f32 %v2839, %v3409
      %v3411 = vpop.f32.mrb[0].mxu0
      %v3412 = vadd.f32 %v2843, %v3411
      %3413 = vmatprep.mubr.bf16.mxu0 %v2735
      %3414 = vmatmul.mubr.bf16.gmra.mrb[0].mxu0 %v2734
      %v3415 = vpop.f32.mrb[0].mxu0
      %v3416 = vadd.f32 %v2839, %v3415
      %v3417 = vpop.f32.mrb[0].mxu0
      %v3418 = vadd.f32 %v2843, %v3417
      %v3419 = vpop.f32.mrb[0].mxu0
      %v3420 = vadd.f32 %v2839, %v3419
      %v3421 = vpop.f32.mrb[0].mxu0
      %v3422 = vadd.f32 %v2843, %v3421
      %3423 = vmatprep.mubr.bf16.mxu0 %v2737
      %3424 = vmatmul.mubr.bf16.gmra.mrb[0].mxu0 %v2736
      %v3425 = vpop.f32.mrb[0].mxu0
      %v3426 = vadd.f32 %v2839, %v3425
      %v3427 = vpop.f32.mrb[0].mxu0
      %v3428 = vadd.f32 %v2843, %v3427
      %v3429 = vpop.f32.mrb[0].mxu0
      %v3430 = vadd.f32 %v2839, %v3429
      %v3431 = vpop.f32.mrb[0].mxu0
      %v3432 = vadd.f32 %v2843, %v3431
      %3433 = vmatprep.mubr.bf16.mxu0 %v2739
      %3434 = vmatmul.mubr.bf16.gmra.mrb[0].mxu0 %v2738
      %v3435 = vpop.f32.mrb[0].mxu0
      %v3436 = vadd.f32 %v2839, %v3435
      %v3437 = vpop.f32.mrb[0].mxu0
      %v3438 = vadd.f32 %v2843, %v3437
      %v3439 = vpop.f32.mrb[0].mxu0
      %v3440 = vadd.f32 %v2839, %v3439
      %v3441 = vpop.f32.mrb[0].mxu0
      %v3442 = vadd.f32 %v2843, %v3441
      %3443 = vmatprep.mubr.bf16.mxu0 %v2741
      %3444 = vmatmul.mubr.bf16.gmra.mrb[0].mxu0 %v2740
      %v3445 = vpop.f32.mrb[0].mxu0
      %v3446 = vadd.f32 %v2839, %v3445
      %v3447 = vpop.f32.mrb[0].mxu0
      %v3448 = vadd.f32 %v2843, %v3447
      %v3449 = vpop.f32.mrb[0].mxu0
      %v3450 = vadd.f32 %v2839, %v3449
      %v3451 = vpop.f32.mrb[0].mxu0
      %v3452 = vadd.f32 %v2843, %v3451
      %3453 = vmatprep.mubr.bf16.mxu0 %v2743
      %3454 = vmatmul.mubr.bf16.gmra.mrb[0].mxu0 %v2742
      %v3455 = vpop.f32.mrb[0].mxu0
      %v3456 = vadd.f32 %v2839, %v3455
      %v3457 = vpop.f32.mrb[0].mxu0
      %v3458 = vadd.f32 %v2843, %v3457
      %v3459 = vpop.f32.mrb[0].mxu0
      %v3460 = vadd.f32 %v2839, %v3459
      %v3461 = vpop.f32.mrb[0].mxu0
      %v3462 = vadd.f32 %v2843, %v3461
      %3463 = vmatprep.mubr.bf16.mxu0 %v2745
      %3464 = vmatmul.mubr.bf16.gmra.mrb[0].mxu0 %v2744
      %v3465 = vpop.f32.mrb[0].mxu0
      %v3466 = vadd.f32 %v2839, %v3465
      %v3467 = vpop.f32.mrb[0].mxu0
      %v3468 = vadd.f32 %v2843, %v3467
      %v3469 = vpop.f32.mrb[0].mxu0
      %v3470 = vadd.f32 %v2839, %v3469
      %v3471 = vpop.f32.mrb[0].mxu0
      %v3472 = vadd.f32 %v2843, %v3471
      %3473 = vmatprep.mubr.bf16.mxu0 %v2747
      %3474 = vmatmul.mubr.bf16.gmra.mrb[0].mxu0 %v2746
      %v3475 = vpop.f32.mrb[0].mxu0
      %v3476 = vadd.f32 %v2839, %v3475
      %v3477 = vpop.f32.mrb[0].mxu0
      %v3478 = vadd.f32 %v2843, %v3477
      %v3479 = vpop.f32.mrb[0].mxu0
      %v3480 = vadd.f32 %v2839, %v3479
      %v3481 = vpop.f32.mrb[0].mxu0
      %v3482 = vadd.f32 %v2843, %v3481
      %3483 = vmatprep.mubr.bf16.mxu0 %v2749
      %3484 = vmatmul.mubr.bf16.gmra.mrb[0].mxu0 %v2748
      %v3485 = vpop.f32.mrb[0].mxu0
      %v3486 = vadd.f32 %v2839, %v3485
      %v3487 = vpop.f32.mrb[0].mxu0
      %v3488 = vadd.f32 %v2843, %v3487
      %v3489 = vpop.f32.mrb[0].mxu0
      %v3490 = vadd.f32 %v2839, %v3489
      %v3491 = vpop.f32.mrb[0].mxu0
      %v3492 = vadd.f32 %v2843, %v3491
      %3493 = vmatprep.mubr.bf16.mxu0 %v2751
      %3494 = vmatmul.mubr.bf16.gmra.mrb[0].mxu0 %v2750
      %v3495 = vpop.f32.mrb[0].mxu0
      %v3496 = vadd.f32 %v2839, %v3495
      %v3497 = vpop.f32.mrb[0].mxu0
      %v3498 = vadd.f32 %v2843, %v3497
      %v3499 = vpop.f32.mrb[0].mxu0
      %v3500 = vadd.f32 %v2839, %v3499
      %v3501 = vpop.f32.mrb[0].mxu0
      %v3502 = vadd.f32 %v2843, %v3501
      %3503 = vmatprep.mubr.bf16.mxu0 %v2753
      %3504 = vmatmul.mubr.bf16.gmra.mrb[0].mxu0 %v2752
      %v3505 = vpop.f32.mrb[0].mxu0
      %v3506 = vadd.f32 %v2839, %v3505
      %v3507 = vpop.f32.mrb[0].mxu0
      %v3508 = vadd.f32 %v2843, %v3507
      %v3509 = vpop.f32.mrb[0].mxu0
      %v3510 = vadd.f32 %v2839, %v3509
      %v3511 = vpop.f32.mrb[0].mxu0
      %v3512 = vadd.f32 %v2843, %v3511
      %3513 = vmatprep.mubr.bf16.mxu0 %v2755
      %3514 = vmatmul.mubr.bf16.gmra.mrb[0].mxu0 %v2754
      %v3515 = vpop.f32.mrb[0].mxu0
      %v3516 = vadd.f32 %v2839, %v3515
      %v3517 = vpop.f32.mrb[0].mxu0
      %v3518 = vadd.f32 %v2843, %v3517
      %v3519 = vpop.f32.mrb[0].mxu0
      %v3520 = vadd.f32 %v2839, %v3519
      %v3521 = vpop.f32.mrb[0].mxu0
      %v3522 = vadd.f32 %v2843, %v3521
      %3523 = vmatprep.mubr.bf16.mxu0 %v2757
      %3524 = vmatmul.mubr.bf16.gmra.mrb[0].mxu0 %v2756
      %v3525 = vpop.f32.mrb[0].mxu0
      %v3526 = vadd.f32 %v2839, %v3525
      %v3527 = vpop.f32.mrb[0].mxu0
      %v3528 = vadd.f32 %v2843, %v3527
      %v3529 = vpop.f32.mrb[0].mxu0
      %v3530 = vadd.f32 %v2839, %v3529
      %v3531 = vpop.f32.mrb[0].mxu0
      %v3532 = vadd.f32 %v2843, %v3531
      %3533 = vmatprep.mubr.bf16.mxu0 %v2759
      %3534 = vmatmul.mubr.bf16.gmra.mrb[0].mxu0 %v2758
      %v3535 = vpop.f32.mrb[0].mxu0
      %v3536 = vadd.f32 %v2839, %v3535
      %v3537 = vpop.f32.mrb[0].mxu0
      %v3538 = vadd.f32 %v2843, %v3537
      %v3539 = vpop.f32.mrb[0].mxu0
      %v3540 = vadd.f32 %v2839, %v3539
      %v3541 = vpop.f32.mrb[0].mxu0
      %v3542 = vadd.f32 %v2843, %v3541
      %3543 = vmatprep.mubr.bf16.mxu0 %v2761
      %3544 = vmatmul.mubr.bf16.gmra.mrb[0].mxu0 %v2760
      %v3545 = vpop.f32.mrb[0].mxu0
      %v3546 = vadd.f32 %v2839, %v3545
      %v3547 = vpop.f32.mrb[0].mxu0
      %v3548 = vadd.f32 %v2843, %v3547
      %v3549 = vpop.f32.mrb[0].mxu0
      %v3550 = vadd.f32 %v2839, %v3549
      %v3551 = vpop.f32.mrb[0].mxu0
      %v3552 = vadd.f32 %v2843, %v3551
      %3553 = vdwg.mxu0
      %v3554 = vmax.f32 %v3203, 0.0
      %v3555 = vmax.f32 %v3205, 0.0
      %v3556 = vmax.f32 %v3396, 0.0
      %v3557 = vmax.f32 %v3398, 0.0
      %v3558 = vmax.f32 %v3207, 0.0
      %v3559 = vmax.f32 %v3209, 0.0
      %v3560 = vmax.f32 %v3400, 0.0
      %v3561 = vmax.f32 %v3402, 0.0
      %v3562 = vmax.f32 %v3213, 0.0
      %v3563 = vmax.f32 %v3215, 0.0
      %v3564 = vmax.f32 %v3406, 0.0
      %v3565 = vmax.f32 %v3408, 0.0
      %v3566 = vmax.f32 %v3217, 0.0
      %v3567 = vmax.f32 %v3219, 0.0
      %v3568 = vmax.f32 %v3410, 0.0
      %v3569 = vmax.f32 %v3412, 0.0
      %v3570 = vmax.f32 %v3223, 0.0
      %v3571 = vmax.f32 %v3225, 0.0
      %v3572 = vmax.f32 %v3416, 0.0
      %v3573 = vmax.f32 %v3418, 0.0
      %v3574 = vmax.f32 %v3227, 0.0
      %v3575 = vmax.f32 %v3229, 0.0
      %v3576 = vmax.f32 %v3420, 0.0
      %v3577 = vmax.f32 %v3422, 0.0
      %v3578 = vmax.f32 %v3233, 0.0
      %v3579 = vmax.f32 %v3235, 0.0
      %v3580 = vmax.f32 %v3426, 0.0
      %v3581 = vmax.f32 %v3428, 0.0
      %v3582 = vmax.f32 %v3237, 0.0
      %v3583 = vmax.f32 %v3239, 0.0
      %v3584 = vmax.f32 %v3430, 0.0
      %v3585 = vmax.f32 %v3432, 0.0
      %v3586 = vmax.f32 %v3243, 0.0
      %v3587 = vmax.f32 %v3245, 0.0
      %v3588 = vmax.f32 %v3436, 0.0
      %v3589 = vmax.f32 %v3438, 0.0
      %v3590 = vmax.f32 %v3247, 0.0
      %v3591 = vmax.f32 %v3249, 0.0
      %v3592 = vmax.f32 %v3440, 0.0
      %v3593 = vmax.f32 %v3442, 0.0
      %v3594 = vmax.f32 %v3253, 0.0
      %v3595 = vmax.f32 %v3255, 0.0
      %v3596 = vmax.f32 %v3446, 0.0
      %v3597 = vmax.f32 %v3448, 0.0
      %v3598 = vmax.f32 %v3257, 0.0
      %v3599 = vmax.f32 %v3259, 0.0
      %v3600 = vmax.f32 %v3450, 0.0
      %v3601 = vmax.f32 %v3452, 0.0
      %v3602 = vmax.f32 %v3263, 0.0
      %v3603 = vmax.f32 %v3265, 0.0
      %v3604 = vmax.f32 %v3456, 0.0
      %v3605 = vmax.f32 %v3458, 0.0
      %v3606 = vmax.f32 %v3267, 0.0
      %v3607 = vmax.f32 %v3269, 0.0
      %v3608 = vmax.f32 %v3460, 0.0
      %v3609 = vmax.f32 %v3462, 0.0
      %v3610 = vmax.f32 %v3273, 0.0
      %v3611 = vmax.f32 %v3275, 0.0
      %v3612 = vmax.f32 %v3466, 0.0
      %v3613 = vmax.f32 %v3468, 0.0
      %v3614 = vmax.f32 %v3277, 0.0
      %v3615 = vmax.f32 %v3279, 0.0
      %v3616 = vmax.f32 %v3470, 0.0
      %v3617 = vmax.f32 %v3472, 0.0
      %v3618 = vmax.f32 %v3283, 0.0
      %v3619 = vmax.f32 %v3285, 0.0
      %v3620 = vmax.f32 %v3476, 0.0
      %v3621 = vmax.f32 %v3478, 0.0
      %v3622 = vmax.f32 %v3287, 0.0
      %v3623 = vmax.f32 %v3289, 0.0
      %v3624 = vmax.f32 %v3480, 0.0
      %v3625 = vmax.f32 %v3482, 0.0
      %v3626 = vmax.f32 %v3293, 0.0
      %v3627 = vmax.f32 %v3295, 0.0
      %v3628 = vmax.f32 %v3486, 0.0
      %v3629 = vmax.f32 %v3488, 0.0
      %v3630 = vmax.f32 %v3297, 0.0
      %v3631 = vmax.f32 %v3299, 0.0
      %v3632 = vmax.f32 %v3490, 0.0
      %v3633 = vmax.f32 %v3492, 0.0
      %v3634 = vmax.f32 %v3303, 0.0
      %v3635 = vmax.f32 %v3305, 0.0
      %v3636 = vmax.f32 %v3496, 0.0
      %v3637 = vmax.f32 %v3498, 0.0
      %v3638 = vmax.f32 %v3307, 0.0
      %v3639 = vmax.f32 %v3309, 0.0
      %v3640 = vmax.f32 %v3500, 0.0
      %v3641 = vmax.f32 %v3502, 0.0
      %v3642 = vmax.f32 %v3313, 0.0
      %v3643 = vmax.f32 %v3315, 0.0
      %v3644 = vmax.f32 %v3506, 0.0
      %v3645 = vmax.f32 %v3508, 0.0
      %v3646 = vmax.f32 %v3317, 0.0
      %v3647 = vmax.f32 %v3319, 0.0
      %v3648 = vmax.f32 %v3510, 0.0
      %v3649 = vmax.f32 %v3512, 0.0
      %v3650 = vmax.f32 %v3323, 0.0
      %v3651 = vmax.f32 %v3325, 0.0
      %v3652 = vmax.f32 %v3516, 0.0
      %v3653 = vmax.f32 %v3518, 0.0
      %v3654 = vmax.f32 %v3327, 0.0
      %v3655 = vmax.f32 %v3329, 0.0
      %v3656 = vmax.f32 %v3520, 0.0
      %v3657 = vmax.f32 %v3522, 0.0
      %v3658 = vmax.f32 %v3333, 0.0
      %v3659 = vmax.f32 %v3335, 0.0
      %v3660 = vmax.f32 %v3526, 0.0
      %v3661 = vmax.f32 %v3528, 0.0
      %v3662 = vmax.f32 %v3337, 0.0
      %v3663 = vmax.f32 %v3339, 0.0
      %v3664 = vmax.f32 %v3530, 0.0
      %v3665 = vmax.f32 %v3532, 0.0
      %v3666 = vmax.f32 %v3343, 0.0
      %v3667 = vmax.f32 %v3345, 0.0
      %v3668 = vmax.f32 %v3536, 0.0
      %v3669 = vmax.f32 %v3538, 0.0
      %v3670 = vmax.f32 %v3347, 0.0
      %v3671 = vmax.f32 %v3349, 0.0
      %v3672 = vmax.f32 %v3540, 0.0
      %v3673 = vmax.f32 %v3542, 0.0
      %v3674 = vmax.f32 %v3353, 0.0
      %v3675 = vmax.f32 %v3355, 0.0
      %v3676 = vmax.f32 %v3546, 0.0
      %v3677 = vmax.f32 %v3548, 0.0
      %v3678 = vmax.f32 %v3357, 0.0
      %v3679 = vmax.f32 %v3359, 0.0
      %v3680 = vmax.f32 %v3550, 0.0
      %v3681 = vmax.f32 %v3552, 0.0
      %v3682 = vpack.c.bf16 %v3558, %v3554
      %v3683 = vpack.c.bf16 %v3559, %v3555
      %v3684 = vpack.c.bf16 %v3560, %v3556
      %v3685 = vpack.c.bf16 %v3561, %v3557
      %v3686 = vpack.c.bf16 %v3566, %v3562
      %v3687 = vpack.c.bf16 %v3567, %v3563
      %v3688 = vpack.c.bf16 %v3568, %v3564
      %v3689 = vpack.c.bf16 %v3569, %v3565
      %v3690 = vpack.c.bf16 %v3574, %v3570
      %v3691 = vpack.c.bf16 %v3575, %v3571
      %v3692 = vpack.c.bf16 %v3576, %v3572
      %v3693 = vpack.c.bf16 %v3577, %v3573
      %v3694 = vpack.c.bf16 %v3582, %v3578
      %v3695 = vpack.c.bf16 %v3583, %v3579
      %v3696 = vpack.c.bf16 %v3584, %v3580
      %v3697 = vpack.c.bf16 %v3585, %v3581
      %v3698 = vpack.c.bf16 %v3590, %v3586
      %v3699 = vpack.c.bf16 %v3591, %v3587
      %v3700 = vpack.c.bf16 %v3592, %v3588
      %v3701 = vpack.c.bf16 %v3593, %v3589
      %v3702 = vpack.c.bf16 %v3598, %v3594
      %v3703 = vpack.c.bf16 %v3599, %v3595
      %v3704 = vpack.c.bf16 %v3600, %v3596
      %v3705 = vpack.c.bf16 %v3601, %v3597
      %v3706 = vpack.c.bf16 %v3606, %v3602
      %v3707 = vpack.c.bf16 %v3607, %v3603
      %v3708 = vpack.c.bf16 %v3608, %v3604
      %v3709 = vpack.c.bf16 %v3609, %v3605
      %v3710 = vpack.c.bf16 %v3614, %v3610
      %v3711 = vpack.c.bf16 %v3615, %v3611
      %v3712 = vpack.c.bf16 %v3616, %v3612
      %v3713 = vpack.c.bf16 %v3617, %v3613
      %v3714 = vpack.c.bf16 %v3622, %v3618
      %v3715 = vpack.c.bf16 %v3623, %v3619
      %v3716 = vpack.c.bf16 %v3624, %v3620
      %v3717 = vpack.c.bf16 %v3625, %v3621
      %v3718 = vpack.c.bf16 %v3630, %v3626
      %v3719 = vpack.c.bf16 %v3631, %v3627
      %v3720 = vpack.c.bf16 %v3632, %v3628
      %v3721 = vpack.c.bf16 %v3633, %v3629
      %v3722 = vpack.c.bf16 %v3638, %v3634
      %v3723 = vpack.c.bf16 %v3639, %v3635
      %v3724 = vpack.c.bf16 %v3640, %v3636
      %v3725 = vpack.c.bf16 %v3641, %v3637
      %v3726 = vpack.c.bf16 %v3646, %v3642
      %v3727 = vpack.c.bf16 %v3647, %v3643
      %v3728 = vpack.c.bf16 %v3648, %v3644
      %v3729 = vpack.c.bf16 %v3649, %v3645
      %v3730 = vpack.c.bf16 %v3654, %v3650
      %v3731 = vpack.c.bf16 %v3655, %v3651
      %v3732 = vpack.c.bf16 %v3656, %v3652
      %v3733 = vpack.c.bf16 %v3657, %v3653
      %v3734 = vpack.c.bf16 %v3662, %v3658
      %v3735 = vpack.c.bf16 %v3663, %v3659
      %v3736 = vpack.c.bf16 %v3664, %v3660
      %v3737 = vpack.c.bf16 %v3665, %v3661
      %v3738 = vpack.c.bf16 %v3670, %v3666
      %v3739 = vpack.c.bf16 %v3671, %v3667
      %v3740 = vpack.c.bf16 %v3672, %v3668
      %v3741 = vpack.c.bf16 %v3673, %v3669
      %v3742 = vpack.c.bf16 %v3678, %v3674
      %v3743 = vpack.c.bf16 %v3679, %v3675
      %v3744 = vpack.c.bf16 %v3680, %v3676
      %v3745 = vpack.c.bf16 %v3681, %v3677
      %v3746 = vld [vmem:[%s6] sm:$0xff]
      %v3747 = vld [vmem:[%s6 + $0x8] sm:$0xff]
      %v3748 = vld [vmem:[%s6 + $0x10] sm:$0xff]
      %v3749 = vld [vmem:[%s6 + $0x18] sm:$0xff]
      %v3750 = vld [vmem:[%s6 + $0x20] sm:$0xff]
      %v3751 = vld [vmem:[%s6 + $0x28] sm:$0xff]
      %v3752 = vld [vmem:[%s6 + $0x30] sm:$0xff]
      %v3753 = vld [vmem:[%s6 + $0x38] sm:$0xff]
      %v3754 = vld [vmem:[%s6 + $0x40] sm:$0xff]
      %v3755 = vld [vmem:[%s6 + $0x48] sm:$0xff]
      %v3756 = vld [vmem:[%s6 + $0x50] sm:$0xff]
      %v3757 = vld [vmem:[%s6 + $0x58] sm:$0xff]
      %v3758 = vld [vmem:[%s6 + $0x60] sm:$0xff]
      %v3759 = vld [vmem:[%s6 + $0x68] sm:$0xff]
      %v3760 = vld [vmem:[%s6 + $0x70] sm:$0xff]
      %v3761 = vld [vmem:[%s6 + $0x78] sm:$0xff]
      %v3762 = vld [vmem:[%s6 + $0x80] sm:$0xff]
      %v3763 = vld [vmem:[%s6 + $0x88] sm:$0xff]
      %v3764 = vld [vmem:[%s6 + $0x90] sm:$0xff]
      %v3765 = vld [vmem:[%s6 + $0x98] sm:$0xff]
      %v3766 = vld [vmem:[%s6 + $0xa0] sm:$0xff]
      %v3767 = vld [vmem:[%s6 + $0xa8] sm:$0xff]
      %v3768 = vld [vmem:[%s6 + $0xb0] sm:$0xff]
      %v3769 = vld [vmem:[%s6 + $0xb8] sm:$0xff]
      %v3770 = vld [vmem:[%s6 + $0xc0] sm:$0xff]
      %v3771 = vld [vmem:[%s6 + $0xc8] sm:$0xff]
      %v3772 = vld [vmem:[%s6 + $0xd0] sm:$0xff]
      %v3773 = vld [vmem:[%s6 + $0xd8] sm:$0xff]
      %v3774 = vld [vmem:[%s6 + $0xe0] sm:$0xff]
      %v3775 = vld [vmem:[%s6 + $0xe8] sm:$0xff]
      %v3776 = vld [vmem:[%s6 + $0xf0] sm:$0xff]
      %v3777 = vld [vmem:[%s6 + $0xf8] sm:$0xff]
      %v3778 = vld [vmem:[%s6 + $0x100] sm:$0xff]
      %v3779 = vld [vmem:[%s6 + $0x108] sm:$0xff]
      %v3780 = vld [vmem:[%s6 + $0x110] sm:$0xff]
      %v3781 = vld [vmem:[%s6 + $0x118] sm:$0xff]
      %v3782 = vld [vmem:[%s6 + $0x120] sm:$0xff]
      %v3783 = vld [vmem:[%s6 + $0x128] sm:$0xff]
      %v3784 = vld [vmem:[%s6 + $0x130] sm:$0xff]
      %v3785 = vld [vmem:[%s6 + $0x138] sm:$0xff]
      %v3786 = vld [vmem:[%s6 + $0x140] sm:$0xff]
      %v3787 = vld [vmem:[%s6 + $0x148] sm:$0xff]
      %v3788 = vld [vmem:[%s6 + $0x150] sm:$0xff]
      %v3789 = vld [vmem:[%s6 + $0x158] sm:$0xff]
      %v3790 = vld [vmem:[%s6 + $0x160] sm:$0xff]
      %v3791 = vld [vmem:[%s6 + $0x168] sm:$0xff]
      %v3792 = vld [vmem:[%s6 + $0x170] sm:$0xff]
      %v3793 = vld [vmem:[%s6 + $0x178] sm:$0xff]
      %v3794 = vld [vmem:[%s6 + $0x180] sm:$0xff]
      %v3795 = vld [vmem:[%s6 + $0x188] sm:$0xff]
      %v3796 = vld [vmem:[%s6 + $0x190] sm:$0xff]
      %v3797 = vld [vmem:[%s6 + $0x198] sm:$0xff]
      %v3798 = vld [vmem:[%s6 + $0x1a0] sm:$0xff]
      %v3799 = vld [vmem:[%s6 + $0x1a8] sm:$0xff]
      %v3800 = vld [vmem:[%s6 + $0x1b0] sm:$0xff]
      %v3801 = vld [vmem:[%s6 + $0x1b8] sm:$0xff]
      %v3802 = vld [vmem:[%s6 + $0x1c0] sm:$0xff]
      %v3803 = vld [vmem:[%s6 + $0x1c8] sm:$0xff]
      %v3804 = vld [vmem:[%s6 + $0x1d0] sm:$0xff]
      %v3805 = vld [vmem:[%s6 + $0x1d8] sm:$0xff]
      %v3806 = vld [vmem:[%s6 + $0x1e0] sm:$0xff]
      %v3807 = vld [vmem:[%s6 + $0x1e8] sm:$0xff]
      %v3808 = vld [vmem:[%s6 + $0x1f0] sm:$0xff]
      %v3809 = vld [vmem:[%s6 + $0x1f8] sm:$0xff]
      %v3810 = vld [vmem:[%s7] sm:$0x3]
      %v3812 = vlaneseq
      %v3813 = vshrl.u32 %v3812, 7
      %v3814 = vsub.s32 0, %v3813
      %v3815 = vrot.slane %v3810, %v3814
      %v3816 = vlaneseq
      %v3817 = vshrl.u32 %v3816, 7
      %v3818 = vsub.s32 1, %v3817
      %v3819 = vrot.slane %v3810, %v3818
      %v3886 = vunpack.c.l.b16 %v3746
      %v3887 = vunpack.c.h.b16 %v3746
      %v3888 = vunpack.c.l.b16 %v3747
      %v3889 = vunpack.c.h.b16 %v3747
      %v3890 = vunpack.c.l.b16 %v3748
      %v3891 = vunpack.c.h.b16 %v3748
      %v3892 = vunpack.c.l.b16 %v3749
      %v3893 = vunpack.c.h.b16 %v3749
      %v3894 = vunpack.c.l.b16 %v3750
      %v3895 = vunpack.c.h.b16 %v3750
      %v3896 = vunpack.c.l.b16 %v3751
      %v3897 = vunpack.c.h.b16 %v3751
      %v3898 = vunpack.c.l.b16 %v3752
      %v3899 = vunpack.c.h.b16 %v3752
      %v3900 = vunpack.c.l.b16 %v3753
      %v3901 = vunpack.c.h.b16 %v3753
      %v3902 = vunpack.c.l.b16 %v3754
      %v3903 = vunpack.c.h.b16 %v3754
      %v3904 = vunpack.c.l.b16 %v3755
      %v3905 = vunpack.c.h.b16 %v3755
      %v3906 = vunpack.c.l.b16 %v3756
      %v3907 = vunpack.c.h.b16 %v3756
      %v3908 = vunpack.c.l.b16 %v3757
      %v3909 = vunpack.c.h.b16 %v3757
      %v3910 = vunpack.c.l.b16 %v3758
      %v3911 = vunpack.c.h.b16 %v3758
      %v3912 = vunpack.c.l.b16 %v3759
      %v3913 = vunpack.c.h.b16 %v3759
      %v3914 = vunpack.c.l.b16 %v3760
      %v3915 = vunpack.c.h.b16 %v3760
      %v3916 = vunpack.c.l.b16 %v3761
      %v3917 = vunpack.c.h.b16 %v3761
      %v3918 = vunpack.c.l.b16 %v3762
      %v3919 = vunpack.c.h.b16 %v3762
      %v3920 = vunpack.c.l.b16 %v3763
      %v3921 = vunpack.c.h.b16 %v3763
      %v3922 = vunpack.c.l.b16 %v3764
      %v3923 = vunpack.c.h.b16 %v3764
      %v3924 = vunpack.c.l.b16 %v3765
      %v3925 = vunpack.c.h.b16 %v3765
      %v3926 = vunpack.c.l.b16 %v3766
      %v3927 = vunpack.c.h.b16 %v3766
      %v3928 = vunpack.c.l.b16 %v3767
      %v3929 = vunpack.c.h.b16 %v3767
      %v3930 = vunpack.c.l.b16 %v3768
      %v3931 = vunpack.c.h.b16 %v3768
      %v3932 = vunpack.c.l.b16 %v3769
      %v3933 = vunpack.c.h.b16 %v3769
      %v3934 = vunpack.c.l.b16 %v3770
      %v3935 = vunpack.c.h.b16 %v3770
      %v3936 = vunpack.c.l.b16 %v3771
      %v3937 = vunpack.c.h.b16 %v3771
      %v3938 = vunpack.c.l.b16 %v3772
      %v3939 = vunpack.c.h.b16 %v3772
      %v3940 = vunpack.c.l.b16 %v3773
      %v3941 = vunpack.c.h.b16 %v3773
      %v3942 = vunpack.c.l.b16 %v3774
      %v3943 = vunpack.c.h.b16 %v3774
      %v3944 = vunpack.c.l.b16 %v3775
      %v3945 = vunpack.c.h.b16 %v3775
      %v3946 = vunpack.c.l.b16 %v3776
      %v3947 = vunpack.c.h.b16 %v3776
      %v3948 = vunpack.c.l.b16 %v3777
      %v3949 = vunpack.c.h.b16 %v3777
      %v3950 = vunpack.c.l.b16 %v3778
      %v3951 = vunpack.c.h.b16 %v3778
      %v3952 = vunpack.c.l.b16 %v3779
      %v3953 = vunpack.c.h.b16 %v3779
      %v3954 = vunpack.c.l.b16 %v3780
      %v3955 = vunpack.c.h.b16 %v3780
      %v3956 = vunpack.c.l.b16 %v3781
      %v3957 = vunpack.c.h.b16 %v3781
      %v3958 = vunpack.c.l.b16 %v3782
      %v3959 = vunpack.c.h.b16 %v3782
      %v3960 = vunpack.c.l.b16 %v3783
      %v3961 = vunpack.c.h.b16 %v3783
      %v3962 = vunpack.c.l.b16 %v3784
      %v3963 = vunpack.c.h.b16 %v3784
      %v3964 = vunpack.c.l.b16 %v3785
      %v3965 = vunpack.c.h.b16 %v3785
      %v3966 = vunpack.c.l.b16 %v3786
      %v3967 = vunpack.c.h.b16 %v3786
      %v3968 = vunpack.c.l.b16 %v3787
      %v3969 = vunpack.c.h.b16 %v3787
      %v3970 = vunpack.c.l.b16 %v3788
      %v3971 = vunpack.c.h.b16 %v3788
      %v3972 = vunpack.c.l.b16 %v3789
      %v3973 = vunpack.c.h.b16 %v3789
      %v3974 = vunpack.c.l.b16 %v3790
      %v3975 = vunpack.c.h.b16 %v3790
      %v3976 = vunpack.c.l.b16 %v3791
      %v3977 = vunpack.c.h.b16 %v3791
      %v3978 = vunpack.c.l.b16 %v3792
      %v3979 = vunpack.c.h.b16 %v3792
      %v3980 = vunpack.c.l.b16 %v3793
      %v3981 = vunpack.c.h.b16 %v3793
      %v3982 = vunpack.c.l.b16 %v3794
      %v3983 = vunpack.c.h.b16 %v3794
      %v3984 = vunpack.c.l.b16 %v3795
      %v3985 = vunpack.c.h.b16 %v3795
      %v3986 = vunpack.c.l.b16 %v3796
      %v3987 = vunpack.c.h.b16 %v3796
      %v3988 = vunpack.c.l.b16 %v3797
      %v3989 = vunpack.c.h.b16 %v3797
      %v3990 = vunpack.c.l.b16 %v3798
      %v3991 = vunpack.c.h.b16 %v3798
      %v3992 = vunpack.c.l.b16 %v3799
      %v3993 = vunpack.c.h.b16 %v3799
      %v3994 = vunpack.c.l.b16 %v3800
      %v3995 = vunpack.c.h.b16 %v3800
      %v3996 = vunpack.c.l.b16 %v3801
      %v3997 = vunpack.c.h.b16 %v3801
      %v3998 = vunpack.c.l.b16 %v3802
      %v3999 = vunpack.c.h.b16 %v3802
      %v4000 = vunpack.c.l.b16 %v3803
      %v4001 = vunpack.c.h.b16 %v3803
      %v4002 = vunpack.c.l.b16 %v3804
      %v4003 = vunpack.c.h.b16 %v3804
      %v4004 = vunpack.c.l.b16 %v3805
      %v4005 = vunpack.c.h.b16 %v3805
      %v4006 = vunpack.c.l.b16 %v3806
      %v4007 = vunpack.c.h.b16 %v3806
      %v4008 = vunpack.c.l.b16 %v3807
      %v4009 = vunpack.c.h.b16 %v3807
      %v4010 = vunpack.c.l.b16 %v3808
      %v4011 = vunpack.c.h.b16 %v3808
      %v4012 = vunpack.c.l.b16 %v3809
      %v4013 = vunpack.c.h.b16 %v3809
      %v4014 = vpack.c.b16 %v3888, %v3886
      %v4015 = vpack.c.b16 %v3889, %v3887
      %v4016 = vpack.c.b16 %v3892, %v3890
      %v4017 = vpack.c.b16 %v3893, %v3891
      %v4018 = vpack.c.b16 %v3896, %v3894
      %v4019 = vpack.c.b16 %v3897, %v3895
      %v4020 = vpack.c.b16 %v3900, %v3898
      %v4021 = vpack.c.b16 %v3901, %v3899
      %v4022 = vpack.c.b16 %v3904, %v3902
      %v4023 = vpack.c.b16 %v3905, %v3903
      %v4024 = vpack.c.b16 %v3908, %v3906
      %v4025 = vpack.c.b16 %v3909, %v3907
      %v4026 = vpack.c.b16 %v3912, %v3910
      %v4027 = vpack.c.b16 %v3913, %v3911
      %v4028 = vpack.c.b16 %v3916, %v3914
      %v4029 = vpack.c.b16 %v3917, %v3915
      %v4030 = vpack.c.b16 %v3920, %v3918
      %v4031 = vpack.c.b16 %v3921, %v3919
      %v4032 = vpack.c.b16 %v3924, %v3922
      %v4033 = vpack.c.b16 %v3925, %v3923
      %v4034 = vpack.c.b16 %v3928, %v3926
      %v4035 = vpack.c.b16 %v3929, %v3927
      %v4036 = vpack.c.b16 %v3932, %v3930
      %v4037 = vpack.c.b16 %v3933, %v3931
      %v4038 = vpack.c.b16 %v3936, %v3934
      %v4039 = vpack.c.b16 %v3937, %v3935
      %v4040 = vpack.c.b16 %v3940, %v3938
      %v4041 = vpack.c.b16 %v3941, %v3939
      %v4042 = vpack.c.b16 %v3944, %v3942
      %v4043 = vpack.c.b16 %v3945, %v3943
      %v4044 = vpack.c.b16 %v3948, %v3946
      %v4045 = vpack.c.b16 %v3949, %v3947
      %v4046 = vpack.c.b16 %v3952, %v3950
      %v4047 = vpack.c.b16 %v3953, %v3951
      %v4048 = vpack.c.b16 %v3956, %v3954
      %v4049 = vpack.c.b16 %v3957, %v3955
      %v4050 = vpack.c.b16 %v3960, %v3958
      %v4051 = vpack.c.b16 %v3961, %v3959
      %v4052 = vpack.c.b16 %v3964, %v3962
      %v4053 = vpack.c.b16 %v3965, %v3963
      %v4054 = vpack.c.b16 %v3968, %v3966
      %v4055 = vpack.c.b16 %v3969, %v3967
      %v4056 = vpack.c.b16 %v3972, %v3970
      %v4057 = vpack.c.b16 %v3973, %v3971
      %v4058 = vpack.c.b16 %v3976, %v3974
      %v4059 = vpack.c.b16 %v3977, %v3975
      %v4060 = vpack.c.b16 %v3980, %v3978
      %v4061 = vpack.c.b16 %v3981, %v3979
      %v4062 = vpack.c.b16 %v3984, %v3982
      %v4063 = vpack.c.b16 %v3985, %v3983
      %v4064 = vpack.c.b16 %v3988, %v3986
      %v4065 = vpack.c.b16 %v3989, %v3987
      %v4066 = vpack.c.b16 %v3992, %v3990
      %v4067 = vpack.c.b16 %v3993, %v3991
      %v4068 = vpack.c.b16 %v3996, %v3994
      %v4069 = vpack.c.b16 %v3997, %v3995
      %v4070 = vpack.c.b16 %v4000, %v3998
      %v4071 = vpack.c.b16 %v4001, %v3999
      %v4072 = vpack.c.b16 %v4004, %v4002
      %v4073 = vpack.c.b16 %v4005, %v4003
      %v4074 = vpack.c.b16 %v4008, %v4006
      %v4075 = vpack.c.b16 %v4009, %v4007
      %v4076 = vpack.c.b16 %v4012, %v4010
      %v4077 = vpack.c.b16 %v4013, %v4011
      %4142 = vmatprep.subr.bf16.mxu0 %v4015
      %4143 = vmatpush1.bf16.msra.mxu0 %v4014
      %4144 = vmatprep.subr.bf16.mxu0 %v4017
      %4145 = vmatpush1.bf16.msra.mxu0 %v4016
      %4146 = vmatprep.subr.bf16.mxu0 %v4019
      %4147 = vmatpush1.bf16.msra.mxu0 %v4018
      %4148 = vmatprep.subr.bf16.mxu0 %v4021
      %4149 = vmatpush1.bf16.msra.mxu0 %v4020
      %4150 = vmatprep.subr.bf16.mxu0 %v4023
      %4151 = vmatpush1.bf16.msra.mxu0 %v4022
      %4152 = vmatprep.subr.bf16.mxu0 %v4025
      %4153 = vmatpush1.bf16.msra.mxu0 %v4024
      %4154 = vmatprep.subr.bf16.mxu0 %v4027
      %4155 = vmatpush1.bf16.msra.mxu0 %v4026
      %4156 = vmatprep.subr.bf16.mxu0 %v4029
      %4157 = vmatpush1.bf16.msra.mxu0 %v4028
      %4158 = vmatprep.subr.bf16.mxu0 %v4031
      %4159 = vmatpush1.bf16.msra.mxu0 %v4030
      %4160 = vmatprep.subr.bf16.mxu0 %v4033
      %4161 = vmatpush1.bf16.msra.mxu0 %v4032
      %4162 = vmatprep.subr.bf16.mxu0 %v4035
      %4163 = vmatpush1.bf16.msra.mxu0 %v4034
      %4164 = vmatprep.subr.bf16.mxu0 %v4037
      %4165 = vmatpush1.bf16.msra.mxu0 %v4036
      %4166 = vmatprep.subr.bf16.mxu0 %v4039
      %4167 = vmatpush1.bf16.msra.mxu0 %v4038
      %4168 = vmatprep.subr.bf16.mxu0 %v4041
      %4169 = vmatpush1.bf16.msra.mxu0 %v4040
      %4170 = vmatprep.subr.bf16.mxu0 %v4043
      %4171 = vmatpush1.bf16.msra.mxu0 %v4042
      %4172 = vmatprep.subr.bf16.mxu0 %v4045
      %4173 = vmatpush1.bf16.msra.mxu0 %v4044
      %4174 = vmatprep.mubr.bf16.mxu0 %v3683
      %4175 = vmatmul.mubr.bf16.gmra.mrb[0].mxu0 %v3682
      %v4176 = vpop.f32.mrb[0].mxu0
      %v4177 = vadd.f32 %v3815, %v4176
      %v4178 = vpop.f32.mrb[0].mxu0
      %v4179 = vadd.f32 %v3819, %v4178
      %v4180 = vpop.f32.mrb[0].mxu0
      %v4181 = vadd.f32 %v3815, %v4180
      %v4182 = vpop.f32.mrb[0].mxu0
      %v4183 = vadd.f32 %v3819, %v4182
      %4184 = vmatprep.mubr.bf16.mxu0 %v3687
      %4185 = vmatmul.mubr.bf16.gmra.mrb[0].mxu0 %v3686
      %v4186 = vpop.f32.mrb[0].mxu0
      %v4187 = vadd.f32 %v3815, %v4186
      %v4188 = vpop.f32.mrb[0].mxu0
      %v4189 = vadd.f32 %v3819, %v4188
      %v4190 = vpop.f32.mrb[0].mxu0
      %v4191 = vadd.f32 %v3815, %v4190
      %v4192 = vpop.f32.mrb[0].mxu0
      %v4193 = vadd.f32 %v3819, %v4192
      %4194 = vmatprep.mubr.bf16.mxu0 %v3691
      %4195 = vmatmul.mubr.bf16.gmra.mrb[0].mxu0 %v3690
      %v4196 = vpop.f32.mrb[0].mxu0
      %v4197 = vadd.f32 %v3815, %v4196
      %v4198 = vpop.f32.mrb[0].mxu0
      %v4199 = vadd.f32 %v3819, %v4198
      %v4200 = vpop.f32.mrb[0].mxu0
      %v4201 = vadd.f32 %v3815, %v4200
      %v4202 = vpop.f32.mrb[0].mxu0
      %v4203 = vadd.f32 %v3819, %v4202
      %4204 = vmatprep.mubr.bf16.mxu0 %v3695
      %4205 = vmatmul.mubr.bf16.gmra.mrb[0].mxu0 %v3694
      %v4206 = vpop.f32.mrb[0].mxu0
      %v4207 = vadd.f32 %v3815, %v4206
      %v4208 = vpop.f32.mrb[0].mxu0
      %v4209 = vadd.f32 %v3819, %v4208
      %v4210 = vpop.f32.mrb[0].mxu0
      %v4211 = vadd.f32 %v3815, %v4210
      %v4212 = vpop.f32.mrb[0].mxu0
      %v4213 = vadd.f32 %v3819, %v4212
      %4214 = vmatprep.mubr.bf16.mxu0 %v3699
      %4215 = vmatmul.mubr.bf16.gmra.mrb[0].mxu0 %v3698
      %v4216 = vpop.f32.mrb[0].mxu0
      %v4217 = vadd.f32 %v3815, %v4216
      %v4218 = vpop.f32.mrb[0].mxu0
      %v4219 = vadd.f32 %v3819, %v4218
      %v4220 = vpop.f32.mrb[0].mxu0
      %v4221 = vadd.f32 %v3815, %v4220
      %v4222 = vpop.f32.mrb[0].mxu0
      %v4223 = vadd.f32 %v3819, %v4222
      %4224 = vmatprep.mubr.bf16.mxu0 %v3703
      %4225 = vmatmul.mubr.bf16.gmra.mrb[0].mxu0 %v3702
      %v4226 = vpop.f32.mrb[0].mxu0
      %v4227 = vadd.f32 %v3815, %v4226
      %v4228 = vpop.f32.mrb[0].mxu0
      %v4229 = vadd.f32 %v3819, %v4228
      %v4230 = vpop.f32.mrb[0].mxu0
      %v4231 = vadd.f32 %v3815, %v4230
      %v4232 = vpop.f32.mrb[0].mxu0
      %v4233 = vadd.f32 %v3819, %v4232
      %4234 = vmatprep.mubr.bf16.mxu0 %v3707
      %4235 = vmatmul.mubr.bf16.gmra.mrb[0].mxu0 %v3706
      %v4236 = vpop.f32.mrb[0].mxu0
      %v4237 = vadd.f32 %v3815, %v4236
      %v4238 = vpop.f32.mrb[0].mxu0
      %v4239 = vadd.f32 %v3819, %v4238
      %v4240 = vpop.f32.mrb[0].mxu0
      %v4241 = vadd.f32 %v3815, %v4240
      %v4242 = vpop.f32.mrb[0].mxu0
      %v4243 = vadd.f32 %v3819, %v4242
      %4244 = vmatprep.mubr.bf16.mxu0 %v3711
      %4245 = vmatmul.mubr.bf16.gmra.mrb[0].mxu0 %v3710
      %v4246 = vpop.f32.mrb[0].mxu0
      %v4247 = vadd.f32 %v3815, %v4246
      %v4248 = vpop.f32.mrb[0].mxu0
      %v4249 = vadd.f32 %v3819, %v4248
      %v4250 = vpop.f32.mrb[0].mxu0
      %v4251 = vadd.f32 %v3815, %v4250
      %v4252 = vpop.f32.mrb[0].mxu0
      %v4253 = vadd.f32 %v3819, %v4252
      %4254 = vmatprep.mubr.bf16.mxu0 %v3715
      %4255 = vmatmul.mubr.bf16.gmra.mrb[0].mxu0 %v3714
      %v4256 = vpop.f32.mrb[0].mxu0
      %v4257 = vadd.f32 %v3815, %v4256
      %v4258 = vpop.f32.mrb[0].mxu0
      %v4259 = vadd.f32 %v3819, %v4258
      %v4260 = vpop.f32.mrb[0].mxu0
      %v4261 = vadd.f32 %v3815, %v4260
      %v4262 = vpop.f32.mrb[0].mxu0
      %v4263 = vadd.f32 %v3819, %v4262
      %4264 = vmatprep.mubr.bf16.mxu0 %v3719
      %4265 = vmatmul.mubr.bf16.gmra.mrb[0].mxu0 %v3718
      %v4266 = vpop.f32.mrb[0].mxu0
      %v4267 = vadd.f32 %v3815, %v4266
      %v4268 = vpop.f32.mrb[0].mxu0
      %v4269 = vadd.f32 %v3819, %v4268
      %v4270 = vpop.f32.mrb[0].mxu0
      %v4271 = vadd.f32 %v3815, %v4270
      %v4272 = vpop.f32.mrb[0].mxu0
      %v4273 = vadd.f32 %v3819, %v4272
      %4274 = vmatprep.mubr.bf16.mxu0 %v3723
      %4275 = vmatmul.mubr.bf16.gmra.mrb[0].mxu0 %v3722
      %v4276 = vpop.f32.mrb[0].mxu0
      %v4277 = vadd.f32 %v3815, %v4276
      %v4278 = vpop.f32.mrb[0].mxu0
      %v4279 = vadd.f32 %v3819, %v4278
      %v4280 = vpop.f32.mrb[0].mxu0
      %v4281 = vadd.f32 %v3815, %v4280
      %v4282 = vpop.f32.mrb[0].mxu0
      %v4283 = vadd.f32 %v3819, %v4282
      %4284 = vmatprep.mubr.bf16.mxu0 %v3727
      %4285 = vmatmul.mubr.bf16.gmra.mrb[0].mxu0 %v3726
      %v4286 = vpop.f32.mrb[0].mxu0
      %v4287 = vadd.f32 %v3815, %v4286
      %v4288 = vpop.f32.mrb[0].mxu0
      %v4289 = vadd.f32 %v3819, %v4288
      %v4290 = vpop.f32.mrb[0].mxu0
      %v4291 = vadd.f32 %v3815, %v4290
      %v4292 = vpop.f32.mrb[0].mxu0
      %v4293 = vadd.f32 %v3819, %v4292
      %4294 = vmatprep.mubr.bf16.mxu0 %v3731
      %4295 = vmatmul.mubr.bf16.gmra.mrb[0].mxu0 %v3730
      %v4296 = vpop.f32.mrb[0].mxu0
      %v4297 = vadd.f32 %v3815, %v4296
      %v4298 = vpop.f32.mrb[0].mxu0
      %v4299 = vadd.f32 %v3819, %v4298
      %v4300 = vpop.f32.mrb[0].mxu0
      %v4301 = vadd.f32 %v3815, %v4300
      %v4302 = vpop.f32.mrb[0].mxu0
      %v4303 = vadd.f32 %v3819, %v4302
      %4304 = vmatprep.mubr.bf16.mxu0 %v3735
      %4305 = vmatmul.mubr.bf16.gmra.mrb[0].mxu0 %v3734
      %v4306 = vpop.f32.mrb[0].mxu0
      %v4307 = vadd.f32 %v3815, %v4306
      %v4308 = vpop.f32.mrb[0].mxu0
      %v4309 = vadd.f32 %v3819, %v4308
      %v4310 = vpop.f32.mrb[0].mxu0
      %v4311 = vadd.f32 %v3815, %v4310
      %v4312 = vpop.f32.mrb[0].mxu0
      %v4313 = vadd.f32 %v3819, %v4312
      %4314 = vmatprep.mubr.bf16.mxu0 %v3739
      %4315 = vmatmul.mubr.bf16.gmra.mrb[0].mxu0 %v3738
      %v4316 = vpop.f32.mrb[0].mxu0
      %v4317 = vadd.f32 %v3815, %v4316
      %v4318 = vpop.f32.mrb[0].mxu0
      %v4319 = vadd.f32 %v3819, %v4318
      %v4320 = vpop.f32.mrb[0].mxu0
      %v4321 = vadd.f32 %v3815, %v4320
      %v4322 = vpop.f32.mrb[0].mxu0
      %v4323 = vadd.f32 %v3819, %v4322
      %4324 = vmatprep.mubr.bf16.mxu0 %v3743
      %4325 = vmatmul.mubr.bf16.gmra.mrb[0].mxu0 %v3742
      %v4326 = vpop.f32.mrb[0].mxu0
      %v4327 = vadd.f32 %v3815, %v4326
      %v4328 = vpop.f32.mrb[0].mxu0
      %v4329 = vadd.f32 %v3819, %v4328
      %v4330 = vpop.f32.mrb[0].mxu0
      %v4331 = vadd.f32 %v3815, %v4330
      %v4332 = vpop.f32.mrb[0].mxu0
      %v4333 = vadd.f32 %v3819, %v4332
      %4334 = vdwg.mxu0
      %4335 = vmatprep.subr.bf16.mxu0 %v4047
      %4336 = vmatpush1.bf16.msra.mxu0 %v4046
      %4337 = vmatprep.subr.bf16.mxu0 %v4049
      %4338 = vmatpush1.bf16.msra.mxu0 %v4048
      %4339 = vmatprep.subr.bf16.mxu0 %v4051
      %4340 = vmatpush1.bf16.msra.mxu0 %v4050
      %4341 = vmatprep.subr.bf16.mxu0 %v4053
      %4342 = vmatpush1.bf16.msra.mxu0 %v4052
      %4343 = vmatprep.subr.bf16.mxu0 %v4055
      %4344 = vmatpush1.bf16.msra.mxu0 %v4054
      %4345 = vmatprep.subr.bf16.mxu0 %v4057
      %4346 = vmatpush1.bf16.msra.mxu0 %v4056
      %4347 = vmatprep.subr.bf16.mxu0 %v4059
      %4348 = vmatpush1.bf16.msra.mxu0 %v4058
      %4349 = vmatprep.subr.bf16.mxu0 %v4061
      %4350 = vmatpush1.bf16.msra.mxu0 %v4060
      %4351 = vmatprep.subr.bf16.mxu0 %v4063
      %4352 = vmatpush1.bf16.msra.mxu0 %v4062
      %4353 = vmatprep.subr.bf16.mxu0 %v4065
      %4354 = vmatpush1.bf16.msra.mxu0 %v4064
      %4355 = vmatprep.subr.bf16.mxu0 %v4067
      %4356 = vmatpush1.bf16.msra.mxu0 %v4066
      %4357 = vmatprep.subr.bf16.mxu0 %v4069
      %4358 = vmatpush1.bf16.msra.mxu0 %v4068
      %4359 = vmatprep.subr.bf16.mxu0 %v4071
      %4360 = vmatpush1.bf16.msra.mxu0 %v4070
      %4361 = vmatprep.subr.bf16.mxu0 %v4073
      %4362 = vmatpush1.bf16.msra.mxu0 %v4072
      %4363 = vmatprep.subr.bf16.mxu0 %v4075
      %4364 = vmatpush1.bf16.msra.mxu0 %v4074
      %4365 = vmatprep.subr.bf16.mxu0 %v4077
      %4366 = vmatpush1.bf16.msra.mxu0 %v4076
      %4367 = vmatprep.mubr.bf16.mxu0 %v3685
      %4368 = vmatmul.mubr.bf16.gmra.mrb[0].mxu0 %v3684
      %v4369 = vpop.f32.mrb[0].mxu0
      %v4370 = vadd.f32 %v4177, %v4369
      %v4371 = vpop.f32.mrb[0].mxu0
      %v4372 = vadd.f32 %v4179, %v4371
      %v4373 = vpop.f32.mrb[0].mxu0
      %v4374 = vadd.f32 %v4181, %v4373
      %v4375 = vpop.f32.mrb[0].mxu0
      %v4376 = vadd.f32 %v4183, %v4375
      %4377 = vmatprep.mubr.bf16.mxu0 %v3689
      %4378 = vmatmul.mubr.bf16.gmra.mrb[0].mxu0 %v3688
      %v4379 = vpop.f32.mrb[0].mxu0
      %v4380 = vadd.f32 %v4187, %v4379
      %v4381 = vpop.f32.mrb[0].mxu0
      %v4382 = vadd.f32 %v4189, %v4381
      %v4383 = vpop.f32.mrb[0].mxu0
      %v4384 = vadd.f32 %v4191, %v4383
      %v4385 = vpop.f32.mrb[0].mxu0
      %v4386 = vadd.f32 %v4193, %v4385
      %4387 = vmatprep.mubr.bf16.mxu0 %v3693
      %4388 = vmatmul.mubr.bf16.gmra.mrb[0].mxu0 %v3692
      %v4389 = vpop.f32.mrb[0].mxu0
      %v4390 = vadd.f32 %v4197, %v4389
      %v4391 = vpop.f32.mrb[0].mxu0
      %v4392 = vadd.f32 %v4199, %v4391
      %v4393 = vpop.f32.mrb[0].mxu0
      %v4394 = vadd.f32 %v4201, %v4393
      %v4395 = vpop.f32.mrb[0].mxu0
      %v4396 = vadd.f32 %v4203, %v4395
      %4397 = vmatprep.mubr.bf16.mxu0 %v3697
      %4398 = vmatmul.mubr.bf16.gmra.mrb[0].mxu0 %v3696
      %v4399 = vpop.f32.mrb[0].mxu0
      %v4400 = vadd.f32 %v4207, %v4399
      %v4401 = vpop.f32.mrb[0].mxu0
      %v4402 = vadd.f32 %v4209, %v4401
      %v4403 = vpop.f32.mrb[0].mxu0
      %v4404 = vadd.f32 %v4211, %v4403
      %v4405 = vpop.f32.mrb[0].mxu0
      %v4406 = vadd.f32 %v4213, %v4405
      %4407 = vmatprep.mubr.bf16.mxu0 %v3701
      %4408 = vmatmul.mubr.bf16.gmra.mrb[0].mxu0 %v3700
      %v4409 = vpop.f32.mrb[0].mxu0
      %v4410 = vadd.f32 %v4217, %v4409
      %v4411 = vpop.f32.mrb[0].mxu0
      %v4412 = vadd.f32 %v4219, %v4411
      %v4413 = vpop.f32.mrb[0].mxu0
      %v4414 = vadd.f32 %v4221, %v4413
      %v4415 = vpop.f32.mrb[0].mxu0
      %v4416 = vadd.f32 %v4223, %v4415
      %4417 = vmatprep.mubr.bf16.mxu0 %v3705
      %4418 = vmatmul.mubr.bf16.gmra.mrb[0].mxu0 %v3704
      %v4419 = vpop.f32.mrb[0].mxu0
      %v4420 = vadd.f32 %v4227, %v4419
      %v4421 = vpop.f32.mrb[0].mxu0
      %v4422 = vadd.f32 %v4229, %v4421
      %v4423 = vpop.f32.mrb[0].mxu0
      %v4424 = vadd.f32 %v4231, %v4423
      %v4425 = vpop.f32.mrb[0].mxu0
      %v4426 = vadd.f32 %v4233, %v4425
      %4427 = vmatprep.mubr.bf16.mxu0 %v3709
      %4428 = vmatmul.mubr.bf16.gmra.mrb[0].mxu0 %v3708
      %v4429 = vpop.f32.mrb[0].mxu0
      %v4430 = vadd.f32 %v4237, %v4429
      %v4431 = vpop.f32.mrb[0].mxu0
      %v4432 = vadd.f32 %v4239, %v4431
      %v4433 = vpop.f32.mrb[0].mxu0
      %v4434 = vadd.f32 %v4241, %v4433
      %v4435 = vpop.f32.mrb[0].mxu0
      %v4436 = vadd.f32 %v4243, %v4435
      %4437 = vmatprep.mubr.bf16.mxu0 %v3713
      %4438 = vmatmul.mubr.bf16.gmra.mrb[0].mxu0 %v3712
      %v4439 = vpop.f32.mrb[0].mxu0
      %v4440 = vadd.f32 %v4247, %v4439
      %v4441 = vpop.f32.mrb[0].mxu0
      %v4442 = vadd.f32 %v4249, %v4441
      %v4443 = vpop.f32.mrb[0].mxu0
      %v4444 = vadd.f32 %v4251, %v4443
      %v4445 = vpop.f32.mrb[0].mxu0
      %v4446 = vadd.f32 %v4253, %v4445
      %4447 = vmatprep.mubr.bf16.mxu0 %v3717
      %4448 = vmatmul.mubr.bf16.gmra.mrb[0].mxu0 %v3716
      %v4449 = vpop.f32.mrb[0].mxu0
      %v4450 = vadd.f32 %v4257, %v4449
      %v4451 = vpop.f32.mrb[0].mxu0
      %v4452 = vadd.f32 %v4259, %v4451
      %v4453 = vpop.f32.mrb[0].mxu0
      %v4454 = vadd.f32 %v4261, %v4453
      %v4455 = vpop.f32.mrb[0].mxu0
      %v4456 = vadd.f32 %v4263, %v4455
      %4457 = vmatprep.mubr.bf16.mxu0 %v3721
      %4458 = vmatmul.mubr.bf16.gmra.mrb[0].mxu0 %v3720
      %v4459 = vpop.f32.mrb[0].mxu0
      %v4460 = vadd.f32 %v4267, %v4459
      %v4461 = vpop.f32.mrb[0].mxu0
      %v4462 = vadd.f32 %v4269, %v4461
      %v4463 = vpop.f32.mrb[0].mxu0
      %v4464 = vadd.f32 %v4271, %v4463
      %v4465 = vpop.f32.mrb[0].mxu0
      %v4466 = vadd.f32 %v4273, %v4465
      %4467 = vmatprep.mubr.bf16.mxu0 %v3725
      %4468 = vmatmul.mubr.bf16.gmra.mrb[0].mxu0 %v3724
      %v4469 = vpop.f32.mrb[0].mxu0
      %v4470 = vadd.f32 %v4277, %v4469
      %v4471 = vpop.f32.mrb[0].mxu0
      %v4472 = vadd.f32 %v4279, %v4471
      %v4473 = vpop.f32.mrb[0].mxu0
      %v4474 = vadd.f32 %v4281, %v4473
      %v4475 = vpop.f32.mrb[0].mxu0
      %v4476 = vadd.f32 %v4283, %v4475
      %4477 = vmatprep.mubr.bf16.mxu0 %v3729
      %4478 = vmatmul.mubr.bf16.gmra.mrb[0].mxu0 %v3728
      %v4479 = vpop.f32.mrb[0].mxu0
      %v4480 = vadd.f32 %v4287, %v4479
      %v4481 = vpop.f32.mrb[0].mxu0
      %v4482 = vadd.f32 %v4289, %v4481
      %v4483 = vpop.f32.mrb[0].mxu0
      %v4484 = vadd.f32 %v4291, %v4483
      %v4485 = vpop.f32.mrb[0].mxu0
      %v4486 = vadd.f32 %v4293, %v4485
      %4487 = vmatprep.mubr.bf16.mxu0 %v3733
      %4488 = vmatmul.mubr.bf16.gmra.mrb[0].mxu0 %v3732
      %v4489 = vpop.f32.mrb[0].mxu0
      %v4490 = vadd.f32 %v4297, %v4489
      %v4491 = vpop.f32.mrb[0].mxu0
      %v4492 = vadd.f32 %v4299, %v4491
      %v4493 = vpop.f32.mrb[0].mxu0
      %v4494 = vadd.f32 %v4301, %v4493
      %v4495 = vpop.f32.mrb[0].mxu0
      %v4496 = vadd.f32 %v4303, %v4495
      %4497 = vmatprep.mubr.bf16.mxu0 %v3737
      %4498 = vmatmul.mubr.bf16.gmra.mrb[0].mxu0 %v3736
      %v4499 = vpop.f32.mrb[0].mxu0
      %v4500 = vadd.f32 %v4307, %v4499
      %v4501 = vpop.f32.mrb[0].mxu0
      %v4502 = vadd.f32 %v4309, %v4501
      %v4503 = vpop.f32.mrb[0].mxu0
      %v4504 = vadd.f32 %v4311, %v4503
      %v4505 = vpop.f32.mrb[0].mxu0
      %v4506 = vadd.f32 %v4313, %v4505
      %4507 = vmatprep.mubr.bf16.mxu0 %v3741
      %4508 = vmatmul.mubr.bf16.gmra.mrb[0].mxu0 %v3740
      %v4509 = vpop.f32.mrb[0].mxu0
      %v4510 = vadd.f32 %v4317, %v4509
      %v4511 = vpop.f32.mrb[0].mxu0
      %v4512 = vadd.f32 %v4319, %v4511
      %v4513 = vpop.f32.mrb[0].mxu0
      %v4514 = vadd.f32 %v4321, %v4513
      %v4515 = vpop.f32.mrb[0].mxu0
      %v4516 = vadd.f32 %v4323, %v4515
      %4517 = vmatprep.mubr.bf16.mxu0 %v3745
      %4518 = vmatmul.mubr.bf16.gmra.mrb[0].mxu0 %v3744
      %v4519 = vpop.f32.mrb[0].mxu0
      %v4520 = vadd.f32 %v4327, %v4519
      %v4521 = vpop.f32.mrb[0].mxu0
      %v4522 = vadd.f32 %v4329, %v4521
      %v4523 = vpop.f32.mrb[0].mxu0
      %v4524 = vadd.f32 %v4331, %v4523
      %v4525 = vpop.f32.mrb[0].mxu0
      %v4526 = vadd.f32 %v4333, %v4525
      %4527 = vdwg.mxu0
      %v4528 = vmax.f32 %v4370, 0.0
      %v4529 = vmax.f32 %v4372, 0.0
      %v4530 = vmax.f32 %v4374, 0.0
      %v4531 = vmax.f32 %v4376, 0.0
      %v4532 = vmax.f32 %v4380, 0.0
      %v4533 = vmax.f32 %v4382, 0.0
      %v4534 = vmax.f32 %v4384, 0.0
      %v4535 = vmax.f32 %v4386, 0.0
      %v4536 = vmax.f32 %v4390, 0.0
      %v4537 = vmax.f32 %v4392, 0.0
      %v4538 = vmax.f32 %v4394, 0.0
      %v4539 = vmax.f32 %v4396, 0.0
      %v4540 = vmax.f32 %v4400, 0.0
      %v4541 = vmax.f32 %v4402, 0.0
      %v4542 = vmax.f32 %v4404, 0.0
      %v4543 = vmax.f32 %v4406, 0.0
      %v4544 = vmax.f32 %v4410, 0.0
      %v4545 = vmax.f32 %v4412, 0.0
      %v4546 = vmax.f32 %v4414, 0.0
      %v4547 = vmax.f32 %v4416, 0.0
      %v4548 = vmax.f32 %v4420, 0.0
      %v4549 = vmax.f32 %v4422, 0.0
      %v4550 = vmax.f32 %v4424, 0.0
      %v4551 = vmax.f32 %v4426, 0.0
      %v4552 = vmax.f32 %v4430, 0.0
      %v4553 = vmax.f32 %v4432, 0.0
      %v4554 = vmax.f32 %v4434, 0.0
      %v4555 = vmax.f32 %v4436, 0.0
      %v4556 = vmax.f32 %v4440, 0.0
      %v4557 = vmax.f32 %v4442, 0.0
      %v4558 = vmax.f32 %v4444, 0.0
      %v4559 = vmax.f32 %v4446, 0.0
      %v4560 = vmax.f32 %v4450, 0.0
      %v4561 = vmax.f32 %v4452, 0.0
      %v4562 = vmax.f32 %v4454, 0.0
      %v4563 = vmax.f32 %v4456, 0.0
      %v4564 = vmax.f32 %v4460, 0.0
      %v4565 = vmax.f32 %v4462, 0.0
      %v4566 = vmax.f32 %v4464, 0.0
      %v4567 = vmax.f32 %v4466, 0.0
      %v4568 = vmax.f32 %v4470, 0.0
      %v4569 = vmax.f32 %v4472, 0.0
      %v4570 = vmax.f32 %v4474, 0.0
      %v4571 = vmax.f32 %v4476, 0.0
      %v4572 = vmax.f32 %v4480, 0.0
      %v4573 = vmax.f32 %v4482, 0.0
      %v4574 = vmax.f32 %v4484, 0.0
      %v4575 = vmax.f32 %v4486, 0.0
      %v4576 = vmax.f32 %v4490, 0.0
      %v4577 = vmax.f32 %v4492, 0.0
      %v4578 = vmax.f32 %v4494, 0.0
      %v4579 = vmax.f32 %v4496, 0.0
      %v4580 = vmax.f32 %v4500, 0.0
      %v4581 = vmax.f32 %v4502, 0.0
      %v4582 = vmax.f32 %v4504, 0.0
      %v4583 = vmax.f32 %v4506, 0.0
      %v4584 = vmax.f32 %v4510, 0.0
      %v4585 = vmax.f32 %v4512, 0.0
      %v4586 = vmax.f32 %v4514, 0.0
      %v4587 = vmax.f32 %v4516, 0.0
      %v4588 = vmax.f32 %v4520, 0.0
      %v4589 = vmax.f32 %v4522, 0.0
      %v4590 = vmax.f32 %v4524, 0.0
      %v4591 = vmax.f32 %v4526, 0.0
      %v4592 = vpack.c.bf16 %v4530, %v4528
      %v4593 = vpack.c.bf16 %v4531, %v4529
      %v4594 = vpack.c.bf16 %v4534, %v4532
      %v4595 = vpack.c.bf16 %v4535, %v4533
      %v4596 = vpack.c.bf16 %v4538, %v4536
      %v4597 = vpack.c.bf16 %v4539, %v4537
      %v4598 = vpack.c.bf16 %v4542, %v4540
      %v4599 = vpack.c.bf16 %v4543, %v4541
      %v4600 = vpack.c.bf16 %v4546, %v4544
      %v4601 = vpack.c.bf16 %v4547, %v4545
      %v4602 = vpack.c.bf16 %v4550, %v4548
      %v4603 = vpack.c.bf16 %v4551, %v4549
      %v4604 = vpack.c.bf16 %v4554, %v4552
      %v4605 = vpack.c.bf16 %v4555, %v4553
      %v4606 = vpack.c.bf16 %v4558, %v4556
      %v4607 = vpack.c.bf16 %v4559, %v4557
      %v4608 = vpack.c.bf16 %v4562, %v4560
      %v4609 = vpack.c.bf16 %v4563, %v4561
      %v4610 = vpack.c.bf16 %v4566, %v4564
      %v4611 = vpack.c.bf16 %v4567, %v4565
      %v4612 = vpack.c.bf16 %v4570, %v4568
      %v4613 = vpack.c.bf16 %v4571, %v4569
      %v4614 = vpack.c.bf16 %v4574, %v4572
      %v4615 = vpack.c.bf16 %v4575, %v4573
      %v4616 = vpack.c.bf16 %v4578, %v4576
      %v4617 = vpack.c.bf16 %v4579, %v4577
      %v4618 = vpack.c.bf16 %v4582, %v4580
      %v4619 = vpack.c.bf16 %v4583, %v4581
      %v4620 = vpack.c.bf16 %v4586, %v4584
      %v4621 = vpack.c.bf16 %v4587, %v4585
      %v4622 = vpack.c.bf16 %v4590, %v4588
      %v4623 = vpack.c.bf16 %v4591, %v4589
      %v4624 = vld [vmem:[%s8] sm:$0xff]
      %v4625 = vld [vmem:[%s8 + $0x8] sm:$0xff]
      %v4626 = vld [vmem:[%s8 + $0x10] sm:$0xff]
      %v4627 = vld [vmem:[%s8 + $0x18] sm:$0xff]
      %v4628 = vld [vmem:[%s8 + $0x20] sm:$0xff]
      %v4629 = vld [vmem:[%s8 + $0x28] sm:$0xff]
      %v4630 = vld [vmem:[%s8 + $0x30] sm:$0xff]
      %v4631 = vld [vmem:[%s8 + $0x38] sm:$0xff]
      %v4632 = vld [vmem:[%s8 + $0x40] sm:$0xff]
      %v4633 = vld [vmem:[%s8 + $0x48] sm:$0xff]
      %v4634 = vld [vmem:[%s8 + $0x50] sm:$0xff]
      %v4635 = vld [vmem:[%s8 + $0x58] sm:$0xff]
      %v4636 = vld [vmem:[%s8 + $0x60] sm:$0xff]
      %v4637 = vld [vmem:[%s8 + $0x68] sm:$0xff]
      %v4638 = vld [vmem:[%s8 + $0x70] sm:$0xff]
      %v4639 = vld [vmem:[%s8 + $0x78] sm:$0xff]
      %v4640 = vld [vmem:[%s8 + $0x80] sm:$0xff]
      %v4641 = vld [vmem:[%s8 + $0x88] sm:$0xff]
      %v4642 = vld [vmem:[%s8 + $0x90] sm:$0xff]
      %v4643 = vld [vmem:[%s8 + $0x98] sm:$0xff]
      %v4644 = vld [vmem:[%s8 + $0xa0] sm:$0xff]
      %v4645 = vld [vmem:[%s8 + $0xa8] sm:$0xff]
      %v4646 = vld [vmem:[%s8 + $0xb0] sm:$0xff]
      %v4647 = vld [vmem:[%s8 + $0xb8] sm:$0xff]
      %v4648 = vld [vmem:[%s8 + $0xc0] sm:$0xff]
      %v4649 = vld [vmem:[%s8 + $0xc8] sm:$0xff]
      %v4650 = vld [vmem:[%s8 + $0xd0] sm:$0xff]
      %v4651 = vld [vmem:[%s8 + $0xd8] sm:$0xff]
      %v4652 = vld [vmem:[%s8 + $0xe0] sm:$0xff]
      %v4653 = vld [vmem:[%s8 + $0xe8] sm:$0xff]
      %v4654 = vld [vmem:[%s8 + $0xf0] sm:$0xff]
      %v4655 = vld [vmem:[%s8 + $0xf8] sm:$0xff]
      %v4656 = vld [vmem:[%s8 + $0x100] sm:$0xff]
      %v4657 = vld [vmem:[%s8 + $0x108] sm:$0xff]
      %v4658 = vld [vmem:[%s8 + $0x110] sm:$0xff]
      %v4659 = vld [vmem:[%s8 + $0x118] sm:$0xff]
      %v4660 = vld [vmem:[%s8 + $0x120] sm:$0xff]
      %v4661 = vld [vmem:[%s8 + $0x128] sm:$0xff]
      %v4662 = vld [vmem:[%s8 + $0x130] sm:$0xff]
      %v4663 = vld [vmem:[%s8 + $0x138] sm:$0xff]
      %v4664 = vld [vmem:[%s8 + $0x140] sm:$0xff]
      %v4665 = vld [vmem:[%s8 + $0x148] sm:$0xff]
      %v4666 = vld [vmem:[%s8 + $0x150] sm:$0xff]
      %v4667 = vld [vmem:[%s8 + $0x158] sm:$0xff]
      %v4668 = vld [vmem:[%s8 + $0x160] sm:$0xff]
      %v4669 = vld [vmem:[%s8 + $0x168] sm:$0xff]
      %v4670 = vld [vmem:[%s8 + $0x170] sm:$0xff]
      %v4671 = vld [vmem:[%s8 + $0x178] sm:$0xff]
      %v4672 = vld [vmem:[%s8 + $0x180] sm:$0xff]
      %v4673 = vld [vmem:[%s8 + $0x188] sm:$0xff]
      %v4674 = vld [vmem:[%s8 + $0x190] sm:$0xff]
      %v4675 = vld [vmem:[%s8 + $0x198] sm:$0xff]
      %v4676 = vld [vmem:[%s8 + $0x1a0] sm:$0xff]
      %v4677 = vld [vmem:[%s8 + $0x1a8] sm:$0xff]
      %v4678 = vld [vmem:[%s8 + $0x1b0] sm:$0xff]
      %v4679 = vld [vmem:[%s8 + $0x1b8] sm:$0xff]
      %v4680 = vld [vmem:[%s8 + $0x1c0] sm:$0xff]
      %v4681 = vld [vmem:[%s8 + $0x1c8] sm:$0xff]
      %v4682 = vld [vmem:[%s8 + $0x1d0] sm:$0xff]
      %v4683 = vld [vmem:[%s8 + $0x1d8] sm:$0xff]
      %v4684 = vld [vmem:[%s8 + $0x1e0] sm:$0xff]
      %v4685 = vld [vmem:[%s8 + $0x1e8] sm:$0xff]
      %v4686 = vld [vmem:[%s8 + $0x1f0] sm:$0xff]
      %v4687 = vld [vmem:[%s8 + $0x1f8] sm:$0xff]
      %v4688 = vld [vmem:[%s9] sm:$0xf]
      %v4690 = vlaneseq
      %v4691 = vshrl.u32 %v4690, 7
      %v4692 = vsub.s32 0, %v4691
      %v4693 = vrot.slane %v4688, %v4692
      %v4694 = vlaneseq
      %v4695 = vshrl.u32 %v4694, 7
      %v4696 = vsub.s32 1, %v4695
      %v4697 = vrot.slane %v4688, %v4696
      %v4698 = vlaneseq
      %v4699 = vshrl.u32 %v4698, 7
      %v4700 = vsub.s32 2, %v4699
      %v4701 = vrot.slane %v4688, %v4700
      %v4702 = vlaneseq
      %v4703 = vshrl.u32 %v4702, 7
      %v4704 = vsub.s32 3, %v4703
      %v4705 = vrot.slane %v4688, %v4704
      %v4774 = vunpack.c.l.b16 %v4624
      %v4775 = vunpack.c.h.b16 %v4624
      %v4776 = vunpack.c.l.b16 %v4625
      %v4777 = vunpack.c.h.b16 %v4625
      %v4778 = vunpack.c.l.b16 %v4626
      %v4779 = vunpack.c.h.b16 %v4626
      %v4780 = vunpack.c.l.b16 %v4627
      %v4781 = vunpack.c.h.b16 %v4627
      %v4782 = vunpack.c.l.b16 %v4628
      %v4783 = vunpack.c.h.b16 %v4628
      %v4784 = vunpack.c.l.b16 %v4629
      %v4785 = vunpack.c.h.b16 %v4629
      %v4786 = vunpack.c.l.b16 %v4630
      %v4787 = vunpack.c.h.b16 %v4630
      %v4788 = vunpack.c.l.b16 %v4631
      %v4789 = vunpack.c.h.b16 %v4631
      %v4790 = vunpack.c.l.b16 %v4632
      %v4791 = vunpack.c.h.b16 %v4632
      %v4792 = vunpack.c.l.b16 %v4633
      %v4793 = vunpack.c.h.b16 %v4633
      %v4794 = vunpack.c.l.b16 %v4634
      %v4795 = vunpack.c.h.b16 %v4634
      %v4796 = vunpack.c.l.b16 %v4635
      %v4797 = vunpack.c.h.b16 %v4635
      %v4798 = vunpack.c.l.b16 %v4636
      %v4799 = vunpack.c.h.b16 %v4636
      %v4800 = vunpack.c.l.b16 %v4637
      %v4801 = vunpack.c.h.b16 %v4637
      %v4802 = vunpack.c.l.b16 %v4638
      %v4803 = vunpack.c.h.b16 %v4638
      %v4804 = vunpack.c.l.b16 %v4639
      %v4805 = vunpack.c.h.b16 %v4639
      %v4806 = vunpack.c.l.b16 %v4640
      %v4807 = vunpack.c.h.b16 %v4640
      %v4808 = vunpack.c.l.b16 %v4641
      %v4809 = vunpack.c.h.b16 %v4641
      %v4810 = vunpack.c.l.b16 %v4642
      %v4811 = vunpack.c.h.b16 %v4642
      %v4812 = vunpack.c.l.b16 %v4643
      %v4813 = vunpack.c.h.b16 %v4643
      %v4814 = vunpack.c.l.b16 %v4644
      %v4815 = vunpack.c.h.b16 %v4644
      %v4816 = vunpack.c.l.b16 %v4645
      %v4817 = vunpack.c.h.b16 %v4645
      %v4818 = vunpack.c.l.b16 %v4646
      %v4819 = vunpack.c.h.b16 %v4646
      %v4820 = vunpack.c.l.b16 %v4647
      %v4821 = vunpack.c.h.b16 %v4647
      %v4822 = vunpack.c.l.b16 %v4648
      %v4823 = vunpack.c.h.b16 %v4648
      %v4824 = vunpack.c.l.b16 %v4649
      %v4825 = vunpack.c.h.b16 %v4649
      %v4826 = vunpack.c.l.b16 %v4650
      %v4827 = vunpack.c.h.b16 %v4650
      %v4828 = vunpack.c.l.b16 %v4651
      %v4829 = vunpack.c.h.b16 %v4651
      %v4830 = vunpack.c.l.b16 %v4652
      %v4831 = vunpack.c.h.b16 %v4652
      %v4832 = vunpack.c.l.b16 %v4653
      %v4833 = vunpack.c.h.b16 %v4653
      %v4834 = vunpack.c.l.b16 %v4654
      %v4835 = vunpack.c.h.b16 %v4654
      %v4836 = vunpack.c.l.b16 %v4655
      %v4837 = vunpack.c.h.b16 %v4655
      %v4838 = vunpack.c.l.b16 %v4656
      %v4839 = vunpack.c.h.b16 %v4656
      %v4840 = vunpack.c.l.b16 %v4657
      %v4841 = vunpack.c.h.b16 %v4657
      %v4842 = vunpack.c.l.b16 %v4658
      %v4843 = vunpack.c.h.b16 %v4658
      %v4844 = vunpack.c.l.b16 %v4659
      %v4845 = vunpack.c.h.b16 %v4659
      %v4846 = vunpack.c.l.b16 %v4660
      %v4847 = vunpack.c.h.b16 %v4660
      %v4848 = vunpack.c.l.b16 %v4661
      %v4849 = vunpack.c.h.b16 %v4661
      %v4850 = vunpack.c.l.b16 %v4662
      %v4851 = vunpack.c.h.b16 %v4662
      %v4852 = vunpack.c.l.b16 %v4663
      %v4853 = vunpack.c.h.b16 %v4663
      %v4854 = vunpack.c.l.b16 %v4664
      %v4855 = vunpack.c.h.b16 %v4664
      %v4856 = vunpack.c.l.b16 %v4665
      %v4857 = vunpack.c.h.b16 %v4665
      %v4858 = vunpack.c.l.b16 %v4666
      %v4859 = vunpack.c.h.b16 %v4666
      %v4860 = vunpack.c.l.b16 %v4667
      %v4861 = vunpack.c.h.b16 %v4667
      %v4862 = vunpack.c.l.b16 %v4668
      %v4863 = vunpack.c.h.b16 %v4668
      %v4864 = vunpack.c.l.b16 %v4669
      %v4865 = vunpack.c.h.b16 %v4669
      %v4866 = vunpack.c.l.b16 %v4670
      %v4867 = vunpack.c.h.b16 %v4670
      %v4868 = vunpack.c.l.b16 %v4671
      %v4869 = vunpack.c.h.b16 %v4671
      %v4870 = vunpack.c.l.b16 %v4672
      %v4871 = vunpack.c.h.b16 %v4672
      %v4872 = vunpack.c.l.b16 %v4673
      %v4873 = vunpack.c.h.b16 %v4673
      %v4874 = vunpack.c.l.b16 %v4674
      %v4875 = vunpack.c.h.b16 %v4674
      %v4876 = vunpack.c.l.b16 %v4675
      %v4877 = vunpack.c.h.b16 %v4675
      %v4878 = vunpack.c.l.b16 %v4676
      %v4879 = vunpack.c.h.b16 %v4676
      %v4880 = vunpack.c.l.b16 %v4677
      %v4881 = vunpack.c.h.b16 %v4677
      %v4882 = vunpack.c.l.b16 %v4678
      %v4883 = vunpack.c.h.b16 %v4678
      %v4884 = vunpack.c.l.b16 %v4679
      %v4885 = vunpack.c.h.b16 %v4679
      %v4886 = vunpack.c.l.b16 %v4680
      %v4887 = vunpack.c.h.b16 %v4680
      %v4888 = vunpack.c.l.b16 %v4681
      %v4889 = vunpack.c.h.b16 %v4681
      %v4890 = vunpack.c.l.b16 %v4682
      %v4891 = vunpack.c.h.b16 %v4682
      %v4892 = vunpack.c.l.b16 %v4683
      %v4893 = vunpack.c.h.b16 %v4683
      %v4894 = vunpack.c.l.b16 %v4684
      %v4895 = vunpack.c.h.b16 %v4684
      %v4896 = vunpack.c.l.b16 %v4685
      %v4897 = vunpack.c.h.b16 %v4685
      %v4898 = vunpack.c.l.b16 %v4686
      %v4899 = vunpack.c.h.b16 %v4686
      %v4900 = vunpack.c.l.b16 %v4687
      %v4901 = vunpack.c.h.b16 %v4687
      %v4902 = vpack.c.b16 %v4778, %v4774
      %v4903 = vpack.c.b16 %v4779, %v4775
      %v4904 = vpack.c.b16 %v4780, %v4776
      %v4905 = vpack.c.b16 %v4781, %v4777
      %v4906 = vpack.c.b16 %v4786, %v4782
      %v4907 = vpack.c.b16 %v4787, %v4783
      %v4908 = vpack.c.b16 %v4788, %v4784
      %v4909 = vpack.c.b16 %v4789, %v4785
      %v4910 = vpack.c.b16 %v4794, %v4790
      %v4911 = vpack.c.b16 %v4795, %v4791
      %v4912 = vpack.c.b16 %v4796, %v4792
      %v4913 = vpack.c.b16 %v4797, %v4793
      %v4914 = vpack.c.b16 %v4802, %v4798
      %v4915 = vpack.c.b16 %v4803, %v4799
      %v4916 = vpack.c.b16 %v4804, %v4800
      %v4917 = vpack.c.b16 %v4805, %v4801
      %v4918 = vpack.c.b16 %v4810, %v4806
      %v4919 = vpack.c.b16 %v4811, %v4807
      %v4920 = vpack.c.b16 %v4812, %v4808
      %v4921 = vpack.c.b16 %v4813, %v4809
      %v4922 = vpack.c.b16 %v4818, %v4814
      %v4923 = vpack.c.b16 %v4819, %v4815
      %v4924 = vpack.c.b16 %v4820, %v4816
      %v4925 = vpack.c.b16 %v4821, %v4817
      %v4926 = vpack.c.b16 %v4826, %v4822
      %v4927 = vpack.c.b16 %v4827, %v4823
      %v4928 = vpack.c.b16 %v4828, %v4824
      %v4929 = vpack.c.b16 %v4829, %v4825
      %v4930 = vpack.c.b16 %v4834, %v4830
      %v4931 = vpack.c.b16 %v4835, %v4831
      %v4932 = vpack.c.b16 %v4836, %v4832
      %v4933 = vpack.c.b16 %v4837, %v4833
      %v4934 = vpack.c.b16 %v4842, %v4838
      %v4935 = vpack.c.b16 %v4843, %v4839
      %v4936 = vpack.c.b16 %v4844, %v4840
      %v4937 = vpack.c.b16 %v4845, %v4841
      %v4938 = vpack.c.b16 %v4850, %v4846
      %v4939 = vpack.c.b16 %v4851, %v4847
      %v4940 = vpack.c.b16 %v4852, %v4848
      %v4941 = vpack.c.b16 %v4853, %v4849
      %v4942 = vpack.c.b16 %v4858, %v4854
      %v4943 = vpack.c.b16 %v4859, %v4855
      %v4944 = vpack.c.b16 %v4860, %v4856
      %v4945 = vpack.c.b16 %v4861, %v4857
      %v4946 = vpack.c.b16 %v4866, %v4862
      %v4947 = vpack.c.b16 %v4867, %v4863
      %v4948 = vpack.c.b16 %v4868, %v4864
      %v4949 = vpack.c.b16 %v4869, %v4865
      %v4950 = vpack.c.b16 %v4874, %v4870
      %v4951 = vpack.c.b16 %v4875, %v4871
      %v4952 = vpack.c.b16 %v4876, %v4872
      %v4953 = vpack.c.b16 %v4877, %v4873
      %v4954 = vpack.c.b16 %v4882, %v4878
      %v4955 = vpack.c.b16 %v4883, %v4879
      %v4956 = vpack.c.b16 %v4884, %v4880
      %v4957 = vpack.c.b16 %v4885, %v4881
      %v4958 = vpack.c.b16 %v4890, %v4886
      %v4959 = vpack.c.b16 %v4891, %v4887
      %v4960 = vpack.c.b16 %v4892, %v4888
      %v4961 = vpack.c.b16 %v4893, %v4889
      %v4962 = vpack.c.b16 %v4898, %v4894
      %v4963 = vpack.c.b16 %v4899, %v4895
      %v4964 = vpack.c.b16 %v4900, %v4896
      %v4965 = vpack.c.b16 %v4901, %v4897
      %5030 = vmatprep.subr.bf16.mxu0 %v4903
      %5031 = vmatpush1.bf16.msra.mxu0 %v4902
      %5032 = vmatprep.subr.bf16.mxu0 %v4907
      %5033 = vmatpush1.bf16.msra.mxu0 %v4906
      %5034 = vmatprep.subr.bf16.mxu0 %v4911
      %5035 = vmatpush1.bf16.msra.mxu0 %v4910
      %5036 = vmatprep.subr.bf16.mxu0 %v4915
      %5037 = vmatpush1.bf16.msra.mxu0 %v4914
      %5038 = vmatprep.subr.bf16.mxu0 %v4919
      %5039 = vmatpush1.bf16.msra.mxu0 %v4918
      %5040 = vmatprep.subr.bf16.mxu0 %v4923
      %5041 = vmatpush1.bf16.msra.mxu0 %v4922
      %5042 = vmatprep.subr.bf16.mxu0 %v4927
      %5043 = vmatpush1.bf16.msra.mxu0 %v4926
      %5044 = vmatprep.subr.bf16.mxu0 %v4931
      %5045 = vmatpush1.bf16.msra.mxu0 %v4930
      %5046 = vmatprep.subr.bf16.mxu0 %v4935
      %5047 = vmatpush1.bf16.msra.mxu0 %v4934
      %5048 = vmatprep.subr.bf16.mxu0 %v4939
      %5049 = vmatpush1.bf16.msra.mxu0 %v4938
      %5050 = vmatprep.subr.bf16.mxu0 %v4943
      %5051 = vmatpush1.bf16.msra.mxu0 %v4942
      %5052 = vmatprep.subr.bf16.mxu0 %v4947
      %5053 = vmatpush1.bf16.msra.mxu0 %v4946
      %5054 = vmatprep.subr.bf16.mxu0 %v4951
      %5055 = vmatpush1.bf16.msra.mxu0 %v4950
      %5056 = vmatprep.subr.bf16.mxu0 %v4955
      %5057 = vmatpush1.bf16.msra.mxu0 %v4954
      %5058 = vmatprep.subr.bf16.mxu0 %v4959
      %5059 = vmatpush1.bf16.msra.mxu0 %v4958
      %5060 = vmatprep.subr.bf16.mxu0 %v4963
      %5061 = vmatpush1.bf16.msra.mxu0 %v4962
      %5062 = vmatprep.mubr.bf16.mxu0 %v4593
      %5063 = vmatmul.mubr.bf16.gmra.mrb[0].mxu0 %v4592
      %v5064 = vpop.f32.mrb[0].mxu0
      %v5065 = vadd.f32 %v4693, %v5064
      %v5066 = vpop.f32.mrb[0].mxu0
      %v5067 = vadd.f32 %v4697, %v5066
      %v5068 = vpop.f32.mrb[0].mxu0
      %v5069 = vadd.f32 %v4693, %v5068
      %v5070 = vpop.f32.mrb[0].mxu0
      %v5071 = vadd.f32 %v4697, %v5070
      %5072 = vmatprep.mubr.bf16.mxu0 %v4595
      %5073 = vmatmul.mubr.bf16.gmra.mrb[0].mxu0 %v4594
      %v5074 = vpop.f32.mrb[0].mxu0
      %v5075 = vadd.f32 %v4693, %v5074
      %v5076 = vpop.f32.mrb[0].mxu0
      %v5077 = vadd.f32 %v4697, %v5076
      %v5078 = vpop.f32.mrb[0].mxu0
      %v5079 = vadd.f32 %v4693, %v5078
      %v5080 = vpop.f32.mrb[0].mxu0
      %v5081 = vadd.f32 %v4697, %v5080
      %5082 = vmatprep.mubr.bf16.mxu0 %v4597
      %5083 = vmatmul.mubr.bf16.gmra.mrb[0].mxu0 %v4596
      %v5084 = vpop.f32.mrb[0].mxu0
      %v5085 = vadd.f32 %v4693, %v5084
      %v5086 = vpop.f32.mrb[0].mxu0
      %v5087 = vadd.f32 %v4697, %v5086
      %v5088 = vpop.f32.mrb[0].mxu0
      %v5089 = vadd.f32 %v4693, %v5088
      %v5090 = vpop.f32.mrb[0].mxu0
      %v5091 = vadd.f32 %v4697, %v5090
      %5092 = vmatprep.mubr.bf16.mxu0 %v4599
      %5093 = vmatmul.mubr.bf16.gmra.mrb[0].mxu0 %v4598
      %v5094 = vpop.f32.mrb[0].mxu0
      %v5095 = vadd.f32 %v4693, %v5094
      %v5096 = vpop.f32.mrb[0].mxu0
      %v5097 = vadd.f32 %v4697, %v5096
      %v5098 = vpop.f32.mrb[0].mxu0
      %v5099 = vadd.f32 %v4693, %v5098
      %v5100 = vpop.f32.mrb[0].mxu0
      %v5101 = vadd.f32 %v4697, %v5100
      %5102 = vmatprep.mubr.bf16.mxu0 %v4601
      %5103 = vmatmul.mubr.bf16.gmra.mrb[0].mxu0 %v4600
      %v5104 = vpop.f32.mrb[0].mxu0
      %v5105 = vadd.f32 %v4693, %v5104
      %v5106 = vpop.f32.mrb[0].mxu0
      %v5107 = vadd.f32 %v4697, %v5106
      %v5108 = vpop.f32.mrb[0].mxu0
      %v5109 = vadd.f32 %v4693, %v5108
      %v5110 = vpop.f32.mrb[0].mxu0
      %v5111 = vadd.f32 %v4697, %v5110
      %5112 = vmatprep.mubr.bf16.mxu0 %v4603
      %5113 = vmatmul.mubr.bf16.gmra.mrb[0].mxu0 %v4602
      %v5114 = vpop.f32.mrb[0].mxu0
      %v5115 = vadd.f32 %v4693, %v5114
      %v5116 = vpop.f32.mrb[0].mxu0
      %v5117 = vadd.f32 %v4697, %v5116
      %v5118 = vpop.f32.mrb[0].mxu0
      %v5119 = vadd.f32 %v4693, %v5118
      %v5120 = vpop.f32.mrb[0].mxu0
      %v5121 = vadd.f32 %v4697, %v5120
      %5122 = vmatprep.mubr.bf16.mxu0 %v4605
      %5123 = vmatmul.mubr.bf16.gmra.mrb[0].mxu0 %v4604
      %v5124 = vpop.f32.mrb[0].mxu0
      %v5125 = vadd.f32 %v4693, %v5124
      %v5126 = vpop.f32.mrb[0].mxu0
      %v5127 = vadd.f32 %v4697, %v5126
      %v5128 = vpop.f32.mrb[0].mxu0
      %v5129 = vadd.f32 %v4693, %v5128
      %v5130 = vpop.f32.mrb[0].mxu0
      %v5131 = vadd.f32 %v4697, %v5130
      %5132 = vmatprep.mubr.bf16.mxu0 %v4607
      %5133 = vmatmul.mubr.bf16.gmra.mrb[0].mxu0 %v4606
      %v5134 = vpop.f32.mrb[0].mxu0
      %v5135 = vadd.f32 %v4693, %v5134
      %v5136 = vpop.f32.mrb[0].mxu0
      %v5137 = vadd.f32 %v4697, %v5136
      %v5138 = vpop.f32.mrb[0].mxu0
      %v5139 = vadd.f32 %v4693, %v5138
      %v5140 = vpop.f32.mrb[0].mxu0
      %v5141 = vadd.f32 %v4697, %v5140
      %5142 = vmatprep.mubr.bf16.mxu0 %v4609
      %5143 = vmatmul.mubr.bf16.gmra.mrb[0].mxu0 %v4608
      %v5144 = vpop.f32.mrb[0].mxu0
      %v5145 = vadd.f32 %v4693, %v5144
      %v5146 = vpop.f32.mrb[0].mxu0
      %v5147 = vadd.f32 %v4697, %v5146
      %v5148 = vpop.f32.mrb[0].mxu0
      %v5149 = vadd.f32 %v4693, %v5148
      %v5150 = vpop.f32.mrb[0].mxu0
      %v5151 = vadd.f32 %v4697, %v5150
      %5152 = vmatprep.mubr.bf16.mxu0 %v4611
      %5153 = vmatmul.mubr.bf16.gmra.mrb[0].mxu0 %v4610
      %v5154 = vpop.f32.mrb[0].mxu0
      %v5155 = vadd.f32 %v4693, %v5154
      %v5156 = vpop.f32.mrb[0].mxu0
      %v5157 = vadd.f32 %v4697, %v5156
      %v5158 = vpop.f32.mrb[0].mxu0
      %v5159 = vadd.f32 %v4693, %v5158
      %v5160 = vpop.f32.mrb[0].mxu0
      %v5161 = vadd.f32 %v4697, %v5160
      %5162 = vmatprep.mubr.bf16.mxu0 %v4613
      %5163 = vmatmul.mubr.bf16.gmra.mrb[0].mxu0 %v4612
      %v5164 = vpop.f32.mrb[0].mxu0
      %v5165 = vadd.f32 %v4693, %v5164
      %v5166 = vpop.f32.mrb[0].mxu0
      %v5167 = vadd.f32 %v4697, %v5166
      %v5168 = vpop.f32.mrb[0].mxu0
      %v5169 = vadd.f32 %v4693, %v5168
      %v5170 = vpop.f32.mrb[0].mxu0
      %v5171 = vadd.f32 %v4697, %v5170
      %5172 = vmatprep.mubr.bf16.mxu0 %v4615
      %5173 = vmatmul.mubr.bf16.gmra.mrb[0].mxu0 %v4614
      %v5174 = vpop.f32.mrb[0].mxu0
      %v5175 = vadd.f32 %v4693, %v5174
      %v5176 = vpop.f32.mrb[0].mxu0
      %v5177 = vadd.f32 %v4697, %v5176
      %v5178 = vpop.f32.mrb[0].mxu0
      %v5179 = vadd.f32 %v4693, %v5178
      %v5180 = vpop.f32.mrb[0].mxu0
      %v5181 = vadd.f32 %v4697, %v5180
      %5182 = vmatprep.mubr.bf16.mxu0 %v4617
      %5183 = vmatmul.mubr.bf16.gmra.mrb[0].mxu0 %v4616
      %v5184 = vpop.f32.mrb[0].mxu0
      %v5185 = vadd.f32 %v4693, %v5184
      %v5186 = vpop.f32.mrb[0].mxu0
      %v5187 = vadd.f32 %v4697, %v5186
      %v5188 = vpop.f32.mrb[0].mxu0
      %v5189 = vadd.f32 %v4693, %v5188
      %v5190 = vpop.f32.mrb[0].mxu0
      %v5191 = vadd.f32 %v4697, %v5190
      %5192 = vmatprep.mubr.bf16.mxu0 %v4619
      %5193 = vmatmul.mubr.bf16.gmra.mrb[0].mxu0 %v4618
      %v5194 = vpop.f32.mrb[0].mxu0
      %v5195 = vadd.f32 %v4693, %v5194
      %v5196 = vpop.f32.mrb[0].mxu0
      %v5197 = vadd.f32 %v4697, %v5196
      %v5198 = vpop.f32.mrb[0].mxu0
      %v5199 = vadd.f32 %v4693, %v5198
      %v5200 = vpop.f32.mrb[0].mxu0
      %v5201 = vadd.f32 %v4697, %v5200
      %5202 = vmatprep.mubr.bf16.mxu0 %v4621
      %5203 = vmatmul.mubr.bf16.gmra.mrb[0].mxu0 %v4620
      %v5204 = vpop.f32.mrb[0].mxu0
      %v5205 = vadd.f32 %v4693, %v5204
      %v5206 = vpop.f32.mrb[0].mxu0
      %v5207 = vadd.f32 %v4697, %v5206
      %v5208 = vpop.f32.mrb[0].mxu0
      %v5209 = vadd.f32 %v4693, %v5208
      %v5210 = vpop.f32.mrb[0].mxu0
      %v5211 = vadd.f32 %v4697, %v5210
      %5212 = vmatprep.mubr.bf16.mxu0 %v4623
      %5213 = vmatmul.mubr.bf16.gmra.mrb[0].mxu0 %v4622
      %v5214 = vpop.f32.mrb[0].mxu0
      %v5215 = vadd.f32 %v4693, %v5214
      %v5216 = vpop.f32.mrb[0].mxu0
      %v5217 = vadd.f32 %v4697, %v5216
      %v5218 = vpop.f32.mrb[0].mxu0
      %v5219 = vadd.f32 %v4693, %v5218
      %v5220 = vpop.f32.mrb[0].mxu0
      %v5221 = vadd.f32 %v4697, %v5220
      %5222 = vdwg.mxu0
      %5223 = vmatprep.subr.bf16.mxu0 %v4905
      %5224 = vmatpush1.bf16.msra.mxu0 %v4904
      %5225 = vmatprep.subr.bf16.mxu0 %v4909
      %5226 = vmatpush1.bf16.msra.mxu0 %v4908
      %5227 = vmatprep.subr.bf16.mxu0 %v4913
      %5228 = vmatpush1.bf16.msra.mxu0 %v4912
      %5229 = vmatprep.subr.bf16.mxu0 %v4917
      %5230 = vmatpush1.bf16.msra.mxu0 %v4916
      %5231 = vmatprep.subr.bf16.mxu0 %v4921
      %5232 = vmatpush1.bf16.msra.mxu0 %v4920
      %5233 = vmatprep.subr.bf16.mxu0 %v4925
      %5234 = vmatpush1.bf16.msra.mxu0 %v4924
      %5235 = vmatprep.subr.bf16.mxu0 %v4929
      %5236 = vmatpush1.bf16.msra.mxu0 %v4928
      %5237 = vmatprep.subr.bf16.mxu0 %v4933
      %5238 = vmatpush1.bf16.msra.mxu0 %v4932
      %5239 = vmatprep.subr.bf16.mxu0 %v4937
      %5240 = vmatpush1.bf16.msra.mxu0 %v4936
      %5241 = vmatprep.subr.bf16.mxu0 %v4941
      %5242 = vmatpush1.bf16.msra.mxu0 %v4940
      %5243 = vmatprep.subr.bf16.mxu0 %v4945
      %5244 = vmatpush1.bf16.msra.mxu0 %v4944
      %5245 = vmatprep.subr.bf16.mxu0 %v4949
      %5246 = vmatpush1.bf16.msra.mxu0 %v4948
      %5247 = vmatprep.subr.bf16.mxu0 %v4953
      %5248 = vmatpush1.bf16.msra.mxu0 %v4952
      %5249 = vmatprep.subr.bf16.mxu0 %v4957
      %5250 = vmatpush1.bf16.msra.mxu0 %v4956
      %5251 = vmatprep.subr.bf16.mxu0 %v4961
      %5252 = vmatpush1.bf16.msra.mxu0 %v4960
      %5253 = vmatprep.subr.bf16.mxu0 %v4965
      %5254 = vmatpush1.bf16.msra.mxu0 %v4964
      %5255 = vmatprep.mubr.bf16.mxu0 %v4593
      %5256 = vmatmul.mubr.bf16.gmra.mrb[0].mxu0 %v4592
      %v5257 = vpop.f32.mrb[0].mxu0
      %v5258 = vadd.f32 %v4701, %v5257
      %v5259 = vpop.f32.mrb[0].mxu0
      %v5260 = vadd.f32 %v4705, %v5259
      %v5261 = vpop.f32.mrb[0].mxu0
      %v5262 = vadd.f32 %v4701, %v5261
      %v5263 = vpop.f32.mrb[0].mxu0
      %v5264 = vadd.f32 %v4705, %v5263
      %5265 = vmatprep.mubr.bf16.mxu0 %v4595
      %5266 = vmatmul.mubr.bf16.gmra.mrb[0].mxu0 %v4594
      %v5267 = vpop.f32.mrb[0].mxu0
      %v5268 = vadd.f32 %v4701, %v5267
      %v5269 = vpop.f32.mrb[0].mxu0
      %v5270 = vadd.f32 %v4705, %v5269
      %v5271 = vpop.f32.mrb[0].mxu0
      %v5272 = vadd.f32 %v4701, %v5271
      %v5273 = vpop.f32.mrb[0].mxu0
      %v5274 = vadd.f32 %v4705, %v5273
      %5275 = vmatprep.mubr.bf16.mxu0 %v4597
      %5276 = vmatmul.mubr.bf16.gmra.mrb[0].mxu0 %v4596
      %v5277 = vpop.f32.mrb[0].mxu0
      %v5278 = vadd.f32 %v4701, %v5277
      %v5279 = vpop.f32.mrb[0].mxu0
      %v5280 = vadd.f32 %v4705, %v5279
      %v5281 = vpop.f32.mrb[0].mxu0
      %v5282 = vadd.f32 %v4701, %v5281
      %v5283 = vpop.f32.mrb[0].mxu0
      %v5284 = vadd.f32 %v4705, %v5283
      %5285 = vmatprep.mubr.bf16.mxu0 %v4599
      %5286 = vmatmul.mubr.bf16.gmra.mrb[0].mxu0 %v4598
      %v5287 = vpop.f32.mrb[0].mxu0
      %v5288 = vadd.f32 %v4701, %v5287
      %v5289 = vpop.f32.mrb[0].mxu0
      %v5290 = vadd.f32 %v4705, %v5289
      %v5291 = vpop.f32.mrb[0].mxu0
      %v5292 = vadd.f32 %v4701, %v5291
      %v5293 = vpop.f32.mrb[0].mxu0
      %v5294 = vadd.f32 %v4705, %v5293
      %5295 = vmatprep.mubr.bf16.mxu0 %v4601
      %5296 = vmatmul.mubr.bf16.gmra.mrb[0].mxu0 %v4600
      %v5297 = vpop.f32.mrb[0].mxu0
      %v5298 = vadd.f32 %v4701, %v5297
      %v5299 = vpop.f32.mrb[0].mxu0
      %v5300 = vadd.f32 %v4705, %v5299
      %v5301 = vpop.f32.mrb[0].mxu0
      %v5302 = vadd.f32 %v4701, %v5301
      %v5303 = vpop.f32.mrb[0].mxu0
      %v5304 = vadd.f32 %v4705, %v5303
      %5305 = vmatprep.mubr.bf16.mxu0 %v4603
      %5306 = vmatmul.mubr.bf16.gmra.mrb[0].mxu0 %v4602
      %v5307 = vpop.f32.mrb[0].mxu0
      %v5308 = vadd.f32 %v4701, %v5307
      %v5309 = vpop.f32.mrb[0].mxu0
      %v5310 = vadd.f32 %v4705, %v5309
      %v5311 = vpop.f32.mrb[0].mxu0
      %v5312 = vadd.f32 %v4701, %v5311
      %v5313 = vpop.f32.mrb[0].mxu0
      %v5314 = vadd.f32 %v4705, %v5313
      %5315 = vmatprep.mubr.bf16.mxu0 %v4605
      %5316 = vmatmul.mubr.bf16.gmra.mrb[0].mxu0 %v4604
      %v5317 = vpop.f32.mrb[0].mxu0
      %v5318 = vadd.f32 %v4701, %v5317
      %v5319 = vpop.f32.mrb[0].mxu0
      %v5320 = vadd.f32 %v4705, %v5319
      %v5321 = vpop.f32.mrb[0].mxu0
      %v5322 = vadd.f32 %v4701, %v5321
      %v5323 = vpop.f32.mrb[0].mxu0
      %v5324 = vadd.f32 %v4705, %v5323
      %5325 = vmatprep.mubr.bf16.mxu0 %v4607
      %5326 = vmatmul.mubr.bf16.gmra.mrb[0].mxu0 %v4606
      %v5327 = vpop.f32.mrb[0].mxu0
      %v5328 = vadd.f32 %v4701, %v5327
      %v5329 = vpop.f32.mrb[0].mxu0
      %v5330 = vadd.f32 %v4705, %v5329
      %v5331 = vpop.f32.mrb[0].mxu0
      %v5332 = vadd.f32 %v4701, %v5331
      %v5333 = vpop.f32.mrb[0].mxu0
      %v5334 = vadd.f32 %v4705, %v5333
      %5335 = vmatprep.mubr.bf16.mxu0 %v4609
      %5336 = vmatmul.mubr.bf16.gmra.mrb[0].mxu0 %v4608
      %v5337 = vpop.f32.mrb[0].mxu0
      %v5338 = vadd.f32 %v4701, %v5337
      %v5339 = vpop.f32.mrb[0].mxu0
      %v5340 = vadd.f32 %v4705, %v5339
      %v5341 = vpop.f32.mrb[0].mxu0
      %v5342 = vadd.f32 %v4701, %v5341
      %v5343 = vpop.f32.mrb[0].mxu0
      %v5344 = vadd.f32 %v4705, %v5343
      %5345 = vmatprep.mubr.bf16.mxu0 %v4611
      %5346 = vmatmul.mubr.bf16.gmra.mrb[0].mxu0 %v4610
      %v5347 = vpop.f32.mrb[0].mxu0
      %v5348 = vadd.f32 %v4701, %v5347
      %v5349 = vpop.f32.mrb[0].mxu0
      %v5350 = vadd.f32 %v4705, %v5349
      %v5351 = vpop.f32.mrb[0].mxu0
      %v5352 = vadd.f32 %v4701, %v5351
      %v5353 = vpop.f32.mrb[0].mxu0
      %v5354 = vadd.f32 %v4705, %v5353
      %5355 = vmatprep.mubr.bf16.mxu0 %v4613
      %5356 = vmatmul.mubr.bf16.gmra.mrb[0].mxu0 %v4612
      %v5357 = vpop.f32.mrb[0].mxu0
      %v5358 = vadd.f32 %v4701, %v5357
      %v5359 = vpop.f32.mrb[0].mxu0
      %v5360 = vadd.f32 %v4705, %v5359
      %v5361 = vpop.f32.mrb[0].mxu0
      %v5362 = vadd.f32 %v4701, %v5361
      %v5363 = vpop.f32.mrb[0].mxu0
      %v5364 = vadd.f32 %v4705, %v5363
      %5365 = vmatprep.mubr.bf16.mxu0 %v4615
      %5366 = vmatmul.mubr.bf16.gmra.mrb[0].mxu0 %v4614
      %v5367 = vpop.f32.mrb[0].mxu0
      %v5368 = vadd.f32 %v4701, %v5367
      %v5369 = vpop.f32.mrb[0].mxu0
      %v5370 = vadd.f32 %v4705, %v5369
      %v5371 = vpop.f32.mrb[0].mxu0
      %v5372 = vadd.f32 %v4701, %v5371
      %v5373 = vpop.f32.mrb[0].mxu0
      %v5374 = vadd.f32 %v4705, %v5373
      %5375 = vmatprep.mubr.bf16.mxu0 %v4617
      %5376 = vmatmul.mubr.bf16.gmra.mrb[0].mxu0 %v4616
      %v5377 = vpop.f32.mrb[0].mxu0
      %v5378 = vadd.f32 %v4701, %v5377
      %v5379 = vpop.f32.mrb[0].mxu0
      %v5380 = vadd.f32 %v4705, %v5379
      %v5381 = vpop.f32.mrb[0].mxu0
      %v5382 = vadd.f32 %v4701, %v5381
      %v5383 = vpop.f32.mrb[0].mxu0
      %v5384 = vadd.f32 %v4705, %v5383
      %5385 = vmatprep.mubr.bf16.mxu0 %v4619
      %5386 = vmatmul.mubr.bf16.gmra.mrb[0].mxu0 %v4618
      %v5387 = vpop.f32.mrb[0].mxu0
      %v5388 = vadd.f32 %v4701, %v5387
      %v5389 = vpop.f32.mrb[0].mxu0
      %v5390 = vadd.f32 %v4705, %v5389
      %v5391 = vpop.f32.mrb[0].mxu0
      %v5392 = vadd.f32 %v4701, %v5391
      %v5393 = vpop.f32.mrb[0].mxu0
      %v5394 = vadd.f32 %v4705, %v5393
      %5395 = vmatprep.mubr.bf16.mxu0 %v4621
      %5396 = vmatmul.mubr.bf16.gmra.mrb[0].mxu0 %v4620
      %v5397 = vpop.f32.mrb[0].mxu0
      %v5398 = vadd.f32 %v4701, %v5397
      %v5399 = vpop.f32.mrb[0].mxu0
      %v5400 = vadd.f32 %v4705, %v5399
      %v5401 = vpop.f32.mrb[0].mxu0
      %v5402 = vadd.f32 %v4701, %v5401
      %v5403 = vpop.f32.mrb[0].mxu0
      %v5404 = vadd.f32 %v4705, %v5403
      %5405 = vmatprep.mubr.bf16.mxu0 %v4623
      %5406 = vmatmul.mubr.bf16.gmra.mrb[0].mxu0 %v4622
      %v5407 = vpop.f32.mrb[0].mxu0
      %v5408 = vadd.f32 %v4701, %v5407
      %v5409 = vpop.f32.mrb[0].mxu0
      %v5410 = vadd.f32 %v4705, %v5409
      %v5411 = vpop.f32.mrb[0].mxu0
      %v5412 = vadd.f32 %v4701, %v5411
      %v5413 = vpop.f32.mrb[0].mxu0
      %v5414 = vadd.f32 %v4705, %v5413
      %5415 = vdwg.mxu0
      %v5416 = vmax.f32 %v5065, 0.0
      %v5417 = vmax.f32 %v5067, 0.0
      %v5418 = vmax.f32 %v5258, 0.0
      %v5419 = vmax.f32 %v5260, 0.0
      %v5420 = vmax.f32 %v5069, 0.0
      %v5421 = vmax.f32 %v5071, 0.0
      %v5422 = vmax.f32 %v5262, 0.0
      %v5423 = vmax.f32 %v5264, 0.0
      %v5424 = vmax.f32 %v5075, 0.0
      %v5425 = vmax.f32 %v5077, 0.0
      %v5426 = vmax.f32 %v5268, 0.0
      %v5427 = vmax.f32 %v5270, 0.0
      %v5428 = vmax.f32 %v5079, 0.0
      %v5429 = vmax.f32 %v5081, 0.0
      %v5430 = vmax.f32 %v5272, 0.0
      %v5431 = vmax.f32 %v5274, 0.0
      %v5432 = vmax.f32 %v5085, 0.0
      %v5433 = vmax.f32 %v5087, 0.0
      %v5434 = vmax.f32 %v5278, 0.0
      %v5435 = vmax.f32 %v5280, 0.0
      %v5436 = vmax.f32 %v5089, 0.0
      %v5437 = vmax.f32 %v5091, 0.0
      %v5438 = vmax.f32 %v5282, 0.0
      %v5439 = vmax.f32 %v5284, 0.0
      %v5440 = vmax.f32 %v5095, 0.0
      %v5441 = vmax.f32 %v5097, 0.0
      %v5442 = vmax.f32 %v5288, 0.0
      %v5443 = vmax.f32 %v5290, 0.0
      %v5444 = vmax.f32 %v5099, 0.0
      %v5445 = vmax.f32 %v5101, 0.0
      %v5446 = vmax.f32 %v5292, 0.0
      %v5447 = vmax.f32 %v5294, 0.0
      %v5448 = vmax.f32 %v5105, 0.0
      %v5449 = vmax.f32 %v5107, 0.0
      %v5450 = vmax.f32 %v5298, 0.0
      %v5451 = vmax.f32 %v5300, 0.0
      %v5452 = vmax.f32 %v5109, 0.0
      %v5453 = vmax.f32 %v5111, 0.0
      %v5454 = vmax.f32 %v5302, 0.0
      %v5455 = vmax.f32 %v5304, 0.0
      %v5456 = vmax.f32 %v5115, 0.0
      %v5457 = vmax.f32 %v5117, 0.0
      %v5458 = vmax.f32 %v5308, 0.0
      %v5459 = vmax.f32 %v5310, 0.0
      %v5460 = vmax.f32 %v5119, 0.0
      %v5461 = vmax.f32 %v5121, 0.0
      %v5462 = vmax.f32 %v5312, 0.0
      %v5463 = vmax.f32 %v5314, 0.0
      %v5464 = vmax.f32 %v5125, 0.0
      %v5465 = vmax.f32 %v5127, 0.0
      %v5466 = vmax.f32 %v5318, 0.0
      %v5467 = vmax.f32 %v5320, 0.0
      %v5468 = vmax.f32 %v5129, 0.0
      %v5469 = vmax.f32 %v5131, 0.0
      %v5470 = vmax.f32 %v5322, 0.0
      %v5471 = vmax.f32 %v5324, 0.0
      %v5472 = vmax.f32 %v5135, 0.0
      %v5473 = vmax.f32 %v5137, 0.0
      %v5474 = vmax.f32 %v5328, 0.0
      %v5475 = vmax.f32 %v5330, 0.0
      %v5476 = vmax.f32 %v5139, 0.0
      %v5477 = vmax.f32 %v5141, 0.0
      %v5478 = vmax.f32 %v5332, 0.0
      %v5479 = vmax.f32 %v5334, 0.0
      %v5480 = vmax.f32 %v5145, 0.0
      %v5481 = vmax.f32 %v5147, 0.0
      %v5482 = vmax.f32 %v5338, 0.0
      %v5483 = vmax.f32 %v5340, 0.0
      %v5484 = vmax.f32 %v5149, 0.0
      %v5485 = vmax.f32 %v5151, 0.0
      %v5486 = vmax.f32 %v5342, 0.0
      %v5487 = vmax.f32 %v5344, 0.0
      %v5488 = vmax.f32 %v5155, 0.0
      %v5489 = vmax.f32 %v5157, 0.0
      %v5490 = vmax.f32 %v5348, 0.0
      %v5491 = vmax.f32 %v5350, 0.0
      %v5492 = vmax.f32 %v5159, 0.0
      %v5493 = vmax.f32 %v5161, 0.0
      %v5494 = vmax.f32 %v5352, 0.0
      %v5495 = vmax.f32 %v5354, 0.0
      %v5496 = vmax.f32 %v5165, 0.0
      %v5497 = vmax.f32 %v5167, 0.0
      %v5498 = vmax.f32 %v5358, 0.0
      %v5499 = vmax.f32 %v5360, 0.0
      %v5500 = vmax.f32 %v5169, 0.0
      %v5501 = vmax.f32 %v5171, 0.0
      %v5502 = vmax.f32 %v5362, 0.0
      %v5503 = vmax.f32 %v5364, 0.0
      %v5504 = vmax.f32 %v5175, 0.0
      %v5505 = vmax.f32 %v5177, 0.0
      %v5506 = vmax.f32 %v5368, 0.0
      %v5507 = vmax.f32 %v5370, 0.0
      %v5508 = vmax.f32 %v5179, 0.0
      %v5509 = vmax.f32 %v5181, 0.0
      %v5510 = vmax.f32 %v5372, 0.0
      %v5511 = vmax.f32 %v5374, 0.0
      %v5512 = vmax.f32 %v5185, 0.0
      %v5513 = vmax.f32 %v5187, 0.0
      %v5514 = vmax.f32 %v5378, 0.0
      %v5515 = vmax.f32 %v5380, 0.0
      %v5516 = vmax.f32 %v5189, 0.0
      %v5517 = vmax.f32 %v5191, 0.0
      %v5518 = vmax.f32 %v5382, 0.0
      %v5519 = vmax.f32 %v5384, 0.0
      %v5520 = vmax.f32 %v5195, 0.0
      %v5521 = vmax.f32 %v5197, 0.0
      %v5522 = vmax.f32 %v5388, 0.0
      %v5523 = vmax.f32 %v5390, 0.0
      %v5524 = vmax.f32 %v5199, 0.0
      %v5525 = vmax.f32 %v5201, 0.0
      %v5526 = vmax.f32 %v5392, 0.0
      %v5527 = vmax.f32 %v5394, 0.0
      %v5528 = vmax.f32 %v5205, 0.0
      %v5529 = vmax.f32 %v5207, 0.0
      %v5530 = vmax.f32 %v5398, 0.0
      %v5531 = vmax.f32 %v5400, 0.0
      %v5532 = vmax.f32 %v5209, 0.0
      %v5533 = vmax.f32 %v5211, 0.0
      %v5534 = vmax.f32 %v5402, 0.0
      %v5535 = vmax.f32 %v5404, 0.0
      %v5536 = vmax.f32 %v5215, 0.0
      %v5537 = vmax.f32 %v5217, 0.0
      %v5538 = vmax.f32 %v5408, 0.0
      %v5539 = vmax.f32 %v5410, 0.0
      %v5540 = vmax.f32 %v5219, 0.0
      %v5541 = vmax.f32 %v5221, 0.0
      %v5542 = vmax.f32 %v5412, 0.0
      %v5543 = vmax.f32 %v5414, 0.0
      %vm5544 = vcmp.ne.f32.partialorder %v5065, %v5065
      %vm5545 = vcmp.ne.f32.partialorder %v5067, %v5067
      %vm5546 = vcmp.ne.f32.partialorder %v5258, %v5258
      %vm5547 = vcmp.ne.f32.partialorder %v5260, %v5260
      %vm5548 = vcmp.ne.f32.partialorder %v5069, %v5069
      %vm5549 = vcmp.ne.f32.partialorder %v5071, %v5071
      %vm5550 = vcmp.ne.f32.partialorder %v5262, %v5262
      %vm5551 = vcmp.ne.f32.partialorder %v5264, %v5264
      %vm5552 = vcmp.ne.f32.partialorder %v5075, %v5075
      %vm5553 = vcmp.ne.f32.partialorder %v5077, %v5077
      %vm5554 = vcmp.ne.f32.partialorder %v5268, %v5268
      %vm5555 = vcmp.ne.f32.partialorder %v5270, %v5270
      %vm5556 = vcmp.ne.f32.partialorder %v5079, %v5079
      %vm5557 = vcmp.ne.f32.partialorder %v5081, %v5081
      %vm5558 = vcmp.ne.f32.partialorder %v5272, %v5272
      %vm5559 = vcmp.ne.f32.partialorder %v5274, %v5274
      %vm5560 = vcmp.ne.f32.partialorder %v5085, %v5085
      %vm5561 = vcmp.ne.f32.partialorder %v5087, %v5087
      %vm5562 = vcmp.ne.f32.partialorder %v5278, %v5278
      %vm5563 = vcmp.ne.f32.partialorder %v5280, %v5280
      %vm5564 = vcmp.ne.f32.partialorder %v5089, %v5089
      %vm5565 = vcmp.ne.f32.partialorder %v5091, %v5091
      %vm5566 = vcmp.ne.f32.partialorder %v5282, %v5282
      %vm5567 = vcmp.ne.f32.partialorder %v5284, %v5284
      %vm5568 = vcmp.ne.f32.partialorder %v5095, %v5095
      %vm5569 = vcmp.ne.f32.partialorder %v5097, %v5097
      %vm5570 = vcmp.ne.f32.partialorder %v5288, %v5288
      %vm5571 = vcmp.ne.f32.partialorder %v5290, %v5290
      %vm5572 = vcmp.ne.f32.partialorder %v5099, %v5099
      %vm5573 = vcmp.ne.f32.partialorder %v5101, %v5101
      %vm5574 = vcmp.ne.f32.partialorder %v5292, %v5292
      %vm5575 = vcmp.ne.f32.partialorder %v5294, %v5294
      %vm5576 = vcmp.ne.f32.partialorder %v5105, %v5105
      %vm5577 = vcmp.ne.f32.partialorder %v5107, %v5107
      %vm5578 = vcmp.ne.f32.partialorder %v5298, %v5298
      %vm5579 = vcmp.ne.f32.partialorder %v5300, %v5300
      %vm5580 = vcmp.ne.f32.partialorder %v5109, %v5109
      %vm5581 = vcmp.ne.f32.partialorder %v5111, %v5111
      %vm5582 = vcmp.ne.f32.partialorder %v5302, %v5302
      %vm5583 = vcmp.ne.f32.partialorder %v5304, %v5304
      %vm5584 = vcmp.ne.f32.partialorder %v5115, %v5115
      %vm5585 = vcmp.ne.f32.partialorder %v5117, %v5117
      %vm5586 = vcmp.ne.f32.partialorder %v5308, %v5308
      %vm5587 = vcmp.ne.f32.partialorder %v5310, %v5310
      %vm5588 = vcmp.ne.f32.partialorder %v5119, %v5119
      %vm5589 = vcmp.ne.f32.partialorder %v5121, %v5121
      %vm5590 = vcmp.ne.f32.partialorder %v5312, %v5312
      %vm5591 = vcmp.ne.f32.partialorder %v5314, %v5314
      %vm5592 = vcmp.ne.f32.partialorder %v5125, %v5125
      %vm5593 = vcmp.ne.f32.partialorder %v5127, %v5127
      %vm5594 = vcmp.ne.f32.partialorder %v5318, %v5318
      %vm5595 = vcmp.ne.f32.partialorder %v5320, %v5320
      %vm5596 = vcmp.ne.f32.partialorder %v5129, %v5129
      %vm5597 = vcmp.ne.f32.partialorder %v5131, %v5131
      %vm5598 = vcmp.ne.f32.partialorder %v5322, %v5322
      %vm5599 = vcmp.ne.f32.partialorder %v5324, %v5324
      %vm5600 = vcmp.ne.f32.partialorder %v5135, %v5135
      %vm5601 = vcmp.ne.f32.partialorder %v5137, %v5137
      %vm5602 = vcmp.ne.f32.partialorder %v5328, %v5328
      %vm5603 = vcmp.ne.f32.partialorder %v5330, %v5330
      %vm5604 = vcmp.ne.f32.partialorder %v5139, %v5139
      %vm5605 = vcmp.ne.f32.partialorder %v5141, %v5141
      %vm5606 = vcmp.ne.f32.partialorder %v5332, %v5332
      %vm5607 = vcmp.ne.f32.partialorder %v5334, %v5334
      %vm5608 = vcmp.ne.f32.partialorder %v5145, %v5145
      %vm5609 = vcmp.ne.f32.partialorder %v5147, %v5147
      %vm5610 = vcmp.ne.f32.partialorder %v5338, %v5338
      %vm5611 = vcmp.ne.f32.partialorder %v5340, %v5340
      %vm5612 = vcmp.ne.f32.partialorder %v5149, %v5149
      %vm5613 = vcmp.ne.f32.partialorder %v5151, %v5151
      %vm5614 = vcmp.ne.f32.partialorder %v5342, %v5342
      %vm5615 = vcmp.ne.f32.partialorder %v5344, %v5344
      %vm5616 = vcmp.ne.f32.partialorder %v5155, %v5155
      %vm5617 = vcmp.ne.f32.partialorder %v5157, %v5157
      %vm5618 = vcmp.ne.f32.partialorder %v5348, %v5348
      %vm5619 = vcmp.ne.f32.partialorder %v5350, %v5350
      %vm5620 = vcmp.ne.f32.partialorder %v5159, %v5159
      %vm5621 = vcmp.ne.f32.partialorder %v5161, %v5161
      %vm5622 = vcmp.ne.f32.partialorder %v5352, %v5352
      %vm5623 = vcmp.ne.f32.partialorder %v5354, %v5354
      %vm5624 = vcmp.ne.f32.partialorder %v5165, %v5165
      %vm5625 = vcmp.ne.f32.partialorder %v5167, %v5167
      %vm5626 = vcmp.ne.f32.partialorder %v5358, %v5358
      %vm5627 = vcmp.ne.f32.partialorder %v5360, %v5360
      %vm5628 = vcmp.ne.f32.partialorder %v5169, %v5169
      %vm5629 = vcmp.ne.f32.partialorder %v5171, %v5171
      %vm5630 = vcmp.ne.f32.partialorder %v5362, %v5362
      %vm5631 = vcmp.ne.f32.partialorder %v5364, %v5364
      %vm5632 = vcmp.ne.f32.partialorder %v5175, %v5175
      %vm5633 = vcmp.ne.f32.partialorder %v5177, %v5177
      %vm5634 = vcmp.ne.f32.partialorder %v5368, %v5368
      %vm5635 = vcmp.ne.f32.partialorder %v5370, %v5370
      %vm5636 = vcmp.ne.f32.partialorder %v5179, %v5179
      %vm5637 = vcmp.ne.f32.partialorder %v5181, %v5181
      %vm5638 = vcmp.ne.f32.partialorder %v5372, %v5372
      %vm5639 = vcmp.ne.f32.partialorder %v5374, %v5374
      %vm5640 = vcmp.ne.f32.partialorder %v5185, %v5185
      %vm5641 = vcmp.ne.f32.partialorder %v5187, %v5187
      %vm5642 = vcmp.ne.f32.partialorder %v5378, %v5378
      %vm5643 = vcmp.ne.f32.partialorder %v5380, %v5380
      %vm5644 = vcmp.ne.f32.partialorder %v5189, %v5189
      %vm5645 = vcmp.ne.f32.partialorder %v5191, %v5191
      %vm5646 = vcmp.ne.f32.partialorder %v5382, %v5382
      %vm5647 = vcmp.ne.f32.partialorder %v5384, %v5384
      %vm5648 = vcmp.ne.f32.partialorder %v5195, %v5195
      %vm5649 = vcmp.ne.f32.partialorder %v5197, %v5197
      %vm5650 = vcmp.ne.f32.partialorder %v5388, %v5388
      %vm5651 = vcmp.ne.f32.partialorder %v5390, %v5390
      %vm5652 = vcmp.ne.f32.partialorder %v5199, %v5199
      %vm5653 = vcmp.ne.f32.partialorder %v5201, %v5201
      %vm5654 = vcmp.ne.f32.partialorder %v5392, %v5392
      %vm5655 = vcmp.ne.f32.partialorder %v5394, %v5394
      %vm5656 = vcmp.ne.f32.partialorder %v5205, %v5205
      %vm5657 = vcmp.ne.f32.partialorder %v5207, %v5207
      %vm5658 = vcmp.ne.f32.partialorder %v5398, %v5398
      %vm5659 = vcmp.ne.f32.partialorder %v5400, %v5400
      %vm5660 = vcmp.ne.f32.partialorder %v5209, %v5209
      %vm5661 = vcmp.ne.f32.partialorder %v5211, %v5211
      %vm5662 = vcmp.ne.f32.partialorder %v5402, %v5402
      %vm5663 = vcmp.ne.f32.partialorder %v5404, %v5404
      %vm5664 = vcmp.ne.f32.partialorder %v5215, %v5215
      %vm5665 = vcmp.ne.f32.partialorder %v5217, %v5217
      %vm5666 = vcmp.ne.f32.partialorder %v5408, %v5408
      %vm5667 = vcmp.ne.f32.partialorder %v5410, %v5410
      %vm5668 = vcmp.ne.f32.partialorder %v5219, %v5219
      %vm5669 = vcmp.ne.f32.partialorder %v5221, %v5221
      %vm5670 = vcmp.ne.f32.partialorder %v5412, %v5412
      %vm5671 = vcmp.ne.f32.partialorder %v5414, %v5414
      %v5672 = vadd.f32 %v5065, 0.0
      %v5673 = vadd.f32 %v5067, 0.0
      %v5674 = vadd.f32 %v5258, 0.0
      %v5675 = vadd.f32 %v5260, 0.0
      %v5676 = vadd.f32 %v5069, 0.0
      %v5677 = vadd.f32 %v5071, 0.0
      %v5678 = vadd.f32 %v5262, 0.0
      %v5679 = vadd.f32 %v5264, 0.0
      %v5680 = vadd.f32 %v5075, 0.0
      %v5681 = vadd.f32 %v5077, 0.0
      %v5682 = vadd.f32 %v5268, 0.0
      %v5683 = vadd.f32 %v5270, 0.0
      %v5684 = vadd.f32 %v5079, 0.0
      %v5685 = vadd.f32 %v5081, 0.0
      %v5686 = vadd.f32 %v5272, 0.0
      %v5687 = vadd.f32 %v5274, 0.0
      %v5688 = vadd.f32 %v5085, 0.0
      %v5689 = vadd.f32 %v5087, 0.0
      %v5690 = vadd.f32 %v5278, 0.0
      %v5691 = vadd.f32 %v5280, 0.0
      %v5692 = vadd.f32 %v5089, 0.0
      %v5693 = vadd.f32 %v5091, 0.0
      %v5694 = vadd.f32 %v5282, 0.0
      %v5695 = vadd.f32 %v5284, 0.0
      %v5696 = vadd.f32 %v5095, 0.0
      %v5697 = vadd.f32 %v5097, 0.0
      %v5698 = vadd.f32 %v5288, 0.0
      %v5699 = vadd.f32 %v5290, 0.0
      %v5700 = vadd.f32 %v5099, 0.0
      %v5701 = vadd.f32 %v5101, 0.0
      %v5702 = vadd.f32 %v5292, 0.0
      %v5703 = vadd.f32 %v5294, 0.0
      %v5704 = vadd.f32 %v5105, 0.0
      %v5705 = vadd.f32 %v5107, 0.0
      %v5706 = vadd.f32 %v5298, 0.0
      %v5707 = vadd.f32 %v5300, 0.0
      %v5708 = vadd.f32 %v5109, 0.0
      %v5709 = vadd.f32 %v5111, 0.0
      %v5710 = vadd.f32 %v5302, 0.0
      %v5711 = vadd.f32 %v5304, 0.0
      %v5712 = vadd.f32 %v5115, 0.0
      %v5713 = vadd.f32 %v5117, 0.0
      %v5714 = vadd.f32 %v5308, 0.0
      %v5715 = vadd.f32 %v5310, 0.0
      %v5716 = vadd.f32 %v5119, 0.0
      %v5717 = vadd.f32 %v5121, 0.0
      %v5718 = vadd.f32 %v5312, 0.0
      %v5719 = vadd.f32 %v5314, 0.0
      %v5720 = vadd.f32 %v5125, 0.0
      %v5721 = vadd.f32 %v5127, 0.0
      %v5722 = vadd.f32 %v5318, 0.0
      %v5723 = vadd.f32 %v5320, 0.0
      %v5724 = vadd.f32 %v5129, 0.0
      %v5725 = vadd.f32 %v5131, 0.0
      %v5726 = vadd.f32 %v5322, 0.0
      %v5727 = vadd.f32 %v5324, 0.0
      %v5728 = vadd.f32 %v5135, 0.0
      %v5729 = vadd.f32 %v5137, 0.0
      %v5730 = vadd.f32 %v5328, 0.0
      %v5731 = vadd.f32 %v5330, 0.0
      %v5732 = vadd.f32 %v5139, 0.0
      %v5733 = vadd.f32 %v5141, 0.0
      %v5734 = vadd.f32 %v5332, 0.0
      %v5735 = vadd.f32 %v5334, 0.0
      %v5736 = vadd.f32 %v5145, 0.0
      %v5737 = vadd.f32 %v5147, 0.0
      %v5738 = vadd.f32 %v5338, 0.0
      %v5739 = vadd.f32 %v5340, 0.0
      %v5740 = vadd.f32 %v5149, 0.0
      %v5741 = vadd.f32 %v5151, 0.0
      %v5742 = vadd.f32 %v5342, 0.0
      %v5743 = vadd.f32 %v5344, 0.0
      %v5744 = vadd.f32 %v5155, 0.0
      %v5745 = vadd.f32 %v5157, 0.0
      %v5746 = vadd.f32 %v5348, 0.0
      %v5747 = vadd.f32 %v5350, 0.0
      %v5748 = vadd.f32 %v5159, 0.0
      %v5749 = vadd.f32 %v5161, 0.0
      %v5750 = vadd.f32 %v5352, 0.0
      %v5751 = vadd.f32 %v5354, 0.0
      %v5752 = vadd.f32 %v5165, 0.0
      %v5753 = vadd.f32 %v5167, 0.0
      %v5754 = vadd.f32 %v5358, 0.0
      %v5755 = vadd.f32 %v5360, 0.0
      %v5756 = vadd.f32 %v5169, 0.0
      %v5757 = vadd.f32 %v5171, 0.0
      %v5758 = vadd.f32 %v5362, 0.0
      %v5759 = vadd.f32 %v5364, 0.0
      %v5760 = vadd.f32 %v5175, 0.0
      %v5761 = vadd.f32 %v5177, 0.0
      %v5762 = vadd.f32 %v5368, 0.0
      %v5763 = vadd.f32 %v5370, 0.0
      %v5764 = vadd.f32 %v5179, 0.0
      %v5765 = vadd.f32 %v5181, 0.0
      %v5766 = vadd.f32 %v5372, 0.0
      %v5767 = vadd.f32 %v5374, 0.0
      %v5768 = vadd.f32 %v5185, 0.0
      %v5769 = vadd.f32 %v5187, 0.0
      %v5770 = vadd.f32 %v5378, 0.0
      %v5771 = vadd.f32 %v5380, 0.0
      %v5772 = vadd.f32 %v5189, 0.0
      %v5773 = vadd.f32 %v5191, 0.0
      %v5774 = vadd.f32 %v5382, 0.0
      %v5775 = vadd.f32 %v5384, 0.0
      %v5776 = vadd.f32 %v5195, 0.0
      %v5777 = vadd.f32 %v5197, 0.0
      %v5778 = vadd.f32 %v5388, 0.0
      %v5779 = vadd.f32 %v5390, 0.0
      %v5780 = vadd.f32 %v5199, 0.0
      %v5781 = vadd.f32 %v5201, 0.0
      %v5782 = vadd.f32 %v5392, 0.0
      %v5783 = vadd.f32 %v5394, 0.0
      %v5784 = vadd.f32 %v5205, 0.0
      %v5785 = vadd.f32 %v5207, 0.0
      %v5786 = vadd.f32 %v5398, 0.0
      %v5787 = vadd.f32 %v5400, 0.0
      %v5788 = vadd.f32 %v5209, 0.0
      %v5789 = vadd.f32 %v5211, 0.0
      %v5790 = vadd.f32 %v5402, 0.0
      %v5791 = vadd.f32 %v5404, 0.0
      %v5792 = vadd.f32 %v5215, 0.0
      %v5793 = vadd.f32 %v5217, 0.0
      %v5794 = vadd.f32 %v5408, 0.0
      %v5795 = vadd.f32 %v5410, 0.0
      %v5796 = vadd.f32 %v5219, 0.0
      %v5797 = vadd.f32 %v5221, 0.0
      %v5798 = vadd.f32 %v5412, 0.0
      %v5799 = vadd.f32 %v5414, 0.0
      %v5800 = vand.u32 2147483647, %v5065
      %v5801 = vand.u32 2147483647, %v5067
      %v5802 = vand.u32 2147483647, %v5258
      %v5803 = vand.u32 2147483647, %v5260
      %v5804 = vand.u32 2147483647, %v5069
      %v5805 = vand.u32 2147483647, %v5071
      %v5806 = vand.u32 2147483647, %v5262
      %v5807 = vand.u32 2147483647, %v5264
      %v5808 = vand.u32 2147483647, %v5075
      %v5809 = vand.u32 2147483647, %v5077
      %v5810 = vand.u32 2147483647, %v5268
      %v5811 = vand.u32 2147483647, %v5270
      %v5812 = vand.u32 2147483647, %v5079
      %v5813 = vand.u32 2147483647, %v5081
      %v5814 = vand.u32 2147483647, %v5272
      %v5815 = vand.u32 2147483647, %v5274
      %v5816 = vand.u32 2147483647, %v5085
      %v5817 = vand.u32 2147483647, %v5087
      %v5818 = vand.u32 2147483647, %v5278
      %v5819 = vand.u32 2147483647, %v5280
      %v5820 = vand.u32 2147483647, %v5089
      %v5821 = vand.u32 2147483647, %v5091
      %v5822 = vand.u32 2147483647, %v5282
      %v5823 = vand.u32 2147483647, %v5284
      %v5824 = vand.u32 2147483647, %v5095
      %v5825 = vand.u32 2147483647, %v5097
      %v5826 = vand.u32 2147483647, %v5288
      %v5827 = vand.u32 2147483647, %v5290
      %v5828 = vand.u32 2147483647, %v5099
      %v5829 = vand.u32 2147483647, %v5101
      %v5830 = vand.u32 2147483647, %v5292
      %v5831 = vand.u32 2147483647, %v5294
      %v5832 = vand.u32 2147483647, %v5105
      %v5833 = vand.u32 2147483647, %v5107
      %v5834 = vand.u32 2147483647, %v5298
      %v5835 = vand.u32 2147483647, %v5300
      %v5836 = vand.u32 2147483647, %v5109
      %v5837 = vand.u32 2147483647, %v5111
      %v5838 = vand.u32 2147483647, %v5302
      %v5839 = vand.u32 2147483647, %v5304
      %v5840 = vand.u32 2147483647, %v5115
      %v5841 = vand.u32 2147483647, %v5117
      %v5842 = vand.u32 2147483647, %v5308
      %v5843 = vand.u32 2147483647, %v5310
      %v5844 = vand.u32 2147483647, %v5119
      %v5845 = vand.u32 2147483647, %v5121
      %v5846 = vand.u32 2147483647, %v5312
      %v5847 = vand.u32 2147483647, %v5314
      %v5848 = vand.u32 2147483647, %v5125
      %v5849 = vand.u32 2147483647, %v5127
      %v5850 = vand.u32 2147483647, %v5318
      %v5851 = vand.u32 2147483647, %v5320
      %v5852 = vand.u32 2147483647, %v5129
      %v5853 = vand.u32 2147483647, %v5131
      %v5854 = vand.u32 2147483647, %v5322
      %v5855 = vand.u32 2147483647, %v5324
      %v5856 = vand.u32 2147483647, %v5135
      %v5857 = vand.u32 2147483647, %v5137
      %v5858 = vand.u32 2147483647, %v5328
      %v5859 = vand.u32 2147483647, %v5330
      %v5860 = vand.u32 2147483647, %v5139
      %v5861 = vand.u32 2147483647, %v5141
      %v5862 = vand.u32 2147483647, %v5332
      %v5863 = vand.u32 2147483647, %v5334
      %v5864 = vand.u32 2147483647, %v5145
      %v5865 = vand.u32 2147483647, %v5147
      %v5866 = vand.u32 2147483647, %v5338
      %v5867 = vand.u32 2147483647, %v5340
      %v5868 = vand.u32 2147483647, %v5149
      %v5869 = vand.u32 2147483647, %v5151
      %v5870 = vand.u32 2147483647, %v5342
      %v5871 = vand.u32 2147483647, %v5344
      %v5872 = vand.u32 2147483647, %v5155
      %v5873 = vand.u32 2147483647, %v5157
      %v5874 = vand.u32 2147483647, %v5348
      %v5875 = vand.u32 2147483647, %v5350
      %v5876 = vand.u32 2147483647, %v5159
      %v5877 = vand.u32 2147483647, %v5161
      %v5878 = vand.u32 2147483647, %v5352
      %v5879 = vand.u32 2147483647, %v5354
      %v5880 = vand.u32 2147483647, %v5165
      %v5881 = vand.u32 2147483647, %v5167
      %v5882 = vand.u32 2147483647, %v5358
      %v5883 = vand.u32 2147483647, %v5360
      %v5884 = vand.u32 2147483647, %v5169
      %v5885 = vand.u32 2147483647, %v5171
      %v5886 = vand.u32 2147483647, %v5362
      %v5887 = vand.u32 2147483647, %v5364
      %v5888 = vand.u32 2147483647, %v5175
      %v5889 = vand.u32 2147483647, %v5177
      %v5890 = vand.u32 2147483647, %v5368
      %v5891 = vand.u32 2147483647, %v5370
      %v5892 = vand.u32 2147483647, %v5179
      %v5893 = vand.u32 2147483647, %v5181
      %v5894 = vand.u32 2147483647, %v5372
      %v5895 = vand.u32 2147483647, %v5374
      %v5896 = vand.u32 2147483647, %v5185
      %v5897 = vand.u32 2147483647, %v5187
      %v5898 = vand.u32 2147483647, %v5378
      %v5899 = vand.u32 2147483647, %v5380
      %v5900 = vand.u32 2147483647, %v5189
      %v5901 = vand.u32 2147483647, %v5191
      %v5902 = vand.u32 2147483647, %v5382
      %v5903 = vand.u32 2147483647, %v5384
      %v5904 = vand.u32 2147483647, %v5195
      %v5905 = vand.u32 2147483647, %v5197
      %v5906 = vand.u32 2147483647, %v5388
      %v5907 = vand.u32 2147483647, %v5390
      %v5908 = vand.u32 2147483647, %v5199
      %v5909 = vand.u32 2147483647, %v5201
      %v5910 = vand.u32 2147483647, %v5392
      %v5911 = vand.u32 2147483647, %v5394
      %v5912 = vand.u32 2147483647, %v5205
      %v5913 = vand.u32 2147483647, %v5207
      %v5914 = vand.u32 2147483647, %v5398
      %v5915 = vand.u32 2147483647, %v5400
      %v5916 = vand.u32 2147483647, %v5209
      %v5917 = vand.u32 2147483647, %v5211
      %v5918 = vand.u32 2147483647, %v5402
      %v5919 = vand.u32 2147483647, %v5404
      %v5920 = vand.u32 2147483647, %v5215
      %v5921 = vand.u32 2147483647, %v5217
      %v5922 = vand.u32 2147483647, %v5408
      %v5923 = vand.u32 2147483647, %v5410
      %v5924 = vand.u32 2147483647, %v5219
      %v5925 = vand.u32 2147483647, %v5221
      %v5926 = vand.u32 2147483647, %v5412
      %v5927 = vand.u32 2147483647, %v5414
      %v5928 = vsub.f32 0.0, %v5800
      %v5929 = vsub.f32 0.0, %v5801
      %v5930 = vsub.f32 0.0, %v5802
      %v5931 = vsub.f32 0.0, %v5803
      %v5932 = vsub.f32 0.0, %v5804
      %v5933 = vsub.f32 0.0, %v5805
      %v5934 = vsub.f32 0.0, %v5806
      %v5935 = vsub.f32 0.0, %v5807
      %v5936 = vsub.f32 0.0, %v5808
      %v5937 = vsub.f32 0.0, %v5809
      %v5938 = vsub.f32 0.0, %v5810
      %v5939 = vsub.f32 0.0, %v5811
      %v5940 = vsub.f32 0.0, %v5812
      %v5941 = vsub.f32 0.0, %v5813
      %v5942 = vsub.f32 0.0, %v5814
      %v5943 = vsub.f32 0.0, %v5815
      %v5944 = vsub.f32 0.0, %v5816
      %v5945 = vsub.f32 0.0, %v5817
      %v5946 = vsub.f32 0.0, %v5818
      %v5947 = vsub.f32 0.0, %v5819
      %v5948 = vsub.f32 0.0, %v5820
      %v5949 = vsub.f32 0.0, %v5821
      %v5950 = vsub.f32 0.0, %v5822
      %v5951 = vsub.f32 0.0, %v5823
      %v5952 = vsub.f32 0.0, %v5824
      %v5953 = vsub.f32 0.0, %v5825
      %v5954 = vsub.f32 0.0, %v5826
      %v5955 = vsub.f32 0.0, %v5827
      %v5956 = vsub.f32 0.0, %v5828
      %v5957 = vsub.f32 0.0, %v5829
      %v5958 = vsub.f32 0.0, %v5830
      %v5959 = vsub.f32 0.0, %v5831
      %v5960 = vsub.f32 0.0, %v5832
      %v5961 = vsub.f32 0.0, %v5833
      %v5962 = vsub.f32 0.0, %v5834
      %v5963 = vsub.f32 0.0, %v5835
      %v5964 = vsub.f32 0.0, %v5836
      %v5965 = vsub.f32 0.0, %v5837
      %v5966 = vsub.f32 0.0, %v5838
      %v5967 = vsub.f32 0.0, %v5839
      %v5968 = vsub.f32 0.0, %v5840
      %v5969 = vsub.f32 0.0, %v5841
      %v5970 = vsub.f32 0.0, %v5842
      %v5971 = vsub.f32 0.0, %v5843
      %v5972 = vsub.f32 0.0, %v5844
      %v5973 = vsub.f32 0.0, %v5845
      %v5974 = vsub.f32 0.0, %v5846
      %v5975 = vsub.f32 0.0, %v5847
      %v5976 = vsub.f32 0.0, %v5848
      %v5977 = vsub.f32 0.0, %v5849
      %v5978 = vsub.f32 0.0, %v5850
      %v5979 = vsub.f32 0.0, %v5851
      %v5980 = vsub.f32 0.0, %v5852
      %v5981 = vsub.f32 0.0, %v5853
      %v5982 = vsub.f32 0.0, %v5854
      %v5983 = vsub.f32 0.0, %v5855
      %v5984 = vsub.f32 0.0, %v5856
      %v5985 = vsub.f32 0.0, %v5857
      %v5986 = vsub.f32 0.0, %v5858
      %v5987 = vsub.f32 0.0, %v5859
      %v5988 = vsub.f32 0.0, %v5860
      %v5989 = vsub.f32 0.0, %v5861
      %v5990 = vsub.f32 0.0, %v5862
      %v5991 = vsub.f32 0.0, %v5863
      %v5992 = vsub.f32 0.0, %v5864
      %v5993 = vsub.f32 0.0, %v5865
      %v5994 = vsub.f32 0.0, %v5866
      %v5995 = vsub.f32 0.0, %v5867
      %v5996 = vsub.f32 0.0, %v5868
      %v5997 = vsub.f32 0.0, %v5869
      %v5998 = vsub.f32 0.0, %v5870
      %v5999 = vsub.f32 0.0, %v5871
      %v6000 = vsub.f32 0.0, %v5872
      %v6001 = vsub.f32 0.0, %v5873
      %v6002 = vsub.f32 0.0, %v5874
      %v6003 = vsub.f32 0.0, %v5875
      %v6004 = vsub.f32 0.0, %v5876
      %v6005 = vsub.f32 0.0, %v5877
      %v6006 = vsub.f32 0.0, %v5878
      %v6007 = vsub.f32 0.0, %v5879
      %v6008 = vsub.f32 0.0, %v5880
      %v6009 = vsub.f32 0.0, %v5881
      %v6010 = vsub.f32 0.0, %v5882
      %v6011 = vsub.f32 0.0, %v5883
      %v6012 = vsub.f32 0.0, %v5884
      %v6013 = vsub.f32 0.0, %v5885
      %v6014 = vsub.f32 0.0, %v5886
      %v6015 = vsub.f32 0.0, %v5887
      %v6016 = vsub.f32 0.0, %v5888
      %v6017 = vsub.f32 0.0, %v5889
      %v6018 = vsub.f32 0.0, %v5890
      %v6019 = vsub.f32 0.0, %v5891
      %v6020 = vsub.f32 0.0, %v5892
      %v6021 = vsub.f32 0.0, %v5893
      %v6022 = vsub.f32 0.0, %v5894
      %v6023 = vsub.f32 0.0, %v5895
      %v6024 = vsub.f32 0.0, %v5896
      %v6025 = vsub.f32 0.0, %v5897
      %v6026 = vsub.f32 0.0, %v5898
      %v6027 = vsub.f32 0.0, %v5899
      %v6028 = vsub.f32 0.0, %v5900
      %v6029 = vsub.f32 0.0, %v5901
      %v6030 = vsub.f32 0.0, %v5902
      %v6031 = vsub.f32 0.0, %v5903
      %v6032 = vsub.f32 0.0, %v5904
      %v6033 = vsub.f32 0.0, %v5905
      %v6034 = vsub.f32 0.0, %v5906
      %v6035 = vsub.f32 0.0, %v5907
      %v6036 = vsub.f32 0.0, %v5908
      %v6037 = vsub.f32 0.0, %v5909
      %v6038 = vsub.f32 0.0, %v5910
      %v6039 = vsub.f32 0.0, %v5911
      %v6040 = vsub.f32 0.0, %v5912
      %v6041 = vsub.f32 0.0, %v5913
      %v6042 = vsub.f32 0.0, %v5914
      %v6043 = vsub.f32 0.0, %v5915
      %v6044 = vsub.f32 0.0, %v5916
      %v6045 = vsub.f32 0.0, %v5917
      %v6046 = vsub.f32 0.0, %v5918
      %v6047 = vsub.f32 0.0, %v5919
      %v6048 = vsub.f32 0.0, %v5920
      %v6049 = vsub.f32 0.0, %v5921
      %v6050 = vsub.f32 0.0, %v5922
      %v6051 = vsub.f32 0.0, %v5923
      %v6052 = vsub.f32 0.0, %v5924
      %v6053 = vsub.f32 0.0, %v5925
      %v6054 = vsub.f32 0.0, %v5926
      %v6055 = vsub.f32 0.0, %v5927
      %v6056 = vmul.f32 %v5928, 1.442695
      %v6057 = vpow.pop %v6056
      %v6058 = vmul.f32 %v5929, 1.442695
      %v6059 = vpow.pop %v6058
      %v6060 = vmul.f32 %v5930, 1.442695
      %v6061 = vpow.pop %v6060
      %v6062 = vmul.f32 %v5931, 1.442695
      %v6063 = vpow.pop %v6062
      %v6064 = vmul.f32 %v5932, 1.442695
      %v6065 = vpow.pop %v6064
      %v6066 = vmul.f32 %v5933, 1.442695
      %v6067 = vpow.pop %v6066
      %v6068 = vmul.f32 %v5934, 1.442695
      %v6069 = vpow.pop %v6068
      %v6070 = vmul.f32 %v5935, 1.442695
      %v6071 = vpow.pop %v6070
      %v6072 = vmul.f32 %v5936, 1.442695
      %v6073 = vpow.pop %v6072
      %v6074 = vmul.f32 %v5937, 1.442695
      %v6075 = vpow.pop %v6074
      %v6076 = vmul.f32 %v5938, 1.442695
      %v6077 = vpow.pop %v6076
      %v6078 = vmul.f32 %v5939, 1.442695
      %v6079 = vpow.pop %v6078
      %v6080 = vmul.f32 %v5940, 1.442695
      %v6081 = vpow.pop %v6080
      %v6082 = vmul.f32 %v5941, 1.442695
      %v6083 = vpow.pop %v6082
      %v6084 = vmul.f32 %v5942, 1.442695
      %v6085 = vpow.pop %v6084
      %v6086 = vmul.f32 %v5943, 1.442695
      %v6087 = vpow.pop %v6086
      %v6088 = vmul.f32 %v5944, 1.442695
      %v6089 = vpow.pop %v6088
      %v6090 = vmul.f32 %v5945, 1.442695
      %v6091 = vpow.pop %v6090
      %v6092 = vmul.f32 %v5946, 1.442695
      %v6093 = vpow.pop %v6092
      %v6094 = vmul.f32 %v5947, 1.442695
      %v6095 = vpow.pop %v6094
      %v6096 = vmul.f32 %v5948, 1.442695
      %v6097 = vpow.pop %v6096
      %v6098 = vmul.f32 %v5949, 1.442695
      %v6099 = vpow.pop %v6098
      %v6100 = vmul.f32 %v5950, 1.442695
      %v6101 = vpow.pop %v6100
      %v6102 = vmul.f32 %v5951, 1.442695
      %v6103 = vpow.pop %v6102
      %v6104 = vmul.f32 %v5952, 1.442695
      %v6105 = vpow.pop %v6104
      %v6106 = vmul.f32 %v5953, 1.442695
      %v6107 = vpow.pop %v6106
      %v6108 = vmul.f32 %v5954, 1.442695
      %v6109 = vpow.pop %v6108
      %v6110 = vmul.f32 %v5955, 1.442695
      %v6111 = vpow.pop %v6110
      %v6112 = vmul.f32 %v5956, 1.442695
      %v6113 = vpow.pop %v6112
      %v6114 = vmul.f32 %v5957, 1.442695
      %v6115 = vpow.pop %v6114
      %v6116 = vmul.f32 %v5958, 1.442695
      %v6117 = vpow.pop %v6116
      %v6118 = vmul.f32 %v5959, 1.442695
      %v6119 = vpow.pop %v6118
      %v6120 = vmul.f32 %v5960, 1.442695
      %v6121 = vpow.pop %v6120
      %v6122 = vmul.f32 %v5961, 1.442695
      %v6123 = vpow.pop %v6122
      %v6124 = vmul.f32 %v5962, 1.442695
      %v6125 = vpow.pop %v6124
      %v6126 = vmul.f32 %v5963, 1.442695
      %v6127 = vpow.pop %v6126
      %v6128 = vmul.f32 %v5964, 1.442695
      %v6129 = vpow.pop %v6128
      %v6130 = vmul.f32 %v5965, 1.442695
      %v6131 = vpow.pop %v6130
      %v6132 = vmul.f32 %v5966, 1.442695
      %v6133 = vpow.pop %v6132
      %v6134 = vmul.f32 %v5967, 1.442695
      %v6135 = vpow.pop %v6134
      %v6136 = vmul.f32 %v5968, 1.442695
      %v6137 = vpow.pop %v6136
      %v6138 = vmul.f32 %v5969, 1.442695
      %v6139 = vpow.pop %v6138
      %v6140 = vmul.f32 %v5970, 1.442695
      %v6141 = vpow.pop %v6140
      %v6142 = vmul.f32 %v5971, 1.442695
      %v6143 = vpow.pop %v6142
      %v6144 = vmul.f32 %v5972, 1.442695
      %v6145 = vpow.pop %v6144
      %v6146 = vmul.f32 %v5973, 1.442695
      %v6147 = vpow.pop %v6146
      %v6148 = vmul.f32 %v5974, 1.442695
      %v6149 = vpow.pop %v6148
      %v6150 = vmul.f32 %v5975, 1.442695
      %v6151 = vpow.pop %v6150
      %v6152 = vmul.f32 %v5976, 1.442695
      %v6153 = vpow.pop %v6152
      %v6154 = vmul.f32 %v5977, 1.442695
      %v6155 = vpow.pop %v6154
      %v6156 = vmul.f32 %v5978, 1.442695
      %v6157 = vpow.pop %v6156
      %v6158 = vmul.f32 %v5979, 1.442695
      %v6159 = vpow.pop %v6158
      %v6160 = vmul.f32 %v5980, 1.442695
      %v6161 = vpow.pop %v6160
      %v6162 = vmul.f32 %v5981, 1.442695
      %v6163 = vpow.pop %v6162
      %v6164 = vmul.f32 %v5982, 1.442695
      %v6165 = vpow.pop %v6164
      %v6166 = vmul.f32 %v5983, 1.442695
      %v6167 = vpow.pop %v6166
      %v6168 = vmul.f32 %v5984, 1.442695
      %v6169 = vpow.pop %v6168
      %v6170 = vmul.f32 %v5985, 1.442695
      %v6171 = vpow.pop %v6170
      %v6172 = vmul.f32 %v5986, 1.442695
      %v6173 = vpow.pop %v6172
      %v6174 = vmul.f32 %v5987, 1.442695
      %v6175 = vpow.pop %v6174
      %v6176 = vmul.f32 %v5988, 1.442695
      %v6177 = vpow.pop %v6176
      %v6178 = vmul.f32 %v5989, 1.442695
      %v6179 = vpow.pop %v6178
      %v6180 = vmul.f32 %v5990, 1.442695
      %v6181 = vpow.pop %v6180
      %v6182 = vmul.f32 %v5991, 1.442695
      %v6183 = vpow.pop %v6182
      %v6184 = vmul.f32 %v5992, 1.442695
      %v6185 = vpow.pop %v6184
      %v6186 = vmul.f32 %v5993, 1.442695
      %v6187 = vpow.pop %v6186
      %v6188 = vmul.f32 %v5994, 1.442695
      %v6189 = vpow.pop %v6188
      %v6190 = vmul.f32 %v5995, 1.442695
      %v6191 = vpow.pop %v6190
      %v6192 = vmul.f32 %v5996, 1.442695
      %v6193 = vpow.pop %v6192
      %v6194 = vmul.f32 %v5997, 1.442695
      %v6195 = vpow.pop %v6194
      %v6196 = vmul.f32 %v5998, 1.442695
      %v6197 = vpow.pop %v6196
      %v6198 = vmul.f32 %v5999, 1.442695
      %v6199 = vpow.pop %v6198
      %v6200 = vmul.f32 %v6000, 1.442695
      %v6201 = vpow.pop %v6200
      %v6202 = vmul.f32 %v6001, 1.442695
      %v6203 = vpow.pop %v6202
      %v6204 = vmul.f32 %v6002, 1.442695
      %v6205 = vpow.pop %v6204
      %v6206 = vmul.f32 %v6003, 1.442695
      %v6207 = vpow.pop %v6206
      %v6208 = vmul.f32 %v6004, 1.442695
      %v6209 = vpow.pop %v6208
      %v6210 = vmul.f32 %v6005, 1.442695
      %v6211 = vpow.pop %v6210
      %v6212 = vmul.f32 %v6006, 1.442695
      %v6213 = vpow.pop %v6212
      %v6214 = vmul.f32 %v6007, 1.442695
      %v6215 = vpow.pop %v6214
      %v6216 = vmul.f32 %v6008, 1.442695
      %v6217 = vpow.pop %v6216
      %v6218 = vmul.f32 %v6009, 1.442695
      %v6219 = vpow.pop %v6218
      %v6220 = vmul.f32 %v6010, 1.442695
      %v6221 = vpow.pop %v6220
      %v6222 = vmul.f32 %v6011, 1.442695
      %v6223 = vpow.pop %v6222
      %v6224 = vmul.f32 %v6012, 1.442695
      %v6225 = vpow.pop %v6224
      %v6226 = vmul.f32 %v6013, 1.442695
      %v6227 = vpow.pop %v6226
      %v6228 = vmul.f32 %v6014, 1.442695
      %v6229 = vpow.pop %v6228
      %v6230 = vmul.f32 %v6015, 1.442695
      %v6231 = vpow.pop %v6230
      %v6232 = vmul.f32 %v6016, 1.442695
      %v6233 = vpow.pop %v6232
      %v6234 = vmul.f32 %v6017, 1.442695
      %v6235 = vpow.pop %v6234
      %v6236 = vmul.f32 %v6018, 1.442695
      %v6237 = vpow.pop %v6236
      %v6238 = vmul.f32 %v6019, 1.442695
      %v6239 = vpow.pop %v6238
      %v6240 = vmul.f32 %v6020, 1.442695
      %v6241 = vpow.pop %v6240
      %v6242 = vmul.f32 %v6021, 1.442695
      %v6243 = vpow.pop %v6242
      %v6244 = vmul.f32 %v6022, 1.442695
      %v6245 = vpow.pop %v6244
      %v6246 = vmul.f32 %v6023, 1.442695
      %v6247 = vpow.pop %v6246
      %v6248 = vmul.f32 %v6024, 1.442695
      %v6249 = vpow.pop %v6248
      %v6250 = vmul.f32 %v6025, 1.442695
      %v6251 = vpow.pop %v6250
      %v6252 = vmul.f32 %v6026, 1.442695
      %v6253 = vpow.pop %v6252
      %v6254 = vmul.f32 %v6027, 1.442695
      %v6255 = vpow.pop %v6254
      %v6256 = vmul.f32 %v6028, 1.442695
      %v6257 = vpow.pop %v6256
      %v6258 = vmul.f32 %v6029, 1.442695
      %v6259 = vpow.pop %v6258
      %v6260 = vmul.f32 %v6030, 1.442695
      %v6261 = vpow.pop %v6260
      %v6262 = vmul.f32 %v6031, 1.442695
      %v6263 = vpow.pop %v6262
      %v6264 = vmul.f32 %v6032, 1.442695
      %v6265 = vpow.pop %v6264
      %v6266 = vmul.f32 %v6033, 1.442695
      %v6267 = vpow.pop %v6266
      %v6268 = vmul.f32 %v6034, 1.442695
      %v6269 = vpow.pop %v6268
      %v6270 = vmul.f32 %v6035, 1.442695
      %v6271 = vpow.pop %v6270
      %v6272 = vmul.f32 %v6036, 1.442695
      %v6273 = vpow.pop %v6272
      %v6274 = vmul.f32 %v6037, 1.442695
      %v6275 = vpow.pop %v6274
      %v6276 = vmul.f32 %v6038, 1.442695
      %v6277 = vpow.pop %v6276
      %v6278 = vmul.f32 %v6039, 1.442695
      %v6279 = vpow.pop %v6278
      %v6280 = vmul.f32 %v6040, 1.442695
      %v6281 = vpow.pop %v6280
      %v6282 = vmul.f32 %v6041, 1.442695
      %v6283 = vpow.pop %v6282
      %v6284 = vmul.f32 %v6042, 1.442695
      %v6285 = vpow.pop %v6284
      %v6286 = vmul.f32 %v6043, 1.442695
      %v6287 = vpow.pop %v6286
      %v6288 = vmul.f32 %v6044, 1.442695
      %v6289 = vpow.pop %v6288
      %v6290 = vmul.f32 %v6045, 1.442695
      %v6291 = vpow.pop %v6290
      %v6292 = vmul.f32 %v6046, 1.442695
      %v6293 = vpow.pop %v6292
      %v6294 = vmul.f32 %v6047, 1.442695
      %v6295 = vpow.pop %v6294
      %v6296 = vmul.f32 %v6048, 1.442695
      %v6297 = vpow.pop %v6296
      %v6298 = vmul.f32 %v6049, 1.442695
      %v6299 = vpow.pop %v6298
      %v6300 = vmul.f32 %v6050, 1.442695
      %v6301 = vpow.pop %v6300
      %v6302 = vmul.f32 %v6051, 1.442695
      %v6303 = vpow.pop %v6302
      %v6304 = vmul.f32 %v6052, 1.442695
      %v6305 = vpow.pop %v6304
      %v6306 = vmul.f32 %v6053, 1.442695
      %v6307 = vpow.pop %v6306
      %v6308 = vmul.f32 %v6054, 1.442695
      %v6309 = vpow.pop %v6308
      %v6310 = vmul.f32 %v6055, 1.442695
      %v6311 = vpow.pop %v6310
      %v6312 = vadd.f32 %v6057, 1.0
      %v6313 = vlog2.pop %v6312
      %v6314 = vmul.f32 %v6313, 0.6931472
      %v6315 = vmul.f32 -0.5, %v6057
      %v6316 = vadd.f32 %v6315, 1.0
      %v6317 = vmul.f32 %v6316, %v6057
      %v6318 = vand.u32 2147483647, %v6057
      %vm6319 = vcmp.lt.f32.partialorder %v6318, 0.0004427343
      %v6320 = vsel %vm6319, %v6317, %v6314
      %v6321 = vadd.f32 %v6059, 1.0
      %v6322 = vlog2.pop %v6321
      %v6323 = vmul.f32 %v6322, 0.6931472
      %v6324 = vmul.f32 -0.5, %v6059
      %v6325 = vadd.f32 %v6324, 1.0
      %v6326 = vmul.f32 %v6325, %v6059
      %v6327 = vand.u32 2147483647, %v6059
      %vm6328 = vcmp.lt.f32.partialorder %v6327, 0.0004427343
      %v6329 = vsel %vm6328, %v6326, %v6323
      %v6330 = vadd.f32 %v6061, 1.0
      %v6331 = vlog2.pop %v6330
      %v6332 = vmul.f32 %v6331, 0.6931472
      %v6333 = vmul.f32 -0.5, %v6061
      %v6334 = vadd.f32 %v6333, 1.0
      %v6335 = vmul.f32 %v6334, %v6061
      %v6336 = vand.u32 2147483647, %v6061
      %vm6337 = vcmp.lt.f32.partialorder %v6336, 0.0004427343
      %v6338 = vsel %vm6337, %v6335, %v6332
      %v6339 = vadd.f32 %v6063, 1.0
      %v6340 = vlog2.pop %v6339
      %v6341 = vmul.f32 %v6340, 0.6931472
      %v6342 = vmul.f32 -0.5, %v6063
      %v6343 = vadd.f32 %v6342, 1.0
      %v6344 = vmul.f32 %v6343, %v6063
      %v6345 = vand.u32 2147483647, %v6063
      %vm6346 = vcmp.lt.f32.partialorder %v6345, 0.0004427343
      %v6347 = vsel %vm6346, %v6344, %v6341
      %v6348 = vadd.f32 %v6065, 1.0
      %v6349 = vlog2.pop %v6348
      %v6350 = vmul.f32 %v6349, 0.6931472
      %v6351 = vmul.f32 -0.5, %v6065
      %v6352 = vadd.f32 %v6351, 1.0
      %v6353 = vmul.f32 %v6352, %v6065
      %v6354 = vand.u32 2147483647, %v6065
      %vm6355 = vcmp.lt.f32.partialorder %v6354, 0.0004427343
      %v6356 = vsel %vm6355, %v6353, %v6350
      %v6357 = vadd.f32 %v6067, 1.0
      %v6358 = vlog2.pop %v6357
      %v6359 = vmul.f32 %v6358, 0.6931472
      %v6360 = vmul.f32 -0.5, %v6067
      %v6361 = vadd.f32 %v6360, 1.0
      %v6362 = vmul.f32 %v6361, %v6067
      %v6363 = vand.u32 2147483647, %v6067
      %vm6364 = vcmp.lt.f32.partialorder %v6363, 0.0004427343
      %v6365 = vsel %vm6364, %v6362, %v6359
      %v6366 = vadd.f32 %v6069, 1.0
      %v6367 = vlog2.pop %v6366
      %v6368 = vmul.f32 %v6367, 0.6931472
      %v6369 = vmul.f32 -0.5, %v6069
      %v6370 = vadd.f32 %v6369, 1.0
      %v6371 = vmul.f32 %v6370, %v6069
      %v6372 = vand.u32 2147483647, %v6069
      %vm6373 = vcmp.lt.f32.partialorder %v6372, 0.0004427343
      %v6374 = vsel %vm6373, %v6371, %v6368
      %v6375 = vadd.f32 %v6071, 1.0
      %v6376 = vlog2.pop %v6375
      %v6377 = vmul.f32 %v6376, 0.6931472
      %v6378 = vmul.f32 -0.5, %v6071
      %v6379 = vadd.f32 %v6378, 1.0
      %v6380 = vmul.f32 %v6379, %v6071
      %v6381 = vand.u32 2147483647, %v6071
      %vm6382 = vcmp.lt.f32.partialorder %v6381, 0.0004427343
      %v6383 = vsel %vm6382, %v6380, %v6377
      %v6384 = vadd.f32 %v6073, 1.0
      %v6385 = vlog2.pop %v6384
      %v6386 = vmul.f32 %v6385, 0.6931472
      %v6387 = vmul.f32 -0.5, %v6073
      %v6388 = vadd.f32 %v6387, 1.0
      %v6389 = vmul.f32 %v6388, %v6073
      %v6390 = vand.u32 2147483647, %v6073
      %vm6391 = vcmp.lt.f32.partialorder %v6390, 0.0004427343
      %v6392 = vsel %vm6391, %v6389, %v6386
      %v6393 = vadd.f32 %v6075, 1.0
      %v6394 = vlog2.pop %v6393
      %v6395 = vmul.f32 %v6394, 0.6931472
      %v6396 = vmul.f32 -0.5, %v6075
      %v6397 = vadd.f32 %v6396, 1.0
      %v6398 = vmul.f32 %v6397, %v6075
      %v6399 = vand.u32 2147483647, %v6075
      %vm6400 = vcmp.lt.f32.partialorder %v6399, 0.0004427343
      %v6401 = vsel %vm6400, %v6398, %v6395
      %v6402 = vadd.f32 %v6077, 1.0
      %v6403 = vlog2.pop %v6402
      %v6404 = vmul.f32 %v6403, 0.6931472
      %v6405 = vmul.f32 -0.5, %v6077
      %v6406 = vadd.f32 %v6405, 1.0
      %v6407 = vmul.f32 %v6406, %v6077
      %v6408 = vand.u32 2147483647, %v6077
      %vm6409 = vcmp.lt.f32.partialorder %v6408, 0.0004427343
      %v6410 = vsel %vm6409, %v6407, %v6404
      %v6411 = vadd.f32 %v6079, 1.0
      %v6412 = vlog2.pop %v6411
      %v6413 = vmul.f32 %v6412, 0.6931472
      %v6414 = vmul.f32 -0.5, %v6079
      %v6415 = vadd.f32 %v6414, 1.0
      %v6416 = vmul.f32 %v6415, %v6079
      %v6417 = vand.u32 2147483647, %v6079
      %vm6418 = vcmp.lt.f32.partialorder %v6417, 0.0004427343
      %v6419 = vsel %vm6418, %v6416, %v6413
      %v6420 = vadd.f32 %v6081, 1.0
      %v6421 = vlog2.pop %v6420
      %v6422 = vmul.f32 %v6421, 0.6931472
      %v6423 = vmul.f32 -0.5, %v6081
      %v6424 = vadd.f32 %v6423, 1.0
      %v6425 = vmul.f32 %v6424, %v6081
      %v6426 = vand.u32 2147483647, %v6081
      %vm6427 = vcmp.lt.f32.partialorder %v6426, 0.0004427343
      %v6428 = vsel %vm6427, %v6425, %v6422
      %v6429 = vadd.f32 %v6083, 1.0
      %v6430 = vlog2.pop %v6429
      %v6431 = vmul.f32 %v6430, 0.6931472
      %v6432 = vmul.f32 -0.5, %v6083
      %v6433 = vadd.f32 %v6432, 1.0
      %v6434 = vmul.f32 %v6433, %v6083
      %v6435 = vand.u32 2147483647, %v6083
      %vm6436 = vcmp.lt.f32.partialorder %v6435, 0.0004427343
      %v6437 = vsel %vm6436, %v6434, %v6431
      %v6438 = vadd.f32 %v6085, 1.0
      %v6439 = vlog2.pop %v6438
      %v6440 = vmul.f32 %v6439, 0.6931472
      %v6441 = vmul.f32 -0.5, %v6085
      %v6442 = vadd.f32 %v6441, 1.0
      %v6443 = vmul.f32 %v6442, %v6085
      %v6444 = vand.u32 2147483647, %v6085
      %vm6445 = vcmp.lt.f32.partialorder %v6444, 0.0004427343
      %v6446 = vsel %vm6445, %v6443, %v6440
      %v6447 = vadd.f32 %v6087, 1.0
      %v6448 = vlog2.pop %v6447
      %v6449 = vmul.f32 %v6448, 0.6931472
      %v6450 = vmul.f32 -0.5, %v6087
      %v6451 = vadd.f32 %v6450, 1.0
      %v6452 = vmul.f32 %v6451, %v6087
      %v6453 = vand.u32 2147483647, %v6087
      %vm6454 = vcmp.lt.f32.partialorder %v6453, 0.0004427343
      %v6455 = vsel %vm6454, %v6452, %v6449
      %v6456 = vadd.f32 %v6089, 1.0
      %v6457 = vlog2.pop %v6456
      %v6458 = vmul.f32 %v6457, 0.6931472
      %v6459 = vmul.f32 -0.5, %v6089
      %v6460 = vadd.f32 %v6459, 1.0
      %v6461 = vmul.f32 %v6460, %v6089
      %v6462 = vand.u32 2147483647, %v6089
      %vm6463 = vcmp.lt.f32.partialorder %v6462, 0.0004427343
      %v6464 = vsel %vm6463, %v6461, %v6458
      %v6465 = vadd.f32 %v6091, 1.0
      %v6466 = vlog2.pop %v6465
      %v6467 = vmul.f32 %v6466, 0.6931472
      %v6468 = vmul.f32 -0.5, %v6091
      %v6469 = vadd.f32 %v6468, 1.0
      %v6470 = vmul.f32 %v6469, %v6091
      %v6471 = vand.u32 2147483647, %v6091
      %vm6472 = vcmp.lt.f32.partialorder %v6471, 0.0004427343
      %v6473 = vsel %vm6472, %v6470, %v6467
      %v6474 = vadd.f32 %v6093, 1.0
      %v6475 = vlog2.pop %v6474
      %v6476 = vmul.f32 %v6475, 0.6931472
      %v6477 = vmul.f32 -0.5, %v6093
      %v6478 = vadd.f32 %v6477, 1.0
      %v6479 = vmul.f32 %v6478, %v6093
      %v6480 = vand.u32 2147483647, %v6093
      %vm6481 = vcmp.lt.f32.partialorder %v6480, 0.0004427343
      %v6482 = vsel %vm6481, %v6479, %v6476
      %v6483 = vadd.f32 %v6095, 1.0
      %v6484 = vlog2.pop %v6483
      %v6485 = vmul.f32 %v6484, 0.6931472
      %v6486 = vmul.f32 -0.5, %v6095
      %v6487 = vadd.f32 %v6486, 1.0
      %v6488 = vmul.f32 %v6487, %v6095
      %v6489 = vand.u32 2147483647, %v6095
      %vm6490 = vcmp.lt.f32.partialorder %v6489, 0.0004427343
      %v6491 = vsel %vm6490, %v6488, %v6485
      %v6492 = vadd.f32 %v6097, 1.0
      %v6493 = vlog2.pop %v6492
      %v6494 = vmul.f32 %v6493, 0.6931472
      %v6495 = vmul.f32 -0.5, %v6097
      %v6496 = vadd.f32 %v6495, 1.0
      %v6497 = vmul.f32 %v6496, %v6097
      %v6498 = vand.u32 2147483647, %v6097
      %vm6499 = vcmp.lt.f32.partialorder %v6498, 0.0004427343
      %v6500 = vsel %vm6499, %v6497, %v6494
      %v6501 = vadd.f32 %v6099, 1.0
      %v6502 = vlog2.pop %v6501
      %v6503 = vmul.f32 %v6502, 0.6931472
      %v6504 = vmul.f32 -0.5, %v6099
      %v6505 = vadd.f32 %v6504, 1.0
      %v6506 = vmul.f32 %v6505, %v6099
      %v6507 = vand.u32 2147483647, %v6099
      %vm6508 = vcmp.lt.f32.partialorder %v6507, 0.0004427343
      %v6509 = vsel %vm6508, %v6506, %v6503
      %v6510 = vadd.f32 %v6101, 1.0
      %v6511 = vlog2.pop %v6510
      %v6512 = vmul.f32 %v6511, 0.6931472
      %v6513 = vmul.f32 -0.5, %v6101
      %v6514 = vadd.f32 %v6513, 1.0
      %v6515 = vmul.f32 %v6514, %v6101
      %v6516 = vand.u32 2147483647, %v6101
      %vm6517 = vcmp.lt.f32.partialorder %v6516, 0.0004427343
      %v6518 = vsel %vm6517, %v6515, %v6512
      %v6519 = vadd.f32 %v6103, 1.0
      %v6520 = vlog2.pop %v6519
      %v6521 = vmul.f32 %v6520, 0.6931472
      %v6522 = vmul.f32 -0.5, %v6103
      %v6523 = vadd.f32 %v6522, 1.0
      %v6524 = vmul.f32 %v6523, %v6103
      %v6525 = vand.u32 2147483647, %v6103
      %vm6526 = vcmp.lt.f32.partialorder %v6525, 0.0004427343
      %v6527 = vsel %vm6526, %v6524, %v6521
      %v6528 = vadd.f32 %v6105, 1.0
      %v6529 = vlog2.pop %v6528
      %v6530 = vmul.f32 %v6529, 0.6931472
      %v6531 = vmul.f32 -0.5, %v6105
      %v6532 = vadd.f32 %v6531, 1.0
      %v6533 = vmul.f32 %v6532, %v6105
      %v6534 = vand.u32 2147483647, %v6105
      %vm6535 = vcmp.lt.f32.partialorder %v6534, 0.0004427343
      %v6536 = vsel %vm6535, %v6533, %v6530
      %v6537 = vadd.f32 %v6107, 1.0
      %v6538 = vlog2.pop %v6537
      %v6539 = vmul.f32 %v6538, 0.6931472
      %v6540 = vmul.f32 -0.5, %v6107
      %v6541 = vadd.f32 %v6540, 1.0
      %v6542 = vmul.f32 %v6541, %v6107
      %v6543 = vand.u32 2147483647, %v6107
      %vm6544 = vcmp.lt.f32.partialorder %v6543, 0.0004427343
      %v6545 = vsel %vm6544, %v6542, %v6539
      %v6546 = vadd.f32 %v6109, 1.0
      %v6547 = vlog2.pop %v6546
      %v6548 = vmul.f32 %v6547, 0.6931472
      %v6549 = vmul.f32 -0.5, %v6109
      %v6550 = vadd.f32 %v6549, 1.0
      %v6551 = vmul.f32 %v6550, %v6109
      %v6552 = vand.u32 2147483647, %v6109
      %vm6553 = vcmp.lt.f32.partialorder %v6552, 0.0004427343
      %v6554 = vsel %vm6553, %v6551, %v6548
      %v6555 = vadd.f32 %v6111, 1.0
      %v6556 = vlog2.pop %v6555
      %v6557 = vmul.f32 %v6556, 0.6931472
      %v6558 = vmul.f32 -0.5, %v6111
      %v6559 = vadd.f32 %v6558, 1.0
      %v6560 = vmul.f32 %v6559, %v6111
      %v6561 = vand.u32 2147483647, %v6111
      %vm6562 = vcmp.lt.f32.partialorder %v6561, 0.0004427343
      %v6563 = vsel %vm6562, %v6560, %v6557
      %v6564 = vadd.f32 %v6113, 1.0
      %v6565 = vlog2.pop %v6564
      %v6566 = vmul.f32 %v6565, 0.6931472
      %v6567 = vmul.f32 -0.5, %v6113
      %v6568 = vadd.f32 %v6567, 1.0
      %v6569 = vmul.f32 %v6568, %v6113
      %v6570 = vand.u32 2147483647, %v6113
      %vm6571 = vcmp.lt.f32.partialorder %v6570, 0.0004427343
      %v6572 = vsel %vm6571, %v6569, %v6566
      %v6573 = vadd.f32 %v6115, 1.0
      %v6574 = vlog2.pop %v6573
      %v6575 = vmul.f32 %v6574, 0.6931472
      %v6576 = vmul.f32 -0.5, %v6115
      %v6577 = vadd.f32 %v6576, 1.0
      %v6578 = vmul.f32 %v6577, %v6115
      %v6579 = vand.u32 2147483647, %v6115
      %vm6580 = vcmp.lt.f32.partialorder %v6579, 0.0004427343
      %v6581 = vsel %vm6580, %v6578, %v6575
      %v6582 = vadd.f32 %v6117, 1.0
      %v6583 = vlog2.pop %v6582
      %v6584 = vmul.f32 %v6583, 0.6931472
      %v6585 = vmul.f32 -0.5, %v6117
      %v6586 = vadd.f32 %v6585, 1.0
      %v6587 = vmul.f32 %v6586, %v6117
      %v6588 = vand.u32 2147483647, %v6117
      %vm6589 = vcmp.lt.f32.partialorder %v6588, 0.0004427343
      %v6590 = vsel %vm6589, %v6587, %v6584
      %v6591 = vadd.f32 %v6119, 1.0
      %v6592 = vlog2.pop %v6591
      %v6593 = vmul.f32 %v6592, 0.6931472
      %v6594 = vmul.f32 -0.5, %v6119
      %v6595 = vadd.f32 %v6594, 1.0
      %v6596 = vmul.f32 %v6595, %v6119
      %v6597 = vand.u32 2147483647, %v6119
      %vm6598 = vcmp.lt.f32.partialorder %v6597, 0.0004427343
      %v6599 = vsel %vm6598, %v6596, %v6593
      %v6600 = vadd.f32 %v6121, 1.0
      %v6601 = vlog2.pop %v6600
      %v6602 = vmul.f32 %v6601, 0.6931472
      %v6603 = vmul.f32 -0.5, %v6121
      %v6604 = vadd.f32 %v6603, 1.0
      %v6605 = vmul.f32 %v6604, %v6121
      %v6606 = vand.u32 2147483647, %v6121
      %vm6607 = vcmp.lt.f32.partialorder %v6606, 0.0004427343
      %v6608 = vsel %vm6607, %v6605, %v6602
      %v6609 = vadd.f32 %v6123, 1.0
      %v6610 = vlog2.pop %v6609
      %v6611 = vmul.f32 %v6610, 0.6931472
      %v6612 = vmul.f32 -0.5, %v6123
      %v6613 = vadd.f32 %v6612, 1.0
      %v6614 = vmul.f32 %v6613, %v6123
      %v6615 = vand.u32 2147483647, %v6123
      %vm6616 = vcmp.lt.f32.partialorder %v6615, 0.0004427343
      %v6617 = vsel %vm6616, %v6614, %v6611
      %v6618 = vadd.f32 %v6125, 1.0
      %v6619 = vlog2.pop %v6618
      %v6620 = vmul.f32 %v6619, 0.6931472
      %v6621 = vmul.f32 -0.5, %v6125
      %v6622 = vadd.f32 %v6621, 1.0
      %v6623 = vmul.f32 %v6622, %v6125
      %v6624 = vand.u32 2147483647, %v6125
      %vm6625 = vcmp.lt.f32.partialorder %v6624, 0.0004427343
      %v6626 = vsel %vm6625, %v6623, %v6620
      %v6627 = vadd.f32 %v6127, 1.0
      %v6628 = vlog2.pop %v6627
      %v6629 = vmul.f32 %v6628, 0.6931472
      %v6630 = vmul.f32 -0.5, %v6127
      %v6631 = vadd.f32 %v6630, 1.0
      %v6632 = vmul.f32 %v6631, %v6127
      %v6633 = vand.u32 2147483647, %v6127
      %vm6634 = vcmp.lt.f32.partialorder %v6633, 0.0004427343
      %v6635 = vsel %vm6634, %v6632, %v6629
      %v6636 = vadd.f32 %v6129, 1.0
      %v6637 = vlog2.pop %v6636
      %v6638 = vmul.f32 %v6637, 0.6931472
      %v6639 = vmul.f32 -0.5, %v6129
      %v6640 = vadd.f32 %v6639, 1.0
      %v6641 = vmul.f32 %v6640, %v6129
      %v6642 = vand.u32 2147483647, %v6129
      %vm6643 = vcmp.lt.f32.partialorder %v6642, 0.0004427343
      %v6644 = vsel %vm6643, %v6641, %v6638
      %v6645 = vadd.f32 %v6131, 1.0
      %v6646 = vlog2.pop %v6645
      %v6647 = vmul.f32 %v6646, 0.6931472
      %v6648 = vmul.f32 -0.5, %v6131
      %v6649 = vadd.f32 %v6648, 1.0
      %v6650 = vmul.f32 %v6649, %v6131
      %v6651 = vand.u32 2147483647, %v6131
      %vm6652 = vcmp.lt.f32.partialorder %v6651, 0.0004427343
      %v6653 = vsel %vm6652, %v6650, %v6647
      %v6654 = vadd.f32 %v6133, 1.0
      %v6655 = vlog2.pop %v6654
      %v6656 = vmul.f32 %v6655, 0.6931472
      %v6657 = vmul.f32 -0.5, %v6133
      %v6658 = vadd.f32 %v6657, 1.0
      %v6659 = vmul.f32 %v6658, %v6133
      %v6660 = vand.u32 2147483647, %v6133
      %vm6661 = vcmp.lt.f32.partialorder %v6660, 0.0004427343
      %v6662 = vsel %vm6661, %v6659, %v6656
      %v6663 = vadd.f32 %v6135, 1.0
      %v6664 = vlog2.pop %v6663
      %v6665 = vmul.f32 %v6664, 0.6931472
      %v6666 = vmul.f32 -0.5, %v6135
      %v6667 = vadd.f32 %v6666, 1.0
      %v6668 = vmul.f32 %v6667, %v6135
      %v6669 = vand.u32 2147483647, %v6135
      %vm6670 = vcmp.lt.f32.partialorder %v6669, 0.0004427343
      %v6671 = vsel %vm6670, %v6668, %v6665
      %v6672 = vadd.f32 %v6137, 1.0
      %v6673 = vlog2.pop %v6672
      %v6674 = vmul.f32 %v6673, 0.6931472
      %v6675 = vmul.f32 -0.5, %v6137
      %v6676 = vadd.f32 %v6675, 1.0
      %v6677 = vmul.f32 %v6676, %v6137
      %v6678 = vand.u32 2147483647, %v6137
      %vm6679 = vcmp.lt.f32.partialorder %v6678, 0.0004427343
      %v6680 = vsel %vm6679, %v6677, %v6674
      %v6681 = vadd.f32 %v6139, 1.0
      %v6682 = vlog2.pop %v6681
      %v6683 = vmul.f32 %v6682, 0.6931472
      %v6684 = vmul.f32 -0.5, %v6139
      %v6685 = vadd.f32 %v6684, 1.0
      %v6686 = vmul.f32 %v6685, %v6139
      %v6687 = vand.u32 2147483647, %v6139
      %vm6688 = vcmp.lt.f32.partialorder %v6687, 0.0004427343
      %v6689 = vsel %vm6688, %v6686, %v6683
      %v6690 = vadd.f32 %v6141, 1.0
      %v6691 = vlog2.pop %v6690
      %v6692 = vmul.f32 %v6691, 0.6931472
      %v6693 = vmul.f32 -0.5, %v6141
      %v6694 = vadd.f32 %v6693, 1.0
      %v6695 = vmul.f32 %v6694, %v6141
      %v6696 = vand.u32 2147483647, %v6141
      %vm6697 = vcmp.lt.f32.partialorder %v6696, 0.0004427343
      %v6698 = vsel %vm6697, %v6695, %v6692
      %v6699 = vadd.f32 %v6143, 1.0
      %v6700 = vlog2.pop %v6699
      %v6701 = vmul.f32 %v6700, 0.6931472
      %v6702 = vmul.f32 -0.5, %v6143
      %v6703 = vadd.f32 %v6702, 1.0
      %v6704 = vmul.f32 %v6703, %v6143
      %v6705 = vand.u32 2147483647, %v6143
      %vm6706 = vcmp.lt.f32.partialorder %v6705, 0.0004427343
      %v6707 = vsel %vm6706, %v6704, %v6701
      %v6708 = vadd.f32 %v6145, 1.0
      %v6709 = vlog2.pop %v6708
      %v6710 = vmul.f32 %v6709, 0.6931472
      %v6711 = vmul.f32 -0.5, %v6145
      %v6712 = vadd.f32 %v6711, 1.0
      %v6713 = vmul.f32 %v6712, %v6145
      %v6714 = vand.u32 2147483647, %v6145
      %vm6715 = vcmp.lt.f32.partialorder %v6714, 0.0004427343
      %v6716 = vsel %vm6715, %v6713, %v6710
      %v6717 = vadd.f32 %v6147, 1.0
      %v6718 = vlog2.pop %v6717
      %v6719 = vmul.f32 %v6718, 0.6931472
      %v6720 = vmul.f32 -0.5, %v6147
      %v6721 = vadd.f32 %v6720, 1.0
      %v6722 = vmul.f32 %v6721, %v6147
      %v6723 = vand.u32 2147483647, %v6147
      %vm6724 = vcmp.lt.f32.partialorder %v6723, 0.0004427343
      %v6725 = vsel %vm6724, %v6722, %v6719
      %v6726 = vadd.f32 %v6149, 1.0
      %v6727 = vlog2.pop %v6726
      %v6728 = vmul.f32 %v6727, 0.6931472
      %v6729 = vmul.f32 -0.5, %v6149
      %v6730 = vadd.f32 %v6729, 1.0
      %v6731 = vmul.f32 %v6730, %v6149
      %v6732 = vand.u32 2147483647, %v6149
      %vm6733 = vcmp.lt.f32.partialorder %v6732, 0.0004427343
      %v6734 = vsel %vm6733, %v6731, %v6728
      %v6735 = vadd.f32 %v6151, 1.0
      %v6736 = vlog2.pop %v6735
      %v6737 = vmul.f32 %v6736, 0.6931472
      %v6738 = vmul.f32 -0.5, %v6151
      %v6739 = vadd.f32 %v6738, 1.0
      %v6740 = vmul.f32 %v6739, %v6151
      %v6741 = vand.u32 2147483647, %v6151
      %vm6742 = vcmp.lt.f32.partialorder %v6741, 0.0004427343
      %v6743 = vsel %vm6742, %v6740, %v6737
      %v6744 = vadd.f32 %v6153, 1.0
      %v6745 = vlog2.pop %v6744
      %v6746 = vmul.f32 %v6745, 0.6931472
      %v6747 = vmul.f32 -0.5, %v6153
      %v6748 = vadd.f32 %v6747, 1.0
      %v6749 = vmul.f32 %v6748, %v6153
      %v6750 = vand.u32 2147483647, %v6153
      %vm6751 = vcmp.lt.f32.partialorder %v6750, 0.0004427343
      %v6752 = vsel %vm6751, %v6749, %v6746
      %v6753 = vadd.f32 %v6155, 1.0
      %v6754 = vlog2.pop %v6753
      %v6755 = vmul.f32 %v6754, 0.6931472
      %v6756 = vmul.f32 -0.5, %v6155
      %v6757 = vadd.f32 %v6756, 1.0
      %v6758 = vmul.f32 %v6757, %v6155
      %v6759 = vand.u32 2147483647, %v6155
      %vm6760 = vcmp.lt.f32.partialorder %v6759, 0.0004427343
      %v6761 = vsel %vm6760, %v6758, %v6755
      %v6762 = vadd.f32 %v6157, 1.0
      %v6763 = vlog2.pop %v6762
      %v6764 = vmul.f32 %v6763, 0.6931472
      %v6765 = vmul.f32 -0.5, %v6157
      %v6766 = vadd.f32 %v6765, 1.0
      %v6767 = vmul.f32 %v6766, %v6157
      %v6768 = vand.u32 2147483647, %v6157
      %vm6769 = vcmp.lt.f32.partialorder %v6768, 0.0004427343
      %v6770 = vsel %vm6769, %v6767, %v6764
      %v6771 = vadd.f32 %v6159, 1.0
      %v6772 = vlog2.pop %v6771
      %v6773 = vmul.f32 %v6772, 0.6931472
      %v6774 = vmul.f32 -0.5, %v6159
      %v6775 = vadd.f32 %v6774, 1.0
      %v6776 = vmul.f32 %v6775, %v6159
      %v6777 = vand.u32 2147483647, %v6159
      %vm6778 = vcmp.lt.f32.partialorder %v6777, 0.0004427343
      %v6779 = vsel %vm6778, %v6776, %v6773
      %v6780 = vadd.f32 %v6161, 1.0
      %v6781 = vlog2.pop %v6780
      %v6782 = vmul.f32 %v6781, 0.6931472
      %v6783 = vmul.f32 -0.5, %v6161
      %v6784 = vadd.f32 %v6783, 1.0
      %v6785 = vmul.f32 %v6784, %v6161
      %v6786 = vand.u32 2147483647, %v6161
      %vm6787 = vcmp.lt.f32.partialorder %v6786, 0.0004427343
      %v6788 = vsel %vm6787, %v6785, %v6782
      %v6789 = vadd.f32 %v6163, 1.0
      %v6790 = vlog2.pop %v6789
      %v6791 = vmul.f32 %v6790, 0.6931472
      %v6792 = vmul.f32 -0.5, %v6163
      %v6793 = vadd.f32 %v6792, 1.0
      %v6794 = vmul.f32 %v6793, %v6163
      %v6795 = vand.u32 2147483647, %v6163
      %vm6796 = vcmp.lt.f32.partialorder %v6795, 0.0004427343
      %v6797 = vsel %vm6796, %v6794, %v6791
      %v6798 = vadd.f32 %v6165, 1.0
      %v6799 = vlog2.pop %v6798
      %v6800 = vmul.f32 %v6799, 0.6931472
      %v6801 = vmul.f32 -0.5, %v6165
      %v6802 = vadd.f32 %v6801, 1.0
      %v6803 = vmul.f32 %v6802, %v6165
      %v6804 = vand.u32 2147483647, %v6165
      %vm6805 = vcmp.lt.f32.partialorder %v6804, 0.0004427343
      %v6806 = vsel %vm6805, %v6803, %v6800
      %v6807 = vadd.f32 %v6167, 1.0
      %v6808 = vlog2.pop %v6807
      %v6809 = vmul.f32 %v6808, 0.6931472
      %v6810 = vmul.f32 -0.5, %v6167
      %v6811 = vadd.f32 %v6810, 1.0
      %v6812 = vmul.f32 %v6811, %v6167
      %v6813 = vand.u32 2147483647, %v6167
      %vm6814 = vcmp.lt.f32.partialorder %v6813, 0.0004427343
      %v6815 = vsel %vm6814, %v6812, %v6809
      %v6816 = vadd.f32 %v6169, 1.0
      %v6817 = vlog2.pop %v6816
      %v6818 = vmul.f32 %v6817, 0.6931472
      %v6819 = vmul.f32 -0.5, %v6169
      %v6820 = vadd.f32 %v6819, 1.0
      %v6821 = vmul.f32 %v6820, %v6169
      %v6822 = vand.u32 2147483647, %v6169
      %vm6823 = vcmp.lt.f32.partialorder %v6822, 0.0004427343
      %v6824 = vsel %vm6823, %v6821, %v6818
      %v6825 = vadd.f32 %v6171, 1.0
      %v6826 = vlog2.pop %v6825
      %v6827 = vmul.f32 %v6826, 0.6931472
      %v6828 = vmul.f32 -0.5, %v6171
      %v6829 = vadd.f32 %v6828, 1.0
      %v6830 = vmul.f32 %v6829, %v6171
      %v6831 = vand.u32 2147483647, %v6171
      %vm6832 = vcmp.lt.f32.partialorder %v6831, 0.0004427343
      %v6833 = vsel %vm6832, %v6830, %v6827
      %v6834 = vadd.f32 %v6173, 1.0
      %v6835 = vlog2.pop %v6834
      %v6836 = vmul.f32 %v6835, 0.6931472
      %v6837 = vmul.f32 -0.5, %v6173
      %v6838 = vadd.f32 %v6837, 1.0
      %v6839 = vmul.f32 %v6838, %v6173
      %v6840 = vand.u32 2147483647, %v6173
      %vm6841 = vcmp.lt.f32.partialorder %v6840, 0.0004427343
      %v6842 = vsel %vm6841, %v6839, %v6836
      %v6843 = vadd.f32 %v6175, 1.0
      %v6844 = vlog2.pop %v6843
      %v6845 = vmul.f32 %v6844, 0.6931472
      %v6846 = vmul.f32 -0.5, %v6175
      %v6847 = vadd.f32 %v6846, 1.0
      %v6848 = vmul.f32 %v6847, %v6175
      %v6849 = vand.u32 2147483647, %v6175
      %vm6850 = vcmp.lt.f32.partialorder %v6849, 0.0004427343
      %v6851 = vsel %vm6850, %v6848, %v6845
      %v6852 = vadd.f32 %v6177, 1.0
      %v6853 = vlog2.pop %v6852
      %v6854 = vmul.f32 %v6853, 0.6931472
      %v6855 = vmul.f32 -0.5, %v6177
      %v6856 = vadd.f32 %v6855, 1.0
      %v6857 = vmul.f32 %v6856, %v6177
      %v6858 = vand.u32 2147483647, %v6177
      %vm6859 = vcmp.lt.f32.partialorder %v6858, 0.0004427343
      %v6860 = vsel %vm6859, %v6857, %v6854
      %v6861 = vadd.f32 %v6179, 1.0
      %v6862 = vlog2.pop %v6861
      %v6863 = vmul.f32 %v6862, 0.6931472
      %v6864 = vmul.f32 -0.5, %v6179
      %v6865 = vadd.f32 %v6864, 1.0
      %v6866 = vmul.f32 %v6865, %v6179
      %v6867 = vand.u32 2147483647, %v6179
      %vm6868 = vcmp.lt.f32.partialorder %v6867, 0.0004427343
      %v6869 = vsel %vm6868, %v6866, %v6863
      %v6870 = vadd.f32 %v6181, 1.0
      %v6871 = vlog2.pop %v6870
      %v6872 = vmul.f32 %v6871, 0.6931472
      %v6873 = vmul.f32 -0.5, %v6181
      %v6874 = vadd.f32 %v6873, 1.0
      %v6875 = vmul.f32 %v6874, %v6181
      %v6876 = vand.u32 2147483647, %v6181
      %vm6877 = vcmp.lt.f32.partialorder %v6876, 0.0004427343
      %v6878 = vsel %vm6877, %v6875, %v6872
      %v6879 = vadd.f32 %v6183, 1.0
      %v6880 = vlog2.pop %v6879
      %v6881 = vmul.f32 %v6880, 0.6931472
      %v6882 = vmul.f32 -0.5, %v6183
      %v6883 = vadd.f32 %v6882, 1.0
      %v6884 = vmul.f32 %v6883, %v6183
      %v6885 = vand.u32 2147483647, %v6183
      %vm6886 = vcmp.lt.f32.partialorder %v6885, 0.0004427343
      %v6887 = vsel %vm6886, %v6884, %v6881
      %v6888 = vadd.f32 %v6185, 1.0
      %v6889 = vlog2.pop %v6888
      %v6890 = vmul.f32 %v6889, 0.6931472
      %v6891 = vmul.f32 -0.5, %v6185
      %v6892 = vadd.f32 %v6891, 1.0
      %v6893 = vmul.f32 %v6892, %v6185
      %v6894 = vand.u32 2147483647, %v6185
      %vm6895 = vcmp.lt.f32.partialorder %v6894, 0.0004427343
      %v6896 = vsel %vm6895, %v6893, %v6890
      %v6897 = vadd.f32 %v6187, 1.0
      %v6898 = vlog2.pop %v6897
      %v6899 = vmul.f32 %v6898, 0.6931472
      %v6900 = vmul.f32 -0.5, %v6187
      %v6901 = vadd.f32 %v6900, 1.0
      %v6902 = vmul.f32 %v6901, %v6187
      %v6903 = vand.u32 2147483647, %v6187
      %vm6904 = vcmp.lt.f32.partialorder %v6903, 0.0004427343
      %v6905 = vsel %vm6904, %v6902, %v6899
      %v6906 = vadd.f32 %v6189, 1.0
      %v6907 = vlog2.pop %v6906
      %v6908 = vmul.f32 %v6907, 0.6931472
      %v6909 = vmul.f32 -0.5, %v6189
      %v6910 = vadd.f32 %v6909, 1.0
      %v6911 = vmul.f32 %v6910, %v6189
      %v6912 = vand.u32 2147483647, %v6189
      %vm6913 = vcmp.lt.f32.partialorder %v6912, 0.0004427343
      %v6914 = vsel %vm6913, %v6911, %v6908
      %v6915 = vadd.f32 %v6191, 1.0
      %v6916 = vlog2.pop %v6915
      %v6917 = vmul.f32 %v6916, 0.6931472
      %v6918 = vmul.f32 -0.5, %v6191
      %v6919 = vadd.f32 %v6918, 1.0
      %v6920 = vmul.f32 %v6919, %v6191
      %v6921 = vand.u32 2147483647, %v6191
      %vm6922 = vcmp.lt.f32.partialorder %v6921, 0.0004427343
      %v6923 = vsel %vm6922, %v6920, %v6917
      %v6924 = vadd.f32 %v6193, 1.0
      %v6925 = vlog2.pop %v6924
      %v6926 = vmul.f32 %v6925, 0.6931472
      %v6927 = vmul.f32 -0.5, %v6193
      %v6928 = vadd.f32 %v6927, 1.0
      %v6929 = vmul.f32 %v6928, %v6193
      %v6930 = vand.u32 2147483647, %v6193
      %vm6931 = vcmp.lt.f32.partialorder %v6930, 0.0004427343
      %v6932 = vsel %vm6931, %v6929, %v6926
      %v6933 = vadd.f32 %v6195, 1.0
      %v6934 = vlog2.pop %v6933
      %v6935 = vmul.f32 %v6934, 0.6931472
      %v6936 = vmul.f32 -0.5, %v6195
      %v6937 = vadd.f32 %v6936, 1.0
      %v6938 = vmul.f32 %v6937, %v6195
      %v6939 = vand.u32 2147483647, %v6195
      %vm6940 = vcmp.lt.f32.partialorder %v6939, 0.0004427343
      %v6941 = vsel %vm6940, %v6938, %v6935
      %v6942 = vadd.f32 %v6197, 1.0
      %v6943 = vlog2.pop %v6942
      %v6944 = vmul.f32 %v6943, 0.6931472
      %v6945 = vmul.f32 -0.5, %v6197
      %v6946 = vadd.f32 %v6945, 1.0
      %v6947 = vmul.f32 %v6946, %v6197
      %v6948 = vand.u32 2147483647, %v6197
      %vm6949 = vcmp.lt.f32.partialorder %v6948, 0.0004427343
      %v6950 = vsel %vm6949, %v6947, %v6944
      %v6951 = vadd.f32 %v6199, 1.0
      %v6952 = vlog2.pop %v6951
      %v6953 = vmul.f32 %v6952, 0.6931472
      %v6954 = vmul.f32 -0.5, %v6199
      %v6955 = vadd.f32 %v6954, 1.0
      %v6956 = vmul.f32 %v6955, %v6199
      %v6957 = vand.u32 2147483647, %v6199
      %vm6958 = vcmp.lt.f32.partialorder %v6957, 0.0004427343
      %v6959 = vsel %vm6958, %v6956, %v6953
      %v6960 = vadd.f32 %v6201, 1.0
      %v6961 = vlog2.pop %v6960
      %v6962 = vmul.f32 %v6961, 0.6931472
      %v6963 = vmul.f32 -0.5, %v6201
      %v6964 = vadd.f32 %v6963, 1.0
      %v6965 = vmul.f32 %v6964, %v6201
      %v6966 = vand.u32 2147483647, %v6201
      %vm6967 = vcmp.lt.f32.partialorder %v6966, 0.0004427343
      %v6968 = vsel %vm6967, %v6965, %v6962
      %v6969 = vadd.f32 %v6203, 1.0
      %v6970 = vlog2.pop %v6969
      %v6971 = vmul.f32 %v6970, 0.6931472
      %v6972 = vmul.f32 -0.5, %v6203
      %v6973 = vadd.f32 %v6972, 1.0
      %v6974 = vmul.f32 %v6973, %v6203
      %v6975 = vand.u32 2147483647, %v6203
      %vm6976 = vcmp.lt.f32.partialorder %v6975, 0.0004427343
      %v6977 = vsel %vm6976, %v6974, %v6971
      %v6978 = vadd.f32 %v6205, 1.0
      %v6979 = vlog2.pop %v6978
      %v6980 = vmul.f32 %v6979, 0.6931472
      %v6981 = vmul.f32 -0.5, %v6205
      %v6982 = vadd.f32 %v6981, 1.0
      %v6983 = vmul.f32 %v6982, %v6205
      %v6984 = vand.u32 2147483647, %v6205
      %vm6985 = vcmp.lt.f32.partialorder %v6984, 0.0004427343
      %v6986 = vsel %vm6985, %v6983, %v6980
      %v6987 = vadd.f32 %v6207, 1.0
      %v6988 = vlog2.pop %v6987
      %v6989 = vmul.f32 %v6988, 0.6931472
      %v6990 = vmul.f32 -0.5, %v6207
      %v6991 = vadd.f32 %v6990, 1.0
      %v6992 = vmul.f32 %v6991, %v6207
      %v6993 = vand.u32 2147483647, %v6207
      %vm6994 = vcmp.lt.f32.partialorder %v6993, 0.0004427343
      %v6995 = vsel %vm6994, %v6992, %v6989
      %v6996 = vadd.f32 %v6209, 1.0
      %v6997 = vlog2.pop %v6996
      %v6998 = vmul.f32 %v6997, 0.6931472
      %v6999 = vmul.f32 -0.5, %v6209
      %v7000 = vadd.f32 %v6999, 1.0
      %v7001 = vmul.f32 %v7000, %v6209
      %v7002 = vand.u32 2147483647, %v6209
      %vm7003 = vcmp.lt.f32.partialorder %v7002, 0.0004427343
      %v7004 = vsel %vm7003, %v7001, %v6998
      %v7005 = vadd.f32 %v6211, 1.0
      %v7006 = vlog2.pop %v7005
      %v7007 = vmul.f32 %v7006, 0.6931472
      %v7008 = vmul.f32 -0.5, %v6211
      %v7009 = vadd.f32 %v7008, 1.0
      %v7010 = vmul.f32 %v7009, %v6211
      %v7011 = vand.u32 2147483647, %v6211
      %vm7012 = vcmp.lt.f32.partialorder %v7011, 0.0004427343
      %v7013 = vsel %vm7012, %v7010, %v7007
      %v7014 = vadd.f32 %v6213, 1.0
      %v7015 = vlog2.pop %v7014
      %v7016 = vmul.f32 %v7015, 0.6931472
      %v7017 = vmul.f32 -0.5, %v6213
      %v7018 = vadd.f32 %v7017, 1.0
      %v7019 = vmul.f32 %v7018, %v6213
      %v7020 = vand.u32 2147483647, %v6213
      %vm7021 = vcmp.lt.f32.partialorder %v7020, 0.0004427343
      %v7022 = vsel %vm7021, %v7019, %v7016
      %v7023 = vadd.f32 %v6215, 1.0
      %v7024 = vlog2.pop %v7023
      %v7025 = vmul.f32 %v7024, 0.6931472
      %v7026 = vmul.f32 -0.5, %v6215
      %v7027 = vadd.f32 %v7026, 1.0
      %v7028 = vmul.f32 %v7027, %v6215
      %v7029 = vand.u32 2147483647, %v6215
      %vm7030 = vcmp.lt.f32.partialorder %v7029, 0.0004427343
      %v7031 = vsel %vm7030, %v7028, %v7025
      %v7032 = vadd.f32 %v6217, 1.0
      %v7033 = vlog2.pop %v7032
      %v7034 = vmul.f32 %v7033, 0.6931472
      %v7035 = vmul.f32 -0.5, %v6217
      %v7036 = vadd.f32 %v7035, 1.0
      %v7037 = vmul.f32 %v7036, %v6217
      %v7038 = vand.u32 2147483647, %v6217
      %vm7039 = vcmp.lt.f32.partialorder %v7038, 0.0004427343
      %v7040 = vsel %vm7039, %v7037, %v7034
      %v7041 = vadd.f32 %v6219, 1.0
      %v7042 = vlog2.pop %v7041
      %v7043 = vmul.f32 %v7042, 0.6931472
      %v7044 = vmul.f32 -0.5, %v6219
      %v7045 = vadd.f32 %v7044, 1.0
      %v7046 = vmul.f32 %v7045, %v6219
      %v7047 = vand.u32 2147483647, %v6219
      %vm7048 = vcmp.lt.f32.partialorder %v7047, 0.0004427343
      %v7049 = vsel %vm7048, %v7046, %v7043
      %v7050 = vadd.f32 %v6221, 1.0
      %v7051 = vlog2.pop %v7050
      %v7052 = vmul.f32 %v7051, 0.6931472
      %v7053 = vmul.f32 -0.5, %v6221
      %v7054 = vadd.f32 %v7053, 1.0
      %v7055 = vmul.f32 %v7054, %v6221
      %v7056 = vand.u32 2147483647, %v6221
      %vm7057 = vcmp.lt.f32.partialorder %v7056, 0.0004427343
      %v7058 = vsel %vm7057, %v7055, %v7052
      %v7059 = vadd.f32 %v6223, 1.0
      %v7060 = vlog2.pop %v7059
      %v7061 = vmul.f32 %v7060, 0.6931472
      %v7062 = vmul.f32 -0.5, %v6223
      %v7063 = vadd.f32 %v7062, 1.0
      %v7064 = vmul.f32 %v7063, %v6223
      %v7065 = vand.u32 2147483647, %v6223
      %vm7066 = vcmp.lt.f32.partialorder %v7065, 0.0004427343
      %v7067 = vsel %vm7066, %v7064, %v7061
      %v7068 = vadd.f32 %v6225, 1.0
      %v7069 = vlog2.pop %v7068
      %v7070 = vmul.f32 %v7069, 0.6931472
      %v7071 = vmul.f32 -0.5, %v6225
      %v7072 = vadd.f32 %v7071, 1.0
      %v7073 = vmul.f32 %v7072, %v6225
      %v7074 = vand.u32 2147483647, %v6225
      %vm7075 = vcmp.lt.f32.partialorder %v7074, 0.0004427343
      %v7076 = vsel %vm7075, %v7073, %v7070
      %v7077 = vadd.f32 %v6227, 1.0
      %v7078 = vlog2.pop %v7077
      %v7079 = vmul.f32 %v7078, 0.6931472
      %v7080 = vmul.f32 -0.5, %v6227
      %v7081 = vadd.f32 %v7080, 1.0
      %v7082 = vmul.f32 %v7081, %v6227
      %v7083 = vand.u32 2147483647, %v6227
      %vm7084 = vcmp.lt.f32.partialorder %v7083, 0.0004427343
      %v7085 = vsel %vm7084, %v7082, %v7079
      %v7086 = vadd.f32 %v6229, 1.0
      %v7087 = vlog2.pop %v7086
      %v7088 = vmul.f32 %v7087, 0.6931472
      %v7089 = vmul.f32 -0.5, %v6229
      %v7090 = vadd.f32 %v7089, 1.0
      %v7091 = vmul.f32 %v7090, %v6229
      %v7092 = vand.u32 2147483647, %v6229
      %vm7093 = vcmp.lt.f32.partialorder %v7092, 0.0004427343
      %v7094 = vsel %vm7093, %v7091, %v7088
      %v7095 = vadd.f32 %v6231, 1.0
      %v7096 = vlog2.pop %v7095
      %v7097 = vmul.f32 %v7096, 0.6931472
      %v7098 = vmul.f32 -0.5, %v6231
      %v7099 = vadd.f32 %v7098, 1.0
      %v7100 = vmul.f32 %v7099, %v6231
      %v7101 = vand.u32 2147483647, %v6231
      %vm7102 = vcmp.lt.f32.partialorder %v7101, 0.0004427343
      %v7103 = vsel %vm7102, %v7100, %v7097
      %v7104 = vadd.f32 %v6233, 1.0
      %v7105 = vlog2.pop %v7104
      %v7106 = vmul.f32 %v7105, 0.6931472
      %v7107 = vmul.f32 -0.5, %v6233
      %v7108 = vadd.f32 %v7107, 1.0
      %v7109 = vmul.f32 %v7108, %v6233
      %v7110 = vand.u32 2147483647, %v6233
      %vm7111 = vcmp.lt.f32.partialorder %v7110, 0.0004427343
      %v7112 = vsel %vm7111, %v7109, %v7106
      %v7113 = vadd.f32 %v6235, 1.0
      %v7114 = vlog2.pop %v7113
      %v7115 = vmul.f32 %v7114, 0.6931472
      %v7116 = vmul.f32 -0.5, %v6235
      %v7117 = vadd.f32 %v7116, 1.0
      %v7118 = vmul.f32 %v7117, %v6235
      %v7119 = vand.u32 2147483647, %v6235
      %vm7120 = vcmp.lt.f32.partialorder %v7119, 0.0004427343
      %v7121 = vsel %vm7120, %v7118, %v7115
      %v7122 = vadd.f32 %v6237, 1.0
      %v7123 = vlog2.pop %v7122
      %v7124 = vmul.f32 %v7123, 0.6931472
      %v7125 = vmul.f32 -0.5, %v6237
      %v7126 = vadd.f32 %v7125, 1.0
      %v7127 = vmul.f32 %v7126, %v6237
      %v7128 = vand.u32 2147483647, %v6237
      %vm7129 = vcmp.lt.f32.partialorder %v7128, 0.0004427343
      %v7130 = vsel %vm7129, %v7127, %v7124
      %v7131 = vadd.f32 %v6239, 1.0
      %v7132 = vlog2.pop %v7131
      %v7133 = vmul.f32 %v7132, 0.6931472
      %v7134 = vmul.f32 -0.5, %v6239
      %v7135 = vadd.f32 %v7134, 1.0
      %v7136 = vmul.f32 %v7135, %v6239
      %v7137 = vand.u32 2147483647, %v6239
      %vm7138 = vcmp.lt.f32.partialorder %v7137, 0.0004427343
      %v7139 = vsel %vm7138, %v7136, %v7133
      %v7140 = vadd.f32 %v6241, 1.0
      %v7141 = vlog2.pop %v7140
      %v7142 = vmul.f32 %v7141, 0.6931472
      %v7143 = vmul.f32 -0.5, %v6241
      %v7144 = vadd.f32 %v7143, 1.0
      %v7145 = vmul.f32 %v7144, %v6241
      %v7146 = vand.u32 2147483647, %v6241
      %vm7147 = vcmp.lt.f32.partialorder %v7146, 0.0004427343
      %v7148 = vsel %vm7147, %v7145, %v7142
      %v7149 = vadd.f32 %v6243, 1.0
      %v7150 = vlog2.pop %v7149
      %v7151 = vmul.f32 %v7150, 0.6931472
      %v7152 = vmul.f32 -0.5, %v6243
      %v7153 = vadd.f32 %v7152, 1.0
      %v7154 = vmul.f32 %v7153, %v6243
      %v7155 = vand.u32 2147483647, %v6243
      %vm7156 = vcmp.lt.f32.partialorder %v7155, 0.0004427343
      %v7157 = vsel %vm7156, %v7154, %v7151
      %v7158 = vadd.f32 %v6245, 1.0
      %v7159 = vlog2.pop %v7158
      %v7160 = vmul.f32 %v7159, 0.6931472
      %v7161 = vmul.f32 -0.5, %v6245
      %v7162 = vadd.f32 %v7161, 1.0
      %v7163 = vmul.f32 %v7162, %v6245
      %v7164 = vand.u32 2147483647, %v6245
      %vm7165 = vcmp.lt.f32.partialorder %v7164, 0.0004427343
      %v7166 = vsel %vm7165, %v7163, %v7160
      %v7167 = vadd.f32 %v6247, 1.0
      %v7168 = vlog2.pop %v7167
      %v7169 = vmul.f32 %v7168, 0.6931472
      %v7170 = vmul.f32 -0.5, %v6247
      %v7171 = vadd.f32 %v7170, 1.0
      %v7172 = vmul.f32 %v7171, %v6247
      %v7173 = vand.u32 2147483647, %v6247
      %vm7174 = vcmp.lt.f32.partialorder %v7173, 0.0004427343
      %v7175 = vsel %vm7174, %v7172, %v7169
      %v7176 = vadd.f32 %v6249, 1.0
      %v7177 = vlog2.pop %v7176
      %v7178 = vmul.f32 %v7177, 0.6931472
      %v7179 = vmul.f32 -0.5, %v6249
      %v7180 = vadd.f32 %v7179, 1.0
      %v7181 = vmul.f32 %v7180, %v6249
      %v7182 = vand.u32 2147483647, %v6249
      %vm7183 = vcmp.lt.f32.partialorder %v7182, 0.0004427343
      %v7184 = vsel %vm7183, %v7181, %v7178
      %v7185 = vadd.f32 %v6251, 1.0
      %v7186 = vlog2.pop %v7185
      %v7187 = vmul.f32 %v7186, 0.6931472
      %v7188 = vmul.f32 -0.5, %v6251
      %v7189 = vadd.f32 %v7188, 1.0
      %v7190 = vmul.f32 %v7189, %v6251
      %v7191 = vand.u32 2147483647, %v6251
      %vm7192 = vcmp.lt.f32.partialorder %v7191, 0.0004427343
      %v7193 = vsel %vm7192, %v7190, %v7187
      %v7194 = vadd.f32 %v6253, 1.0
      %v7195 = vlog2.pop %v7194
      %v7196 = vmul.f32 %v7195, 0.6931472
      %v7197 = vmul.f32 -0.5, %v6253
      %v7198 = vadd.f32 %v7197, 1.0
      %v7199 = vmul.f32 %v7198, %v6253
      %v7200 = vand.u32 2147483647, %v6253
      %vm7201 = vcmp.lt.f32.partialorder %v7200, 0.0004427343
      %v7202 = vsel %vm7201, %v7199, %v7196
      %v7203 = vadd.f32 %v6255, 1.0
      %v7204 = vlog2.pop %v7203
      %v7205 = vmul.f32 %v7204, 0.6931472
      %v7206 = vmul.f32 -0.5, %v6255
      %v7207 = vadd.f32 %v7206, 1.0
      %v7208 = vmul.f32 %v7207, %v6255
      %v7209 = vand.u32 2147483647, %v6255
      %vm7210 = vcmp.lt.f32.partialorder %v7209, 0.0004427343
      %v7211 = vsel %vm7210, %v7208, %v7205
      %v7212 = vadd.f32 %v6257, 1.0
      %v7213 = vlog2.pop %v7212
      %v7214 = vmul.f32 %v7213, 0.6931472
      %v7215 = vmul.f32 -0.5, %v6257
      %v7216 = vadd.f32 %v7215, 1.0
      %v7217 = vmul.f32 %v7216, %v6257
      %v7218 = vand.u32 2147483647, %v6257
      %vm7219 = vcmp.lt.f32.partialorder %v7218, 0.0004427343
      %v7220 = vsel %vm7219, %v7217, %v7214
      %v7221 = vadd.f32 %v6259, 1.0
      %v7222 = vlog2.pop %v7221
      %v7223 = vmul.f32 %v7222, 0.6931472
      %v7224 = vmul.f32 -0.5, %v6259
      %v7225 = vadd.f32 %v7224, 1.0
      %v7226 = vmul.f32 %v7225, %v6259
      %v7227 = vand.u32 2147483647, %v6259
      %vm7228 = vcmp.lt.f32.partialorder %v7227, 0.0004427343
      %v7229 = vsel %vm7228, %v7226, %v7223
      %v7230 = vadd.f32 %v6261, 1.0
      %v7231 = vlog2.pop %v7230
      %v7232 = vmul.f32 %v7231, 0.6931472
      %v7233 = vmul.f32 -0.5, %v6261
      %v7234 = vadd.f32 %v7233, 1.0
      %v7235 = vmul.f32 %v7234, %v6261
      %v7236 = vand.u32 2147483647, %v6261
      %vm7237 = vcmp.lt.f32.partialorder %v7236, 0.0004427343
      %v7238 = vsel %vm7237, %v7235, %v7232
      %v7239 = vadd.f32 %v6263, 1.0
      %v7240 = vlog2.pop %v7239
      %v7241 = vmul.f32 %v7240, 0.6931472
      %v7242 = vmul.f32 -0.5, %v6263
      %v7243 = vadd.f32 %v7242, 1.0
      %v7244 = vmul.f32 %v7243, %v6263
      %v7245 = vand.u32 2147483647, %v6263
      %vm7246 = vcmp.lt.f32.partialorder %v7245, 0.0004427343
      %v7247 = vsel %vm7246, %v7244, %v7241
      %v7248 = vadd.f32 %v6265, 1.0
      %v7249 = vlog2.pop %v7248
      %v7250 = vmul.f32 %v7249, 0.6931472
      %v7251 = vmul.f32 -0.5, %v6265
      %v7252 = vadd.f32 %v7251, 1.0
      %v7253 = vmul.f32 %v7252, %v6265
      %v7254 = vand.u32 2147483647, %v6265
      %vm7255 = vcmp.lt.f32.partialorder %v7254, 0.0004427343
      %v7256 = vsel %vm7255, %v7253, %v7250
      %v7257 = vadd.f32 %v6267, 1.0
      %v7258 = vlog2.pop %v7257
      %v7259 = vmul.f32 %v7258, 0.6931472
      %v7260 = vmul.f32 -0.5, %v6267
      %v7261 = vadd.f32 %v7260, 1.0
      %v7262 = vmul.f32 %v7261, %v6267
      %v7263 = vand.u32 2147483647, %v6267
      %vm7264 = vcmp.lt.f32.partialorder %v7263, 0.0004427343
      %v7265 = vsel %vm7264, %v7262, %v7259
      %v7266 = vadd.f32 %v6269, 1.0
      %v7267 = vlog2.pop %v7266
      %v7268 = vmul.f32 %v7267, 0.6931472
      %v7269 = vmul.f32 -0.5, %v6269
      %v7270 = vadd.f32 %v7269, 1.0
      %v7271 = vmul.f32 %v7270, %v6269
      %v7272 = vand.u32 2147483647, %v6269
      %vm7273 = vcmp.lt.f32.partialorder %v7272, 0.0004427343
      %v7274 = vsel %vm7273, %v7271, %v7268
      %v7275 = vadd.f32 %v6271, 1.0
      %v7276 = vlog2.pop %v7275
      %v7277 = vmul.f32 %v7276, 0.6931472
      %v7278 = vmul.f32 -0.5, %v6271
      %v7279 = vadd.f32 %v7278, 1.0
      %v7280 = vmul.f32 %v7279, %v6271
      %v7281 = vand.u32 2147483647, %v6271
      %vm7282 = vcmp.lt.f32.partialorder %v7281, 0.0004427343
      %v7283 = vsel %vm7282, %v7280, %v7277
      %v7284 = vadd.f32 %v6273, 1.0
      %v7285 = vlog2.pop %v7284
      %v7286 = vmul.f32 %v7285, 0.6931472
      %v7287 = vmul.f32 -0.5, %v6273
      %v7288 = vadd.f32 %v7287, 1.0
      %v7289 = vmul.f32 %v7288, %v6273
      %v7290 = vand.u32 2147483647, %v6273
      %vm7291 = vcmp.lt.f32.partialorder %v7290, 0.0004427343
      %v7292 = vsel %vm7291, %v7289, %v7286
      %v7293 = vadd.f32 %v6275, 1.0
      %v7294 = vlog2.pop %v7293
      %v7295 = vmul.f32 %v7294, 0.6931472
      %v7296 = vmul.f32 -0.5, %v6275
      %v7297 = vadd.f32 %v7296, 1.0
      %v7298 = vmul.f32 %v7297, %v6275
      %v7299 = vand.u32 2147483647, %v6275
      %vm7300 = vcmp.lt.f32.partialorder %v7299, 0.0004427343
      %v7301 = vsel %vm7300, %v7298, %v7295
      %v7302 = vadd.f32 %v6277, 1.0
      %v7303 = vlog2.pop %v7302
      %v7304 = vmul.f32 %v7303, 0.6931472
      %v7305 = vmul.f32 -0.5, %v6277
      %v7306 = vadd.f32 %v7305, 1.0
      %v7307 = vmul.f32 %v7306, %v6277
      %v7308 = vand.u32 2147483647, %v6277
      %vm7309 = vcmp.lt.f32.partialorder %v7308, 0.0004427343
      %v7310 = vsel %vm7309, %v7307, %v7304
      %v7311 = vadd.f32 %v6279, 1.0
      %v7312 = vlog2.pop %v7311
      %v7313 = vmul.f32 %v7312, 0.6931472
      %v7314 = vmul.f32 -0.5, %v6279
      %v7315 = vadd.f32 %v7314, 1.0
      %v7316 = vmul.f32 %v7315, %v6279
      %v7317 = vand.u32 2147483647, %v6279
      %vm7318 = vcmp.lt.f32.partialorder %v7317, 0.0004427343
      %v7319 = vsel %vm7318, %v7316, %v7313
      %v7320 = vadd.f32 %v6281, 1.0
      %v7321 = vlog2.pop %v7320
      %v7322 = vmul.f32 %v7321, 0.6931472
      %v7323 = vmul.f32 -0.5, %v6281
      %v7324 = vadd.f32 %v7323, 1.0
      %v7325 = vmul.f32 %v7324, %v6281
      %v7326 = vand.u32 2147483647, %v6281
      %vm7327 = vcmp.lt.f32.partialorder %v7326, 0.0004427343
      %v7328 = vsel %vm7327, %v7325, %v7322
      %v7329 = vadd.f32 %v6283, 1.0
      %v7330 = vlog2.pop %v7329
      %v7331 = vmul.f32 %v7330, 0.6931472
      %v7332 = vmul.f32 -0.5, %v6283
      %v7333 = vadd.f32 %v7332, 1.0
      %v7334 = vmul.f32 %v7333, %v6283
      %v7335 = vand.u32 2147483647, %v6283
      %vm7336 = vcmp.lt.f32.partialorder %v7335, 0.0004427343
      %v7337 = vsel %vm7336, %v7334, %v7331
      %v7338 = vadd.f32 %v6285, 1.0
      %v7339 = vlog2.pop %v7338
      %v7340 = vmul.f32 %v7339, 0.6931472
      %v7341 = vmul.f32 -0.5, %v6285
      %v7342 = vadd.f32 %v7341, 1.0
      %v7343 = vmul.f32 %v7342, %v6285
      %v7344 = vand.u32 2147483647, %v6285
      %vm7345 = vcmp.lt.f32.partialorder %v7344, 0.0004427343
      %v7346 = vsel %vm7345, %v7343, %v7340
      %v7347 = vadd.f32 %v6287, 1.0
      %v7348 = vlog2.pop %v7347
      %v7349 = vmul.f32 %v7348, 0.6931472
      %v7350 = vmul.f32 -0.5, %v6287
      %v7351 = vadd.f32 %v7350, 1.0
      %v7352 = vmul.f32 %v7351, %v6287
      %v7353 = vand.u32 2147483647, %v6287
      %vm7354 = vcmp.lt.f32.partialorder %v7353, 0.0004427343
      %v7355 = vsel %vm7354, %v7352, %v7349
      %v7356 = vadd.f32 %v6289, 1.0
      %v7357 = vlog2.pop %v7356
      %v7358 = vmul.f32 %v7357, 0.6931472
      %v7359 = vmul.f32 -0.5, %v6289
      %v7360 = vadd.f32 %v7359, 1.0
      %v7361 = vmul.f32 %v7360, %v6289
      %v7362 = vand.u32 2147483647, %v6289
      %vm7363 = vcmp.lt.f32.partialorder %v7362, 0.0004427343
      %v7364 = vsel %vm7363, %v7361, %v7358
      %v7365 = vadd.f32 %v6291, 1.0
      %v7366 = vlog2.pop %v7365
      %v7367 = vmul.f32 %v7366, 0.6931472
      %v7368 = vmul.f32 -0.5, %v6291
      %v7369 = vadd.f32 %v7368, 1.0
      %v7370 = vmul.f32 %v7369, %v6291
      %v7371 = vand.u32 2147483647, %v6291
      %vm7372 = vcmp.lt.f32.partialorder %v7371, 0.0004427343
      %v7373 = vsel %vm7372, %v7370, %v7367
      %v7374 = vadd.f32 %v6293, 1.0
      %v7375 = vlog2.pop %v7374
      %v7376 = vmul.f32 %v7375, 0.6931472
      %v7377 = vmul.f32 -0.5, %v6293
      %v7378 = vadd.f32 %v7377, 1.0
      %v7379 = vmul.f32 %v7378, %v6293
      %v7380 = vand.u32 2147483647, %v6293
      %vm7381 = vcmp.lt.f32.partialorder %v7380, 0.0004427343
      %v7382 = vsel %vm7381, %v7379, %v7376
      %v7383 = vadd.f32 %v6295, 1.0
      %v7384 = vlog2.pop %v7383
      %v7385 = vmul.f32 %v7384, 0.6931472
      %v7386 = vmul.f32 -0.5, %v6295
      %v7387 = vadd.f32 %v7386, 1.0
      %v7388 = vmul.f32 %v7387, %v6295
      %v7389 = vand.u32 2147483647, %v6295
      %vm7390 = vcmp.lt.f32.partialorder %v7389, 0.0004427343
      %v7391 = vsel %vm7390, %v7388, %v7385
      %v7392 = vadd.f32 %v6297, 1.0
      %v7393 = vlog2.pop %v7392
      %v7394 = vmul.f32 %v7393, 0.6931472
      %v7395 = vmul.f32 -0.5, %v6297
      %v7396 = vadd.f32 %v7395, 1.0
      %v7397 = vmul.f32 %v7396, %v6297
      %v7398 = vand.u32 2147483647, %v6297
      %vm7399 = vcmp.lt.f32.partialorder %v7398, 0.0004427343
      %v7400 = vsel %vm7399, %v7397, %v7394
      %v7401 = vadd.f32 %v6299, 1.0
      %v7402 = vlog2.pop %v7401
      %v7403 = vmul.f32 %v7402, 0.6931472
      %v7404 = vmul.f32 -0.5, %v6299
      %v7405 = vadd.f32 %v7404, 1.0
      %v7406 = vmul.f32 %v7405, %v6299
      %v7407 = vand.u32 2147483647, %v6299
      %vm7408 = vcmp.lt.f32.partialorder %v7407, 0.0004427343
      %v7409 = vsel %vm7408, %v7406, %v7403
      %v7410 = vadd.f32 %v6301, 1.0
      %v7411 = vlog2.pop %v7410
      %v7412 = vmul.f32 %v7411, 0.6931472
      %v7413 = vmul.f32 -0.5, %v6301
      %v7414 = vadd.f32 %v7413, 1.0
      %v7415 = vmul.f32 %v7414, %v6301
      %v7416 = vand.u32 2147483647, %v6301
      %vm7417 = vcmp.lt.f32.partialorder %v7416, 0.0004427343
      %v7418 = vsel %vm7417, %v7415, %v7412
      %v7419 = vadd.f32 %v6303, 1.0
      %v7420 = vlog2.pop %v7419
      %v7421 = vmul.f32 %v7420, 0.6931472
      %v7422 = vmul.f32 -0.5, %v6303
      %v7423 = vadd.f32 %v7422, 1.0
      %v7424 = vmul.f32 %v7423, %v6303
      %v7425 = vand.u32 2147483647, %v6303
      %vm7426 = vcmp.lt.f32.partialorder %v7425, 0.0004427343
      %v7427 = vsel %vm7426, %v7424, %v7421
      %v7428 = vadd.f32 %v6305, 1.0
      %v7429 = vlog2.pop %v7428
      %v7430 = vmul.f32 %v7429, 0.6931472
      %v7431 = vmul.f32 -0.5, %v6305
      %v7432 = vadd.f32 %v7431, 1.0
      %v7433 = vmul.f32 %v7432, %v6305
      %v7434 = vand.u32 2147483647, %v6305
      %vm7435 = vcmp.lt.f32.partialorder %v7434, 0.0004427343
      %v7436 = vsel %vm7435, %v7433, %v7430
      %v7437 = vadd.f32 %v6307, 1.0
      %v7438 = vlog2.pop %v7437
      %v7439 = vmul.f32 %v7438, 0.6931472
      %v7440 = vmul.f32 -0.5, %v6307
      %v7441 = vadd.f32 %v7440, 1.0
      %v7442 = vmul.f32 %v7441, %v6307
      %v7443 = vand.u32 2147483647, %v6307
      %vm7444 = vcmp.lt.f32.partialorder %v7443, 0.0004427343
      %v7445 = vsel %vm7444, %v7442, %v7439
      %v7446 = vadd.f32 %v6309, 1.0
      %v7447 = vlog2.pop %v7446
      %v7448 = vmul.f32 %v7447, 0.6931472
      %v7449 = vmul.f32 -0.5, %v6309
      %v7450 = vadd.f32 %v7449, 1.0
      %v7451 = vmul.f32 %v7450, %v6309
      %v7452 = vand.u32 2147483647, %v6309
      %vm7453 = vcmp.lt.f32.partialorder %v7452, 0.0004427343
      %v7454 = vsel %vm7453, %v7451, %v7448
      %v7455 = vadd.f32 %v6311, 1.0
      %v7456 = vlog2.pop %v7455
      %v7457 = vmul.f32 %v7456, 0.6931472
      %v7458 = vmul.f32 -0.5, %v6311
      %v7459 = vadd.f32 %v7458, 1.0
      %v7460 = vmul.f32 %v7459, %v6311
      %v7461 = vand.u32 2147483647, %v6311
      %vm7462 = vcmp.lt.f32.partialorder %v7461, 0.0004427343
      %v7463 = vsel %vm7462, %v7460, %v7457
      %v7464 = vadd.f32 %v5416, %v6320
      %v7465 = vadd.f32 %v5417, %v6329
      %v7466 = vadd.f32 %v5418, %v6338
      %v7467 = vadd.f32 %v5419, %v6347
      %v7468 = vadd.f32 %v5420, %v6356
      %v7469 = vadd.f32 %v5421, %v6365
      %v7470 = vadd.f32 %v5422, %v6374
      %v7471 = vadd.f32 %v5423, %v6383
      %v7472 = vadd.f32 %v5424, %v6392
      %v7473 = vadd.f32 %v5425, %v6401
      %v7474 = vadd.f32 %v5426, %v6410
      %v7475 = vadd.f32 %v5427, %v6419
      %v7476 = vadd.f32 %v5428, %v6428
      %v7477 = vadd.f32 %v5429, %v6437
      %v7478 = vadd.f32 %v5430, %v6446
      %v7479 = vadd.f32 %v5431, %v6455
      %v7480 = vadd.f32 %v5432, %v6464
      %v7481 = vadd.f32 %v5433, %v6473
      %v7482 = vadd.f32 %v5434, %v6482
      %v7483 = vadd.f32 %v5435, %v6491
      %v7484 = vadd.f32 %v5436, %v6500
      %v7485 = vadd.f32 %v5437, %v6509
      %v7486 = vadd.f32 %v5438, %v6518
      %v7487 = vadd.f32 %v5439, %v6527
      %v7488 = vadd.f32 %v5440, %v6536
      %v7489 = vadd.f32 %v5441, %v6545
      %v7490 = vadd.f32 %v5442, %v6554
      %v7491 = vadd.f32 %v5443, %v6563
      %v7492 = vadd.f32 %v5444, %v6572
      %v7493 = vadd.f32 %v5445, %v6581
      %v7494 = vadd.f32 %v5446, %v6590
      %v7495 = vadd.f32 %v5447, %v6599
      %v7496 = vadd.f32 %v5448, %v6608
      %v7497 = vadd.f32 %v5449, %v6617
      %v7498 = vadd.f32 %v5450, %v6626
      %v7499 = vadd.f32 %v5451, %v6635
      %v7500 = vadd.f32 %v5452, %v6644
      %v7501 = vadd.f32 %v5453, %v6653
      %v7502 = vadd.f32 %v5454, %v6662
      %v7503 = vadd.f32 %v5455, %v6671
      %v7504 = vadd.f32 %v5456, %v6680
      %v7505 = vadd.f32 %v5457, %v6689
      %v7506 = vadd.f32 %v5458, %v6698
      %v7507 = vadd.f32 %v5459, %v6707
      %v7508 = vadd.f32 %v5460, %v6716
      %v7509 = vadd.f32 %v5461, %v6725
      %v7510 = vadd.f32 %v5462, %v6734
      %v7511 = vadd.f32 %v5463, %v6743
      %v7512 = vadd.f32 %v5464, %v6752
      %v7513 = vadd.f32 %v5465, %v6761
      %v7514 = vadd.f32 %v5466, %v6770
      %v7515 = vadd.f32 %v5467, %v6779
      %v7516 = vadd.f32 %v5468, %v6788
      %v7517 = vadd.f32 %v5469, %v6797
      %v7518 = vadd.f32 %v5470, %v6806
      %v7519 = vadd.f32 %v5471, %v6815
      %v7520 = vadd.f32 %v5472, %v6824
      %v7521 = vadd.f32 %v5473, %v6833
      %v7522 = vadd.f32 %v5474, %v6842
      %v7523 = vadd.f32 %v5475, %v6851
      %v7524 = vadd.f32 %v5476, %v6860
      %v7525 = vadd.f32 %v5477, %v6869
      %v7526 = vadd.f32 %v5478, %v6878
      %v7527 = vadd.f32 %v5479, %v6887
      %v7528 = vadd.f32 %v5480, %v6896
      %v7529 = vadd.f32 %v5481, %v6905
      %v7530 = vadd.f32 %v5482, %v6914
      %v7531 = vadd.f32 %v5483, %v6923
      %v7532 = vadd.f32 %v5484, %v6932
      %v7533 = vadd.f32 %v5485, %v6941
      %v7534 = vadd.f32 %v5486, %v6950
      %v7535 = vadd.f32 %v5487, %v6959
      %v7536 = vadd.f32 %v5488, %v6968
      %v7537 = vadd.f32 %v5489, %v6977
      %v7538 = vadd.f32 %v5490, %v6986
      %v7539 = vadd.f32 %v5491, %v6995
      %v7540 = vadd.f32 %v5492, %v7004
      %v7541 = vadd.f32 %v5493, %v7013
      %v7542 = vadd.f32 %v5494, %v7022
      %v7543 = vadd.f32 %v5495, %v7031
      %v7544 = vadd.f32 %v5496, %v7040
      %v7545 = vadd.f32 %v5497, %v7049
      %v7546 = vadd.f32 %v5498, %v7058
      %v7547 = vadd.f32 %v5499, %v7067
      %v7548 = vadd.f32 %v5500, %v7076
      %v7549 = vadd.f32 %v5501, %v7085
      %v7550 = vadd.f32 %v5502, %v7094
      %v7551 = vadd.f32 %v5503, %v7103
      %v7552 = vadd.f32 %v5504, %v7112
      %v7553 = vadd.f32 %v5505, %v7121
      %v7554 = vadd.f32 %v5506, %v7130
      %v7555 = vadd.f32 %v5507, %v7139
      %v7556 = vadd.f32 %v5508, %v7148
      %v7557 = vadd.f32 %v5509, %v7157
      %v7558 = vadd.f32 %v5510, %v7166
      %v7559 = vadd.f32 %v5511, %v7175
      %v7560 = vadd.f32 %v5512, %v7184
      %v7561 = vadd.f32 %v5513, %v7193
      %v7562 = vadd.f32 %v5514, %v7202
      %v7563 = vadd.f32 %v5515, %v7211
      %v7564 = vadd.f32 %v5516, %v7220
      %v7565 = vadd.f32 %v5517, %v7229
      %v7566 = vadd.f32 %v5518, %v7238
      %v7567 = vadd.f32 %v5519, %v7247
      %v7568 = vadd.f32 %v5520, %v7256
      %v7569 = vadd.f32 %v5521, %v7265
      %v7570 = vadd.f32 %v5522, %v7274
      %v7571 = vadd.f32 %v5523, %v7283
      %v7572 = vadd.f32 %v5524, %v7292
      %v7573 = vadd.f32 %v5525, %v7301
      %v7574 = vadd.f32 %v5526, %v7310
      %v7575 = vadd.f32 %v5527, %v7319
      %v7576 = vadd.f32 %v5528, %v7328
      %v7577 = vadd.f32 %v5529, %v7337
      %v7578 = vadd.f32 %v5530, %v7346
      %v7579 = vadd.f32 %v5531, %v7355
      %v7580 = vadd.f32 %v5532, %v7364
      %v7581 = vadd.f32 %v5533, %v7373
      %v7582 = vadd.f32 %v5534, %v7382
      %v7583 = vadd.f32 %v5535, %v7391
      %v7584 = vadd.f32 %v5536, %v7400
      %v7585 = vadd.f32 %v5537, %v7409
      %v7586 = vadd.f32 %v5538, %v7418
      %v7587 = vadd.f32 %v5539, %v7427
      %v7588 = vadd.f32 %v5540, %v7436
      %v7589 = vadd.f32 %v5541, %v7445
      %v7590 = vadd.f32 %v5542, %v7454
      %v7591 = vadd.f32 %v5543, %v7463
      %v7592 = vsel %vm5544, %v5672, %v7464
      %v7593 = vsel %vm5545, %v5673, %v7465
      %v7594 = vsel %vm5546, %v5674, %v7466
      %v7595 = vsel %vm5547, %v5675, %v7467
      %v7596 = vsel %vm5548, %v5676, %v7468
      %v7597 = vsel %vm5549, %v5677, %v7469
      %v7598 = vsel %vm5550, %v5678, %v7470
      %v7599 = vsel %vm5551, %v5679, %v7471
      %v7600 = vsel %vm5552, %v5680, %v7472
      %v7601 = vsel %vm5553, %v5681, %v7473
      %v7602 = vsel %vm5554, %v5682, %v7474
      %v7603 = vsel %vm5555, %v5683, %v7475
      %v7604 = vsel %vm5556, %v5684, %v7476
      %v7605 = vsel %vm5557, %v5685, %v7477
      %v7606 = vsel %vm5558, %v5686, %v7478
      %v7607 = vsel %vm5559, %v5687, %v7479
      %v7608 = vsel %vm5560, %v5688, %v7480
      %v7609 = vsel %vm5561, %v5689, %v7481
      %v7610 = vsel %vm5562, %v5690, %v7482
      %v7611 = vsel %vm5563, %v5691, %v7483
      %v7612 = vsel %vm5564, %v5692, %v7484
      %v7613 = vsel %vm5565, %v5693, %v7485
      %v7614 = vsel %vm5566, %v5694, %v7486
      %v7615 = vsel %vm5567, %v5695, %v7487
      %v7616 = vsel %vm5568, %v5696, %v7488
      %v7617 = vsel %vm5569, %v5697, %v7489
      %v7618 = vsel %vm5570, %v5698, %v7490
      %v7619 = vsel %vm5571, %v5699, %v7491
      %v7620 = vsel %vm5572, %v5700, %v7492
      %v7621 = vsel %vm5573, %v5701, %v7493
      %v7622 = vsel %vm5574, %v5702, %v7494
      %v7623 = vsel %vm5575, %v5703, %v7495
      %v7624 = vsel %vm5576, %v5704, %v7496
      %v7625 = vsel %vm5577, %v5705, %v7497
      %v7626 = vsel %vm5578, %v5706, %v7498
      %v7627 = vsel %vm5579, %v5707, %v7499
      %v7628 = vsel %vm5580, %v5708, %v7500
      %v7629 = vsel %vm5581, %v5709, %v7501
      %v7630 = vsel %vm5582, %v5710, %v7502
      %v7631 = vsel %vm5583, %v5711, %v7503
      %v7632 = vsel %vm5584, %v5712, %v7504
      %v7633 = vsel %vm5585, %v5713, %v7505
      %v7634 = vsel %vm5586, %v5714, %v7506
      %v7635 = vsel %vm5587, %v5715, %v7507
      %v7636 = vsel %vm5588, %v5716, %v7508
      %v7637 = vsel %vm5589, %v5717, %v7509
      %v7638 = vsel %vm5590, %v5718, %v7510
      %v7639 = vsel %vm5591, %v5719, %v7511
      %v7640 = vsel %vm5592, %v5720, %v7512
      %v7641 = vsel %vm5593, %v5721, %v7513
      %v7642 = vsel %vm5594, %v5722, %v7514
      %v7643 = vsel %vm5595, %v5723, %v7515
      %v7644 = vsel %vm5596, %v5724, %v7516
      %v7645 = vsel %vm5597, %v5725, %v7517
      %v7646 = vsel %vm5598, %v5726, %v7518
      %v7647 = vsel %vm5599, %v5727, %v7519
      %v7648 = vsel %vm5600, %v5728, %v7520
      %v7649 = vsel %vm5601, %v5729, %v7521
      %v7650 = vsel %vm5602, %v5730, %v7522
      %v7651 = vsel %vm5603, %v5731, %v7523
      %v7652 = vsel %vm5604, %v5732, %v7524
      %v7653 = vsel %vm5605, %v5733, %v7525
      %v7654 = vsel %vm5606, %v5734, %v7526
      %v7655 = vsel %vm5607, %v5735, %v7527
      %v7656 = vsel %vm5608, %v5736, %v7528
      %v7657 = vsel %vm5609, %v5737, %v7529
      %v7658 = vsel %vm5610, %v5738, %v7530
      %v7659 = vsel %vm5611, %v5739, %v7531
      %v7660 = vsel %vm5612, %v5740, %v7532
      %v7661 = vsel %vm5613, %v5741, %v7533
      %v7662 = vsel %vm5614, %v5742, %v7534
      %v7663 = vsel %vm5615, %v5743, %v7535
      %v7664 = vsel %vm5616, %v5744, %v7536
      %v7665 = vsel %vm5617, %v5745, %v7537
      %v7666 = vsel %vm5618, %v5746, %v7538
      %v7667 = vsel %vm5619, %v5747, %v7539
      %v7668 = vsel %vm5620, %v5748, %v7540
      %v7669 = vsel %vm5621, %v5749, %v7541
      %v7670 = vsel %vm5622, %v5750, %v7542
      %v7671 = vsel %vm5623, %v5751, %v7543
      %v7672 = vsel %vm5624, %v5752, %v7544
      %v7673 = vsel %vm5625, %v5753, %v7545
      %v7674 = vsel %vm5626, %v5754, %v7546
      %v7675 = vsel %vm5627, %v5755, %v7547
      %v7676 = vsel %vm5628, %v5756, %v7548
      %v7677 = vsel %vm5629, %v5757, %v7549
      %v7678 = vsel %vm5630, %v5758, %v7550
      %v7679 = vsel %vm5631, %v5759, %v7551
      %v7680 = vsel %vm5632, %v5760, %v7552
      %v7681 = vsel %vm5633, %v5761, %v7553
      %v7682 = vsel %vm5634, %v5762, %v7554
      %v7683 = vsel %vm5635, %v5763, %v7555
      %v7684 = vsel %vm5636, %v5764, %v7556
      %v7685 = vsel %vm5637, %v5765, %v7557
      %v7686 = vsel %vm5638, %v5766, %v7558
      %v7687 = vsel %vm5639, %v5767, %v7559
      %v7688 = vsel %vm5640, %v5768, %v7560
      %v7689 = vsel %vm5641, %v5769, %v7561
      %v7690 = vsel %vm5642, %v5770, %v7562
      %v7691 = vsel %vm5643, %v5771, %v7563
      %v7692 = vsel %vm5644, %v5772, %v7564
      %v7693 = vsel %vm5645, %v5773, %v7565
      %v7694 = vsel %vm5646, %v5774, %v7566
      %v7695 = vsel %vm5647, %v5775, %v7567
      %v7696 = vsel %vm5648, %v5776, %v7568
      %v7697 = vsel %vm5649, %v5777, %v7569
      %v7698 = vsel %vm5650, %v5778, %v7570
      %v7699 = vsel %vm5651, %v5779, %v7571
      %v7700 = vsel %vm5652, %v5780, %v7572
      %v7701 = vsel %vm5653, %v5781, %v7573
      %v7702 = vsel %vm5654, %v5782, %v7574
      %v7703 = vsel %vm5655, %v5783, %v7575
      %v7704 = vsel %vm5656, %v5784, %v7576
      %v7705 = vsel %vm5657, %v5785, %v7577
      %v7706 = vsel %vm5658, %v5786, %v7578
      %v7707 = vsel %vm5659, %v5787, %v7579
      %v7708 = vsel %vm5660, %v5788, %v7580
      %v7709 = vsel %vm5661, %v5789, %v7581
      %v7710 = vsel %vm5662, %v5790, %v7582
      %v7711 = vsel %vm5663, %v5791, %v7583
      %v7712 = vsel %vm5664, %v5792, %v7584
      %v7713 = vsel %vm5665, %v5793, %v7585
      %v7714 = vsel %vm5666, %v5794, %v7586
      %v7715 = vsel %vm5667, %v5795, %v7587
      %v7716 = vsel %vm5668, %v5796, %v7588
      %v7717 = vsel %vm5669, %v5797, %v7589
      %v7718 = vsel %vm5670, %v5798, %v7590
      %v7719 = vsel %vm5671, %v5799, %v7591
      %7720 = vst [vmem:[%s388] sm:$0xff] %v7592
      %7721 = vst [vmem:[%s388 + $0x8] sm:$0xff] %v7593
      %7722 = vst [vmem:[%s388 + $0x10] sm:$0xff] %v7594
      %7723 = vst [vmem:[%s388 + $0x18] sm:$0xff] %v7595
      %7724 = vst [vmem:[%s388 + $0x20] sm:$0xff] %v7596
      %7725 = vst [vmem:[%s388 + $0x28] sm:$0xff] %v7597
      %7726 = vst [vmem:[%s388 + $0x30] sm:$0xff] %v7598
      %7727 = vst [vmem:[%s388 + $0x38] sm:$0xff] %v7599
      %7728 = vst [vmem:[%s388 + $0x40] sm:$0xff] %v7600
      %7729 = vst [vmem:[%s388 + $0x48] sm:$0xff] %v7601
      %7730 = vst [vmem:[%s388 + $0x50] sm:$0xff] %v7602
      %7731 = vst [vmem:[%s388 + $0x58] sm:$0xff] %v7603
      %7732 = vst [vmem:[%s388 + $0x60] sm:$0xff] %v7604
      %7733 = vst [vmem:[%s388 + $0x68] sm:$0xff] %v7605
      %7734 = vst [vmem:[%s388 + $0x70] sm:$0xff] %v7606
      %7735 = vst [vmem:[%s388 + $0x78] sm:$0xff] %v7607
      %7736 = vst [vmem:[%s388 + $0x80] sm:$0xff] %v7608
      %7737 = vst [vmem:[%s388 + $0x88] sm:$0xff] %v7609
      %7738 = vst [vmem:[%s388 + $0x90] sm:$0xff] %v7610
      %7739 = vst [vmem:[%s388 + $0x98] sm:$0xff] %v7611
      %7740 = vst [vmem:[%s388 + $0xa0] sm:$0xff] %v7612
      %7741 = vst [vmem:[%s388 + $0xa8] sm:$0xff] %v7613
      %7742 = vst [vmem:[%s388 + $0xb0] sm:$0xff] %v7614
      %7743 = vst [vmem:[%s388 + $0xb8] sm:$0xff] %v7615
      %7744 = vst [vmem:[%s388 + $0xc0] sm:$0xff] %v7616
      %7745 = vst [vmem:[%s388 + $0xc8] sm:$0xff] %v7617
      %7746 = vst [vmem:[%s388 + $0xd0] sm:$0xff] %v7618
      %7747 = vst [vmem:[%s388 + $0xd8] sm:$0xff] %v7619
      %7748 = vst [vmem:[%s388 + $0xe0] sm:$0xff] %v7620
      %7749 = vst [vmem:[%s388 + $0xe8] sm:$0xff] %v7621
      %7750 = vst [vmem:[%s388 + $0xf0] sm:$0xff] %v7622
      %7751 = vst [vmem:[%s388 + $0xf8] sm:$0xff] %v7623
      %7752 = vst [vmem:[%s388 + $0x100] sm:$0xff] %v7624
      %7753 = vst [vmem:[%s388 + $0x108] sm:$0xff] %v7625
      %7754 = vst [vmem:[%s388 + $0x110] sm:$0xff] %v7626
      %7755 = vst [vmem:[%s388 + $0x118] sm:$0xff] %v7627
      %7756 = vst [vmem:[%s388 + $0x120] sm:$0xff] %v7628
      %7757 = vst [vmem:[%s388 + $0x128] sm:$0xff] %v7629
      %7758 = vst [vmem:[%s388 + $0x130] sm:$0xff] %v7630
      %7759 = vst [vmem:[%s388 + $0x138] sm:$0xff] %v7631
      %7760 = vst [vmem:[%s388 + $0x140] sm:$0xff] %v7632
      %7761 = vst [vmem:[%s388 + $0x148] sm:$0xff] %v7633
      %7762 = vst [vmem:[%s388 + $0x150] sm:$0xff] %v7634
      %7763 = vst [vmem:[%s388 + $0x158] sm:$0xff] %v7635
      %7764 = vst [vmem:[%s388 + $0x160] sm:$0xff] %v7636
      %7765 = vst [vmem:[%s388 + $0x168] sm:$0xff] %v7637
      %7766 = vst [vmem:[%s388 + $0x170] sm:$0xff] %v7638
      %7767 = vst [vmem:[%s388 + $0x178] sm:$0xff] %v7639
      %7768 = vst [vmem:[%s388 + $0x180] sm:$0xff] %v7640
      %7769 = vst [vmem:[%s388 + $0x188] sm:$0xff] %v7641
      %7770 = vst [vmem:[%s388 + $0x190] sm:$0xff] %v7642
      %7771 = vst [vmem:[%s388 + $0x198] sm:$0xff] %v7643
      %7772 = vst [vmem:[%s388 + $0x1a0] sm:$0xff] %v7644
      %7773 = vst [vmem:[%s388 + $0x1a8] sm:$0xff] %v7645
      %7774 = vst [vmem:[%s388 + $0x1b0] sm:$0xff] %v7646
      %7775 = vst [vmem:[%s388 + $0x1b8] sm:$0xff] %v7647
      %7776 = vst [vmem:[%s388 + $0x1c0] sm:$0xff] %v7648
      %7777 = vst [vmem:[%s388 + $0x1c8] sm:$0xff] %v7649
      %7778 = vst [vmem:[%s388 + $0x1d0] sm:$0xff] %v7650
      %7779 = vst [vmem:[%s388 + $0x1d8] sm:$0xff] %v7651
      %7780 = vst [vmem:[%s388 + $0x1e0] sm:$0xff] %v7652
      %7781 = vst [vmem:[%s388 + $0x1e8] sm:$0xff] %v7653
      %7782 = vst [vmem:[%s388 + $0x1f0] sm:$0xff] %v7654
      %7783 = vst [vmem:[%s388 + $0x1f8] sm:$0xff] %v7655
      %7784 = vst [vmem:[%s388 + $0x200] sm:$0xff] %v7656
      %7785 = vst [vmem:[%s388 + $0x208] sm:$0xff] %v7657
      %7786 = vst [vmem:[%s388 + $0x210] sm:$0xff] %v7658
      %7787 = vst [vmem:[%s388 + $0x218] sm:$0xff] %v7659
      %7788 = vst [vmem:[%s388 + $0x220] sm:$0xff] %v7660
      %7789 = vst [vmem:[%s388 + $0x228] sm:$0xff] %v7661
      %7790 = vst [vmem:[%s388 + $0x230] sm:$0xff] %v7662
      %7791 = vst [vmem:[%s388 + $0x238] sm:$0xff] %v7663
      %7792 = vst [vmem:[%s388 + $0x240] sm:$0xff] %v7664
      %7793 = vst [vmem:[%s388 + $0x248] sm:$0xff] %v7665
      %7794 = vst [vmem:[%s388 + $0x250] sm:$0xff] %v7666
      %7795 = vst [vmem:[%s388 + $0x258] sm:$0xff] %v7667
      %7796 = vst [vmem:[%s388 + $0x260] sm:$0xff] %v7668
      %7797 = vst [vmem:[%s388 + $0x268] sm:$0xff] %v7669
      %7798 = vst [vmem:[%s388 + $0x270] sm:$0xff] %v7670
      %7799 = vst [vmem:[%s388 + $0x278] sm:$0xff] %v7671
      %7800 = vst [vmem:[%s388 + $0x280] sm:$0xff] %v7672
      %7801 = vst [vmem:[%s388 + $0x288] sm:$0xff] %v7673
      %7802 = vst [vmem:[%s388 + $0x290] sm:$0xff] %v7674
      %7803 = vst [vmem:[%s388 + $0x298] sm:$0xff] %v7675
      %7804 = vst [vmem:[%s388 + $0x2a0] sm:$0xff] %v7676
      %7805 = vst [vmem:[%s388 + $0x2a8] sm:$0xff] %v7677
      %7806 = vst [vmem:[%s388 + $0x2b0] sm:$0xff] %v7678
      %7807 = vst [vmem:[%s388 + $0x2b8] sm:$0xff] %v7679
      %7808 = vst [vmem:[%s388 + $0x2c0] sm:$0xff] %v7680
      %7809 = vst [vmem:[%s388 + $0x2c8] sm:$0xff] %v7681
      %7810 = vst [vmem:[%s388 + $0x2d0] sm:$0xff] %v7682
      %7811 = vst [vmem:[%s388 + $0x2d8] sm:$0xff] %v7683
      %7812 = vst [vmem:[%s388 + $0x2e0] sm:$0xff] %v7684
      %7813 = vst [vmem:[%s388 + $0x2e8] sm:$0xff] %v7685
      %7814 = vst [vmem:[%s388 + $0x2f0] sm:$0xff] %v7686
      %7815 = vst [vmem:[%s388 + $0x2f8] sm:$0xff] %v7687
      %7816 = vst [vmem:[%s388 + $0x300] sm:$0xff] %v7688
      %7817 = vst [vmem:[%s388 + $0x308] sm:$0xff] %v7689
      %7818 = vst [vmem:[%s388 + $0x310] sm:$0xff] %v7690
      %7819 = vst [vmem:[%s388 + $0x318] sm:$0xff] %v7691
      %7820 = vst [vmem:[%s388 + $0x320] sm:$0xff] %v7692
      %7821 = vst [vmem:[%s388 + $0x328] sm:$0xff] %v7693
      %7822 = vst [vmem:[%s388 + $0x330] sm:$0xff] %v7694
      %7823 = vst [vmem:[%s388 + $0x338] sm:$0xff] %v7695
      %7824 = vst [vmem:[%s388 + $0x340] sm:$0xff] %v7696
      %7825 = vst [vmem:[%s388 + $0x348] sm:$0xff] %v7697
      %7826 = vst [vmem:[%s388 + $0x350] sm:$0xff] %v7698
      %7827 = vst [vmem:[%s388 + $0x358] sm:$0xff] %v7699
      %7828 = vst [vmem:[%s388 + $0x360] sm:$0xff] %v7700
      %7829 = vst [vmem:[%s388 + $0x368] sm:$0xff] %v7701
      %7830 = vst [vmem:[%s388 + $0x370] sm:$0xff] %v7702
      %7831 = vst [vmem:[%s388 + $0x378] sm:$0xff] %v7703
      %7832 = vst [vmem:[%s388 + $0x380] sm:$0xff] %v7704
      %7833 = vst [vmem:[%s388 + $0x388] sm:$0xff] %v7705
      %7834 = vst [vmem:[%s388 + $0x390] sm:$0xff] %v7706
      %7835 = vst [vmem:[%s388 + $0x398] sm:$0xff] %v7707
      %7836 = vst [vmem:[%s388 + $0x3a0] sm:$0xff] %v7708
      %7837 = vst [vmem:[%s388 + $0x3a8] sm:$0xff] %v7709
      %7838 = vst [vmem:[%s388 + $0x3b0] sm:$0xff] %v7710
      %7839 = vst [vmem:[%s388 + $0x3b8] sm:$0xff] %v7711
      %7840 = vst [vmem:[%s388 + $0x3c0] sm:$0xff] %v7712
      %7841 = vst [vmem:[%s388 + $0x3c8] sm:$0xff] %v7713
      %7842 = vst [vmem:[%s388 + $0x3d0] sm:$0xff] %v7714
      %7843 = vst [vmem:[%s388 + $0x3d8] sm:$0xff] %v7715
      %7844 = vst [vmem:[%s388 + $0x3e0] sm:$0xff] %v7716
      %7845 = vst [vmem:[%s388 + $0x3e8] sm:$0xff] %v7717
      %7846 = vst [vmem:[%s388 + $0x3f0] sm:$0xff] %v7718
      %7847 = vst [vmem:[%s388 + $0x3f8] sm:$0xff] %v7719
      %s7848 = smul.u32 32, %s21
      %p7849 = scmp.lt.s32.totalorder %s7848, 63
      %s7850 = scalar_select %p7849, %s7848, 63
      %s7851 = smul.addr %s7850, 4
      %s7852 = smul.addr %s7851, 8
      %s7853 = scalar_lea.vmem %s10, %s7852
      // Predicated region
      $region61: #{conditional_generator_forward.1} parent=59 // pred_check
        %p7854 = pneg %p259
      $region62: #{conditional_generator_forward.1} parent=59 // pred_check_branch
        %7856 = sbr.rel (%p7854) target = $region64
      $region63: #{conditional_generator_forward.1} parent=59 // pred_region
        %s7857 = smul.u32 32, %s21
      $region64: #{conditional_generator_forward.1} parent=59 // pred_fallthru
        _
    $region60: #{conditional_generator_forward.1} parent=5 // pred_fallthru
      _
    %p7858 = scmp.le.s32.totalorder 2, %s16
    // Predicated region
    $region65: #{conditional_generator_forward.1} parent=5 // pred_check
      %p7859 = pneg %p7858
    $region66: #{conditional_generator_forward.1} parent=5 // pred_check_branch
      %7861 = sbr.rel (%p7859) target = $region68
    $region67: #{conditional_generator_forward.1} parent=5 // pred_region
      %s7862 = ssub.s32 %s16, 2
      // Predicated region
      $region69: #{conditional_generator_forward.1} parent=67 // pred_check
        %p7863 = pneg %p265
      $region70: #{conditional_generator_forward.1} parent=67 // pred_check_branch
        %7865 = sbr.rel (%p7863) target = $region72
      $region71: #{conditional_generator_forward.1} parent=67 // pred_region
        %s7866 = smul.u32 32, %s22
        %p7867 = scmp.lt.s32.totalorder %s7866, 63
        %s7868 = scalar_select %p7867, %s7866, 63
        %s7869 = smul.addr %s7868, 4
        %s7870 = smul.addr %s7869, 8
        %s7871 = scalar_lea.vmem %s10, %s7870
      $region72: #{conditional_generator_forward.1} parent=67 // pred_fallthru
        _
    $region68: #{conditional_generator_forward.1} parent=5 // pred_fallthru
      _
  $region6: #{conditional_generator_forward.1} parent=0 // loop_footer
    %s20 = sadd.s32 1, %s16
  $region7: #{conditional_generator_forward.1} parent=0 // loop_footer_branch
    %15 = sbr.rel target = $region3
  $region8: #{conditional_generator_forward.1} parent=0 // loop_exit
    _

</llo_original>
